<compile_context>
chip_gen: v6e
topology: v6e:2x2x1
jax: 0.10.0
libtpu: 0.0.40
codegen_flags: <defaults>
</compile_context>

<pallas_src>
import functools

import numpy as np
import jax
import jax.numpy as jnp
from jax.experimental import pallas as pl
from jax.experimental.pallas import tpu as pltpu


# Per-layer geometry: (H, W, Cin, Cout, activation, mode)
#   mode: "pool"  -> 2x2 max-pool then re-pad for the next conv
#         "up"    -> nearest-2x upsample then re-pad for the next conv
#         "final" -> nearest-2x upsample to the flat 16x16 output image
LAYERS = (
    (16, 16, 1, 8, "relu", "pool"),
    (8, 8, 8, 16, "relu", "pool"),
    (4, 4, 16, 32, "relu", "pool"),
    (2, 2, 32, 16, "relu", "up"),
    (4, 4, 16, 8, "relu", "up"),
    (8, 8, 8, 1, "sigmoid", "final"),
)
IMG = 16
P1 = (IMG + 2) * (IMG + 2)          # padded-flat length of the network input (324)


# ----------------------------------------------------------------------------
# In-kernel building blocks (all static slices / 2-D matmuls / elementwise ops)
# ----------------------------------------------------------------------------
def _conv_im2col(xp, w_ref, b_ref, patch_ref, H, W, Cin, act):
    """3x3 'same' conv on a padded-flat activation.

    xp        : ((H+2)*(W+2), Cin) value, zero padding ring included.
    w_ref     : (9*Cin, Cout) packed im2col weight slab.
    b_ref     : (1, Cout) bias.
    patch_ref : VMEM scratch used as the im2col patch matrix.

    Returns (M, Cout) with M = H*(W+2)-2; row q = y*(W+2)+x. Rows with x >= W
    are "don't care" values that later stages never select.
    """
    Wp = W + 2
    M = H * Wp - 2
    t = 0
    for dy in range(3):
        for dx in range(3):
            s = dy * Wp + dx
            patch_ref[0:M, t * Cin:(t + 1) * Cin] = xp[s:s + M, :]
            t += 1
    patches = patch_ref[0:M, 0:9 * Cin]                       # (M, 9*Cin)
    z = jnp.dot(patches, w_ref[...], preferred_element_type=jnp.float32)
    z = z + b_ref[...]
    if act == "relu":
        return jnp.maximum(z, 0.0)
    return 1.0 / (1.0 + jnp.exp(-z))                          # sigmoid (EUP exp)


def _pool_2x2_vm(z, H, W):
    """2x2 window maxima of a padded-flat conv output via two shifted maxima.

    vm[q] = max over the 2x2 window whose top-left corner is padded-flat
    position q; the following constant selection matmul picks the rows
    q = 2i*(W+2)+2j and re-pads them into the next layer's layout.
    """
    Wp = W + 2
    M = H * Wp - 2
    hm = jnp.maximum(z[0:M - 1, :], z[1:M, :])                # horizontal pair max
    vm = jnp.maximum(hm[0:M - 1 - Wp, :], hm[Wp:M - 1, :])    # + vertical pair max
    return vm


def _fused_autoencoder_kernel(x_ref, *refs):
    # refs layout: w1..w6, b1..b6, s1..s6, o_ref, patch_ref (VMEM scratch)
    w_refs = refs[0:6]
    b_refs = refs[6:12]
    s_refs = refs[12:18]
    o_ref = refs[18]
    patch_ref = refs[19]

    xp = x_ref[0]                                             # (324, 1) padded-flat input
    for l, (H, W, Cin, Cout, act, mode) in enumerate(LAYERS):
        z = _conv_im2col(xp, w_refs[l], b_refs[l], patch_ref, H, W, Cin, act)
        src = _pool_2x2_vm(z, H, W) if mode == "pool" else z
        # Constant 0/1 matmul: decimate (pool) or duplicate (upsample) the
        # valid rows and scatter them into the next padded-flat layout
        # (or the final flat 16x16 image).
        xp = jnp.dot(s_refs[l][...], src, preferred_element_type=jnp.float32)

    o_ref[0] = xp                                             # (256, 1)


# ----------------------------------------------------------------------------
# Constant 0/1 selection matrices (built once on the host)
# ----------------------------------------------------------------------------
def _pool_select(H, W):
    """(P_next, vm_len): pick the 2x2-pool results and re-pad for the next conv."""
    Wp = W + 2
    vm_len = H * Wp - 3 - Wp
    Hn, Wn = H // 2, W // 2
    Pn = (Hn + 2) * (Wn + 2)
    S = np.zeros((Pn, vm_len), np.float32)
    for i in range(Hn):
        for j in range(Wn):
            S[(i + 1) * (Wn + 2) + (j + 1), 2 * i * Wp + 2 * j] = 1.0
    return S


def _upsample_select(H, W, pad_out):
    """(P_next, M): nearest-2x upsample (+ re-pad unless it is the final layer)."""
    Wp = W + 2
    M = H * Wp - 2
    Hn, Wn = 2 * H, 2 * W
    if pad_out:
        Wt, Pt, off = Wn + 2, (Hn + 2) * (Wn + 2), (Wn + 2) + 1
    else:
        Wt, Pt, off = Wn, Hn * Wn, 0
    S = np.zeros((Pt, M), np.float32)
    for i in range(H):
        for j in range(W):
            src = i * Wp + j
            for di in range(2):
                for dj in range(2):
                    S[off + (2 * i + di) * Wt + (2 * j + dj), src] = 1.0
    return S


# ----------------------------------------------------------------------------
# Parameters (deterministic, synthetic; PyTorch layouts converted + packed)
# ----------------------------------------------------------------------------
def init_params(key):
    ks = iter(jax.random.split(key, 16))

    def conv2d_w(cout, cin):            # PyTorch Conv2d layout (O, I, kH, kW)
        return 0.1 * jax.random.normal(next(ks), (cout, cin, 3, 3), jnp.float32)

    def convt2d_w(cin, cout):           # PyTorch ConvTranspose2d layout (I, O, kH, kW)
        return 0.1 * jax.random.normal(next(ks), (cin, cout, 3, 3), jnp.float32)

    def bias(c):
        return 0.01 * jax.random.normal(next(ks), (c,), jnp.float32)

    def conv_to_hwio(w_oihw):
        return jnp.transpose(w_oihw, (2, 3, 1, 0))            # -> (kH, kW, I, O)

    def convt_to_hwio(w_iohw):
        # ConvTranspose2d(stride=1, padding=1, k=3) == Conv2d with spatially
        # flipped kernel and swapped in/out channels, padding=1.
        return jnp.transpose(jnp.flip(w_iohw, axis=(2, 3)), (2, 3, 0, 1))

    hwio = [
        conv_to_hwio(conv2d_w(8, 1)),
        conv_to_hwio(conv2d_w(16, 8)),
        conv_to_hwio(conv2d_w(32, 16)),
        convt_to_hwio(convt2d_w(32, 16)),
        convt_to_hwio(convt2d_w(16, 8)),
        convt_to_hwio(convt2d_w(8, 1)),
    ]
    biases = [bias(8), bias(16), bias(32), bias(16), bias(8), bias(1)]

    selects = []
    for (H, W, _, _, _, mode) in LAYERS:
        if mode == "pool":
            selects.append(jnp.asarray(_pool_select(H, W)))
        else:
            selects.append(jnp.asarray(_upsample_select(H, W, pad_out=(mode == "up"))))

    return {
        "hwio": hwio,                                          # for the pure-JAX reference
        "biases": biases,
        "w_slabs": [w.reshape(-1, w.shape[-1]) for w in hwio], # dense (9*Cin, Cout) slabs
        "b_rows": [b.reshape(1, -1) for b in biases],
        "selects": selects,                                    # constant 0/1 pool/upsample maps
        # nn.Linear(2048, 1) exists in __init__ but forward() never uses it.
        "dense_w": 0.1 * jax.random.normal(next(ks), (1, 2048), jnp.float32),
        "dense_b": jnp.zeros((1,), jnp.float32),
    }


# ----------------------------------------------------------------------------
# Forward pass (matches Autoencoder.forward = decode(encode(x)))
# ----------------------------------------------------------------------------
def autoencoder_forward(x_nchw, params):
    N = x_nchw.shape[0]
    x = jnp.transpose(x_nchw, (0, 2, 3, 1))                    # NCHW -> NHWC
    xpf = jnp.pad(x, ((0, 0), (1, 1), (1, 1), (0, 0))).reshape(N, P1, 1)

    w_slabs, b_rows, selects = params["w_slabs"], params["b_rows"], params["selects"]

    def full_spec(a):
        nd = a.ndim
        return pl.BlockSpec(a.shape, lambda n, _nd=nd: (0,) * _nd)

    in_specs = [pl.BlockSpec((1, P1, 1), lambda n: (n, 0, 0))]
    in_specs += [full_spec(w) for w in w_slabs]
    in_specs += [full_spec(b) for b in b_rows]
    in_specs += [full_spec(s) for s in selects]

    out_flat = pl.pallas_call(
        _fused_autoencoder_kernel,
        out_shape=jax.ShapeDtypeStruct((N, IMG * IMG, 1), jnp.float32),
        grid=(N,),
        in_specs=in_specs,
        out_specs=pl.BlockSpec((1, IMG * IMG, 1), lambda n: (n, 0, 0)),
        scratch_shapes=[pltpu.VMEM((288, 288), jnp.float32)],  # shared im2col patch matrix
        compiler_params=pltpu.CompilerParams(dimension_semantics=("parallel",)),
    )(xpf, *w_slabs, *b_rows, *selects)

    return out_flat.reshape(N, IMG, IMG)[:, None, :, :]        # NHWC-flat -> NCHW (N,1,16,16)


# ----------------------------------------------------------------------------
# Pure-JAX reference (same converted weights) for a loose numerical check
# ----------------------------------------------------------------------------
def reference_forward(x_nchw, params):
    x = jnp.transpose(x_nchw, (0, 2, 3, 1))

    def conv(x, w, b):
        y = jax.lax.conv_general_dilated(
            x, w, window_strides=(1, 1), padding=((1, 1), (1, 1)),
            dimension_numbers=("NHWC", "HWIO", "NHWC"),
            precision=jax.lax.Precision.HIGHEST)
        return y + b.reshape(1, 1, 1, -1)

    def pool(x):
        N, H, W, C = x.shape
        return jnp.max(x.reshape(N, H // 2, 2, W // 2, 2, C), axis=(2, 4))

    def up(x):
        return jnp.repeat(jnp.repeat(x, 2, axis=1), 2, axis=2)

    hw, bs = params["hwio"], params["biases"]
    x = pool(jax.nn.relu(conv(x, hw[0], bs[0])))
    x = pool(jax.nn.relu(conv(x, hw[1], bs[1])))
    x = pool(jax.nn.relu(conv(x, hw[2], bs[2])))
    x = up(jax.nn.relu(conv(x, hw[3], bs[3])))
    x = up(jax.nn.relu(conv(x, hw[4], bs[4])))
    x = up(jax.nn.sigmoid(conv(x, hw[5], bs[5])))
    return jnp.transpose(x, (0, 3, 1, 2))


if __name__ == "__main__":
    key = jax.random.PRNGKey(0)
    pkey, xkey = jax.random.split(key)
    params = init_params(pkey)

    # NCHW input consistent with conv1 (1 input channel).
    x = jax.random.uniform(xkey, (2, 1, 16, 16), jnp.float32)

    fwd = jax.jit(functools.partial(autoencoder_forward, params=params))
    out = jax.block_until_ready(fwd(x))

    assert out.shape == (2, 1, 16, 16), out.shape
    assert bool(jnp.all(jnp.isfinite(out)))
    assert bool(jnp.all((out >= 0.0) & (out <= 1.0)))          # final sigmoid range

    ref = reference_forward(x, params)
    err = float(jnp.max(jnp.abs(out - ref)))
    assert err < 3e-2, f"max abs error vs pure-JAX reference: {err}"
    print("KERNEL_OK")
</pallas_src>

<mosaic_0001>
module attributes {stable_mosaic.version = 11 : i64} {
  func.func @_fused_autoencoder_kernel(%arg0: i32, %arg1: memref<1x324x1xf32, #tpu.memory_space<vmem>>, %arg2: memref<9x8xf32, #tpu.memory_space<vmem>>, %arg3: memref<72x16xf32, #tpu.memory_space<vmem>>, %arg4: memref<144x32xf32, #tpu.memory_space<vmem>>, %arg5: memref<288x16xf32, #tpu.memory_space<vmem>>, %arg6: memref<144x8xf32, #tpu.memory_space<vmem>>, %arg7: memref<72x1xf32, #tpu.memory_space<vmem>>, %arg8: memref<1x8xf32, #tpu.memory_space<vmem>>, %arg9: memref<1x16xf32, #tpu.memory_space<vmem>>, %arg10: memref<1x32xf32, #tpu.memory_space<vmem>>, %arg11: memref<1x16xf32, #tpu.memory_space<vmem>>, %arg12: memref<1x8xf32, #tpu.memory_space<vmem>>, %arg13: memref<1x1xf32, #tpu.memory_space<vmem>>, %arg14: memref<100x267xf32, #tpu.memory_space<vmem>>, %arg15: memref<36x67xf32, #tpu.memory_space<vmem>>, %arg16: memref<16x15xf32, #tpu.memory_space<vmem>>, %arg17: memref<36x6xf32, #tpu.memory_space<vmem>>, %arg18: memref<100x22xf32, #tpu.memory_space<vmem>>, %arg19: memref<256x78xf32, #tpu.memory_space<vmem>>, %arg20: memref<1x256x1xf32, #tpu.memory_space<vmem>>, %arg21: memref<288x288xf32, #tpu.memory_space<vmem>>) attributes {dimension_semantics = [#tpu.dimension_semantics<parallel>], iteration_bounds = array<i64: 2>, scalar_prefetch = 0 : i64, scratch_operands = 1 : i64, tpu.core_type = #tpu.core_type<tc>, window_params = [{transform_indices = @transform_0, window_bounds = array<i64: 1, 324, 1>}, {pipeline_mode = #tpu.pipeline_mode<synchronous>, transform_indices = @transform_1, window_bounds = array<i64: 9, 8>}, {pipeline_mode = #tpu.pipeline_mode<synchronous>, transform_indices = @transform_2, window_bounds = array<i64: 72, 16>}, {pipeline_mode = #tpu.pipeline_mode<synchronous>, transform_indices = @transform_3, window_bounds = array<i64: 144, 32>}, {pipeline_mode = #tpu.pipeline_mode<synchronous>, transform_indices = @transform_4, window_bounds = array<i64: 288, 16>}, {pipeline_mode = #tpu.pipeline_mode<synchronous>, transform_indices = @transform_5, window_bounds = array<i64: 144, 8>}, {pipeline_mode = #tpu.pipeline_mode<synchronous>, transform_indices = @transform_6, window_bounds = array<i64: 72, 1>}, {pipeline_mode = #tpu.pipeline_mode<synchronous>, transform_indices = @transform_7, window_bounds = array<i64: 1, 8>}, {pipeline_mode = #tpu.pipeline_mode<synchronous>, transform_indices = @transform_8, window_bounds = array<i64: 1, 16>}, {pipeline_mode = #tpu.pipeline_mode<synchronous>, transform_indices = @transform_9, window_bounds = array<i64: 1, 32>}, {pipeline_mode = #tpu.pipeline_mode<synchronous>, transform_indices = @transform_10, window_bounds = array<i64: 1, 16>}, {pipeline_mode = #tpu.pipeline_mode<synchronous>, transform_indices = @transform_11, window_bounds = array<i64: 1, 8>}, {pipeline_mode = #tpu.pipeline_mode<synchronous>, transform_indices = @transform_12, window_bounds = array<i64: 1, 1>}, {pipeline_mode = #tpu.pipeline_mode<synchronous>, transform_indices = @transform_13, window_bounds = array<i64: 100, 267>}, {pipeline_mode = #tpu.pipeline_mode<synchronous>, transform_indices = @transform_14, window_bounds = array<i64: 36, 67>}, {pipeline_mode = #tpu.pipeline_mode<synchronous>, transform_indices = @transform_15, window_bounds = array<i64: 16, 15>}, {pipeline_mode = #tpu.pipeline_mode<synchronous>, transform_indices = @transform_16, window_bounds = array<i64: 36, 6>}, {pipeline_mode = #tpu.pipeline_mode<synchronous>, transform_indices = @transform_17, window_bounds = array<i64: 100, 22>}, {pipeline_mode = #tpu.pipeline_mode<synchronous>, transform_indices = @transform_18, window_bounds = array<i64: 256, 78>}, {transform_indices = @transform_19, window_bounds = array<i64: 1, 256, 1>}]} {
    %c0 = arith.constant 0 : index
    %c0_0 = arith.constant 0 : index
    %c0_1 = arith.constant 0 : index
    %0 = vector.load %arg1[%c0, %c0_0, %c0_1] : memref<1x324x1xf32, #tpu.memory_space<vmem>>, vector<1x324x1xf32>
    %1 = vector.shape_cast %0 : vector<1x324x1xf32> to vector<324x1xf32>
    %2 = vector.extract_strided_slice %1 {offsets = [0, 0], sizes = [286, 1], strides = [1, 1]} : vector<324x1xf32> to vector<286x1xf32>
    %c0_2 = arith.constant 0 : index
    %c0_3 = arith.constant 0 : index
    %3 = vector.load %arg21[%c0_2, %c0_3] : memref<288x288xf32, #tpu.memory_space<vmem>>, vector<286x1xf32>
    tpu.vector_store %arg21[%c0_2, %c0_3], %2 {strides = array<i32>} : memref<288x288xf32, #tpu.memory_space<vmem>>, vector<286x1xf32>,
    %4 = vector.extract_strided_slice %1 {offsets = [1, 0], sizes = [286, 1], strides = [1, 1]} : vector<324x1xf32> to vector<286x1xf32>
    %c0_4 = arith.constant 0 : index
    %c1 = arith.constant 1 : index
    %5 = vector.load %arg21[%c0_4, %c1] : memref<288x288xf32, #tpu.memory_space<vmem>>, vector<286x1xf32>
    tpu.vector_store %arg21[%c0_4, %c1], %4 {strides = array<i32>} : memref<288x288xf32, #tpu.memory_space<vmem>>, vector<286x1xf32>,
    %6 = vector.extract_strided_slice %1 {offsets = [2, 0], sizes = [286, 1], strides = [1, 1]} : vector<324x1xf32> to vector<286x1xf32>
    %c0_5 = arith.constant 0 : index
    %c2 = arith.constant 2 : index
    %7 = vector.load %arg21[%c0_5, %c2] : memref<288x288xf32, #tpu.memory_space<vmem>>, vector<286x1xf32>
    tpu.vector_store %arg21[%c0_5, %c2], %6 {strides = array<i32>} : memref<288x288xf32, #tpu.memory_space<vmem>>, vector<286x1xf32>,
    %8 = vector.extract_strided_slice %1 {offsets = [18, 0], sizes = [286, 1], strides = [1, 1]} : vector<324x1xf32> to vector<286x1xf32>
    %c0_6 = arith.constant 0 : index
    %c3 = arith.constant 3 : index
    %9 = vector.load %arg21[%c0_6, %c3] : memref<288x288xf32, #tpu.memory_space<vmem>>, vector<286x1xf32>
    tpu.vector_store %arg21[%c0_6, %c3], %8 {strides = array<i32>} : memref<288x288xf32, #tpu.memory_space<vmem>>, vector<286x1xf32>,
    %10 = vector.extract_strided_slice %1 {offsets = [19, 0], sizes = [286, 1], strides = [1, 1]} : vector<324x1xf32> to vector<286x1xf32>
    %c0_7 = arith.constant 0 : index
    %c4 = arith.constant 4 : index
    %11 = vector.load %arg21[%c0_7, %c4] : memref<288x288xf32, #tpu.memory_space<vmem>>, vector<286x1xf32>
    tpu.vector_store %arg21[%c0_7, %c4], %10 {strides = array<i32>} : memref<288x288xf32, #tpu.memory_space<vmem>>, vector<286x1xf32>,
    %12 = vector.extract_strided_slice %1 {offsets = [20, 0], sizes = [286, 1], strides = [1, 1]} : vector<324x1xf32> to vector<286x1xf32>
    %c0_8 = arith.constant 0 : index
    %c5 = arith.constant 5 : index
    %13 = vector.load %arg21[%c0_8, %c5] : memref<288x288xf32, #tpu.memory_space<vmem>>, vector<286x1xf32>
    tpu.vector_store %arg21[%c0_8, %c5], %12 {strides = array<i32>} : memref<288x288xf32, #tpu.memory_space<vmem>>, vector<286x1xf32>,
    %14 = vector.extract_strided_slice %1 {offsets = [36, 0], sizes = [286, 1], strides = [1, 1]} : vector<324x1xf32> to vector<286x1xf32>
    %c0_9 = arith.constant 0 : index
    %c6 = arith.constant 6 : index
    %15 = vector.load %arg21[%c0_9, %c6] : memref<288x288xf32, #tpu.memory_space<vmem>>, vector<286x1xf32>
    tpu.vector_store %arg21[%c0_9, %c6], %14 {strides = array<i32>} : memref<288x288xf32, #tpu.memory_space<vmem>>, vector<286x1xf32>,
    %16 = vector.extract_strided_slice %1 {offsets = [37, 0], sizes = [286, 1], strides = [1, 1]} : vector<324x1xf32> to vector<286x1xf32>
    %c0_10 = arith.constant 0 : index
    %c7 = arith.constant 7 : index
    %17 = vector.load %arg21[%c0_10, %c7] : memref<288x288xf32, #tpu.memory_space<vmem>>, vector<286x1xf32>
    tpu.vector_store %arg21[%c0_10, %c7], %16 {strides = array<i32>} : memref<288x288xf32, #tpu.memory_space<vmem>>, vector<286x1xf32>,
    %18 = vector.extract_strided_slice %1 {offsets = [38, 0], sizes = [286, 1], strides = [1, 1]} : vector<324x1xf32> to vector<286x1xf32>
    %c0_11 = arith.constant 0 : index
    %c8 = arith.constant 8 : index
    %19 = vector.load %arg21[%c0_11, %c8] : memref<288x288xf32, #tpu.memory_space<vmem>>, vector<286x1xf32>
    tpu.vector_store %arg21[%c0_11, %c8], %18 {strides = array<i32>} : memref<288x288xf32, #tpu.memory_space<vmem>>, vector<286x1xf32>,
    %c0_12 = arith.constant 0 : index
    %c0_13 = arith.constant 0 : index
    %20 = vector.load %arg21[%c0_12, %c0_13] : memref<288x288xf32, #tpu.memory_space<vmem>>, vector<286x9xf32>
    %c0_14 = arith.constant 0 : index
    %c0_15 = arith.constant 0 : index
    %21 = vector.load %arg2[%c0_14, %c0_15] : memref<9x8xf32, #tpu.memory_space<vmem>>, vector<9x8xf32>
    %cst = arith.constant dense<0.000000e+00> : vector<286x8xf32>
    %22 = tpu.matmul %20, %21, %cst {dimension_numbers = #tpu.dot_dimension_numbers<[1], [0], [0], [1], [0, 0, 1, 1], [], []>} : vector<286x9xf32>, vector<9x8xf32>, vector<286x8xf32> -> vector<286x8xf32>
    %c0_16 = arith.constant 0 : index
    %c0_17 = arith.constant 0 : index
    %23 = vector.load %arg8[%c0_16, %c0_17] : memref<1x8xf32, #tpu.memory_space<vmem>>, vector<1x8xf32>
    %24 = vector.broadcast %23 : vector<1x8xf32> to vector<286x8xf32>
    %25 = arith.addf %22, %24 : vector<286x8xf32>
    %cst_18 = arith.constant 0.000000e+00 : f32
    %26 = vector.broadcast %cst_18 : f32 to vector<286x8xf32>
    %27 = arith.maximumf %25, %26 : vector<286x8xf32>
    %28 = vector.extract_strided_slice %27 {offsets = [0, 0], sizes = [285, 8], strides = [1, 1]} : vector<286x8xf32> to vector<285x8xf32>
    %29 = vector.extract_strided_slice %27 {offsets = [1, 0], sizes = [285, 8], strides = [1, 1]} : vector<286x8xf32> to vector<285x8xf32>
    %30 = arith.maximumf %28, %29 : vector<285x8xf32>
    %31 = vector.extract_strided_slice %30 {offsets = [0, 0], sizes = [267, 8], strides = [1, 1]} : vector<285x8xf32> to vector<267x8xf32>
    %32 = vector.extract_strided_slice %30 {offsets = [18, 0], sizes = [267, 8], strides = [1, 1]} : vector<285x8xf32> to vector<267x8xf32>
    %33 = arith.maximumf %31, %32 : vector<267x8xf32>
    %c0_19 = arith.constant 0 : index
    %c0_20 = arith.constant 0 : index
    %34 = vector.load %arg14[%c0_19, %c0_20] : memref<100x267xf32, #tpu.memory_space<vmem>>, vector<100x267xf32>
    %cst_21 = arith.constant dense<0.000000e+00> : vector<100x8xf32>
    %35 = tpu.matmul %34, %33, %cst_21 {dimension_numbers = #tpu.dot_dimension_numbers<[1], [0], [0], [1], [0, 0, 1, 1], [], []>} : vector<100x267xf32>, vector<267x8xf32>, vector<100x8xf32> -> vector<100x8xf32>
    %36 = vector.extract_strided_slice %35 {offsets = [0, 0], sizes = [78, 8], strides = [1, 1]} : vector<100x8xf32> to vector<78x8xf32>
    %c0_22 = arith.constant 0 : index
    %c0_23 = arith.constant 0 : index
    %37 = vector.load %arg21[%c0_22, %c0_23] : memref<288x288xf32, #tpu.memory_space<vmem>>, vector<78x8xf32>
    tpu.vector_store %arg21[%c0_22, %c0_23], %36 {strides = array<i32>} : memref<288x288xf32, #tpu.memory_space<vmem>>, vector<78x8xf32>,
    %38 = vector.extract_strided_slice %35 {offsets = [1, 0], sizes = [78, 8], strides = [1, 1]} : vector<100x8xf32> to vector<78x8xf32>
    %c0_24 = arith.constant 0 : index
    %c8_25 = arith.constant 8 : index
    %39 = vector.load %arg21[%c0_24, %c8_25] : memref<288x288xf32, #tpu.memory_space<vmem>>, vector<78x8xf32>
    tpu.vector_store %arg21[%c0_24, %c8_25], %38 {strides = array<i32>} : memref<288x288xf32, #tpu.memory_space<vmem>>, vector<78x8xf32>,
    %40 = vector.extract_strided_slice %35 {offsets = [2, 0], sizes = [78, 8], strides = [1, 1]} : vector<100x8xf32> to vector<78x8xf32>
    %c0_26 = arith.constant 0 : index
    %c16 = arith.constant 16 : index
    %41 = vector.load %arg21[%c0_26, %c16] : memref<288x288xf32, #tpu.memory_space<vmem>>, vector<78x8xf32>
    tpu.vector_store %arg21[%c0_26, %c16], %40 {strides = array<i32>} : memref<288x288xf32, #tpu.memory_space<vmem>>, vector<78x8xf32>,
    %42 = vector.extract_strided_slice %35 {offsets = [10, 0], sizes = [78, 8], strides = [1, 1]} : vector<100x8xf32> to vector<78x8xf32>
    %c0_27 = arith.constant 0 : index
    %c24 = arith.constant 24 : index
    %43 = vector.load %arg21[%c0_27, %c24] : memref<288x288xf32, #tpu.memory_space<vmem>>, vector<78x8xf32>
    tpu.vector_store %arg21[%c0_27, %c24], %42 {strides = array<i32>} : memref<288x288xf32, #tpu.memory_space<vmem>>, vector<78x8xf32>,
    %44 = vector.extract_strided_slice %35 {offsets = [11, 0], sizes = [78, 8], strides = [1, 1]} : vector<100x8xf32> to vector<78x8xf32>
    %c0_28 = arith.constant 0 : index
    %c32 = arith.constant 32 : index
    %45 = vector.load %arg21[%c0_28, %c32] : memref<288x288xf32, #tpu.memory_space<vmem>>, vector<78x8xf32>
    tpu.vector_store %arg21[%c0_28, %c32], %44 {strides = array<i32>} : memref<288x288xf32, #tpu.memory_space<vmem>>, vector<78x8xf32>,
    %46 = vector.extract_strided_slice %35 {offsets = [12, 0], sizes = [78, 8], strides = [1, 1]} : vector<100x8xf32> to vector<78x8xf32>
    %c0_29 = arith.constant 0 : index
    %c40 = arith.constant 40 : index
    %47 = vector.load %arg21[%c0_29, %c40] : memref<288x288xf32, #tpu.memory_space<vmem>>, vector<78x8xf32>
    tpu.vector_store %arg21[%c0_29, %c40], %46 {strides = array<i32>} : memref<288x288xf32, #tpu.memory_space<vmem>>, vector<78x8xf32>,
    %48 = vector.extract_strided_slice %35 {offsets = [20, 0], sizes = [78, 8], strides = [1, 1]} : vector<100x8xf32> to vector<78x8xf32>
    %c0_30 = arith.constant 0 : index
    %c48 = arith.constant 48 : index
    %49 = vector.load %arg21[%c0_30, %c48] : memref<288x288xf32, #tpu.memory_space<vmem>>, vector<78x8xf32>
    tpu.vector_store %arg21[%c0_30, %c48], %48 {strides = array<i32>} : memref<288x288xf32, #tpu.memory_space<vmem>>, vector<78x8xf32>,
    %50 = vector.extract_strided_slice %35 {offsets = [21, 0], sizes = [78, 8], strides = [1, 1]} : vector<100x8xf32> to vector<78x8xf32>
    %c0_31 = arith.constant 0 : index
    %c56 = arith.constant 56 : index
    %51 = vector.load %arg21[%c0_31, %c56] : memref<288x288xf32, #tpu.memory_space<vmem>>, vector<78x8xf32>
    tpu.vector_store %arg21[%c0_31, %c56], %50 {strides = array<i32>} : memref<288x288xf32, #tpu.memory_space<vmem>>, vector<78x8xf32>,
    %52 = vector.extract_strided_slice %35 {offsets = [22, 0], sizes = [78, 8], strides = [1, 1]} : vector<100x8xf32> to vector<78x8xf32>
    %c0_32 = arith.constant 0 : index
    %c64 = arith.constant 64 : index
    %53 = vector.load %arg21[%c0_32, %c64] : memref<288x288xf32, #tpu.memory_space<vmem>>, vector<78x8xf32>
    tpu.vector_store %arg21[%c0_32, %c64], %52 {strides = array<i32>} : memref<288x288xf32, #tpu.memory_space<vmem>>, vector<78x8xf32>,
    %c0_33 = arith.constant 0 : index
    %c0_34 = arith.constant 0 : index
    %54 = vector.load %arg21[%c0_33, %c0_34] : memref<288x288xf32, #tpu.memory_space<vmem>>, vector<78x72xf32>
    %c0_35 = arith.constant 0 : index
    %c0_36 = arith.constant 0 : index
    %55 = vector.load %arg3[%c0_35, %c0_36] : memref<72x16xf32, #tpu.memory_space<vmem>>, vector<72x16xf32>
    %cst_37 = arith.constant dense<0.000000e+00> : vector<78x16xf32>
    %56 = tpu.matmul %54, %55, %cst_37 {dimension_numbers = #tpu.dot_dimension_numbers<[1], [0], [0], [1], [0, 0, 1, 1], [], []>} : vector<78x72xf32>, vector<72x16xf32>, vector<78x16xf32> -> vector<78x16xf32>
    %c0_38 = arith.constant 0 : index
    %c0_39 = arith.constant 0 : index
    %57 = vector.load %arg9[%c0_38, %c0_39] : memref<1x16xf32, #tpu.memory_space<vmem>>, vector<1x16xf32>
    %58 = vector.broadcast %57 : vector<1x16xf32> to vector<78x16xf32>
    %59 = arith.addf %56, %58 : vector<78x16xf32>
    %cst_40 = arith.constant 0.000000e+00 : f32
    %60 = vector.broadcast %cst_40 : f32 to vector<78x16xf32>
    %61 = arith.maximumf %59, %60 : vector<78x16xf32>
    %62 = vector.extract_strided_slice %61 {offsets = [0, 0], sizes = [77, 16], strides = [1, 1]} : vector<78x16xf32> to vector<77x16xf32>
    %63 = vector.extract_strided_slice %61 {offsets = [1, 0], sizes = [77, 16], strides = [1, 1]} : vector<78x16xf32> to vector<77x16xf32>
    %64 = arith.maximumf %62, %63 : vector<77x16xf32>
    %65 = vector.extract_strided_slice %64 {offsets = [0, 0], sizes = [67, 16], strides = [1, 1]} : vector<77x16xf32> to vector<67x16xf32>
    %66 = vector.extract_strided_slice %64 {offsets = [10, 0], sizes = [67, 16], strides = [1, 1]} : vector<77x16xf32> to vector<67x16xf32>
    %67 = arith.maximumf %65, %66 : vector<67x16xf32>
    %c0_41 = arith.constant 0 : index
    %c0_42 = arith.constant 0 : index
    %68 = vector.load %arg15[%c0_41, %c0_42] : memref<36x67xf32, #tpu.memory_space<vmem>>, vector<36x67xf32>
    %cst_43 = arith.constant dense<0.000000e+00> : vector<36x16xf32>
    %69 = tpu.matmul %68, %67, %cst_43 {dimension_numbers = #tpu.dot_dimension_numbers<[1], [0], [0], [1], [0, 0, 1, 1], [], []>} : vector<36x67xf32>, vector<67x16xf32>, vector<36x16xf32> -> vector<36x16xf32>
    %70 = vector.extract_strided_slice %69 {offsets = [0, 0], sizes = [22, 16], strides = [1, 1]} : vector<36x16xf32> to vector<22x16xf32>
    %c0_44 = arith.constant 0 : index
    %c0_45 = arith.constant 0 : index
    %71 = vector.load %arg21[%c0_44, %c0_45] : memref<288x288xf32, #tpu.memory_space<vmem>>, vector<22x16xf32>
    tpu.vector_store %arg21[%c0_44, %c0_45], %70 {strides = array<i32>} : memref<288x288xf32, #tpu.memory_space<vmem>>, vector<22x16xf32>,
    %72 = vector.extract_strided_slice %69 {offsets = [1, 0], sizes = [22, 16], strides = [1, 1]} : vector<36x16xf32> to vector<22x16xf32>
    %c0_46 = arith.constant 0 : index
    %c16_47 = arith.constant 16 : index
    %73 = vector.load %arg21[%c0_46, %c16_47] : memref<288x288xf32, #tpu.memory_space<vmem>>, vector<22x16xf32>
    tpu.vector_store %arg21[%c0_46, %c16_47], %72 {strides = array<i32>} : memref<288x288xf32, #tpu.memory_space<vmem>>, vector<22x16xf32>,
    %74 = vector.extract_strided_slice %69 {offsets = [2, 0], sizes = [22, 16], strides = [1, 1]} : vector<36x16xf32> to vector<22x16xf32>
    %c0_48 = arith.constant 0 : index
    %c32_49 = arith.constant 32 : index
    %75 = vector.load %arg21[%c0_48, %c32_49] : memref<288x288xf32, #tpu.memory_space<vmem>>, vector<22x16xf32>
    tpu.vector_store %arg21[%c0_48, %c32_49], %74 {strides = array<i32>} : memref<288x288xf32, #tpu.memory_space<vmem>>, vector<22x16xf32>,
    %76 = vector.extract_strided_slice %69 {offsets = [6, 0], sizes = [22, 16], strides = [1, 1]} : vector<36x16xf32> to vector<22x16xf32>
    %c0_50 = arith.constant 0 : index
    %c48_51 = arith.constant 48 : index
    %77 = vector.load %arg21[%c0_50, %c48_51] : memref<288x288xf32, #tpu.memory_space<vmem>>, vector<22x16xf32>
    tpu.vector_store %arg21[%c0_50, %c48_51], %76 {strides = array<i32>} : memref<288x288xf32, #tpu.memory_space<vmem>>, vector<22x16xf32>,
    %78 = vector.extract_strided_slice %69 {offsets = [7, 0], sizes = [22, 16], strides = [1, 1]} : vector<36x16xf32> to vector<22x16xf32>
    %c0_52 = arith.constant 0 : index
    %c64_53 = arith.constant 64 : index
    %79 = vector.load %arg21[%c0_52, %c64_53] : memref<288x288xf32, #tpu.memory_space<vmem>>, vector<22x16xf32>
    tpu.vector_store %arg21[%c0_52, %c64_53], %78 {strides = array<i32>} : memref<288x288xf32, #tpu.memory_space<vmem>>, vector<22x16xf32>,
    %80 = vector.extract_strided_slice %69 {offsets = [8, 0], sizes = [22, 16], strides = [1, 1]} : vector<36x16xf32> to vector<22x16xf32>
    %c0_54 = arith.constant 0 : index
    %c80 = arith.constant 80 : index
    %81 = vector.load %arg21[%c0_54, %c80] : memref<288x288xf32, #tpu.memory_space<vmem>>, vector<22x16xf32>
    tpu.vector_store %arg21[%c0_54, %c80], %80 {strides = array<i32>} : memref<288x288xf32, #tpu.memory_space<vmem>>, vector<22x16xf32>,
    %82 = vector.extract_strided_slice %69 {offsets = [12, 0], sizes = [22, 16], strides = [1, 1]} : vector<36x16xf32> to vector<22x16xf32>
    %c0_55 = arith.constant 0 : index
    %c96 = arith.constant 96 : index
    %83 = vector.load %arg21[%c0_55, %c96] : memref<288x288xf32, #tpu.memory_space<vmem>>, vector<22x16xf32>
    tpu.vector_store %arg21[%c0_55, %c96], %82 {strides = array<i32>} : memref<288x288xf32, #tpu.memory_space<vmem>>, vector<22x16xf32>,
    %84 = vector.extract_strided_slice %69 {offsets = [13, 0], sizes = [22, 16], strides = [1, 1]} : vector<36x16xf32> to vector<22x16xf32>
    %c0_56 = arith.constant 0 : index
    %c112 = arith.constant 112 : index
    %85 = vector.load %arg21[%c0_56, %c112] : memref<288x288xf32, #tpu.memory_space<vmem>>, vector<22x16xf32>
    tpu.vector_store %arg21[%c0_56, %c112], %84 {strides = array<i32>} : memref<288x288xf32, #tpu.memory_space<vmem>>, vector<22x16xf32>,
    %86 = vector.extract_strided_slice %69 {offsets = [14, 0], sizes = [22, 16], strides = [1, 1]} : vector<36x16xf32> to vector<22x16xf32>
    %c0_57 = arith.constant 0 : index
    %c128 = arith.constant 128 : index
    %87 = vector.load %arg21[%c0_57, %c128] : memref<288x288xf32, #tpu.memory_space<vmem>>, vector<22x16xf32>
    tpu.vector_store %arg21[%c0_57, %c128], %86 {strides = array<i32>} : memref<288x288xf32, #tpu.memory_space<vmem>>, vector<22x16xf32>,
    %c0_58 = arith.constant 0 : index
    %c0_59 = arith.constant 0 : index
    %88 = vector.load %arg21[%c0_58, %c0_59] : memref<288x288xf32, #tpu.memory_space<vmem>>, vector<22x144xf32>
    %c0_60 = arith.constant 0 : index
    %c0_61 = arith.constant 0 : index
    %89 = vector.load %arg4[%c0_60, %c0_61] : memref<144x32xf32, #tpu.memory_space<vmem>>, vector<144x32xf32>
    %cst_62 = arith.constant dense<0.000000e+00> : vector<22x32xf32>
    %90 = tpu.matmul %88, %89, %cst_62 {dimension_numbers = #tpu.dot_dimension_numbers<[1], [0], [0], [1], [0, 0, 1, 1], [], []>} : vector<22x144xf32>, vector<144x32xf32>, vector<22x32xf32> -> vector<22x32xf32>
    %c0_63 = arith.constant 0 : index
    %c0_64 = arith.constant 0 : index
    %91 = vector.load %arg10[%c0_63, %c0_64] : memref<1x32xf32, #tpu.memory_space<vmem>>, vector<1x32xf32>
    %92 = vector.broadcast %91 : vector<1x32xf32> to vector<22x32xf32>
    %93 = arith.addf %90, %92 : vector<22x32xf32>
    %cst_65 = arith.constant 0.000000e+00 : f32
    %94 = vector.broadcast %cst_65 : f32 to vector<22x32xf32>
    %95 = arith.maximumf %93, %94 : vector<22x32xf32>
    %96 = vector.extract_strided_slice %95 {offsets = [0, 0], sizes = [21, 32], strides = [1, 1]} : vector<22x32xf32> to vector<21x32xf32>
    %97 = vector.extract_strided_slice %95 {offsets = [1, 0], sizes = [21, 32], strides = [1, 1]} : vector<22x32xf32> to vector<21x32xf32>
    %98 = arith.maximumf %96, %97 : vector<21x32xf32>
    %99 = vector.extract_strided_slice %98 {offsets = [0, 0], sizes = [15, 32], strides = [1, 1]} : vector<21x32xf32> to vector<15x32xf32>
    %100 = vector.extract_strided_slice %98 {offsets = [6, 0], sizes = [15, 32], strides = [1, 1]} : vector<21x32xf32> to vector<15x32xf32>
    %101 = arith.maximumf %99, %100 : vector<15x32xf32>
    %c0_66 = arith.constant 0 : index
    %c0_67 = arith.constant 0 : index
    %102 = vector.load %arg16[%c0_66, %c0_67] : memref<16x15xf32, #tpu.memory_space<vmem>>, vector<16x15xf32>
    %cst_68 = arith.constant dense<0.000000e+00> : vector<16x32xf32>
    %103 = tpu.matmul %102, %101, %cst_68 {dimension_numbers = #tpu.dot_dimension_numbers<[1], [0], [0], [1], [0, 0, 1, 1], [], []>} : vector<16x15xf32>, vector<15x32xf32>, vector<16x32xf32> -> vector<16x32xf32>
    %104 = vector.extract_strided_slice %103 {offsets = [0, 0], sizes = [6, 32], strides = [1, 1]} : vector<16x32xf32> to vector<6x32xf32>
    %c0_69 = arith.constant 0 : index
    %c0_70 = arith.constant 0 : index
    %105 = vector.load %arg21[%c0_69, %c0_70] : memref<288x288xf32, #tpu.memory_space<vmem>>, vector<6x32xf32>
    tpu.vector_store %arg21[%c0_69, %c0_70], %104 {strides = array<i32>} : memref<288x288xf32, #tpu.memory_space<vmem>>, vector<6x32xf32>,
    %106 = vector.extract_strided_slice %103 {offsets = [1, 0], sizes = [6, 32], strides = [1, 1]} : vector<16x32xf32> to vector<6x32xf32>
    %c0_71 = arith.constant 0 : index
    %c32_72 = arith.constant 32 : index
    %107 = vector.load %arg21[%c0_71, %c32_72] : memref<288x288xf32, #tpu.memory_space<vmem>>, vector<6x32xf32>
    tpu.vector_store %arg21[%c0_71, %c32_72], %106 {strides = array<i32>} : memref<288x288xf32, #tpu.memory_space<vmem>>, vector<6x32xf32>,
    %108 = vector.extract_strided_slice %103 {offsets = [2, 0], sizes = [6, 32], strides = [1, 1]} : vector<16x32xf32> to vector<6x32xf32>
    %c0_73 = arith.constant 0 : index
    %c64_74 = arith.constant 64 : index
    %109 = vector.load %arg21[%c0_73, %c64_74] : memref<288x288xf32, #tpu.memory_space<vmem>>, vector<6x32xf32>
    tpu.vector_store %arg21[%c0_73, %c64_74], %108 {strides = array<i32>} : memref<288x288xf32, #tpu.memory_space<vmem>>, vector<6x32xf32>,
    %110 = vector.extract_strided_slice %103 {offsets = [4, 0], sizes = [6, 32], strides = [1, 1]} : vector<16x32xf32> to vector<6x32xf32>
    %c0_75 = arith.constant 0 : index
    %c96_76 = arith.constant 96 : index
    %111 = vector.load %arg21[%c0_75, %c96_76] : memref<288x288xf32, #tpu.memory_space<vmem>>, vector<6x32xf32>
    tpu.vector_store %arg21[%c0_75, %c96_76], %110 {strides = array<i32>} : memref<288x288xf32, #tpu.memory_space<vmem>>, vector<6x32xf32>,
    %112 = vector.extract_strided_slice %103 {offsets = [5, 0], sizes = [6, 32], strides = [1, 1]} : vector<16x32xf32> to vector<6x32xf32>
    %c0_77 = arith.constant 0 : index
    %c128_78 = arith.constant 128 : index
    %113 = vector.load %arg21[%c0_77, %c128_78] : memref<288x288xf32, #tpu.memory_space<vmem>>, vector<6x32xf32>
    tpu.vector_store %arg21[%c0_77, %c128_78], %112 {strides = array<i32>} : memref<288x288xf32, #tpu.memory_space<vmem>>, vector<6x32xf32>,
    %114 = vector.extract_strided_slice %103 {offsets = [6, 0], sizes = [6, 32], strides = [1, 1]} : vector<16x32xf32> to vector<6x32xf32>
    %c0_79 = arith.constant 0 : index
    %c160 = arith.constant 160 : index
    %115 = vector.load %arg21[%c0_79, %c160] : memref<288x288xf32, #tpu.memory_space<vmem>>, vector<6x32xf32>
    tpu.vector_store %arg21[%c0_79, %c160], %114 {strides = array<i32>} : memref<288x288xf32, #tpu.memory_space<vmem>>, vector<6x32xf32>,
    %116 = vector.extract_strided_slice %103 {offsets = [8, 0], sizes = [6, 32], strides = [1, 1]} : vector<16x32xf32> to vector<6x32xf32>
    %c0_80 = arith.constant 0 : index
    %c192 = arith.constant 192 : index
    %117 = vector.load %arg21[%c0_80, %c192] : memref<288x288xf32, #tpu.memory_space<vmem>>, vector<6x32xf32>
    tpu.vector_store %arg21[%c0_80, %c192], %116 {strides = array<i32>} : memref<288x288xf32, #tpu.memory_space<vmem>>, vector<6x32xf32>,
    %118 = vector.extract_strided_slice %103 {offsets = [9, 0], sizes = [6, 32], strides = [1, 1]} : vector<16x32xf32> to vector<6x32xf32>
    %c0_81 = arith.constant 0 : index
    %c224 = arith.constant 224 : index
    %119 = vector.load %arg21[%c0_81, %c224] : memref<288x288xf32, #tpu.memory_space<vmem>>, vector<6x32xf32>
    tpu.vector_store %arg21[%c0_81, %c224], %118 {strides = array<i32>} : memref<288x288xf32, #tpu.memory_space<vmem>>, vector<6x32xf32>,
    %120 = vector.extract_strided_slice %103 {offsets = [10, 0], sizes = [6, 32], strides = [1, 1]} : vector<16x32xf32> to vector<6x32xf32>
    %c0_82 = arith.constant 0 : index
    %c256 = arith.constant 256 : index
    %121 = vector.load %arg21[%c0_82, %c256] : memref<288x288xf32, #tpu.memory_space<vmem>>, vector<6x32xf32>
    tpu.vector_store %arg21[%c0_82, %c256], %120 {strides = array<i32>} : memref<288x288xf32, #tpu.memory_space<vmem>>, vector<6x32xf32>,
    %c0_83 = arith.constant 0 : index
    %c0_84 = arith.constant 0 : index
    %122 = vector.load %arg21[%c0_83, %c0_84] : memref<288x288xf32, #tpu.memory_space<vmem>>, vector<6x288xf32>
    %c0_85 = arith.constant 0 : index
    %c0_86 = arith.constant 0 : index
    %123 = vector.load %arg5[%c0_85, %c0_86] : memref<288x16xf32, #tpu.memory_space<vmem>>, vector<288x16xf32>
    %cst_87 = arith.constant dense<0.000000e+00> : vector<6x16xf32>
    %124 = tpu.matmul %122, %123, %cst_87 {dimension_numbers = #tpu.dot_dimension_numbers<[1], [0], [0], [1], [0, 0, 1, 1], [], []>} : vector<6x288xf32>, vector<288x16xf32>, vector<6x16xf32> -> vector<6x16xf32>
    %c0_88 = arith.constant 0 : index
    %c0_89 = arith.constant 0 : index
    %125 = vector.load %arg11[%c0_88, %c0_89] : memref<1x16xf32, #tpu.memory_space<vmem>>, vector<1x16xf32>
    %126 = vector.broadcast %125 : vector<1x16xf32> to vector<6x16xf32>
    %127 = arith.addf %124, %126 : vector<6x16xf32>
    %cst_90 = arith.constant 0.000000e+00 : f32
    %128 = vector.broadcast %cst_90 : f32 to vector<6x16xf32>
    %129 = arith.maximumf %127, %128 : vector<6x16xf32>
    %c0_91 = arith.constant 0 : index
    %c0_92 = arith.constant 0 : index
    %130 = vector.load %arg17[%c0_91, %c0_92] : memref<36x6xf32, #tpu.memory_space<vmem>>, vector<36x6xf32>
    %cst_93 = arith.constant dense<0.000000e+00> : vector<36x16xf32>
    %131 = tpu.matmul %130, %129, %cst_93 {dimension_numbers = #tpu.dot_dimension_numbers<[1], [0], [0], [1], [0, 0, 1, 1], [], []>} : vector<36x6xf32>, vector<6x16xf32>, vector<36x16xf32> -> vector<36x16xf32>
    %132 = vector.extract_strided_slice %131 {offsets = [0, 0], sizes = [22, 16], strides = [1, 1]} : vector<36x16xf32> to vector<22x16xf32>
    %c0_94 = arith.constant 0 : index
    %c0_95 = arith.constant 0 : index
    %133 = vector.load %arg21[%c0_94, %c0_95] : memref<288x288xf32, #tpu.memory_space<vmem>>, vector<22x16xf32>
    tpu.vector_store %arg21[%c0_94, %c0_95], %132 {strides = array<i32>} : memref<288x288xf32, #tpu.memory_space<vmem>>, vector<22x16xf32>,
    %134 = vector.extract_strided_slice %131 {offsets = [1, 0], sizes = [22, 16], strides = [1, 1]} : vector<36x16xf32> to vector<22x16xf32>
    %c0_96 = arith.constant 0 : index
    %c16_97 = arith.constant 16 : index
    %135 = vector.load %arg21[%c0_96, %c16_97] : memref<288x288xf32, #tpu.memory_space<vmem>>, vector<22x16xf32>
    tpu.vector_store %arg21[%c0_96, %c16_97], %134 {strides = array<i32>} : memref<288x288xf32, #tpu.memory_space<vmem>>, vector<22x16xf32>,
    %136 = vector.extract_strided_slice %131 {offsets = [2, 0], sizes = [22, 16], strides = [1, 1]} : vector<36x16xf32> to vector<22x16xf32>
    %c0_98 = arith.constant 0 : index
    %c32_99 = arith.constant 32 : index
    %137 = vector.load %arg21[%c0_98, %c32_99] : memref<288x288xf32, #tpu.memory_space<vmem>>, vector<22x16xf32>
    tpu.vector_store %arg21[%c0_98, %c32_99], %136 {strides = array<i32>} : memref<288x288xf32, #tpu.memory_space<vmem>>, vector<22x16xf32>,
    %138 = vector.extract_strided_slice %131 {offsets = [6, 0], sizes = [22, 16], strides = [1, 1]} : vector<36x16xf32> to vector<22x16xf32>
    %c0_100 = arith.constant 0 : index
    %c48_101 = arith.constant 48 : index
    %139 = vector.load %arg21[%c0_100, %c48_101] : memref<288x288xf32, #tpu.memory_space<vmem>>, vector<22x16xf32>
    tpu.vector_store %arg21[%c0_100, %c48_101], %138 {strides = array<i32>} : memref<288x288xf32, #tpu.memory_space<vmem>>, vector<22x16xf32>,
    %140 = vector.extract_strided_slice %131 {offsets = [7, 0], sizes = [22, 16], strides = [1, 1]} : vector<36x16xf32> to vector<22x16xf32>
    %c0_102 = arith.constant 0 : index
    %c64_103 = arith.constant 64 : index
    %141 = vector.load %arg21[%c0_102, %c64_103] : memref<288x288xf32, #tpu.memory_space<vmem>>, vector<22x16xf32>
    tpu.vector_store %arg21[%c0_102, %c64_103], %140 {strides = array<i32>} : memref<288x288xf32, #tpu.memory_space<vmem>>, vector<22x16xf32>,
    %142 = vector.extract_strided_slice %131 {offsets = [8, 0], sizes = [22, 16], strides = [1, 1]} : vector<36x16xf32> to vector<22x16xf32>
    %c0_104 = arith.constant 0 : index
    %c80_105 = arith.constant 80 : index
    %143 = vector.load %arg21[%c0_104, %c80_105] : memref<288x288xf32, #tpu.memory_space<vmem>>, vector<22x16xf32>
    tpu.vector_store %arg21[%c0_104, %c80_105], %142 {strides = array<i32>} : memref<288x288xf32, #tpu.memory_space<vmem>>, vector<22x16xf32>,
    %144 = vector.extract_strided_slice %131 {offsets = [12, 0], sizes = [22, 16], strides = [1, 1]} : vector<36x16xf32> to vector<22x16xf32>
    %c0_106 = arith.constant 0 : index
    %c96_107 = arith.constant 96 : index
    %145 = vector.load %arg21[%c0_106, %c96_107] : memref<288x288xf32, #tpu.memory_space<vmem>>, vector<22x16xf32>
    tpu.vector_store %arg21[%c0_106, %c96_107], %144 {strides = array<i32>} : memref<288x288xf32, #tpu.memory_space<vmem>>, vector<22x16xf32>,
    %146 = vector.extract_strided_slice %131 {offsets = [13, 0], sizes = [22, 16], strides = [1, 1]} : vector<36x16xf32> to vector<22x16xf32>
    %c0_108 = arith.constant 0 : index
    %c112_109 = arith.constant 112 : index
    %147 = vector.load %arg21[%c0_108, %c112_109] : memref<288x288xf32, #tpu.memory_space<vmem>>, vector<22x16xf32>
    tpu.vector_store %arg21[%c0_108, %c112_109], %146 {strides = array<i32>} : memref<288x288xf32, #tpu.memory_space<vmem>>, vector<22x16xf32>,
    %148 = vector.extract_strided_slice %131 {offsets = [14, 0], sizes = [22, 16], strides = [1, 1]} : vector<36x16xf32> to vector<22x16xf32>
    %c0_110 = arith.constant 0 : index
    %c128_111 = arith.constant 128 : index
    %149 = vector.load %arg21[%c0_110, %c128_111] : memref<288x288xf32, #tpu.memory_space<vmem>>, vector<22x16xf32>
    tpu.vector_store %arg21[%c0_110, %c128_111], %148 {strides = array<i32>} : memref<288x288xf32, #tpu.memory_space<vmem>>, vector<22x16xf32>,
    %c0_112 = arith.constant 0 : index
    %c0_113 = arith.constant 0 : index
    %150 = vector.load %arg21[%c0_112, %c0_113] : memref<288x288xf32, #tpu.memory_space<vmem>>, vector<22x144xf32>
    %c0_114 = arith.constant 0 : index
    %c0_115 = arith.constant 0 : index
    %151 = vector.load %arg6[%c0_114, %c0_115] : memref<144x8xf32, #tpu.memory_space<vmem>>, vector<144x8xf32>
    %cst_116 = arith.constant dense<0.000000e+00> : vector<22x8xf32>
    %152 = tpu.matmul %150, %151, %cst_116 {dimension_numbers = #tpu.dot_dimension_numbers<[1], [0], [0], [1], [0, 0, 1, 1], [], []>} : vector<22x144xf32>, vector<144x8xf32>, vector<22x8xf32> -> vector<22x8xf32>
    %c0_117 = arith.constant 0 : index
    %c0_118 = arith.constant 0 : index
    %153 = vector.load %arg12[%c0_117, %c0_118] : memref<1x8xf32, #tpu.memory_space<vmem>>, vector<1x8xf32>
    %154 = vector.broadcast %153 : vector<1x8xf32> to vector<22x8xf32>
    %155 = arith.addf %152, %154 : vector<22x8xf32>
    %cst_119 = arith.constant 0.000000e+00 : f32
    %156 = vector.broadcast %cst_119 : f32 to vector<22x8xf32>
    %157 = arith.maximumf %155, %156 : vector<22x8xf32>
    %c0_120 = arith.constant 0 : index
    %c0_121 = arith.constant 0 : index
    %158 = vector.load %arg18[%c0_120, %c0_121] : memref<100x22xf32, #tpu.memory_space<vmem>>, vector<100x22xf32>
    %cst_122 = arith.constant dense<0.000000e+00> : vector<100x8xf32>
    %159 = tpu.matmul %158, %157, %cst_122 {dimension_numbers = #tpu.dot_dimension_numbers<[1], [0], [0], [1], [0, 0, 1, 1], [], []>} : vector<100x22xf32>, vector<22x8xf32>, vector<100x8xf32> -> vector<100x8xf32>
    %160 = vector.extract_strided_slice %159 {offsets = [0, 0], sizes = [78, 8], strides = [1, 1]} : vector<100x8xf32> to vector<78x8xf32>
    %c0_123 = arith.constant 0 : index
    %c0_124 = arith.constant 0 : index
    %161 = vector.load %arg21[%c0_123, %c0_124] : memref<288x288xf32, #tpu.memory_space<vmem>>, vector<78x8xf32>
    tpu.vector_store %arg21[%c0_123, %c0_124], %160 {strides = array<i32>} : memref<288x288xf32, #tpu.memory_space<vmem>>, vector<78x8xf32>,
    %162 = vector.extract_strided_slice %159 {offsets = [1, 0], sizes = [78, 8], strides = [1, 1]} : vector<100x8xf32> to vector<78x8xf32>
    %c0_125 = arith.constant 0 : index
    %c8_126 = arith.constant 8 : index
    %163 = vector.load %arg21[%c0_125, %c8_126] : memref<288x288xf32, #tpu.memory_space<vmem>>, vector<78x8xf32>
    tpu.vector_store %arg21[%c0_125, %c8_126], %162 {strides = array<i32>} : memref<288x288xf32, #tpu.memory_space<vmem>>, vector<78x8xf32>,
    %164 = vector.extract_strided_slice %159 {offsets = [2, 0], sizes = [78, 8], strides = [1, 1]} : vector<100x8xf32> to vector<78x8xf32>
    %c0_127 = arith.constant 0 : index
    %c16_128 = arith.constant 16 : index
    %165 = vector.load %arg21[%c0_127, %c16_128] : memref<288x288xf32, #tpu.memory_space<vmem>>, vector<78x8xf32>
    tpu.vector_store %arg21[%c0_127, %c16_128], %164 {strides = array<i32>} : memref<288x288xf32, #tpu.memory_space<vmem>>, vector<78x8xf32>,
    %166 = vector.extract_strided_slice %159 {offsets = [10, 0], sizes = [78, 8], strides = [1, 1]} : vector<100x8xf32> to vector<78x8xf32>
    %c0_129 = arith.constant 0 : index
    %c24_130 = arith.constant 24 : index
    %167 = vector.load %arg21[%c0_129, %c24_130] : memref<288x288xf32, #tpu.memory_space<vmem>>, vector<78x8xf32>
    tpu.vector_store %arg21[%c0_129, %c24_130], %166 {strides = array<i32>} : memref<288x288xf32, #tpu.memory_space<vmem>>, vector<78x8xf32>,
    %168 = vector.extract_strided_slice %159 {offsets = [11, 0], sizes = [78, 8], strides = [1, 1]} : vector<100x8xf32> to vector<78x8xf32>
    %c0_131 = arith.constant 0 : index
    %c32_132 = arith.constant 32 : index
    %169 = vector.load %arg21[%c0_131, %c32_132] : memref<288x288xf32, #tpu.memory_space<vmem>>, vector<78x8xf32>
    tpu.vector_store %arg21[%c0_131, %c32_132], %168 {strides = array<i32>} : memref<288x288xf32, #tpu.memory_space<vmem>>, vector<78x8xf32>,
    %170 = vector.extract_strided_slice %159 {offsets = [12, 0], sizes = [78, 8], strides = [1, 1]} : vector<100x8xf32> to vector<78x8xf32>
    %c0_133 = arith.constant 0 : index
    %c40_134 = arith.constant 40 : index
    %171 = vector.load %arg21[%c0_133, %c40_134] : memref<288x288xf32, #tpu.memory_space<vmem>>, vector<78x8xf32>
    tpu.vector_store %arg21[%c0_133, %c40_134], %170 {strides = array<i32>} : memref<288x288xf32, #tpu.memory_space<vmem>>, vector<78x8xf32>,
    %172 = vector.extract_strided_slice %159 {offsets = [20, 0], sizes = [78, 8], strides = [1, 1]} : vector<100x8xf32> to vector<78x8xf32>
    %c0_135 = arith.constant 0 : index
    %c48_136 = arith.constant 48 : index
    %173 = vector.load %arg21[%c0_135, %c48_136] : memref<288x288xf32, #tpu.memory_space<vmem>>, vector<78x8xf32>
    tpu.vector_store %arg21[%c0_135, %c48_136], %172 {strides = array<i32>} : memref<288x288xf32, #tpu.memory_space<vmem>>, vector<78x8xf32>,
    %174 = vector.extract_strided_slice %159 {offsets = [21, 0], sizes = [78, 8], strides = [1, 1]} : vector<100x8xf32> to vector<78x8xf32>
    %c0_137 = arith.constant 0 : index
    %c56_138 = arith.constant 56 : index
    %175 = vector.load %arg21[%c0_137, %c56_138] : memref<288x288xf32, #tpu.memory_space<vmem>>, vector<78x8xf32>
    tpu.vector_store %arg21[%c0_137, %c56_138], %174 {strides = array<i32>} : memref<288x288xf32, #tpu.memory_space<vmem>>, vector<78x8xf32>,
    %176 = vector.extract_strided_slice %159 {offsets = [22, 0], sizes = [78, 8], strides = [1, 1]} : vector<100x8xf32> to vector<78x8xf32>
    %c0_139 = arith.constant 0 : index
    %c64_140 = arith.constant 64 : index
    %177 = vector.load %arg21[%c0_139, %c64_140] : memref<288x288xf32, #tpu.memory_space<vmem>>, vector<78x8xf32>
    tpu.vector_store %arg21[%c0_139, %c64_140], %176 {strides = array<i32>} : memref<288x288xf32, #tpu.memory_space<vmem>>, vector<78x8xf32>,
    %c0_141 = arith.constant 0 : index
    %c0_142 = arith.constant 0 : index
    %178 = vector.load %arg21[%c0_141, %c0_142] : memref<288x288xf32, #tpu.memory_space<vmem>>, vector<78x72xf32>
    %c0_143 = arith.constant 0 : index
    %c0_144 = arith.constant 0 : index
    %179 = vector.load %arg7[%c0_143, %c0_144] : memref<72x1xf32, #tpu.memory_space<vmem>>, vector<72x1xf32>
    %cst_145 = arith.constant dense<0.000000e+00> : vector<78x1xf32>
    %180 = tpu.matmul %178, %179, %cst_145 {dimension_numbers = #tpu.dot_dimension_numbers<[1], [0], [0], [1], [0, 0, 1, 1], [], []>} : vector<78x72xf32>, vector<72x1xf32>, vector<78x1xf32> -> vector<78x1xf32>
    %c0_146 = arith.constant 0 : index
    %c0_147 = arith.constant 0 : index
    %181 = vector.load %arg13[%c0_146, %c0_147] : memref<1x1xf32, #tpu.memory_space<vmem>>, vector<1x1xf32>
    %182 = vector.broadcast %181 : vector<1x1xf32> to vector<78x1xf32>
    %183 = arith.addf %180, %182 : vector<78x1xf32>
    %cst_148 = arith.constant 0.000000e+00 : f32
    %184 = vector.broadcast %cst_148 : f32 to vector<78x1xf32>
    %185 = arith.subf %184, %183 : vector<78x1xf32>
    %186 = math.exp %185 : vector<78x1xf32>
    %cst_149 = arith.constant 1.000000e+00 : f32
    %187 = vector.broadcast %cst_149 : f32 to vector<78x1xf32>
    %188 = arith.addf %187, %186 : vector<78x1xf32>
    %cst_150 = arith.constant 1.000000e+00 : f32
    %189 = vector.broadcast %cst_150 : f32 to vector<78x1xf32>
    %190 = arith.divf %189, %188 : vector<78x1xf32>
    %c0_151 = arith.constant 0 : index
    %c0_152 = arith.constant 0 : index
    %191 = vector.load %arg19[%c0_151, %c0_152] : memref<256x78xf32, #tpu.memory_space<vmem>>, vector<256x78xf32>
    %cst_153 = arith.constant dense<0.000000e+00> : vector<256x1xf32>
    %192 = tpu.matmul %191, %190, %cst_153 {dimension_numbers = #tpu.dot_dimension_numbers<[1], [0], [0], [1], [0, 0, 1, 1], [], []>} : vector<256x78xf32>, vector<78x1xf32>, vector<256x1xf32> -> vector<256x1xf32>
    %c0_154 = arith.constant 0 : index
    %c0_155 = arith.constant 0 : index
    %c0_156 = arith.constant 0 : index
    %193 = vector.load %arg20[%c0_154, %c0_155, %c0_156] : memref<1x256x1xf32, #tpu.memory_space<vmem>>, vector<1x256x1xf32>
    %194 = vector.shape_cast %193 : vector<1x256x1xf32> to vector<256x1xf32>
    %195 = vector.shape_cast %192 : vector<256x1xf32> to vector<1x256x1xf32>
    tpu.vector_store %arg20[%c0_154, %c0_155, %c0_156], %195 {strides = array<i32>} : memref<1x256x1xf32, #tpu.memory_space<vmem>>, vector<1x256x1xf32>,
    return
  }
  func.func @transform_0(%arg0: i32) -> (i32, i32, i32) {
    %c0_i32 = arith.constant 0 : i32
    %c0_i32_0 = arith.constant 0 : i32
    %c0_i32_1 = arith.constant 0 : i32
    return %arg0, %c0_i32, %c0_i32_0 : i32, i32, i32
  }
  func.func @transform_1(%arg0: i32) -> (i32, i32) {
    %c0_i32 = arith.constant 0 : i32
    %c0_i32_0 = arith.constant 0 : i32
    %c0_i32_1 = arith.constant 0 : i32
    return %c0_i32, %c0_i32_0 : i32, i32
  }
  func.func @transform_2(%arg0: i32) -> (i32, i32) {
    %c0_i32 = arith.constant 0 : i32
    %c0_i32_0 = arith.constant 0 : i32
    %c0_i32_1 = arith.constant 0 : i32
    return %c0_i32, %c0_i32_0 : i32, i32
  }
  func.func @transform_3(%arg0: i32) -> (i32, i32) {
    %c0_i32 = arith.constant 0 : i32
    %c0_i32_0 = arith.constant 0 : i32
    %c0_i32_1 = arith.constant 0 : i32
    return %c0_i32, %c0_i32_0 : i32, i32
  }
  func.func @transform_4(%arg0: i32) -> (i32, i32) {
    %c0_i32 = arith.constant 0 : i32
    %c0_i32_0 = arith.constant 0 : i32
    %c0_i32_1 = arith.constant 0 : i32
    return %c0_i32, %c0_i32_0 : i32, i32
  }
  func.func @transform_5(%arg0: i32) -> (i32, i32) {
    %c0_i32 = arith.constant 0 : i32
    %c0_i32_0 = arith.constant 0 : i32
    %c0_i32_1 = arith.constant 0 : i32
    return %c0_i32, %c0_i32_0 : i32, i32
  }
  func.func @transform_6(%arg0: i32) -> (i32, i32) {
    %c0_i32 = arith.constant 0 : i32
    %c0_i32_0 = arith.constant 0 : i32
    %c0_i32_1 = arith.constant 0 : i32
    return %c0_i32, %c0_i32_0 : i32, i32
  }
  func.func @transform_7(%arg0: i32) -> (i32, i32) {
    %c0_i32 = arith.constant 0 : i32
    %c0_i32_0 = arith.constant 0 : i32
    %c0_i32_1 = arith.constant 0 : i32
    return %c0_i32, %c0_i32_0 : i32, i32
  }
  func.func @transform_8(%arg0: i32) -> (i32, i32) {
    %c0_i32 = arith.constant 0 : i32
    %c0_i32_0 = arith.constant 0 : i32
    %c0_i32_1 = arith.constant 0 : i32
    return %c0_i32, %c0_i32_0 : i32, i32
  }
  func.func @transform_9(%arg0: i32) -> (i32, i32) {
    %c0_i32 = arith.constant 0 : i32
    %c0_i32_0 = arith.constant 0 : i32
    %c0_i32_1 = arith.constant 0 : i32
    return %c0_i32, %c0_i32_0 : i32, i32
  }
  func.func @transform_10(%arg0: i32) -> (i32, i32) {
    %c0_i32 = arith.constant 0 : i32
    %c0_i32_0 = arith.constant 0 : i32
    %c0_i32_1 = arith.constant 0 : i32
    return %c0_i32, %c0_i32_0 : i32, i32
  }
  func.func @transform_11(%arg0: i32) -> (i32, i32) {
    %c0_i32 = arith.constant 0 : i32
    %c0_i32_0 = arith.constant 0 : i32
    %c0_i32_1 = arith.constant 0 : i32
    return %c0_i32, %c0_i32_0 : i32, i32
  }
  func.func @transform_12(%arg0: i32) -> (i32, i32) {
    %c0_i32 = arith.constant 0 : i32
    %c0_i32_0 = arith.constant 0 : i32
    %c0_i32_1 = arith.constant 0 : i32
    return %c0_i32, %c0_i32_0 : i32, i32
  }
  func.func @transform_13(%arg0: i32) -> (i32, i32) {
    %c0_i32 = arith.constant 0 : i32
    %c0_i32_0 = arith.constant 0 : i32
    %c0_i32_1 = arith.constant 0 : i32
    return %c0_i32, %c0_i32_0 : i32, i32
  }
  func.func @transform_14(%arg0: i32) -> (i32, i32) {
    %c0_i32 = arith.constant 0 : i32
    %c0_i32_0 = arith.constant 0 : i32
    %c0_i32_1 = arith.constant 0 : i32
    return %c0_i32, %c0_i32_0 : i32, i32
  }
  func.func @transform_15(%arg0: i32) -> (i32, i32) {
    %c0_i32 = arith.constant 0 : i32
    %c0_i32_0 = arith.constant 0 : i32
    %c0_i32_1 = arith.constant 0 : i32
    return %c0_i32, %c0_i32_0 : i32, i32
  }
  func.func @transform_16(%arg0: i32) -> (i32, i32) {
    %c0_i32 = arith.constant 0 : i32
    %c0_i32_0 = arith.constant 0 : i32
    %c0_i32_1 = arith.constant 0 : i32
    return %c0_i32, %c0_i32_0 : i32, i32
  }
  func.func @transform_17(%arg0: i32) -> (i32, i32) {
    %c0_i32 = arith.constant 0 : i32
    %c0_i32_0 = arith.constant 0 : i32
    %c0_i32_1 = arith.constant 0 : i32
    return %c0_i32, %c0_i32_0 : i32, i32
  }
  func.func @transform_18(%arg0: i32) -> (i32, i32) {
    %c0_i32 = arith.constant 0 : i32
    %c0_i32_0 = arith.constant 0 : i32
    %c0_i32_1 = arith.constant 0 : i32
    return %c0_i32, %c0_i32_0 : i32, i32
  }
  func.func @transform_19(%arg0: i32) -> (i32, i32, i32) {
    %c0_i32 = arith.constant 0 : i32
    %c0_i32_0 = arith.constant 0 : i32
    %c0_i32_1 = arith.constant 0 : i32
    return %arg0, %c0_i32, %c0_i32_0 : i32, i32, i32
  }
}

</mosaic_0001>

<llo_original>
// kernel: autoencoder_forward.1
$region0: #{autoencoder_forward.1}
  #allocation0 [shape = 'u32[]', space=smem, size = 0x4, offset = 0x4, fixed_abs, tag = 'smem constant byte address 0x4 - core index']
  #allocation1 [shape = 'u32[144,128]{1,0:T(1,128)}', space=vmem, size = 0x12000, scoped, tag = 'internal scratch']
  #allocation2 [shape = 'f32[288,288]{1,0:T(8,128)}', space=vmem, size = 0x6c000, scoped, tag = 'scratch operand']
  #allocation3 [shape = 'f32[1,1]{1,0:T(1,128)S(1)}', space=vmem, size = 0x200, scoped, tag = 'scoped memory for autoencoder_forward.1']
  %s0 = inlined_call_operand.vmem [shape: f32[2,324,1], index: 0, kind: input, shape index: {}]
  %s1 = inlined_call_operand.hbm [shape: f32[9,8], index: 1, kind: input, shape index: {}]
  %s2 = inlined_call_operand.hbm [shape: f32[72,16], index: 2, kind: input, shape index: {}]
  %s3 = inlined_call_operand.hbm [shape: f32[144,32], index: 3, kind: input, shape index: {}]
  %s4 = inlined_call_operand.vmem [shape: f32[288,16], index: 4, kind: input, shape index: {}]
  %s5 = inlined_call_operand.vmem [shape: f32[144,8], index: 5, kind: input, shape index: {}]
  %s6 = inlined_call_operand.hbm [shape: f32[72,1], index: 6, kind: input, shape index: {}]
  %s7 = inlined_call_operand.hbm [shape: f32[1,8], index: 7, kind: input, shape index: {}]
  %s8 = inlined_call_operand.hbm [shape: f32[1,16], index: 8, kind: input, shape index: {}]
  %s9 = inlined_call_operand.vmem [shape: f32[1,32], index: 9, kind: input, shape index: {}]
  %s10 = inlined_call_operand.vmem [shape: f32[1,16], index: 10, kind: input, shape index: {}]
  %s11 = inlined_call_operand.vmem [shape: f32[1,8], index: 11, kind: input, shape index: {}]
  %s12 = inlined_call_operand.<no memory space> [shape: f32[1,1], index: 12, kind: input, shape index: {}]
  %s13 = inlined_call_operand.vmem [shape: f32[100,267], index: 13, kind: input, shape index: {}]
  %s14 = inlined_call_operand.hbm [shape: f32[36,67], index: 14, kind: input, shape index: {}]
  %s15 = inlined_call_operand.vmem [shape: f32[16,15], index: 15, kind: input, shape index: {}]
  %s16 = inlined_call_operand.vmem [shape: f32[36,6], index: 16, kind: input, shape index: {}]
  %s17 = inlined_call_operand.hbm [shape: f32[100,22], index: 17, kind: input, shape index: {}]
  %s18 = inlined_call_operand.hbm [shape: f32[256,78], index: 18, kind: input, shape index: {}]
  %s19 = inlined_call_operand.vmem [shape: f32[2,256,1], index: 19, kind: output, shape index: {}]
  %s20 = sld [smem:[#allocation0]]
  $region145: #{autoencoder_forward.1} parent=0
    _
  %s22 = ssub.s32 1, %s20
  %s23 = scalar_select 0, %s22, %s20
  %v24 = vstv %s12
  %25 = vst [vmem:[#allocation3] sm:$0x1] %v24
  $region1: #{autoencoder_forward.1} parent=0
    #allocation4 [shape = 'u8[8192]{0}', space=vmem, size = 0x2000, scoped, tag = 'input window, operand 1, single buffered']
    #allocation5 [shape = 's32[2]{0}', space=sflag, size = 0x8, scoped, tag = 'scoped memory for autoencoder_forward.1']
    #allocation6 [shape = 'u8[36864]{0}', space=vmem, size = 0x9000, scoped, tag = 'input window, operand 2, single buffered']
    #allocation7 [shape = 's32[1]{0}', space=sflag, size = 0x4, scoped, tag = 'scoped memory for autoencoder_forward.1']
    #allocation8 [shape = 'u8[73728]{0}', space=vmem, size = 0x12000, scoped, tag = 'input window, operand 3, single buffered']
    #allocation9 [shape = 'u8[36864]{0}', space=vmem, size = 0x9000, scoped, tag = 'input window, operand 6, single buffered']
    #allocation10 [shape = 's32[1]{0}', space=sflag, size = 0x4, scoped, tag = 'scoped memory for autoencoder_forward.1']
    #allocation11 [shape = 'u8[512]{0}', space=vmem, size = 0x400, scoped, tag = 'input window, operand 7, single buffered']
    #allocation12 [shape = 'u8[512]{0}', space=vmem, size = 0x400, scoped, tag = 'input window, operand 8, single buffered']
    #allocation13 [shape = 's32[1]{0}', space=sflag, size = 0x4, scoped, tag = 'scoped memory for autoencoder_forward.1']
    #allocation14 [shape = 'u8[20480]{0}', space=vmem, size = 0x5000, scoped, tag = 'input window, operand 14, single buffered']
    #allocation15 [shape = 'u8[53248]{0}', space=vmem, size = 0xd000, scoped, tag = 'input window, operand 17, single buffered']
    #allocation16 [shape = 's32[1]{0}', space=sflag, size = 0x4, scoped, tag = 'scoped memory for autoencoder_forward.1']
    #allocation17 [shape = 'u8[131072]{0}', space=vmem, size = 0x20000, scoped, tag = 'input window, operand 18, single buffered']
    %26 = vsyncpa [#allocation5], 0
    %27 = vsyncpa [#allocation7], 0
    %28 = vsyncpa [#allocation10], 0
    %29 = vsyncpa [#allocation13], 0
    %30 = vsyncpa [#allocation16], 0
    loop: start=0, step=1, limit=4
    $region2: #{autoencoder_forward.1} parent=1 // loop_pre_header
      _
    $region3: #{autoencoder_forward.1} parent=1 // loop_header
      %s32 = sphi 0, %s36
      %p33 = scmp.ge.s32.totalorder %s32, 4
      %s42 = sphi 0, %s44
      %s45 = sphi 0, %s42
      %s46 = sphi 0, %s45
      %s62 = sphi 0, %s46
      %s66 = sphi 0, %s66
      %s68 = sphi 0, %s66
      %s69 = sphi 0, %s68
      %s83 = sphi 0, %s69
      %s87 = sphi 0, %s87
      %s89 = sphi 0, %s87
      %s90 = sphi 0, %s89
      %s104 = sphi 0, %s90
      %s108 = sphi 0, %s108
      %s110 = sphi 0, %s108
      %s111 = sphi 0, %s110
      %s125 = sphi 0, %s111
      %s129 = sphi 0, %s129
      %s131 = sphi 0, %s129
      %s132 = sphi 0, %s131
      %s146 = sphi 0, %s132
      %s150 = sphi 0, %s150
      %s152 = sphi 0, %s150
      %s153 = sphi 0, %s152
      %s167 = sphi 0, %s153
      %s171 = sphi 0, %s171
      %s173 = sphi 0, %s171
      %s174 = sphi 0, %s173
      %s188 = sphi 0, %s174
      %s192 = sphi 0, %s192
      %s194 = sphi 0, %s192
      %s195 = sphi 0, %s194
      %s209 = sphi 0, %s195
      %s213 = sphi 0, %s213
      %s215 = sphi 0, %s213
      %s216 = sphi 0, %s215
      %s230 = sphi 0, %s216
      %s234 = sphi 0, %s234
      %s236 = sphi 0, %s234
      %s237 = sphi 0, %s236
      %s251 = sphi 0, %s237
      %s255 = sphi 0, %s255
      %s257 = sphi 0, %s255
      %s258 = sphi 0, %s257
      %s272 = sphi 0, %s258
      %s276 = sphi 0, %s276
      %s278 = sphi 0, %s276
      %s279 = sphi 0, %s278
      %s293 = sphi 0, %s279
      %s297 = sphi 0, %s297
      %s299 = sphi 0, %s297
      %s300 = sphi 0, %s299
      %s314 = sphi 0, %s300
      %s318 = sphi 0, %s318
      %s320 = sphi 0, %s318
      %s321 = sphi 0, %s320
      %s335 = sphi 0, %s321
      %s339 = sphi 0, %s339
      %s341 = sphi 0, %s339
      %s342 = sphi 0, %s341
      %s356 = sphi 0, %s342
      %s360 = sphi 0, %s360
      %s362 = sphi 0, %s360
      %s363 = sphi 0, %s362
      %s377 = sphi 0, %s363
      %s381 = sphi 0, %s381
      %s383 = sphi 0, %s381
      %s384 = sphi 0, %s383
      %s398 = sphi 0, %s384
      %s402 = sphi 0, %s402
      %s404 = sphi 0, %s402
      %s405 = sphi 0, %s404
      %s419 = sphi 0, %s405
      %s423 = sphi 0, %s423
      %s425 = sphi 0, %s423
      %s426 = sphi 0, %s425
      %s440 = sphi 0, %s426
      %s446 = sphi 0, %s448
      %s449 = sphi 0, %s446
      %s450 = sphi 0, %s449
      %s466 = sphi 0, %s450
    $region4: #{autoencoder_forward.1} parent=1 // loop_header_branch
      %35 = sbr.rel (%p33) target = $region8
    $region5: #{autoencoder_forward.1} parent=1 // loop_body
      %s37 = ssub.s32 %s32, 1
      %s38 = ssub.s32 %s32, 2
      %s39 = sadd.s32 %s32, 1
      %s40 = ssub.s32 %s32, %s39
      %p41 = scmp.eq.s32.totalorder %s40, 0
      %s43 = sadd.s32 %s42, 1
      %s44 = scalar_select %p41, %s42, %s43
      %p47 = pneg %p41
      %p48 = scmp.eq.s32.totalorder %s32, 1
      %p49 = por %p47, %p48
      %p50 = scmp.ne.s32.totalorder %s42, %s45
      %p51 = scmp.eq.s32.totalorder %s32, 0
      %p52 = por %p50, %p51
      %p53 = scmp.ne.s32.totalorder %s42, %s45
      %p54 = scmp.eq.s32.totalorder %s37, 1
      %p55 = por %p53, %p54
      %p56 = scmp.ne.s32.totalorder %s45, %s46
      %p57 = scmp.eq.s32.totalorder %s37, 0
      %p58 = por %p56, %p57
      %p59 = scmp.ne.s32.totalorder %s45, %s46
      %p60 = scmp.eq.s32.totalorder %s38, 1
      %p61 = por %p59, %p60
      %p63 = scmp.ne.s32.totalorder %s46, %s62
      %p64 = scmp.eq.s32.totalorder %s38, 0
      %p65 = por %p63, %p64
      %s67 = sadd.s32 %s66, 1
      %p70 = scmp.eq.s32.totalorder %s32, 1
      %p71 = scmp.ne.s32.totalorder %s66, %s68
      %p72 = scmp.eq.s32.totalorder %s32, 0
      %p73 = por %p71, %p72
      %p74 = scmp.ne.s32.totalorder %s66, %s68
      %p75 = scmp.eq.s32.totalorder %s37, 1
      %p76 = por %p74, %p75
      %p77 = scmp.ne.s32.totalorder %s68, %s69
      %p78 = scmp.eq.s32.totalorder %s37, 0
      %p79 = por %p77, %p78
      %p80 = scmp.ne.s32.totalorder %s68, %s69
      %p81 = scmp.eq.s32.totalorder %s38, 1
      %p82 = por %p80, %p81
      %p84 = scmp.ne.s32.totalorder %s69, %s83
      %p85 = scmp.eq.s32.totalorder %s38, 0
      %p86 = por %p84, %p85
      %s88 = sadd.s32 %s87, 1
      %p91 = scmp.eq.s32.totalorder %s32, 1
      %p92 = scmp.ne.s32.totalorder %s87, %s89
      %p93 = scmp.eq.s32.totalorder %s32, 0
      %p94 = por %p92, %p93
      %p95 = scmp.ne.s32.totalorder %s87, %s89
      %p96 = scmp.eq.s32.totalorder %s37, 1
      %p97 = por %p95, %p96
      %p98 = scmp.ne.s32.totalorder %s89, %s90
      %p99 = scmp.eq.s32.totalorder %s37, 0
      %p100 = por %p98, %p99
      %p101 = scmp.ne.s32.totalorder %s89, %s90
      %p102 = scmp.eq.s32.totalorder %s38, 1
      %p103 = por %p101, %p102
      %p105 = scmp.ne.s32.totalorder %s90, %s104
      %p106 = scmp.eq.s32.totalorder %s38, 0
      %p107 = por %p105, %p106
      %s109 = sadd.s32 %s108, 1
      %p112 = scmp.eq.s32.totalorder %s32, 1
      %p113 = scmp.ne.s32.totalorder %s108, %s110
      %p114 = scmp.eq.s32.totalorder %s32, 0
      %p115 = por %p113, %p114
      %p116 = scmp.ne.s32.totalorder %s108, %s110
      %p117 = scmp.eq.s32.totalorder %s37, 1
      %p118 = por %p116, %p117
      %p119 = scmp.ne.s32.totalorder %s110, %s111
      %p120 = scmp.eq.s32.totalorder %s37, 0
      %p121 = por %p119, %p120
      %p122 = scmp.ne.s32.totalorder %s110, %s111
      %p123 = scmp.eq.s32.totalorder %s38, 1
      %p124 = por %p122, %p123
      %p126 = scmp.ne.s32.totalorder %s111, %s125
      %p127 = scmp.eq.s32.totalorder %s38, 0
      %p128 = por %p126, %p127
      %s130 = sadd.s32 %s129, 1
      %p133 = scmp.eq.s32.totalorder %s32, 1
      %p134 = scmp.ne.s32.totalorder %s129, %s131
      %p135 = scmp.eq.s32.totalorder %s32, 0
      %p136 = por %p134, %p135
      %p137 = scmp.ne.s32.totalorder %s129, %s131
      %p138 = scmp.eq.s32.totalorder %s37, 1
      %p139 = por %p137, %p138
      %p140 = scmp.ne.s32.totalorder %s131, %s132
      %p141 = scmp.eq.s32.totalorder %s37, 0
      %p142 = por %p140, %p141
      %p143 = scmp.ne.s32.totalorder %s131, %s132
      %p144 = scmp.eq.s32.totalorder %s38, 1
      %p145 = por %p143, %p144
      %p147 = scmp.ne.s32.totalorder %s132, %s146
      %p148 = scmp.eq.s32.totalorder %s38, 0
      %p149 = por %p147, %p148
      %s151 = sadd.s32 %s150, 1
      %p154 = scmp.eq.s32.totalorder %s32, 1
      %p155 = scmp.ne.s32.totalorder %s150, %s152
      %p156 = scmp.eq.s32.totalorder %s32, 0
      %p157 = por %p155, %p156
      %p158 = scmp.ne.s32.totalorder %s150, %s152
      %p159 = scmp.eq.s32.totalorder %s37, 1
      %p160 = por %p158, %p159
      %p161 = scmp.ne.s32.totalorder %s152, %s153
      %p162 = scmp.eq.s32.totalorder %s37, 0
      %p163 = por %p161, %p162
      %p164 = scmp.ne.s32.totalorder %s152, %s153
      %p165 = scmp.eq.s32.totalorder %s38, 1
      %p166 = por %p164, %p165
      %p168 = scmp.ne.s32.totalorder %s153, %s167
      %p169 = scmp.eq.s32.totalorder %s38, 0
      %p170 = por %p168, %p169
      %s172 = sadd.s32 %s171, 1
      %p175 = scmp.eq.s32.totalorder %s32, 1
      %p176 = scmp.ne.s32.totalorder %s171, %s173
      %p177 = scmp.eq.s32.totalorder %s32, 0
      %p178 = por %p176, %p177
      %p179 = scmp.ne.s32.totalorder %s171, %s173
      %p180 = scmp.eq.s32.totalorder %s37, 1
      %p181 = por %p179, %p180
      %p182 = scmp.ne.s32.totalorder %s173, %s174
      %p183 = scmp.eq.s32.totalorder %s37, 0
      %p184 = por %p182, %p183
      %p185 = scmp.ne.s32.totalorder %s173, %s174
      %p186 = scmp.eq.s32.totalorder %s38, 1
      %p187 = por %p185, %p186
      %p189 = scmp.ne.s32.totalorder %s174, %s188
      %p190 = scmp.eq.s32.totalorder %s38, 0
      %p191 = por %p189, %p190
      %s193 = sadd.s32 %s192, 1
      %p196 = scmp.eq.s32.totalorder %s32, 1
      %p197 = scmp.ne.s32.totalorder %s192, %s194
      %p198 = scmp.eq.s32.totalorder %s32, 0
      %p199 = por %p197, %p198
      %p200 = scmp.ne.s32.totalorder %s192, %s194
      %p201 = scmp.eq.s32.totalorder %s37, 1
      %p202 = por %p200, %p201
      %p203 = scmp.ne.s32.totalorder %s194, %s195
      %p204 = scmp.eq.s32.totalorder %s37, 0
      %p205 = por %p203, %p204
      %p206 = scmp.ne.s32.totalorder %s194, %s195
      %p207 = scmp.eq.s32.totalorder %s38, 1
      %p208 = por %p206, %p207
      %p210 = scmp.ne.s32.totalorder %s195, %s209
      %p211 = scmp.eq.s32.totalorder %s38, 0
      %p212 = por %p210, %p211
      %s214 = sadd.s32 %s213, 1
      %p217 = scmp.eq.s32.totalorder %s32, 1
      %p218 = scmp.ne.s32.totalorder %s213, %s215
      %p219 = scmp.eq.s32.totalorder %s32, 0
      %p220 = por %p218, %p219
      %p221 = scmp.ne.s32.totalorder %s213, %s215
      %p222 = scmp.eq.s32.totalorder %s37, 1
      %p223 = por %p221, %p222
      %p224 = scmp.ne.s32.totalorder %s215, %s216
      %p225 = scmp.eq.s32.totalorder %s37, 0
      %p226 = por %p224, %p225
      %p227 = scmp.ne.s32.totalorder %s215, %s216
      %p228 = scmp.eq.s32.totalorder %s38, 1
      %p229 = por %p227, %p228
      %p231 = scmp.ne.s32.totalorder %s216, %s230
      %p232 = scmp.eq.s32.totalorder %s38, 0
      %p233 = por %p231, %p232
      %s235 = sadd.s32 %s234, 1
      %p238 = scmp.eq.s32.totalorder %s32, 1
      %p239 = scmp.ne.s32.totalorder %s234, %s236
      %p240 = scmp.eq.s32.totalorder %s32, 0
      %p241 = por %p239, %p240
      %p242 = scmp.ne.s32.totalorder %s234, %s236
      %p243 = scmp.eq.s32.totalorder %s37, 1
      %p244 = por %p242, %p243
      %p245 = scmp.ne.s32.totalorder %s236, %s237
      %p246 = scmp.eq.s32.totalorder %s37, 0
      %p247 = por %p245, %p246
      %p248 = scmp.ne.s32.totalorder %s236, %s237
      %p249 = scmp.eq.s32.totalorder %s38, 1
      %p250 = por %p248, %p249
      %p252 = scmp.ne.s32.totalorder %s237, %s251
      %p253 = scmp.eq.s32.totalorder %s38, 0
      %p254 = por %p252, %p253
      %s256 = sadd.s32 %s255, 1
      %p259 = scmp.eq.s32.totalorder %s32, 1
      %p260 = scmp.ne.s32.totalorder %s255, %s257
      %p261 = scmp.eq.s32.totalorder %s32, 0
      %p262 = por %p260, %p261
      %p263 = scmp.ne.s32.totalorder %s255, %s257
      %p264 = scmp.eq.s32.totalorder %s37, 1
      %p265 = por %p263, %p264
      %p266 = scmp.ne.s32.totalorder %s257, %s258
      %p267 = scmp.eq.s32.totalorder %s37, 0
      %p268 = por %p266, %p267
      %p269 = scmp.ne.s32.totalorder %s257, %s258
      %p270 = scmp.eq.s32.totalorder %s38, 1
      %p271 = por %p269, %p270
      %p273 = scmp.ne.s32.totalorder %s258, %s272
      %p274 = scmp.eq.s32.totalorder %s38, 0
      %p275 = por %p273, %p274
      %s277 = sadd.s32 %s276, 1
      %p280 = scmp.eq.s32.totalorder %s32, 1
      %p281 = scmp.ne.s32.totalorder %s276, %s278
      %p282 = scmp.eq.s32.totalorder %s32, 0
      %p283 = por %p281, %p282
      %p284 = scmp.ne.s32.totalorder %s276, %s278
      %p285 = scmp.eq.s32.totalorder %s37, 1
      %p286 = por %p284, %p285
      %p287 = scmp.ne.s32.totalorder %s278, %s279
      %p288 = scmp.eq.s32.totalorder %s37, 0
      %p289 = por %p287, %p288
      %p290 = scmp.ne.s32.totalorder %s278, %s279
      %p291 = scmp.eq.s32.totalorder %s38, 1
      %p292 = por %p290, %p291
      %p294 = scmp.ne.s32.totalorder %s279, %s293
      %p295 = scmp.eq.s32.totalorder %s38, 0
      %p296 = por %p294, %p295
      %s298 = sadd.s32 %s297, 1
      %p301 = scmp.eq.s32.totalorder %s32, 1
      %p302 = scmp.ne.s32.totalorder %s297, %s299
      %p303 = scmp.eq.s32.totalorder %s32, 0
      %p304 = por %p302, %p303
      %p305 = scmp.ne.s32.totalorder %s297, %s299
      %p306 = scmp.eq.s32.totalorder %s37, 1
      %p307 = por %p305, %p306
      %p308 = scmp.ne.s32.totalorder %s299, %s300
      %p309 = scmp.eq.s32.totalorder %s37, 0
      %p310 = por %p308, %p309
      %p311 = scmp.ne.s32.totalorder %s299, %s300
      %p312 = scmp.eq.s32.totalorder %s38, 1
      %p313 = por %p311, %p312
      %p315 = scmp.ne.s32.totalorder %s300, %s314
      %p316 = scmp.eq.s32.totalorder %s38, 0
      %p317 = por %p315, %p316
      %s319 = sadd.s32 %s318, 1
      %p322 = scmp.eq.s32.totalorder %s32, 1
      %p323 = scmp.ne.s32.totalorder %s318, %s320
      %p324 = scmp.eq.s32.totalorder %s32, 0
      %p325 = por %p323, %p324
      %p326 = scmp.ne.s32.totalorder %s318, %s320
      %p327 = scmp.eq.s32.totalorder %s37, 1
      %p328 = por %p326, %p327
      %p329 = scmp.ne.s32.totalorder %s320, %s321
      %p330 = scmp.eq.s32.totalorder %s37, 0
      %p331 = por %p329, %p330
      %p332 = scmp.ne.s32.totalorder %s320, %s321
      %p333 = scmp.eq.s32.totalorder %s38, 1
      %p334 = por %p332, %p333
      %p336 = scmp.ne.s32.totalorder %s321, %s335
      %p337 = scmp.eq.s32.totalorder %s38, 0
      %p338 = por %p336, %p337
      %s340 = sadd.s32 %s339, 1
      %p343 = scmp.eq.s32.totalorder %s32, 1
      %p344 = scmp.ne.s32.totalorder %s339, %s341
      %p345 = scmp.eq.s32.totalorder %s32, 0
      %p346 = por %p344, %p345
      %p347 = scmp.ne.s32.totalorder %s339, %s341
      %p348 = scmp.eq.s32.totalorder %s37, 1
      %p349 = por %p347, %p348
      %p350 = scmp.ne.s32.totalorder %s341, %s342
      %p351 = scmp.eq.s32.totalorder %s37, 0
      %p352 = por %p350, %p351
      %p353 = scmp.ne.s32.totalorder %s341, %s342
      %p354 = scmp.eq.s32.totalorder %s38, 1
      %p355 = por %p353, %p354
      %p357 = scmp.ne.s32.totalorder %s342, %s356
      %p358 = scmp.eq.s32.totalorder %s38, 0
      %p359 = por %p357, %p358
      %s361 = sadd.s32 %s360, 1
      %p364 = scmp.eq.s32.totalorder %s32, 1
      %p365 = scmp.ne.s32.totalorder %s360, %s362
      %p366 = scmp.eq.s32.totalorder %s32, 0
      %p367 = por %p365, %p366
      %p368 = scmp.ne.s32.totalorder %s360, %s362
      %p369 = scmp.eq.s32.totalorder %s37, 1
      %p370 = por %p368, %p369
      %p371 = scmp.ne.s32.totalorder %s362, %s363
      %p372 = scmp.eq.s32.totalorder %s37, 0
      %p373 = por %p371, %p372
      %p374 = scmp.ne.s32.totalorder %s362, %s363
      %p375 = scmp.eq.s32.totalorder %s38, 1
      %p376 = por %p374, %p375
      %p378 = scmp.ne.s32.totalorder %s363, %s377
      %p379 = scmp.eq.s32.totalorder %s38, 0
      %p380 = por %p378, %p379
      %s382 = sadd.s32 %s381, 1
      %p385 = scmp.eq.s32.totalorder %s32, 1
      %p386 = scmp.ne.s32.totalorder %s381, %s383
      %p387 = scmp.eq.s32.totalorder %s32, 0
      %p388 = por %p386, %p387
      %p389 = scmp.ne.s32.totalorder %s381, %s383
      %p390 = scmp.eq.s32.totalorder %s37, 1
      %p391 = por %p389, %p390
      %p392 = scmp.ne.s32.totalorder %s383, %s384
      %p393 = scmp.eq.s32.totalorder %s37, 0
      %p394 = por %p392, %p393
      %p395 = scmp.ne.s32.totalorder %s383, %s384
      %p396 = scmp.eq.s32.totalorder %s38, 1
      %p397 = por %p395, %p396
      %p399 = scmp.ne.s32.totalorder %s384, %s398
      %p400 = scmp.eq.s32.totalorder %s38, 0
      %p401 = por %p399, %p400
      %s403 = sadd.s32 %s402, 1
      %p406 = scmp.eq.s32.totalorder %s32, 1
      %p407 = scmp.ne.s32.totalorder %s402, %s404
      %p408 = scmp.eq.s32.totalorder %s32, 0
      %p409 = por %p407, %p408
      %p410 = scmp.ne.s32.totalorder %s402, %s404
      %p411 = scmp.eq.s32.totalorder %s37, 1
      %p412 = por %p410, %p411
      %p413 = scmp.ne.s32.totalorder %s404, %s405
      %p414 = scmp.eq.s32.totalorder %s37, 0
      %p415 = por %p413, %p414
      %p416 = scmp.ne.s32.totalorder %s404, %s405
      %p417 = scmp.eq.s32.totalorder %s38, 1
      %p418 = por %p416, %p417
      %p420 = scmp.ne.s32.totalorder %s405, %s419
      %p421 = scmp.eq.s32.totalorder %s38, 0
      %p422 = por %p420, %p421
      %s424 = sadd.s32 %s423, 1
      %p427 = scmp.eq.s32.totalorder %s32, 1
      %p428 = scmp.ne.s32.totalorder %s423, %s425
      %p429 = scmp.eq.s32.totalorder %s32, 0
      %p430 = por %p428, %p429
      %p431 = scmp.ne.s32.totalorder %s423, %s425
      %p432 = scmp.eq.s32.totalorder %s37, 1
      %p433 = por %p431, %p432
      %p434 = scmp.ne.s32.totalorder %s425, %s426
      %p435 = scmp.eq.s32.totalorder %s37, 0
      %p436 = por %p434, %p435
      %p437 = scmp.ne.s32.totalorder %s425, %s426
      %p438 = scmp.eq.s32.totalorder %s38, 1
      %p439 = por %p437, %p438
      %p441 = scmp.ne.s32.totalorder %s426, %s440
      %p442 = scmp.eq.s32.totalorder %s38, 0
      %p443 = por %p441, %p442
      %s444 = ssub.s32 %s32, %s39
      %p445 = scmp.eq.s32.totalorder %s444, 0
      %s447 = sadd.s32 %s446, 1
      %s448 = scalar_select %p445, %s446, %s447
      %p451 = pneg %p445
      %p452 = scmp.eq.s32.totalorder %s32, 1
      %p453 = por %p451, %p452
      %p454 = scmp.ne.s32.totalorder %s446, %s449
      %p455 = scmp.eq.s32.totalorder %s32, 0
      %p456 = por %p454, %p455
      %p457 = scmp.ne.s32.totalorder %s446, %s449
      %p458 = scmp.eq.s32.totalorder %s37, 1
      %p459 = por %p457, %p458
      %p460 = scmp.ne.s32.totalorder %s449, %s450
      %p461 = scmp.eq.s32.totalorder %s37, 0
      %p462 = por %p460, %p461
      %p463 = scmp.ne.s32.totalorder %s449, %s450
      %p464 = scmp.eq.s32.totalorder %s38, 1
      %p465 = por %p463, %p464
      %p467 = scmp.ne.s32.totalorder %s450, %s466
      %p468 = scmp.eq.s32.totalorder %s38, 0
      %p469 = por %p467, %p468
      %p470 = scmp.le.s32.totalorder 1, %s32
      %p471 = scmp.lt.s32.totalorder %s32, 3
      %p472 = pnand %p470, %p471
      %p473 = pneg %p472
      // Predicated region
      $region9: #{autoencoder_forward.1} parent=5 // pred_check
        _
      $region10: #{autoencoder_forward.1} parent=5 // pred_check_branch
        %475 = sbr.rel (%p472) target = $region12
      $region11: #{autoencoder_forward.1} parent=5 // pred_region
        %s476 = ssub.s32 %s32, 1
        // Predicated region
        $region13: #{autoencoder_forward.1} parent=11 // pred_check
          %p477 = pneg %p79
        $region14: #{autoencoder_forward.1} parent=11 // pred_check_branch
          %479 = sbr.rel (%p477) target = $region16
        $region15: #{autoencoder_forward.1} parent=11 // pred_region
          %s481 = ssub.s32 256, 256
          %482 = vsyncadd [#allocation5], %s481
          %s483 = sshll.u32 [#allocation4], 4
          %s484 = int_to_ptr.vmem [resolvable:$true] %s483
          %489 = dma.hbm_to_vmem [thread:$0]  %s1, 256, %s484, [#allocation5], 128, 128, 8
        $region16: #{autoencoder_forward.1} parent=11 // pred_fallthru
          _
        // Predicated region
        $region17: #{autoencoder_forward.1} parent=11 // pred_check
          %p490 = pneg %p100
        $region18: #{autoencoder_forward.1} parent=11 // pred_check_branch
          %492 = sbr.rel (%p490) target = $region20
        $region19: #{autoencoder_forward.1} parent=11 // pred_region
          %s494 = ssub.s32 1152, 1152
          %495 = vsyncadd [#allocation7], %s494
          %s496 = sshll.u32 [#allocation6], 4
          %s497 = int_to_ptr.vmem [resolvable:$true] %s496
          %502 = dma.hbm_to_vmem [thread:$0]  %s2, 1152, %s497, [#allocation7], 128, 128, 8
        $region20: #{autoencoder_forward.1} parent=11 // pred_fallthru
          _
        // Predicated region
        $region21: #{autoencoder_forward.1} parent=11 // pred_check
          %p503 = pneg %p121
        $region22: #{autoencoder_forward.1} parent=11 // pred_check_branch
          %505 = sbr.rel (%p503) target = $region24
        $region23: #{autoencoder_forward.1} parent=11 // pred_region
          %s507 = ssub.s32 2304, 2304
          %508 = vsyncadd [#allocation7], %s507
          %s509 = sshll.u32 [#allocation8], 4
          %s510 = int_to_ptr.vmem [resolvable:$true] %s509
          %515 = dma.hbm_to_vmem [thread:$0]  %s3, 2304, %s510, [#allocation7], 128, 128, 8
        $region24: #{autoencoder_forward.1} parent=11 // pred_fallthru
          _
        // Predicated region
        $region25: #{autoencoder_forward.1} parent=11 // pred_check
          %p516 = pneg %p142
        $region26: #{autoencoder_forward.1} parent=11 // pred_check_branch
          %518 = sbr.rel (%p516) target = $region28
        $region27: #{autoencoder_forward.1} parent=11 // pred_region
          _
        $region28: #{autoencoder_forward.1} parent=11 // pred_fallthru
          _
        // Predicated region
        $region29: #{autoencoder_forward.1} parent=11 // pred_check
          %p519 = pneg %p163
        $region30: #{autoencoder_forward.1} parent=11 // pred_check_branch
          %521 = sbr.rel (%p519) target = $region32
        $region31: #{autoencoder_forward.1} parent=11 // pred_region
          _
        $region32: #{autoencoder_forward.1} parent=11 // pred_fallthru
          _
        // Predicated region
        $region33: #{autoencoder_forward.1} parent=11 // pred_check
          %p522 = pneg %p184
        $region34: #{autoencoder_forward.1} parent=11 // pred_check_branch
          %524 = sbr.rel (%p522) target = $region36
        $region35: #{autoencoder_forward.1} parent=11 // pred_region
          %s526 = ssub.s32 1152, 1152
          %527 = vsyncadd [#allocation10], %s526
          %s528 = sshll.u32 [#allocation9], 4
          %s529 = int_to_ptr.vmem [resolvable:$true] %s528
          %534 = dma.hbm_to_vmem [thread:$0]  %s6, 1152, %s529, [#allocation10], 128, 128, 8
        $region36: #{autoencoder_forward.1} parent=11 // pred_fallthru
          _
        // Predicated region
        $region37: #{autoencoder_forward.1} parent=11 // pred_check
          %p535 = pneg %p205
        $region38: #{autoencoder_forward.1} parent=11 // pred_check_branch
          %537 = sbr.rel (%p535) target = $region40
        $region39: #{autoencoder_forward.1} parent=11 // pred_region
          %s539 = ssub.s32 16, 16
          %540 = vsyncadd [#allocation10], %s539
          %s542 = sshll.u32 [#allocation11], 4
          %s543 = int_to_ptr.vmem [resolvable:$true] %s542
          %545 = dma.hbm_to_vmem [thread:$0]  %s7, 16, %s543, [#allocation10]
        $region40: #{autoencoder_forward.1} parent=11 // pred_fallthru
          _
        // Predicated region
        $region41: #{autoencoder_forward.1} parent=11 // pred_check
          %p546 = pneg %p226
        $region42: #{autoencoder_forward.1} parent=11 // pred_check_branch
          %548 = sbr.rel (%p546) target = $region44
        $region43: #{autoencoder_forward.1} parent=11 // pred_region
          %s550 = ssub.s32 16, 16
          %551 = vsyncadd [#allocation13], %s550
          %s553 = sshll.u32 [#allocation12], 4
          %s554 = int_to_ptr.vmem [resolvable:$true] %s553
          %556 = dma.hbm_to_vmem [thread:$0]  %s8, 16, %s554, [#allocation13]
        $region44: #{autoencoder_forward.1} parent=11 // pred_fallthru
          _
        // Predicated region
        $region45: #{autoencoder_forward.1} parent=11 // pred_check
          %p557 = pneg %p247
        $region46: #{autoencoder_forward.1} parent=11 // pred_check_branch
          %559 = sbr.rel (%p557) target = $region48
        $region47: #{autoencoder_forward.1} parent=11 // pred_region
          _
        $region48: #{autoencoder_forward.1} parent=11 // pred_fallthru
          _
        // Predicated region
        $region49: #{autoencoder_forward.1} parent=11 // pred_check
          %p560 = pneg %p268
        $region50: #{autoencoder_forward.1} parent=11 // pred_check_branch
          %562 = sbr.rel (%p560) target = $region52
        $region51: #{autoencoder_forward.1} parent=11 // pred_region
          _
        $region52: #{autoencoder_forward.1} parent=11 // pred_fallthru
          _
        // Predicated region
        $region53: #{autoencoder_forward.1} parent=11 // pred_check
          %p563 = pneg %p289
        $region54: #{autoencoder_forward.1} parent=11 // pred_check_branch
          %565 = sbr.rel (%p563) target = $region56
        $region55: #{autoencoder_forward.1} parent=11 // pred_region
          _
        $region56: #{autoencoder_forward.1} parent=11 // pred_fallthru
          _
        // Predicated region
        $region57: #{autoencoder_forward.1} parent=11 // pred_check
          %p566 = pneg %p310
        $region58: #{autoencoder_forward.1} parent=11 // pred_check_branch
          %568 = sbr.rel (%p566) target = $region60
        $region59: #{autoencoder_forward.1} parent=11 // pred_region
          _
        $region60: #{autoencoder_forward.1} parent=11 // pred_fallthru
          _
        // Predicated region
        $region61: #{autoencoder_forward.1} parent=11 // pred_check
          %p569 = pneg %p331
        $region62: #{autoencoder_forward.1} parent=11 // pred_check_branch
          %571 = sbr.rel (%p569) target = $region64
        $region63: #{autoencoder_forward.1} parent=11 // pred_region
          _
        $region64: #{autoencoder_forward.1} parent=11 // pred_fallthru
          _
        // Predicated region
        $region65: #{autoencoder_forward.1} parent=11 // pred_check
          %p572 = pneg %p352
        $region66: #{autoencoder_forward.1} parent=11 // pred_check_branch
          %574 = sbr.rel (%p572) target = $region68
        $region67: #{autoencoder_forward.1} parent=11 // pred_region
          %s576 = ssub.s32 640, 640
          %577 = vsyncadd [#allocation13], %s576
          %s578 = sshll.u32 [#allocation14], 4
          %s579 = int_to_ptr.vmem [resolvable:$true] %s578
          %584 = dma.hbm_to_vmem [thread:$0]  %s14, 640, %s579, [#allocation13], 128, 128, 8
        $region68: #{autoencoder_forward.1} parent=11 // pred_fallthru
          _
        // Predicated region
        $region69: #{autoencoder_forward.1} parent=11 // pred_check
          %p585 = pneg %p373
        $region70: #{autoencoder_forward.1} parent=11 // pred_check_branch
          %587 = sbr.rel (%p585) target = $region72
        $region71: #{autoencoder_forward.1} parent=11 // pred_region
          _
        $region72: #{autoencoder_forward.1} parent=11 // pred_fallthru
          _
        // Predicated region
        $region73: #{autoencoder_forward.1} parent=11 // pred_check
          %p588 = pneg %p394
        $region74: #{autoencoder_forward.1} parent=11 // pred_check_branch
          %590 = sbr.rel (%p588) target = $region76
        $region75: #{autoencoder_forward.1} parent=11 // pred_region
          _
        $region76: #{autoencoder_forward.1} parent=11 // pred_fallthru
          _
        // Predicated region
        $region77: #{autoencoder_forward.1} parent=11 // pred_check
          %p591 = pneg %p415
        $region78: #{autoencoder_forward.1} parent=11 // pred_check_branch
          %593 = sbr.rel (%p591) target = $region80
        $region79: #{autoencoder_forward.1} parent=11 // pred_region
          %s595 = ssub.s32 1664, 1664
          %596 = vsyncadd [#allocation16], %s595
          %s597 = sshll.u32 [#allocation15], 4
          %s598 = int_to_ptr.vmem [resolvable:$true] %s597
          %603 = dma.hbm_to_vmem [thread:$0]  %s17, 1664, %s598, [#allocation16], 128, 128, 8
        $region80: #{autoencoder_forward.1} parent=11 // pred_fallthru
          _
        // Predicated region
        $region81: #{autoencoder_forward.1} parent=11 // pred_check
          %p604 = pneg %p436
        $region82: #{autoencoder_forward.1} parent=11 // pred_check_branch
          %606 = sbr.rel (%p604) target = $region84
        $region83: #{autoencoder_forward.1} parent=11 // pred_region
          %s608 = ssub.s32 4096, 4096
          %609 = vsyncadd [#allocation16], %s608
          %s610 = sshll.u32 [#allocation17], 4
          %s611 = int_to_ptr.vmem [resolvable:$true] %s610
          %616 = dma.hbm_to_vmem [thread:$0]  %s18, 4096, %s611, [#allocation16], 128, 128, 8
        $region84: #{autoencoder_forward.1} parent=11 // pred_fallthru
          _
      $region12: #{autoencoder_forward.1} parent=5 // pred_fallthru
        _
      %p617 = scmp.lt.s32.totalorder %s32, 2
      // Predicated region
      $region85: #{autoencoder_forward.1} parent=5 // pred_check
        %p618 = pneg %p617
      $region86: #{autoencoder_forward.1} parent=5 // pred_check_branch
        %620 = sbr.rel (%p618) target = $region88
      $region87: #{autoencoder_forward.1} parent=5 // pred_region
        // Predicated region
        $region89: #{autoencoder_forward.1} parent=87 // pred_check
          %p621 = pneg %p52
        $region90: #{autoencoder_forward.1} parent=87 // pred_check_branch
          %623 = sbr.rel (%p621) target = $region92
        $region91: #{autoencoder_forward.1} parent=87 // pred_region
          %p624 = scmp.lt.s32.totalorder %s32, 1
          %s625 = scalar_select %p624, %s32, 1
          %s626 = smul.addr %s625, 41
          %s627 = smul.addr %s626, 8
          %s628 = scalar_lea.vmem %s0, %s627
        $region92: #{autoencoder_forward.1} parent=87 // pred_fallthru
          _
      $region88: #{autoencoder_forward.1} parent=5 // pred_fallthru
        _
      %p629 = scmp.le.s32.totalorder 1, %s32
      %p630 = scmp.lt.s32.totalorder %s32, 3
      %p631 = pnand %p629, %p630
      %p632 = pneg %p631
      // Predicated region
      $region93: #{autoencoder_forward.1} parent=5 // pred_check
        _
      $region94: #{autoencoder_forward.1} parent=5 // pred_check_branch
        %634 = sbr.rel (%p631) target = $region96
      $region95: #{autoencoder_forward.1} parent=5 // pred_region
        %s635 = ssub.s32 %s32, 1
        // Predicated region
        $region97: #{autoencoder_forward.1} parent=95 // pred_check
          %p636 = pneg %p79
        $region98: #{autoencoder_forward.1} parent=95 // pred_check_branch
          %638 = sbr.rel (%p636) target = $region100
        $region99: #{autoencoder_forward.1} parent=95 // pred_region
          %639 = dma.done [#allocation5], 256
        $region100: #{autoencoder_forward.1} parent=95 // pred_fallthru
          _
        // Predicated region
        $region101: #{autoencoder_forward.1} parent=95 // pred_check
          %p640 = pneg %p100
        $region102: #{autoencoder_forward.1} parent=95 // pred_check_branch
          %642 = sbr.rel (%p640) target = $region104
        $region103: #{autoencoder_forward.1} parent=95 // pred_region
          %643 = dma.done [#allocation7], 1152
        $region104: #{autoencoder_forward.1} parent=95 // pred_fallthru
          _
        // Predicated region
        $region105: #{autoencoder_forward.1} parent=95 // pred_check
          %p644 = pneg %p121
        $region106: #{autoencoder_forward.1} parent=95 // pred_check_branch
          %646 = sbr.rel (%p644) target = $region108
        $region107: #{autoencoder_forward.1} parent=95 // pred_region
          %647 = dma.done [#allocation7], 2304
        $region108: #{autoencoder_forward.1} parent=95 // pred_fallthru
          _
        // Predicated region
        $region109: #{autoencoder_forward.1} parent=95 // pred_check
          %p648 = pneg %p184
        $region110: #{autoencoder_forward.1} parent=95 // pred_check_branch
          %650 = sbr.rel (%p648) target = $region112
        $region111: #{autoencoder_forward.1} parent=95 // pred_region
          %651 = dma.done [#allocation10], 1152
        $region112: #{autoencoder_forward.1} parent=95 // pred_fallthru
          _
        // Predicated region
        $region113: #{autoencoder_forward.1} parent=95 // pred_check
          %p652 = pneg %p205
        $region114: #{autoencoder_forward.1} parent=95 // pred_check_branch
          %654 = sbr.rel (%p652) target = $region116
        $region115: #{autoencoder_forward.1} parent=95 // pred_region
          %655 = dma.done [#allocation10], 16
        $region116: #{autoencoder_forward.1} parent=95 // pred_fallthru
          _
        // Predicated region
        $region117: #{autoencoder_forward.1} parent=95 // pred_check
          %p656 = pneg %p226
        $region118: #{autoencoder_forward.1} parent=95 // pred_check_branch
          %658 = sbr.rel (%p656) target = $region120
        $region119: #{autoencoder_forward.1} parent=95 // pred_region
          %659 = dma.done [#allocation13], 16
        $region120: #{autoencoder_forward.1} parent=95 // pred_fallthru
          _
        // Predicated region
        $region121: #{autoencoder_forward.1} parent=95 // pred_check
          %p660 = pneg %p352
        $region122: #{autoencoder_forward.1} parent=95 // pred_check_branch
          %662 = sbr.rel (%p660) target = $region124
        $region123: #{autoencoder_forward.1} parent=95 // pred_region
          %663 = dma.done [#allocation13], 640
        $region124: #{autoencoder_forward.1} parent=95 // pred_fallthru
          _
        // Predicated region
        $region125: #{autoencoder_forward.1} parent=95 // pred_check
          %p664 = pneg %p415
        $region126: #{autoencoder_forward.1} parent=95 // pred_check_branch
          %666 = sbr.rel (%p664) target = $region128
        $region127: #{autoencoder_forward.1} parent=95 // pred_region
          %667 = dma.done [#allocation16], 1664
        $region128: #{autoencoder_forward.1} parent=95 // pred_fallthru
          _
        // Predicated region
        $region129: #{autoencoder_forward.1} parent=95 // pred_check
          %p668 = pneg %p436
        $region130: #{autoencoder_forward.1} parent=95 // pred_check_branch
          %670 = sbr.rel (%p668) target = $region132
        $region131: #{autoencoder_forward.1} parent=95 // pred_region
          %671 = dma.done [#allocation16], 4096
        $region132: #{autoencoder_forward.1} parent=95 // pred_fallthru
          _
        %p672 = scmp.lt.s32.totalorder %s37, 1
        %s673 = scalar_select %p672, %s37, 1
        %s674 = smul.addr %s673, 41
        %s675 = smul.addr %s674, 8
        %s676 = scalar_lea.vmem %s0, %s675
        %p677 = pneg %p58
        %p678 = pneg %p55
        %p679 = pneg %p79
        %p680 = pneg %p76
        %p681 = pneg %p100
        %p682 = pneg %p97
        %p683 = pneg %p121
        %p684 = pneg %p118
        %p685 = pneg %p142
        %p686 = pneg %p139
        %p687 = pneg %p163
        %p688 = pneg %p160
        %p689 = pneg %p184
        %p690 = pneg %p181
        %p691 = pneg %p205
        %p692 = pneg %p202
        %p693 = pneg %p226
        %p694 = pneg %p223
        %p695 = pneg %p247
        %p696 = pneg %p244
        %p697 = pneg %p268
        %p698 = pneg %p265
        %p699 = pneg %p289
        %p700 = pneg %p286
        %p701 = pneg %p310
        %p702 = pneg %p307
        %p703 = pneg %p331
        %p704 = pneg %p328
        %p705 = pneg %p352
        %p706 = pneg %p349
        %p707 = pneg %p373
        %p708 = pneg %p370
        %p709 = pneg %p394
        %p710 = pneg %p391
        %p711 = pneg %p415
        %p712 = pneg %p412
        %p713 = pneg %p436
        %p714 = pneg %p433
        %p715 = pneg %p462
        %p716 = pneg %p459
        %p717 = scmp.lt.s32.totalorder %s37, 1
        %s718 = scalar_select %p717, %s37, 1
        %s719 = smul.addr %s718, 32
        %s720 = smul.addr %s719, 8
        %s721 = scalar_lea.vmem %s19, %s720
        %p722 = scmp.lt.s32.totalorder %s37, 1
        %s723 = scalar_select %p722, %s37, 1
        %s724 = smul.addr %s723, 41
        %s725 = smul.addr %s724, 8
        %s726 = scalar_lea.vmem %s0, %s725
        %p727 = scmp.lt.s32.totalorder %s37, 1
        %s728 = scalar_select %p727, %s37, 1
        %s729 = smul.addr %s728, 32
        %s730 = smul.addr %s729, 8
        %s731 = scalar_lea.vmem %s19, %s730
        %v732 = vld [vmem:[%s726] sm:$0xff]
        %v733 = vld [vmem:[%s726 + $0x8] sm:$0xff]
        %v734 = vld [vmem:[%s726 + $0x10] sm:$0xff]
        %v735 = vld [vmem:[%s726 + $0x18] sm:$0xff]
        %v736 = vld [vmem:[%s726 + $0x20] sm:$0xff]
        %v737 = vld [vmem:[%s726 + $0x28] sm:$0xff]
        %v738 = vld [vmem:[%s726 + $0x30] sm:$0xff]
        %v739 = vld [vmem:[%s726 + $0x38] sm:$0xff]
        %v740 = vld [vmem:[%s726 + $0x40] sm:$0xff]
        %v741 = vld [vmem:[%s726 + $0x48] sm:$0xff]
        %v742 = vld [vmem:[%s726 + $0x50] sm:$0xff]
        %v743 = vld [vmem:[%s726 + $0x58] sm:$0xff]
        %v744 = vld [vmem:[%s726 + $0x60] sm:$0xff]
        %v745 = vld [vmem:[%s726 + $0x68] sm:$0xff]
        %v746 = vld [vmem:[%s726 + $0x70] sm:$0xff]
        %v747 = vld [vmem:[%s726 + $0x78] sm:$0xff]
        %v748 = vld [vmem:[%s726 + $0x80] sm:$0xff]
        %v749 = vld [vmem:[%s726 + $0x88] sm:$0xff]
        %v750 = vld [vmem:[%s726 + $0x90] sm:$0xff]
        %v751 = vld [vmem:[%s726 + $0x98] sm:$0xff]
        %v752 = vld [vmem:[%s726 + $0xa0] sm:$0xff]
        %v753 = vld [vmem:[%s726 + $0xa8] sm:$0xff]
        %v754 = vld [vmem:[%s726 + $0xb0] sm:$0xff]
        %v755 = vld [vmem:[%s726 + $0xb8] sm:$0xff]
        %v756 = vld [vmem:[%s726 + $0xc0] sm:$0xff]
        %v757 = vld [vmem:[%s726 + $0xc8] sm:$0xff]
        %v758 = vld [vmem:[%s726 + $0xd0] sm:$0xff]
        %v759 = vld [vmem:[%s726 + $0xd8] sm:$0xff]
        %v760 = vld [vmem:[%s726 + $0xe0] sm:$0xff]
        %v761 = vld [vmem:[%s726 + $0xe8] sm:$0xff]
        %v762 = vld [vmem:[%s726 + $0xf0] sm:$0xff]
        %v763 = vld [vmem:[%s726 + $0xf8] sm:$0xff]
        %v764 = vld [vmem:[%s726 + $0x100] sm:$0xff]
        %v765 = vld [vmem:[%s726 + $0x108] sm:$0xff]
        %v766 = vld [vmem:[%s726 + $0x110] sm:$0xff]
        %v767 = vld [vmem:[%s726 + $0x118] sm:$0xff]
        %v768 = vld [vmem:[%s726 + $0x120] sm:$0xff]
        %v769 = vld [vmem:[%s726 + $0x128] sm:$0xff]
        %v770 = vld [vmem:[%s726 + $0x130] sm:$0xff]
        %v771 = vld [vmem:[%s726 + $0x138] sm:$0xff]
        %v772 = vld [vmem:[%s726 + $0x140] sm:$0xf]
        %vm773 = vcmask 7168
        %774 = vst.msk [vmem:[#allocation2] sm:$0xff] %vm773, %v732
        %775 = vst.msk [vmem:[#allocation2 + $0x18] sm:$0xff] %vm773, %v733
        %776 = vst.msk [vmem:[#allocation2 + $0x30] sm:$0xff] %vm773, %v734
        %777 = vst.msk [vmem:[#allocation2 + $0x48] sm:$0xff] %vm773, %v735
        %778 = vst.msk [vmem:[#allocation2 + $0x60] sm:$0xff] %vm773, %v736
        %779 = vst.msk [vmem:[#allocation2 + $0x78] sm:$0xff] %vm773, %v737
        %780 = vst.msk [vmem:[#allocation2 + $0x90] sm:$0xff] %vm773, %v738
        %781 = vst.msk [vmem:[#allocation2 + $0xa8] sm:$0xff] %vm773, %v739
        %782 = vst.msk [vmem:[#allocation2 + $0xc0] sm:$0xff] %vm773, %v740
        %783 = vst.msk [vmem:[#allocation2 + $0xd8] sm:$0xff] %vm773, %v741
        %784 = vst.msk [vmem:[#allocation2 + $0xf0] sm:$0xff] %vm773, %v742
        %785 = vst.msk [vmem:[#allocation2 + $0x108] sm:$0xff] %vm773, %v743
        %786 = vst.msk [vmem:[#allocation2 + $0x120] sm:$0xff] %vm773, %v744
        %787 = vst.msk [vmem:[#allocation2 + $0x138] sm:$0xff] %vm773, %v745
        %788 = vst.msk [vmem:[#allocation2 + $0x150] sm:$0xff] %vm773, %v746
        %789 = vst.msk [vmem:[#allocation2 + $0x168] sm:$0xff] %vm773, %v747
        %790 = vst.msk [vmem:[#allocation2 + $0x180] sm:$0xff] %vm773, %v748
        %791 = vst.msk [vmem:[#allocation2 + $0x198] sm:$0xff] %vm773, %v749
        %792 = vst.msk [vmem:[#allocation2 + $0x1b0] sm:$0xff] %vm773, %v750
        %793 = vst.msk [vmem:[#allocation2 + $0x1c8] sm:$0xff] %vm773, %v751
        %794 = vst.msk [vmem:[#allocation2 + $0x1e0] sm:$0xff] %vm773, %v752
        %795 = vst.msk [vmem:[#allocation2 + $0x1f8] sm:$0xff] %vm773, %v753
        %796 = vst.msk [vmem:[#allocation2 + $0x210] sm:$0xff] %vm773, %v754
        %797 = vst.msk [vmem:[#allocation2 + $0x228] sm:$0xff] %vm773, %v755
        %798 = vst.msk [vmem:[#allocation2 + $0x240] sm:$0xff] %vm773, %v756
        %799 = vst.msk [vmem:[#allocation2 + $0x258] sm:$0xff] %vm773, %v757
        %800 = vst.msk [vmem:[#allocation2 + $0x270] sm:$0xff] %vm773, %v758
        %801 = vst.msk [vmem:[#allocation2 + $0x288] sm:$0xff] %vm773, %v759
        %802 = vst.msk [vmem:[#allocation2 + $0x2a0] sm:$0xff] %vm773, %v760
        %803 = vst.msk [vmem:[#allocation2 + $0x2b8] sm:$0xff] %vm773, %v761
        %804 = vst.msk [vmem:[#allocation2 + $0x2d0] sm:$0xff] %vm773, %v762
        %805 = vst.msk [vmem:[#allocation2 + $0x2e8] sm:$0xff] %vm773, %v763
        %806 = vst.msk [vmem:[#allocation2 + $0x300] sm:$0xff] %vm773, %v764
        %807 = vst.msk [vmem:[#allocation2 + $0x318] sm:$0xff] %vm773, %v765
        %808 = vst.msk [vmem:[#allocation2 + $0x330] sm:$0xff] %vm773, %v766
        %vm809 = vcmask 5120
        %810 = vst.msk [vmem:[#allocation2 + $0x348] sm:$0x3f] %vm809, %v767
        %vm847 = vcmask 1046528
        %v848 = vrot.slane %v732, 1
        %v849 = vrot.slane %v733, 1
        %v850 = vsel %vm847, %v848, %v849
        %v851 = vrot.slane %v734, 1
        %v852 = vsel %vm847, %v849, %v851
        %v853 = vrot.slane %v735, 1
        %v854 = vsel %vm847, %v851, %v853
        %v855 = vrot.slane %v736, 1
        %v856 = vsel %vm847, %v853, %v855
        %v857 = vrot.slane %v737, 1
        %v858 = vsel %vm847, %v855, %v857
        %v859 = vrot.slane %v738, 1
        %v860 = vsel %vm847, %v857, %v859
        %v861 = vrot.slane %v739, 1
        %v862 = vsel %vm847, %v859, %v861
        %v863 = vrot.slane %v740, 1
        %v864 = vsel %vm847, %v861, %v863
        %v865 = vrot.slane %v741, 1
        %v866 = vsel %vm847, %v863, %v865
        %v867 = vrot.slane %v742, 1
        %v868 = vsel %vm847, %v865, %v867
        %v869 = vrot.slane %v743, 1
        %v870 = vsel %vm847, %v867, %v869
        %v871 = vrot.slane %v744, 1
        %v872 = vsel %vm847, %v869, %v871
        %v873 = vrot.slane %v745, 1
        %v874 = vsel %vm847, %v871, %v873
        %v875 = vrot.slane %v746, 1
        %v876 = vsel %vm847, %v873, %v875
        %v877 = vrot.slane %v747, 1
        %v878 = vsel %vm847, %v875, %v877
        %v879 = vrot.slane %v748, 1
        %v880 = vsel %vm847, %v877, %v879
        %v881 = vrot.slane %v749, 1
        %v882 = vsel %vm847, %v879, %v881
        %v883 = vrot.slane %v750, 1
        %v884 = vsel %vm847, %v881, %v883
        %v885 = vrot.slane %v751, 1
        %v886 = vsel %vm847, %v883, %v885
        %v887 = vrot.slane %v752, 1
        %v888 = vsel %vm847, %v885, %v887
        %v889 = vrot.slane %v753, 1
        %v890 = vsel %vm847, %v887, %v889
        %v891 = vrot.slane %v754, 1
        %v892 = vsel %vm847, %v889, %v891
        %v893 = vrot.slane %v755, 1
        %v894 = vsel %vm847, %v891, %v893
        %v895 = vrot.slane %v756, 1
        %v896 = vsel %vm847, %v893, %v895
        %v897 = vrot.slane %v757, 1
        %v898 = vsel %vm847, %v895, %v897
        %v899 = vrot.slane %v758, 1
        %v900 = vsel %vm847, %v897, %v899
        %v901 = vrot.slane %v759, 1
        %v902 = vsel %vm847, %v899, %v901
        %v903 = vrot.slane %v760, 1
        %v904 = vsel %vm847, %v901, %v903
        %v905 = vrot.slane %v761, 1
        %v906 = vsel %vm847, %v903, %v905
        %v907 = vrot.slane %v762, 1
        %v908 = vsel %vm847, %v905, %v907
        %v909 = vrot.slane %v763, 1
        %v910 = vsel %vm847, %v907, %v909
        %v911 = vrot.slane %v764, 1
        %v912 = vsel %vm847, %v909, %v911
        %v913 = vrot.slane %v765, 1
        %v914 = vsel %vm847, %v911, %v913
        %v915 = vrot.slane %v766, 1
        %v916 = vsel %vm847, %v913, %v915
        %v917 = vrot.slane %v767, 1
        %v918 = vsel %vm847, %v915, %v917
        %919 = vrot.lane.b32.xlu0 %v850, 1
        %v920 = vpop.permute.xlu0 %919
        %921 = vrot.lane.b32.xlu0 %v852, 1
        %v922 = vpop.permute.xlu0 %921
        %923 = vrot.lane.b32.xlu0 %v854, 1
        %v924 = vpop.permute.xlu0 %923
        %925 = vrot.lane.b32.xlu0 %v856, 1
        %v926 = vpop.permute.xlu0 %925
        %927 = vrot.lane.b32.xlu0 %v858, 1
        %v928 = vpop.permute.xlu0 %927
        %929 = vrot.lane.b32.xlu0 %v860, 1
        %v930 = vpop.permute.xlu0 %929
        %931 = vrot.lane.b32.xlu0 %v862, 1
        %v932 = vpop.permute.xlu0 %931
        %933 = vrot.lane.b32.xlu0 %v864, 1
        %v934 = vpop.permute.xlu0 %933
        %935 = vrot.lane.b32.xlu0 %v866, 1
        %v936 = vpop.permute.xlu0 %935
        %937 = vrot.lane.b32.xlu0 %v868, 1
        %v938 = vpop.permute.xlu0 %937
        %939 = vrot.lane.b32.xlu0 %v870, 1
        %v940 = vpop.permute.xlu0 %939
        %941 = vrot.lane.b32.xlu0 %v872, 1
        %v942 = vpop.permute.xlu0 %941
        %943 = vrot.lane.b32.xlu0 %v874, 1
        %v944 = vpop.permute.xlu0 %943
        %945 = vrot.lane.b32.xlu0 %v876, 1
        %v946 = vpop.permute.xlu0 %945
        %947 = vrot.lane.b32.xlu0 %v878, 1
        %v948 = vpop.permute.xlu0 %947
        %949 = vrot.lane.b32.xlu0 %v880, 1
        %v950 = vpop.permute.xlu0 %949
        %951 = vrot.lane.b32.xlu0 %v882, 1
        %v952 = vpop.permute.xlu0 %951
        %953 = vrot.lane.b32.xlu0 %v884, 1
        %v954 = vpop.permute.xlu0 %953
        %955 = vrot.lane.b32.xlu0 %v886, 1
        %v956 = vpop.permute.xlu0 %955
        %957 = vrot.lane.b32.xlu0 %v888, 1
        %v958 = vpop.permute.xlu0 %957
        %959 = vrot.lane.b32.xlu0 %v890, 1
        %v960 = vpop.permute.xlu0 %959
        %961 = vrot.lane.b32.xlu0 %v892, 1
        %v962 = vpop.permute.xlu0 %961
        %963 = vrot.lane.b32.xlu0 %v894, 1
        %v964 = vpop.permute.xlu0 %963
        %965 = vrot.lane.b32.xlu0 %v896, 1
        %v966 = vpop.permute.xlu0 %965
        %967 = vrot.lane.b32.xlu0 %v898, 1
        %v968 = vpop.permute.xlu0 %967
        %969 = vrot.lane.b32.xlu0 %v900, 1
        %v970 = vpop.permute.xlu0 %969
        %971 = vrot.lane.b32.xlu0 %v902, 1
        %v972 = vpop.permute.xlu0 %971
        %973 = vrot.lane.b32.xlu0 %v904, 1
        %v974 = vpop.permute.xlu0 %973
        %975 = vrot.lane.b32.xlu0 %v906, 1
        %v976 = vpop.permute.xlu0 %975
        %977 = vrot.lane.b32.xlu0 %v908, 1
        %v978 = vpop.permute.xlu0 %977
        %979 = vrot.lane.b32.xlu0 %v910, 1
        %v980 = vpop.permute.xlu0 %979
        %981 = vrot.lane.b32.xlu0 %v912, 1
        %v982 = vpop.permute.xlu0 %981
        %983 = vrot.lane.b32.xlu0 %v914, 1
        %v984 = vpop.permute.xlu0 %983
        %985 = vrot.lane.b32.xlu0 %v916, 1
        %v986 = vpop.permute.xlu0 %985
        %987 = vrot.lane.b32.xlu0 %v918, 1
        %v988 = vpop.permute.xlu0 %987
        %989 = vrot.lane.b32.xlu0 %v917, 1
        %v990 = vpop.permute.xlu0 %989
        %vm1027 = vcmask 15368
        %1028 = vst.msk [vmem:[#allocation2] sm:$0xff] %vm1027, %v920
        %1029 = vst.msk [vmem:[#allocation2 + $0x18] sm:$0xff] %vm1027, %v922
        %1030 = vst.msk [vmem:[#allocation2 + $0x30] sm:$0xff] %vm1027, %v924
        %1031 = vst.msk [vmem:[#allocation2 + $0x48] sm:$0xff] %vm1027, %v926
        %1032 = vst.msk [vmem:[#allocation2 + $0x60] sm:$0xff] %vm1027, %v928
        %1033 = vst.msk [vmem:[#allocation2 + $0x78] sm:$0xff] %vm1027, %v930
        %1034 = vst.msk [vmem:[#allocation2 + $0x90] sm:$0xff] %vm1027, %v932
        %1035 = vst.msk [vmem:[#allocation2 + $0xa8] sm:$0xff] %vm1027, %v934
        %1036 = vst.msk [vmem:[#allocation2 + $0xc0] sm:$0xff] %vm1027, %v936
        %1037 = vst.msk [vmem:[#allocation2 + $0xd8] sm:$0xff] %vm1027, %v938
        %1038 = vst.msk [vmem:[#allocation2 + $0xf0] sm:$0xff] %vm1027, %v940
        %1039 = vst.msk [vmem:[#allocation2 + $0x108] sm:$0xff] %vm1027, %v942
        %1040 = vst.msk [vmem:[#allocation2 + $0x120] sm:$0xff] %vm1027, %v944
        %1041 = vst.msk [vmem:[#allocation2 + $0x138] sm:$0xff] %vm1027, %v946
        %1042 = vst.msk [vmem:[#allocation2 + $0x150] sm:$0xff] %vm1027, %v948
        %1043 = vst.msk [vmem:[#allocation2 + $0x168] sm:$0xff] %vm1027, %v950
        %1044 = vst.msk [vmem:[#allocation2 + $0x180] sm:$0xff] %vm1027, %v952
        %1045 = vst.msk [vmem:[#allocation2 + $0x198] sm:$0xff] %vm1027, %v954
        %1046 = vst.msk [vmem:[#allocation2 + $0x1b0] sm:$0xff] %vm1027, %v956
        %1047 = vst.msk [vmem:[#allocation2 + $0x1c8] sm:$0xff] %vm1027, %v958
        %1048 = vst.msk [vmem:[#allocation2 + $0x1e0] sm:$0xff] %vm1027, %v960
        %1049 = vst.msk [vmem:[#allocation2 + $0x1f8] sm:$0xff] %vm1027, %v962
        %1050 = vst.msk [vmem:[#allocation2 + $0x210] sm:$0xff] %vm1027, %v964
        %1051 = vst.msk [vmem:[#allocation2 + $0x228] sm:$0xff] %vm1027, %v966
        %1052 = vst.msk [vmem:[#allocation2 + $0x240] sm:$0xff] %vm1027, %v968
        %1053 = vst.msk [vmem:[#allocation2 + $0x258] sm:$0xff] %vm1027, %v970
        %1054 = vst.msk [vmem:[#allocation2 + $0x270] sm:$0xff] %vm1027, %v972
        %1055 = vst.msk [vmem:[#allocation2 + $0x288] sm:$0xff] %vm1027, %v974
        %1056 = vst.msk [vmem:[#allocation2 + $0x2a0] sm:$0xff] %vm1027, %v976
        %1057 = vst.msk [vmem:[#allocation2 + $0x2b8] sm:$0xff] %vm1027, %v978
        %1058 = vst.msk [vmem:[#allocation2 + $0x2d0] sm:$0xff] %vm1027, %v980
        %1059 = vst.msk [vmem:[#allocation2 + $0x2e8] sm:$0xff] %vm1027, %v982
        %1060 = vst.msk [vmem:[#allocation2 + $0x300] sm:$0xff] %vm1027, %v984
        %1061 = vst.msk [vmem:[#allocation2 + $0x318] sm:$0xff] %vm1027, %v986
        %1062 = vst.msk [vmem:[#allocation2 + $0x330] sm:$0xff] %vm1027, %v988
        %vm1063 = vcmask 13320
        %1064 = vst.msk [vmem:[#allocation2 + $0x348] sm:$0x3f] %vm1063, %v990
        %vm1065 = vcmask 1045504
        %v1066 = vrot.slane %v732, 2
        %v1067 = vrot.slane %v733, 2
        %v1068 = vsel %vm1065, %v1066, %v1067
        %v1069 = vrot.slane %v734, 2
        %v1070 = vsel %vm1065, %v1067, %v1069
        %v1071 = vrot.slane %v735, 2
        %v1072 = vsel %vm1065, %v1069, %v1071
        %v1073 = vrot.slane %v736, 2
        %v1074 = vsel %vm1065, %v1071, %v1073
        %v1075 = vrot.slane %v737, 2
        %v1076 = vsel %vm1065, %v1073, %v1075
        %v1077 = vrot.slane %v738, 2
        %v1078 = vsel %vm1065, %v1075, %v1077
        %v1079 = vrot.slane %v739, 2
        %v1080 = vsel %vm1065, %v1077, %v1079
        %v1081 = vrot.slane %v740, 2
        %v1082 = vsel %vm1065, %v1079, %v1081
        %v1083 = vrot.slane %v741, 2
        %v1084 = vsel %vm1065, %v1081, %v1083
        %v1085 = vrot.slane %v742, 2
        %v1086 = vsel %vm1065, %v1083, %v1085
        %v1087 = vrot.slane %v743, 2
        %v1088 = vsel %vm1065, %v1085, %v1087
        %v1089 = vrot.slane %v744, 2
        %v1090 = vsel %vm1065, %v1087, %v1089
        %v1091 = vrot.slane %v745, 2
        %v1092 = vsel %vm1065, %v1089, %v1091
        %v1093 = vrot.slane %v746, 2
        %v1094 = vsel %vm1065, %v1091, %v1093
        %v1095 = vrot.slane %v747, 2
        %v1096 = vsel %vm1065, %v1093, %v1095
        %v1097 = vrot.slane %v748, 2
        %v1098 = vsel %vm1065, %v1095, %v1097
        %v1099 = vrot.slane %v749, 2
        %v1100 = vsel %vm1065, %v1097, %v1099
        %v1101 = vrot.slane %v750, 2
        %v1102 = vsel %vm1065, %v1099, %v1101
        %v1103 = vrot.slane %v751, 2
        %v1104 = vsel %vm1065, %v1101, %v1103
        %v1105 = vrot.slane %v752, 2
        %v1106 = vsel %vm1065, %v1103, %v1105
        %v1107 = vrot.slane %v753, 2
        %v1108 = vsel %vm1065, %v1105, %v1107
        %v1109 = vrot.slane %v754, 2
        %v1110 = vsel %vm1065, %v1107, %v1109
        %v1111 = vrot.slane %v755, 2
        %v1112 = vsel %vm1065, %v1109, %v1111
        %v1113 = vrot.slane %v756, 2
        %v1114 = vsel %vm1065, %v1111, %v1113
        %v1115 = vrot.slane %v757, 2
        %v1116 = vsel %vm1065, %v1113, %v1115
        %v1117 = vrot.slane %v758, 2
        %v1118 = vsel %vm1065, %v1115, %v1117
        %v1119 = vrot.slane %v759, 2
        %v1120 = vsel %vm1065, %v1117, %v1119
        %v1121 = vrot.slane %v760, 2
        %v1122 = vsel %vm1065, %v1119, %v1121
        %v1123 = vrot.slane %v761, 2
        %v1124 = vsel %vm1065, %v1121, %v1123
        %v1125 = vrot.slane %v762, 2
        %v1126 = vsel %vm1065, %v1123, %v1125
        %v1127 = vrot.slane %v763, 2
        %v1128 = vsel %vm1065, %v1125, %v1127
        %v1129 = vrot.slane %v764, 2
        %v1130 = vsel %vm1065, %v1127, %v1129
        %v1131 = vrot.slane %v765, 2
        %v1132 = vsel %vm1065, %v1129, %v1131
        %v1133 = vrot.slane %v766, 2
        %v1134 = vsel %vm1065, %v1131, %v1133
        %v1135 = vrot.slane %v767, 2
        %v1136 = vsel %vm1065, %v1133, %v1135
        %1137 = vrot.lane.b32.xlu0 %v1068, 2
        %v1138 = vpop.permute.xlu0 %1137
        %1139 = vrot.lane.b32.xlu0 %v1070, 2
        %v1140 = vpop.permute.xlu0 %1139
        %1141 = vrot.lane.b32.xlu0 %v1072, 2
        %v1142 = vpop.permute.xlu0 %1141
        %1143 = vrot.lane.b32.xlu0 %v1074, 2
        %v1144 = vpop.permute.xlu0 %1143
        %1145 = vrot.lane.b32.xlu0 %v1076, 2
        %v1146 = vpop.permute.xlu0 %1145
        %1147 = vrot.lane.b32.xlu0 %v1078, 2
        %v1148 = vpop.permute.xlu0 %1147
        %1149 = vrot.lane.b32.xlu0 %v1080, 2
        %v1150 = vpop.permute.xlu0 %1149
        %1151 = vrot.lane.b32.xlu0 %v1082, 2
        %v1152 = vpop.permute.xlu0 %1151
        %1153 = vrot.lane.b32.xlu0 %v1084, 2
        %v1154 = vpop.permute.xlu0 %1153
        %1155 = vrot.lane.b32.xlu0 %v1086, 2
        %v1156 = vpop.permute.xlu0 %1155
        %1157 = vrot.lane.b32.xlu0 %v1088, 2
        %v1158 = vpop.permute.xlu0 %1157
        %1159 = vrot.lane.b32.xlu0 %v1090, 2
        %v1160 = vpop.permute.xlu0 %1159
        %1161 = vrot.lane.b32.xlu0 %v1092, 2
        %v1162 = vpop.permute.xlu0 %1161
        %1163 = vrot.lane.b32.xlu0 %v1094, 2
        %v1164 = vpop.permute.xlu0 %1163
        %1165 = vrot.lane.b32.xlu0 %v1096, 2
        %v1166 = vpop.permute.xlu0 %1165
        %1167 = vrot.lane.b32.xlu0 %v1098, 2
        %v1168 = vpop.permute.xlu0 %1167
        %1169 = vrot.lane.b32.xlu0 %v1100, 2
        %v1170 = vpop.permute.xlu0 %1169
        %1171 = vrot.lane.b32.xlu0 %v1102, 2
        %v1172 = vpop.permute.xlu0 %1171
        %1173 = vrot.lane.b32.xlu0 %v1104, 2
        %v1174 = vpop.permute.xlu0 %1173
        %1175 = vrot.lane.b32.xlu0 %v1106, 2
        %v1176 = vpop.permute.xlu0 %1175
        %1177 = vrot.lane.b32.xlu0 %v1108, 2
        %v1178 = vpop.permute.xlu0 %1177
        %1179 = vrot.lane.b32.xlu0 %v1110, 2
        %v1180 = vpop.permute.xlu0 %1179
        %1181 = vrot.lane.b32.xlu0 %v1112, 2
        %v1182 = vpop.permute.xlu0 %1181
        %1183 = vrot.lane.b32.xlu0 %v1114, 2
        %v1184 = vpop.permute.xlu0 %1183
        %1185 = vrot.lane.b32.xlu0 %v1116, 2
        %v1186 = vpop.permute.xlu0 %1185
        %1187 = vrot.lane.b32.xlu0 %v1118, 2
        %v1188 = vpop.permute.xlu0 %1187
        %1189 = vrot.lane.b32.xlu0 %v1120, 2
        %v1190 = vpop.permute.xlu0 %1189
        %1191 = vrot.lane.b32.xlu0 %v1122, 2
        %v1192 = vpop.permute.xlu0 %1191
        %1193 = vrot.lane.b32.xlu0 %v1124, 2
        %v1194 = vpop.permute.xlu0 %1193
        %1195 = vrot.lane.b32.xlu0 %v1126, 2
        %v1196 = vpop.permute.xlu0 %1195
        %1197 = vrot.lane.b32.xlu0 %v1128, 2
        %v1198 = vpop.permute.xlu0 %1197
        %1199 = vrot.lane.b32.xlu0 %v1130, 2
        %v1200 = vpop.permute.xlu0 %1199
        %1201 = vrot.lane.b32.xlu0 %v1132, 2
        %v1202 = vpop.permute.xlu0 %1201
        %1203 = vrot.lane.b32.xlu0 %v1134, 2
        %v1204 = vpop.permute.xlu0 %1203
        %1205 = vrot.lane.b32.xlu0 %v1136, 2
        %v1206 = vpop.permute.xlu0 %1205
        %1207 = vrot.lane.b32.xlu0 %v1135, 2
        %v1208 = vpop.permute.xlu0 %1207
        %vm1245 = vcmask 23568
        %1246 = vst.msk [vmem:[#allocation2] sm:$0xff] %vm1245, %v1138
        %1247 = vst.msk [vmem:[#allocation2 + $0x18] sm:$0xff] %vm1245, %v1140
        %1248 = vst.msk [vmem:[#allocation2 + $0x30] sm:$0xff] %vm1245, %v1142
        %1249 = vst.msk [vmem:[#allocation2 + $0x48] sm:$0xff] %vm1245, %v1144
        %1250 = vst.msk [vmem:[#allocation2 + $0x60] sm:$0xff] %vm1245, %v1146
        %1251 = vst.msk [vmem:[#allocation2 + $0x78] sm:$0xff] %vm1245, %v1148
        %1252 = vst.msk [vmem:[#allocation2 + $0x90] sm:$0xff] %vm1245, %v1150
        %1253 = vst.msk [vmem:[#allocation2 + $0xa8] sm:$0xff] %vm1245, %v1152
        %1254 = vst.msk [vmem:[#allocation2 + $0xc0] sm:$0xff] %vm1245, %v1154
        %1255 = vst.msk [vmem:[#allocation2 + $0xd8] sm:$0xff] %vm1245, %v1156
        %1256 = vst.msk [vmem:[#allocation2 + $0xf0] sm:$0xff] %vm1245, %v1158
        %1257 = vst.msk [vmem:[#allocation2 + $0x108] sm:$0xff] %vm1245, %v1160
        %1258 = vst.msk [vmem:[#allocation2 + $0x120] sm:$0xff] %vm1245, %v1162
        %1259 = vst.msk [vmem:[#allocation2 + $0x138] sm:$0xff] %vm1245, %v1164
        %1260 = vst.msk [vmem:[#allocation2 + $0x150] sm:$0xff] %vm1245, %v1166
        %1261 = vst.msk [vmem:[#allocation2 + $0x168] sm:$0xff] %vm1245, %v1168
        %1262 = vst.msk [vmem:[#allocation2 + $0x180] sm:$0xff] %vm1245, %v1170
        %1263 = vst.msk [vmem:[#allocation2 + $0x198] sm:$0xff] %vm1245, %v1172
        %1264 = vst.msk [vmem:[#allocation2 + $0x1b0] sm:$0xff] %vm1245, %v1174
        %1265 = vst.msk [vmem:[#allocation2 + $0x1c8] sm:$0xff] %vm1245, %v1176
        %1266 = vst.msk [vmem:[#allocation2 + $0x1e0] sm:$0xff] %vm1245, %v1178
        %1267 = vst.msk [vmem:[#allocation2 + $0x1f8] sm:$0xff] %vm1245, %v1180
        %1268 = vst.msk [vmem:[#allocation2 + $0x210] sm:$0xff] %vm1245, %v1182
        %1269 = vst.msk [vmem:[#allocation2 + $0x228] sm:$0xff] %vm1245, %v1184
        %1270 = vst.msk [vmem:[#allocation2 + $0x240] sm:$0xff] %vm1245, %v1186
        %1271 = vst.msk [vmem:[#allocation2 + $0x258] sm:$0xff] %vm1245, %v1188
        %1272 = vst.msk [vmem:[#allocation2 + $0x270] sm:$0xff] %vm1245, %v1190
        %1273 = vst.msk [vmem:[#allocation2 + $0x288] sm:$0xff] %vm1245, %v1192
        %1274 = vst.msk [vmem:[#allocation2 + $0x2a0] sm:$0xff] %vm1245, %v1194
        %1275 = vst.msk [vmem:[#allocation2 + $0x2b8] sm:$0xff] %vm1245, %v1196
        %1276 = vst.msk [vmem:[#allocation2 + $0x2d0] sm:$0xff] %vm1245, %v1198
        %1277 = vst.msk [vmem:[#allocation2 + $0x2e8] sm:$0xff] %vm1245, %v1200
        %1278 = vst.msk [vmem:[#allocation2 + $0x300] sm:$0xff] %vm1245, %v1202
        %1279 = vst.msk [vmem:[#allocation2 + $0x318] sm:$0xff] %vm1245, %v1204
        %1280 = vst.msk [vmem:[#allocation2 + $0x330] sm:$0xff] %vm1245, %v1206
        %vm1281 = vcmask 21520
        %1282 = vst.msk [vmem:[#allocation2 + $0x348] sm:$0x3f] %vm1281, %v1208
        %v1285 = vrot.slane %v768, 2
        %v1286 = vsel %vm1065, %v1135, %v1285
        %v1287 = vrot.slane %v769, 2
        %v1288 = vsel %vm1065, %v1285, %v1287
        %1289 = vrot.lane.b32.xlu0 %v1072, 3
        %v1290 = vpop.permute.xlu0 %1289
        %1291 = vrot.lane.b32.xlu0 %v1074, 3
        %v1292 = vpop.permute.xlu0 %1291
        %1293 = vrot.lane.b32.xlu0 %v1076, 3
        %v1294 = vpop.permute.xlu0 %1293
        %1295 = vrot.lane.b32.xlu0 %v1078, 3
        %v1296 = vpop.permute.xlu0 %1295
        %1297 = vrot.lane.b32.xlu0 %v1080, 3
        %v1298 = vpop.permute.xlu0 %1297
        %1299 = vrot.lane.b32.xlu0 %v1082, 3
        %v1300 = vpop.permute.xlu0 %1299
        %1301 = vrot.lane.b32.xlu0 %v1084, 3
        %v1302 = vpop.permute.xlu0 %1301
        %1303 = vrot.lane.b32.xlu0 %v1086, 3
        %v1304 = vpop.permute.xlu0 %1303
        %1305 = vrot.lane.b32.xlu0 %v1088, 3
        %v1306 = vpop.permute.xlu0 %1305
        %1307 = vrot.lane.b32.xlu0 %v1090, 3
        %v1308 = vpop.permute.xlu0 %1307
        %1309 = vrot.lane.b32.xlu0 %v1092, 3
        %v1310 = vpop.permute.xlu0 %1309
        %1311 = vrot.lane.b32.xlu0 %v1094, 3
        %v1312 = vpop.permute.xlu0 %1311
        %1313 = vrot.lane.b32.xlu0 %v1096, 3
        %v1314 = vpop.permute.xlu0 %1313
        %1315 = vrot.lane.b32.xlu0 %v1098, 3
        %v1316 = vpop.permute.xlu0 %1315
        %1317 = vrot.lane.b32.xlu0 %v1100, 3
        %v1318 = vpop.permute.xlu0 %1317
        %1319 = vrot.lane.b32.xlu0 %v1102, 3
        %v1320 = vpop.permute.xlu0 %1319
        %1321 = vrot.lane.b32.xlu0 %v1104, 3
        %v1322 = vpop.permute.xlu0 %1321
        %1323 = vrot.lane.b32.xlu0 %v1106, 3
        %v1324 = vpop.permute.xlu0 %1323
        %1325 = vrot.lane.b32.xlu0 %v1108, 3
        %v1326 = vpop.permute.xlu0 %1325
        %1327 = vrot.lane.b32.xlu0 %v1110, 3
        %v1328 = vpop.permute.xlu0 %1327
        %1329 = vrot.lane.b32.xlu0 %v1112, 3
        %v1330 = vpop.permute.xlu0 %1329
        %1331 = vrot.lane.b32.xlu0 %v1114, 3
        %v1332 = vpop.permute.xlu0 %1331
        %1333 = vrot.lane.b32.xlu0 %v1116, 3
        %v1334 = vpop.permute.xlu0 %1333
        %1335 = vrot.lane.b32.xlu0 %v1118, 3
        %v1336 = vpop.permute.xlu0 %1335
        %1337 = vrot.lane.b32.xlu0 %v1120, 3
        %v1338 = vpop.permute.xlu0 %1337
        %1339 = vrot.lane.b32.xlu0 %v1122, 3
        %v1340 = vpop.permute.xlu0 %1339
        %1341 = vrot.lane.b32.xlu0 %v1124, 3
        %v1342 = vpop.permute.xlu0 %1341
        %1343 = vrot.lane.b32.xlu0 %v1126, 3
        %v1344 = vpop.permute.xlu0 %1343
        %1345 = vrot.lane.b32.xlu0 %v1128, 3
        %v1346 = vpop.permute.xlu0 %1345
        %1347 = vrot.lane.b32.xlu0 %v1130, 3
        %v1348 = vpop.permute.xlu0 %1347
        %1349 = vrot.lane.b32.xlu0 %v1132, 3
        %v1350 = vpop.permute.xlu0 %1349
        %1351 = vrot.lane.b32.xlu0 %v1134, 3
        %v1352 = vpop.permute.xlu0 %1351
        %1353 = vrot.lane.b32.xlu0 %v1136, 3
        %v1354 = vpop.permute.xlu0 %1353
        %1355 = vrot.lane.b32.xlu0 %v1286, 3
        %v1356 = vpop.permute.xlu0 %1355
        %1357 = vrot.lane.b32.xlu0 %v1288, 3
        %v1358 = vpop.permute.xlu0 %1357
        %1359 = vrot.lane.b32.xlu0 %v1287, 3
        %v1360 = vpop.permute.xlu0 %1359
        %vm1397 = vcmask 31768
        %1398 = vst.msk [vmem:[#allocation2] sm:$0xff] %vm1397, %v1290
        %1399 = vst.msk [vmem:[#allocation2 + $0x18] sm:$0xff] %vm1397, %v1292
        %1400 = vst.msk [vmem:[#allocation2 + $0x30] sm:$0xff] %vm1397, %v1294
        %1401 = vst.msk [vmem:[#allocation2 + $0x48] sm:$0xff] %vm1397, %v1296
        %1402 = vst.msk [vmem:[#allocation2 + $0x60] sm:$0xff] %vm1397, %v1298
        %1403 = vst.msk [vmem:[#allocation2 + $0x78] sm:$0xff] %vm1397, %v1300
        %1404 = vst.msk [vmem:[#allocation2 + $0x90] sm:$0xff] %vm1397, %v1302
        %1405 = vst.msk [vmem:[#allocation2 + $0xa8] sm:$0xff] %vm1397, %v1304
        %1406 = vst.msk [vmem:[#allocation2 + $0xc0] sm:$0xff] %vm1397, %v1306
        %1407 = vst.msk [vmem:[#allocation2 + $0xd8] sm:$0xff] %vm1397, %v1308
        %1408 = vst.msk [vmem:[#allocation2 + $0xf0] sm:$0xff] %vm1397, %v1310
        %1409 = vst.msk [vmem:[#allocation2 + $0x108] sm:$0xff] %vm1397, %v1312
        %1410 = vst.msk [vmem:[#allocation2 + $0x120] sm:$0xff] %vm1397, %v1314
        %1411 = vst.msk [vmem:[#allocation2 + $0x138] sm:$0xff] %vm1397, %v1316
        %1412 = vst.msk [vmem:[#allocation2 + $0x150] sm:$0xff] %vm1397, %v1318
        %1413 = vst.msk [vmem:[#allocation2 + $0x168] sm:$0xff] %vm1397, %v1320
        %1414 = vst.msk [vmem:[#allocation2 + $0x180] sm:$0xff] %vm1397, %v1322
        %1415 = vst.msk [vmem:[#allocation2 + $0x198] sm:$0xff] %vm1397, %v1324
        %1416 = vst.msk [vmem:[#allocation2 + $0x1b0] sm:$0xff] %vm1397, %v1326
        %1417 = vst.msk [vmem:[#allocation2 + $0x1c8] sm:$0xff] %vm1397, %v1328
        %1418 = vst.msk [vmem:[#allocation2 + $0x1e0] sm:$0xff] %vm1397, %v1330
        %1419 = vst.msk [vmem:[#allocation2 + $0x1f8] sm:$0xff] %vm1397, %v1332
        %1420 = vst.msk [vmem:[#allocation2 + $0x210] sm:$0xff] %vm1397, %v1334
        %1421 = vst.msk [vmem:[#allocation2 + $0x228] sm:$0xff] %vm1397, %v1336
        %1422 = vst.msk [vmem:[#allocation2 + $0x240] sm:$0xff] %vm1397, %v1338
        %1423 = vst.msk [vmem:[#allocation2 + $0x258] sm:$0xff] %vm1397, %v1340
        %1424 = vst.msk [vmem:[#allocation2 + $0x270] sm:$0xff] %vm1397, %v1342
        %1425 = vst.msk [vmem:[#allocation2 + $0x288] sm:$0xff] %vm1397, %v1344
        %1426 = vst.msk [vmem:[#allocation2 + $0x2a0] sm:$0xff] %vm1397, %v1346
        %1427 = vst.msk [vmem:[#allocation2 + $0x2b8] sm:$0xff] %vm1397, %v1348
        %1428 = vst.msk [vmem:[#allocation2 + $0x2d0] sm:$0xff] %vm1397, %v1350
        %1429 = vst.msk [vmem:[#allocation2 + $0x2e8] sm:$0xff] %vm1397, %v1352
        %1430 = vst.msk [vmem:[#allocation2 + $0x300] sm:$0xff] %vm1397, %v1354
        %1431 = vst.msk [vmem:[#allocation2 + $0x318] sm:$0xff] %vm1397, %v1356
        %1432 = vst.msk [vmem:[#allocation2 + $0x330] sm:$0xff] %vm1397, %v1358
        %vm1433 = vcmask 29720
        %1434 = vst.msk [vmem:[#allocation2 + $0x348] sm:$0x3f] %vm1433, %v1360
        %vm1436 = vcmask 1044480
        %v1437 = vrot.slane %v734, 3
        %v1438 = vrot.slane %v735, 3
        %v1439 = vsel %vm1436, %v1437, %v1438
        %v1440 = vrot.slane %v736, 3
        %v1441 = vsel %vm1436, %v1438, %v1440
        %v1442 = vrot.slane %v737, 3
        %v1443 = vsel %vm1436, %v1440, %v1442
        %v1444 = vrot.slane %v738, 3
        %v1445 = vsel %vm1436, %v1442, %v1444
        %v1446 = vrot.slane %v739, 3
        %v1447 = vsel %vm1436, %v1444, %v1446
        %v1448 = vrot.slane %v740, 3
        %v1449 = vsel %vm1436, %v1446, %v1448
        %v1450 = vrot.slane %v741, 3
        %v1451 = vsel %vm1436, %v1448, %v1450
        %v1452 = vrot.slane %v742, 3
        %v1453 = vsel %vm1436, %v1450, %v1452
        %v1454 = vrot.slane %v743, 3
        %v1455 = vsel %vm1436, %v1452, %v1454
        %v1456 = vrot.slane %v744, 3
        %v1457 = vsel %vm1436, %v1454, %v1456
        %v1458 = vrot.slane %v745, 3
        %v1459 = vsel %vm1436, %v1456, %v1458
        %v1460 = vrot.slane %v746, 3
        %v1461 = vsel %vm1436, %v1458, %v1460
        %v1462 = vrot.slane %v747, 3
        %v1463 = vsel %vm1436, %v1460, %v1462
        %v1464 = vrot.slane %v748, 3
        %v1465 = vsel %vm1436, %v1462, %v1464
        %v1466 = vrot.slane %v749, 3
        %v1467 = vsel %vm1436, %v1464, %v1466
        %v1468 = vrot.slane %v750, 3
        %v1469 = vsel %vm1436, %v1466, %v1468
        %v1470 = vrot.slane %v751, 3
        %v1471 = vsel %vm1436, %v1468, %v1470
        %v1472 = vrot.slane %v752, 3
        %v1473 = vsel %vm1436, %v1470, %v1472
        %v1474 = vrot.slane %v753, 3
        %v1475 = vsel %vm1436, %v1472, %v1474
        %v1476 = vrot.slane %v754, 3
        %v1477 = vsel %vm1436, %v1474, %v1476
        %v1478 = vrot.slane %v755, 3
        %v1479 = vsel %vm1436, %v1476, %v1478
        %v1480 = vrot.slane %v756, 3
        %v1481 = vsel %vm1436, %v1478, %v1480
        %v1482 = vrot.slane %v757, 3
        %v1483 = vsel %vm1436, %v1480, %v1482
        %v1484 = vrot.slane %v758, 3
        %v1485 = vsel %vm1436, %v1482, %v1484
        %v1486 = vrot.slane %v759, 3
        %v1487 = vsel %vm1436, %v1484, %v1486
        %v1488 = vrot.slane %v760, 3
        %v1489 = vsel %vm1436, %v1486, %v1488
        %v1490 = vrot.slane %v761, 3
        %v1491 = vsel %vm1436, %v1488, %v1490
        %v1492 = vrot.slane %v762, 3
        %v1493 = vsel %vm1436, %v1490, %v1492
        %v1494 = vrot.slane %v763, 3
        %v1495 = vsel %vm1436, %v1492, %v1494
        %v1496 = vrot.slane %v764, 3
        %v1497 = vsel %vm1436, %v1494, %v1496
        %v1498 = vrot.slane %v765, 3
        %v1499 = vsel %vm1436, %v1496, %v1498
        %v1500 = vrot.slane %v766, 3
        %v1501 = vsel %vm1436, %v1498, %v1500
        %v1502 = vrot.slane %v767, 3
        %v1503 = vsel %vm1436, %v1500, %v1502
        %v1504 = vrot.slane %v768, 3
        %v1505 = vsel %vm1436, %v1502, %v1504
        %v1506 = vrot.slane %v769, 3
        %v1507 = vsel %vm1436, %v1504, %v1506
        %v1508 = vrot.slane %v770, 3
        %v1509 = vsel %vm1436, %v1506, %v1508
        %1510 = vrot.lane.b32.xlu0 %v1439, 4
        %v1511 = vpop.permute.xlu0 %1510
        %1512 = vrot.lane.b32.xlu0 %v1441, 4
        %v1513 = vpop.permute.xlu0 %1512
        %1514 = vrot.lane.b32.xlu0 %v1443, 4
        %v1515 = vpop.permute.xlu0 %1514
        %1516 = vrot.lane.b32.xlu0 %v1445, 4
        %v1517 = vpop.permute.xlu0 %1516
        %1518 = vrot.lane.b32.xlu0 %v1447, 4
        %v1519 = vpop.permute.xlu0 %1518
        %1520 = vrot.lane.b32.xlu0 %v1449, 4
        %v1521 = vpop.permute.xlu0 %1520
        %1522 = vrot.lane.b32.xlu0 %v1451, 4
        %v1523 = vpop.permute.xlu0 %1522
        %1524 = vrot.lane.b32.xlu0 %v1453, 4
        %v1525 = vpop.permute.xlu0 %1524
        %1526 = vrot.lane.b32.xlu0 %v1455, 4
        %v1527 = vpop.permute.xlu0 %1526
        %1528 = vrot.lane.b32.xlu0 %v1457, 4
        %v1529 = vpop.permute.xlu0 %1528
        %1530 = vrot.lane.b32.xlu0 %v1459, 4
        %v1531 = vpop.permute.xlu0 %1530
        %1532 = vrot.lane.b32.xlu0 %v1461, 4
        %v1533 = vpop.permute.xlu0 %1532
        %1534 = vrot.lane.b32.xlu0 %v1463, 4
        %v1535 = vpop.permute.xlu0 %1534
        %1536 = vrot.lane.b32.xlu0 %v1465, 4
        %v1537 = vpop.permute.xlu0 %1536
        %1538 = vrot.lane.b32.xlu0 %v1467, 4
        %v1539 = vpop.permute.xlu0 %1538
        %1540 = vrot.lane.b32.xlu0 %v1469, 4
        %v1541 = vpop.permute.xlu0 %1540
        %1542 = vrot.lane.b32.xlu0 %v1471, 4
        %v1543 = vpop.permute.xlu0 %1542
        %1544 = vrot.lane.b32.xlu0 %v1473, 4
        %v1545 = vpop.permute.xlu0 %1544
        %1546 = vrot.lane.b32.xlu0 %v1475, 4
        %v1547 = vpop.permute.xlu0 %1546
        %1548 = vrot.lane.b32.xlu0 %v1477, 4
        %v1549 = vpop.permute.xlu0 %1548
        %1550 = vrot.lane.b32.xlu0 %v1479, 4
        %v1551 = vpop.permute.xlu0 %1550
        %1552 = vrot.lane.b32.xlu0 %v1481, 4
        %v1553 = vpop.permute.xlu0 %1552
        %1554 = vrot.lane.b32.xlu0 %v1483, 4
        %v1555 = vpop.permute.xlu0 %1554
        %1556 = vrot.lane.b32.xlu0 %v1485, 4
        %v1557 = vpop.permute.xlu0 %1556
        %1558 = vrot.lane.b32.xlu0 %v1487, 4
        %v1559 = vpop.permute.xlu0 %1558
        %1560 = vrot.lane.b32.xlu0 %v1489, 4
        %v1561 = vpop.permute.xlu0 %1560
        %1562 = vrot.lane.b32.xlu0 %v1491, 4
        %v1563 = vpop.permute.xlu0 %1562
        %1564 = vrot.lane.b32.xlu0 %v1493, 4
        %v1565 = vpop.permute.xlu0 %1564
        %1566 = vrot.lane.b32.xlu0 %v1495, 4
        %v1567 = vpop.permute.xlu0 %1566
        %1568 = vrot.lane.b32.xlu0 %v1497, 4
        %v1569 = vpop.permute.xlu0 %1568
        %1570 = vrot.lane.b32.xlu0 %v1499, 4
        %v1571 = vpop.permute.xlu0 %1570
        %1572 = vrot.lane.b32.xlu0 %v1501, 4
        %v1573 = vpop.permute.xlu0 %1572
        %1574 = vrot.lane.b32.xlu0 %v1503, 4
        %v1575 = vpop.permute.xlu0 %1574
        %1576 = vrot.lane.b32.xlu0 %v1505, 4
        %v1577 = vpop.permute.xlu0 %1576
        %1578 = vrot.lane.b32.xlu0 %v1507, 4
        %v1579 = vpop.permute.xlu0 %1578
        %1580 = vrot.lane.b32.xlu0 %v1509, 4
        %v1581 = vpop.permute.xlu0 %1580
        %vm1618 = vcmask 39968
        %1619 = vst.msk [vmem:[#allocation2] sm:$0xff] %vm1618, %v1511
        %1620 = vst.msk [vmem:[#allocation2 + $0x18] sm:$0xff] %vm1618, %v1513
        %1621 = vst.msk [vmem:[#allocation2 + $0x30] sm:$0xff] %vm1618, %v1515
        %1622 = vst.msk [vmem:[#allocation2 + $0x48] sm:$0xff] %vm1618, %v1517
        %1623 = vst.msk [vmem:[#allocation2 + $0x60] sm:$0xff] %vm1618, %v1519
        %1624 = vst.msk [vmem:[#allocation2 + $0x78] sm:$0xff] %vm1618, %v1521
        %1625 = vst.msk [vmem:[#allocation2 + $0x90] sm:$0xff] %vm1618, %v1523
        %1626 = vst.msk [vmem:[#allocation2 + $0xa8] sm:$0xff] %vm1618, %v1525
        %1627 = vst.msk [vmem:[#allocation2 + $0xc0] sm:$0xff] %vm1618, %v1527
        %1628 = vst.msk [vmem:[#allocation2 + $0xd8] sm:$0xff] %vm1618, %v1529
        %1629 = vst.msk [vmem:[#allocation2 + $0xf0] sm:$0xff] %vm1618, %v1531
        %1630 = vst.msk [vmem:[#allocation2 + $0x108] sm:$0xff] %vm1618, %v1533
        %1631 = vst.msk [vmem:[#allocation2 + $0x120] sm:$0xff] %vm1618, %v1535
        %1632 = vst.msk [vmem:[#allocation2 + $0x138] sm:$0xff] %vm1618, %v1537
        %1633 = vst.msk [vmem:[#allocation2 + $0x150] sm:$0xff] %vm1618, %v1539
        %1634 = vst.msk [vmem:[#allocation2 + $0x168] sm:$0xff] %vm1618, %v1541
        %1635 = vst.msk [vmem:[#allocation2 + $0x180] sm:$0xff] %vm1618, %v1543
        %1636 = vst.msk [vmem:[#allocation2 + $0x198] sm:$0xff] %vm1618, %v1545
        %1637 = vst.msk [vmem:[#allocation2 + $0x1b0] sm:$0xff] %vm1618, %v1547
        %1638 = vst.msk [vmem:[#allocation2 + $0x1c8] sm:$0xff] %vm1618, %v1549
        %1639 = vst.msk [vmem:[#allocation2 + $0x1e0] sm:$0xff] %vm1618, %v1551
        %1640 = vst.msk [vmem:[#allocation2 + $0x1f8] sm:$0xff] %vm1618, %v1553
        %1641 = vst.msk [vmem:[#allocation2 + $0x210] sm:$0xff] %vm1618, %v1555
        %1642 = vst.msk [vmem:[#allocation2 + $0x228] sm:$0xff] %vm1618, %v1557
        %1643 = vst.msk [vmem:[#allocation2 + $0x240] sm:$0xff] %vm1618, %v1559
        %1644 = vst.msk [vmem:[#allocation2 + $0x258] sm:$0xff] %vm1618, %v1561
        %1645 = vst.msk [vmem:[#allocation2 + $0x270] sm:$0xff] %vm1618, %v1563
        %1646 = vst.msk [vmem:[#allocation2 + $0x288] sm:$0xff] %vm1618, %v1565
        %1647 = vst.msk [vmem:[#allocation2 + $0x2a0] sm:$0xff] %vm1618, %v1567
        %1648 = vst.msk [vmem:[#allocation2 + $0x2b8] sm:$0xff] %vm1618, %v1569
        %1649 = vst.msk [vmem:[#allocation2 + $0x2d0] sm:$0xff] %vm1618, %v1571
        %1650 = vst.msk [vmem:[#allocation2 + $0x2e8] sm:$0xff] %vm1618, %v1573
        %1651 = vst.msk [vmem:[#allocation2 + $0x300] sm:$0xff] %vm1618, %v1575
        %1652 = vst.msk [vmem:[#allocation2 + $0x318] sm:$0xff] %vm1618, %v1577
        %1653 = vst.msk [vmem:[#allocation2 + $0x330] sm:$0xff] %vm1618, %v1579
        %vm1654 = vcmask 37920
        %1655 = vst.msk [vmem:[#allocation2 + $0x348] sm:$0x3f] %vm1654, %v1581
        %vm1656 = vcmask 1043456
        %v1657 = vrot.slane %v734, 4
        %v1658 = vrot.slane %v735, 4
        %v1659 = vsel %vm1656, %v1657, %v1658
        %v1660 = vrot.slane %v736, 4
        %v1661 = vsel %vm1656, %v1658, %v1660
        %v1662 = vrot.slane %v737, 4
        %v1663 = vsel %vm1656, %v1660, %v1662
        %v1664 = vrot.slane %v738, 4
        %v1665 = vsel %vm1656, %v1662, %v1664
        %v1666 = vrot.slane %v739, 4
        %v1667 = vsel %vm1656, %v1664, %v1666
        %v1668 = vrot.slane %v740, 4
        %v1669 = vsel %vm1656, %v1666, %v1668
        %v1670 = vrot.slane %v741, 4
        %v1671 = vsel %vm1656, %v1668, %v1670
        %v1672 = vrot.slane %v742, 4
        %v1673 = vsel %vm1656, %v1670, %v1672
        %v1674 = vrot.slane %v743, 4
        %v1675 = vsel %vm1656, %v1672, %v1674
        %v1676 = vrot.slane %v744, 4
        %v1677 = vsel %vm1656, %v1674, %v1676
        %v1678 = vrot.slane %v745, 4
        %v1679 = vsel %vm1656, %v1676, %v1678
        %v1680 = vrot.slane %v746, 4
        %v1681 = vsel %vm1656, %v1678, %v1680
        %v1682 = vrot.slane %v747, 4
        %v1683 = vsel %vm1656, %v1680, %v1682
        %v1684 = vrot.slane %v748, 4
        %v1685 = vsel %vm1656, %v1682, %v1684
        %v1686 = vrot.slane %v749, 4
        %v1687 = vsel %vm1656, %v1684, %v1686
        %v1688 = vrot.slane %v750, 4
        %v1689 = vsel %vm1656, %v1686, %v1688
        %v1690 = vrot.slane %v751, 4
        %v1691 = vsel %vm1656, %v1688, %v1690
        %v1692 = vrot.slane %v752, 4
        %v1693 = vsel %vm1656, %v1690, %v1692
        %v1694 = vrot.slane %v753, 4
        %v1695 = vsel %vm1656, %v1692, %v1694
        %v1696 = vrot.slane %v754, 4
        %v1697 = vsel %vm1656, %v1694, %v1696
        %v1698 = vrot.slane %v755, 4
        %v1699 = vsel %vm1656, %v1696, %v1698
        %v1700 = vrot.slane %v756, 4
        %v1701 = vsel %vm1656, %v1698, %v1700
        %v1702 = vrot.slane %v757, 4
        %v1703 = vsel %vm1656, %v1700, %v1702
        %v1704 = vrot.slane %v758, 4
        %v1705 = vsel %vm1656, %v1702, %v1704
        %v1706 = vrot.slane %v759, 4
        %v1707 = vsel %vm1656, %v1704, %v1706
        %v1708 = vrot.slane %v760, 4
        %v1709 = vsel %vm1656, %v1706, %v1708
        %v1710 = vrot.slane %v761, 4
        %v1711 = vsel %vm1656, %v1708, %v1710
        %v1712 = vrot.slane %v762, 4
        %v1713 = vsel %vm1656, %v1710, %v1712
        %v1714 = vrot.slane %v763, 4
        %v1715 = vsel %vm1656, %v1712, %v1714
        %v1716 = vrot.slane %v764, 4
        %v1717 = vsel %vm1656, %v1714, %v1716
        %v1718 = vrot.slane %v765, 4
        %v1719 = vsel %vm1656, %v1716, %v1718
        %v1720 = vrot.slane %v766, 4
        %v1721 = vsel %vm1656, %v1718, %v1720
        %v1722 = vrot.slane %v767, 4
        %v1723 = vsel %vm1656, %v1720, %v1722
        %v1724 = vrot.slane %v768, 4
        %v1725 = vsel %vm1656, %v1722, %v1724
        %v1726 = vrot.slane %v769, 4
        %v1727 = vsel %vm1656, %v1724, %v1726
        %v1728 = vrot.slane %v770, 4
        %v1729 = vsel %vm1656, %v1726, %v1728
        %1730 = vrot.lane.b32.xlu0 %v1659, 5
        %v1731 = vpop.permute.xlu0 %1730
        %1732 = vrot.lane.b32.xlu0 %v1661, 5
        %v1733 = vpop.permute.xlu0 %1732
        %1734 = vrot.lane.b32.xlu0 %v1663, 5
        %v1735 = vpop.permute.xlu0 %1734
        %1736 = vrot.lane.b32.xlu0 %v1665, 5
        %v1737 = vpop.permute.xlu0 %1736
        %1738 = vrot.lane.b32.xlu0 %v1667, 5
        %v1739 = vpop.permute.xlu0 %1738
        %1740 = vrot.lane.b32.xlu0 %v1669, 5
        %v1741 = vpop.permute.xlu0 %1740
        %1742 = vrot.lane.b32.xlu0 %v1671, 5
        %v1743 = vpop.permute.xlu0 %1742
        %1744 = vrot.lane.b32.xlu0 %v1673, 5
        %v1745 = vpop.permute.xlu0 %1744
        %1746 = vrot.lane.b32.xlu0 %v1675, 5
        %v1747 = vpop.permute.xlu0 %1746
        %1748 = vrot.lane.b32.xlu0 %v1677, 5
        %v1749 = vpop.permute.xlu0 %1748
        %1750 = vrot.lane.b32.xlu0 %v1679, 5
        %v1751 = vpop.permute.xlu0 %1750
        %1752 = vrot.lane.b32.xlu0 %v1681, 5
        %v1753 = vpop.permute.xlu0 %1752
        %1754 = vrot.lane.b32.xlu0 %v1683, 5
        %v1755 = vpop.permute.xlu0 %1754
        %1756 = vrot.lane.b32.xlu0 %v1685, 5
        %v1757 = vpop.permute.xlu0 %1756
        %1758 = vrot.lane.b32.xlu0 %v1687, 5
        %v1759 = vpop.permute.xlu0 %1758
        %1760 = vrot.lane.b32.xlu0 %v1689, 5
        %v1761 = vpop.permute.xlu0 %1760
        %1762 = vrot.lane.b32.xlu0 %v1691, 5
        %v1763 = vpop.permute.xlu0 %1762
        %1764 = vrot.lane.b32.xlu0 %v1693, 5
        %v1765 = vpop.permute.xlu0 %1764
        %1766 = vrot.lane.b32.xlu0 %v1695, 5
        %v1767 = vpop.permute.xlu0 %1766
        %1768 = vrot.lane.b32.xlu0 %v1697, 5
        %v1769 = vpop.permute.xlu0 %1768
        %1770 = vrot.lane.b32.xlu0 %v1699, 5
        %v1771 = vpop.permute.xlu0 %1770
        %1772 = vrot.lane.b32.xlu0 %v1701, 5
        %v1773 = vpop.permute.xlu0 %1772
        %1774 = vrot.lane.b32.xlu0 %v1703, 5
        %v1775 = vpop.permute.xlu0 %1774
        %1776 = vrot.lane.b32.xlu0 %v1705, 5
        %v1777 = vpop.permute.xlu0 %1776
        %1778 = vrot.lane.b32.xlu0 %v1707, 5
        %v1779 = vpop.permute.xlu0 %1778
        %1780 = vrot.lane.b32.xlu0 %v1709, 5
        %v1781 = vpop.permute.xlu0 %1780
        %1782 = vrot.lane.b32.xlu0 %v1711, 5
        %v1783 = vpop.permute.xlu0 %1782
        %1784 = vrot.lane.b32.xlu0 %v1713, 5
        %v1785 = vpop.permute.xlu0 %1784
        %1786 = vrot.lane.b32.xlu0 %v1715, 5
        %v1787 = vpop.permute.xlu0 %1786
        %1788 = vrot.lane.b32.xlu0 %v1717, 5
        %v1789 = vpop.permute.xlu0 %1788
        %1790 = vrot.lane.b32.xlu0 %v1719, 5
        %v1791 = vpop.permute.xlu0 %1790
        %1792 = vrot.lane.b32.xlu0 %v1721, 5
        %v1793 = vpop.permute.xlu0 %1792
        %1794 = vrot.lane.b32.xlu0 %v1723, 5
        %v1795 = vpop.permute.xlu0 %1794
        %1796 = vrot.lane.b32.xlu0 %v1725, 5
        %v1797 = vpop.permute.xlu0 %1796
        %1798 = vrot.lane.b32.xlu0 %v1727, 5
        %v1799 = vpop.permute.xlu0 %1798
        %1800 = vrot.lane.b32.xlu0 %v1729, 5
        %v1801 = vpop.permute.xlu0 %1800
        %vm1838 = vcmask 48168
        %1839 = vst.msk [vmem:[#allocation2] sm:$0xff] %vm1838, %v1731
        %1840 = vst.msk [vmem:[#allocation2 + $0x18] sm:$0xff] %vm1838, %v1733
        %1841 = vst.msk [vmem:[#allocation2 + $0x30] sm:$0xff] %vm1838, %v1735
        %1842 = vst.msk [vmem:[#allocation2 + $0x48] sm:$0xff] %vm1838, %v1737
        %1843 = vst.msk [vmem:[#allocation2 + $0x60] sm:$0xff] %vm1838, %v1739
        %1844 = vst.msk [vmem:[#allocation2 + $0x78] sm:$0xff] %vm1838, %v1741
        %1845 = vst.msk [vmem:[#allocation2 + $0x90] sm:$0xff] %vm1838, %v1743
        %1846 = vst.msk [vmem:[#allocation2 + $0xa8] sm:$0xff] %vm1838, %v1745
        %1847 = vst.msk [vmem:[#allocation2 + $0xc0] sm:$0xff] %vm1838, %v1747
        %1848 = vst.msk [vmem:[#allocation2 + $0xd8] sm:$0xff] %vm1838, %v1749
        %1849 = vst.msk [vmem:[#allocation2 + $0xf0] sm:$0xff] %vm1838, %v1751
        %1850 = vst.msk [vmem:[#allocation2 + $0x108] sm:$0xff] %vm1838, %v1753
        %1851 = vst.msk [vmem:[#allocation2 + $0x120] sm:$0xff] %vm1838, %v1755
        %1852 = vst.msk [vmem:[#allocation2 + $0x138] sm:$0xff] %vm1838, %v1757
        %1853 = vst.msk [vmem:[#allocation2 + $0x150] sm:$0xff] %vm1838, %v1759
        %1854 = vst.msk [vmem:[#allocation2 + $0x168] sm:$0xff] %vm1838, %v1761
        %1855 = vst.msk [vmem:[#allocation2 + $0x180] sm:$0xff] %vm1838, %v1763
        %1856 = vst.msk [vmem:[#allocation2 + $0x198] sm:$0xff] %vm1838, %v1765
        %1857 = vst.msk [vmem:[#allocation2 + $0x1b0] sm:$0xff] %vm1838, %v1767
        %1858 = vst.msk [vmem:[#allocation2 + $0x1c8] sm:$0xff] %vm1838, %v1769
        %1859 = vst.msk [vmem:[#allocation2 + $0x1e0] sm:$0xff] %vm1838, %v1771
        %1860 = vst.msk [vmem:[#allocation2 + $0x1f8] sm:$0xff] %vm1838, %v1773
        %1861 = vst.msk [vmem:[#allocation2 + $0x210] sm:$0xff] %vm1838, %v1775
        %1862 = vst.msk [vmem:[#allocation2 + $0x228] sm:$0xff] %vm1838, %v1777
        %1863 = vst.msk [vmem:[#allocation2 + $0x240] sm:$0xff] %vm1838, %v1779
        %1864 = vst.msk [vmem:[#allocation2 + $0x258] sm:$0xff] %vm1838, %v1781
        %1865 = vst.msk [vmem:[#allocation2 + $0x270] sm:$0xff] %vm1838, %v1783
        %1866 = vst.msk [vmem:[#allocation2 + $0x288] sm:$0xff] %vm1838, %v1785
        %1867 = vst.msk [vmem:[#allocation2 + $0x2a0] sm:$0xff] %vm1838, %v1787
        %1868 = vst.msk [vmem:[#allocation2 + $0x2b8] sm:$0xff] %vm1838, %v1789
        %1869 = vst.msk [vmem:[#allocation2 + $0x2d0] sm:$0xff] %vm1838, %v1791
        %1870 = vst.msk [vmem:[#allocation2 + $0x2e8] sm:$0xff] %vm1838, %v1793
        %1871 = vst.msk [vmem:[#allocation2 + $0x300] sm:$0xff] %vm1838, %v1795
        %1872 = vst.msk [vmem:[#allocation2 + $0x318] sm:$0xff] %vm1838, %v1797
        %1873 = vst.msk [vmem:[#allocation2 + $0x330] sm:$0xff] %vm1838, %v1799
        %vm1874 = vcmask 46120
        %1875 = vst.msk [vmem:[#allocation2 + $0x348] sm:$0x3f] %vm1874, %v1801
        %v1878 = vrot.slane %v771, 4
        %v1879 = vsel %vm1656, %v1728, %v1878
        %v1880 = vrot.slane %v772, 4
        %v1881 = vsel %vm1656, %v1878, %v1880
        %1882 = vrot.lane.b32.xlu0 %v1663, 6
        %v1883 = vpop.permute.xlu0 %1882
        %1884 = vrot.lane.b32.xlu0 %v1665, 6
        %v1885 = vpop.permute.xlu0 %1884
        %1886 = vrot.lane.b32.xlu0 %v1667, 6
        %v1887 = vpop.permute.xlu0 %1886
        %1888 = vrot.lane.b32.xlu0 %v1669, 6
        %v1889 = vpop.permute.xlu0 %1888
        %1890 = vrot.lane.b32.xlu0 %v1671, 6
        %v1891 = vpop.permute.xlu0 %1890
        %1892 = vrot.lane.b32.xlu0 %v1673, 6
        %v1893 = vpop.permute.xlu0 %1892
        %1894 = vrot.lane.b32.xlu0 %v1675, 6
        %v1895 = vpop.permute.xlu0 %1894
        %1896 = vrot.lane.b32.xlu0 %v1677, 6
        %v1897 = vpop.permute.xlu0 %1896
        %1898 = vrot.lane.b32.xlu0 %v1679, 6
        %v1899 = vpop.permute.xlu0 %1898
        %1900 = vrot.lane.b32.xlu0 %v1681, 6
        %v1901 = vpop.permute.xlu0 %1900
        %1902 = vrot.lane.b32.xlu0 %v1683, 6
        %v1903 = vpop.permute.xlu0 %1902
        %1904 = vrot.lane.b32.xlu0 %v1685, 6
        %v1905 = vpop.permute.xlu0 %1904
        %1906 = vrot.lane.b32.xlu0 %v1687, 6
        %v1907 = vpop.permute.xlu0 %1906
        %1908 = vrot.lane.b32.xlu0 %v1689, 6
        %v1909 = vpop.permute.xlu0 %1908
        %1910 = vrot.lane.b32.xlu0 %v1691, 6
        %v1911 = vpop.permute.xlu0 %1910
        %1912 = vrot.lane.b32.xlu0 %v1693, 6
        %v1913 = vpop.permute.xlu0 %1912
        %1914 = vrot.lane.b32.xlu0 %v1695, 6
        %v1915 = vpop.permute.xlu0 %1914
        %1916 = vrot.lane.b32.xlu0 %v1697, 6
        %v1917 = vpop.permute.xlu0 %1916
        %1918 = vrot.lane.b32.xlu0 %v1699, 6
        %v1919 = vpop.permute.xlu0 %1918
        %1920 = vrot.lane.b32.xlu0 %v1701, 6
        %v1921 = vpop.permute.xlu0 %1920
        %1922 = vrot.lane.b32.xlu0 %v1703, 6
        %v1923 = vpop.permute.xlu0 %1922
        %1924 = vrot.lane.b32.xlu0 %v1705, 6
        %v1925 = vpop.permute.xlu0 %1924
        %1926 = vrot.lane.b32.xlu0 %v1707, 6
        %v1927 = vpop.permute.xlu0 %1926
        %1928 = vrot.lane.b32.xlu0 %v1709, 6
        %v1929 = vpop.permute.xlu0 %1928
        %1930 = vrot.lane.b32.xlu0 %v1711, 6
        %v1931 = vpop.permute.xlu0 %1930
        %1932 = vrot.lane.b32.xlu0 %v1713, 6
        %v1933 = vpop.permute.xlu0 %1932
        %1934 = vrot.lane.b32.xlu0 %v1715, 6
        %v1935 = vpop.permute.xlu0 %1934
        %1936 = vrot.lane.b32.xlu0 %v1717, 6
        %v1937 = vpop.permute.xlu0 %1936
        %1938 = vrot.lane.b32.xlu0 %v1719, 6
        %v1939 = vpop.permute.xlu0 %1938
        %1940 = vrot.lane.b32.xlu0 %v1721, 6
        %v1941 = vpop.permute.xlu0 %1940
        %1942 = vrot.lane.b32.xlu0 %v1723, 6
        %v1943 = vpop.permute.xlu0 %1942
        %1944 = vrot.lane.b32.xlu0 %v1725, 6
        %v1945 = vpop.permute.xlu0 %1944
        %1946 = vrot.lane.b32.xlu0 %v1727, 6
        %v1947 = vpop.permute.xlu0 %1946
        %1948 = vrot.lane.b32.xlu0 %v1729, 6
        %v1949 = vpop.permute.xlu0 %1948
        %1950 = vrot.lane.b32.xlu0 %v1879, 6
        %v1951 = vpop.permute.xlu0 %1950
        %1952 = vrot.lane.b32.xlu0 %v1881, 6
        %v1953 = vpop.permute.xlu0 %1952
        %vm1990 = vcmask 56368
        %1991 = vst.msk [vmem:[#allocation2] sm:$0xff] %vm1990, %v1883
        %1992 = vst.msk [vmem:[#allocation2 + $0x18] sm:$0xff] %vm1990, %v1885
        %1993 = vst.msk [vmem:[#allocation2 + $0x30] sm:$0xff] %vm1990, %v1887
        %1994 = vst.msk [vmem:[#allocation2 + $0x48] sm:$0xff] %vm1990, %v1889
        %1995 = vst.msk [vmem:[#allocation2 + $0x60] sm:$0xff] %vm1990, %v1891
        %1996 = vst.msk [vmem:[#allocation2 + $0x78] sm:$0xff] %vm1990, %v1893
        %1997 = vst.msk [vmem:[#allocation2 + $0x90] sm:$0xff] %vm1990, %v1895
        %1998 = vst.msk [vmem:[#allocation2 + $0xa8] sm:$0xff] %vm1990, %v1897
        %1999 = vst.msk [vmem:[#allocation2 + $0xc0] sm:$0xff] %vm1990, %v1899
        %2000 = vst.msk [vmem:[#allocation2 + $0xd8] sm:$0xff] %vm1990, %v1901
        %2001 = vst.msk [vmem:[#allocation2 + $0xf0] sm:$0xff] %vm1990, %v1903
        %2002 = vst.msk [vmem:[#allocation2 + $0x108] sm:$0xff] %vm1990, %v1905
        %2003 = vst.msk [vmem:[#allocation2 + $0x120] sm:$0xff] %vm1990, %v1907
        %2004 = vst.msk [vmem:[#allocation2 + $0x138] sm:$0xff] %vm1990, %v1909
        %2005 = vst.msk [vmem:[#allocation2 + $0x150] sm:$0xff] %vm1990, %v1911
        %2006 = vst.msk [vmem:[#allocation2 + $0x168] sm:$0xff] %vm1990, %v1913
        %2007 = vst.msk [vmem:[#allocation2 + $0x180] sm:$0xff] %vm1990, %v1915
        %2008 = vst.msk [vmem:[#allocation2 + $0x198] sm:$0xff] %vm1990, %v1917
        %2009 = vst.msk [vmem:[#allocation2 + $0x1b0] sm:$0xff] %vm1990, %v1919
        %2010 = vst.msk [vmem:[#allocation2 + $0x1c8] sm:$0xff] %vm1990, %v1921
        %2011 = vst.msk [vmem:[#allocation2 + $0x1e0] sm:$0xff] %vm1990, %v1923
        %2012 = vst.msk [vmem:[#allocation2 + $0x1f8] sm:$0xff] %vm1990, %v1925
        %2013 = vst.msk [vmem:[#allocation2 + $0x210] sm:$0xff] %vm1990, %v1927
        %2014 = vst.msk [vmem:[#allocation2 + $0x228] sm:$0xff] %vm1990, %v1929
        %2015 = vst.msk [vmem:[#allocation2 + $0x240] sm:$0xff] %vm1990, %v1931
        %2016 = vst.msk [vmem:[#allocation2 + $0x258] sm:$0xff] %vm1990, %v1933
        %2017 = vst.msk [vmem:[#allocation2 + $0x270] sm:$0xff] %vm1990, %v1935
        %2018 = vst.msk [vmem:[#allocation2 + $0x288] sm:$0xff] %vm1990, %v1937
        %2019 = vst.msk [vmem:[#allocation2 + $0x2a0] sm:$0xff] %vm1990, %v1939
        %2020 = vst.msk [vmem:[#allocation2 + $0x2b8] sm:$0xff] %vm1990, %v1941
        %2021 = vst.msk [vmem:[#allocation2 + $0x2d0] sm:$0xff] %vm1990, %v1943
        %2022 = vst.msk [vmem:[#allocation2 + $0x2e8] sm:$0xff] %vm1990, %v1945
        %2023 = vst.msk [vmem:[#allocation2 + $0x300] sm:$0xff] %vm1990, %v1947
        %2024 = vst.msk [vmem:[#allocation2 + $0x318] sm:$0xff] %vm1990, %v1949
        %2025 = vst.msk [vmem:[#allocation2 + $0x330] sm:$0xff] %vm1990, %v1951
        %vm2026 = vcmask 54320
        %2027 = vst.msk [vmem:[#allocation2 + $0x348] sm:$0x3f] %vm2026, %v1953
        %vm2028 = vcmask 1042432
        %v2029 = vrot.slane %v736, 5
        %v2030 = vrot.slane %v737, 5
        %v2031 = vsel %vm2028, %v2029, %v2030
        %v2032 = vrot.slane %v738, 5
        %v2033 = vsel %vm2028, %v2030, %v2032
        %v2034 = vrot.slane %v739, 5
        %v2035 = vsel %vm2028, %v2032, %v2034
        %v2036 = vrot.slane %v740, 5
        %v2037 = vsel %vm2028, %v2034, %v2036
        %v2038 = vrot.slane %v741, 5
        %v2039 = vsel %vm2028, %v2036, %v2038
        %v2040 = vrot.slane %v742, 5
        %v2041 = vsel %vm2028, %v2038, %v2040
        %v2042 = vrot.slane %v743, 5
        %v2043 = vsel %vm2028, %v2040, %v2042
        %v2044 = vrot.slane %v744, 5
        %v2045 = vsel %vm2028, %v2042, %v2044
        %v2046 = vrot.slane %v745, 5
        %v2047 = vsel %vm2028, %v2044, %v2046
        %v2048 = vrot.slane %v746, 5
        %v2049 = vsel %vm2028, %v2046, %v2048
        %v2050 = vrot.slane %v747, 5
        %v2051 = vsel %vm2028, %v2048, %v2050
        %v2052 = vrot.slane %v748, 5
        %v2053 = vsel %vm2028, %v2050, %v2052
        %v2054 = vrot.slane %v749, 5
        %v2055 = vsel %vm2028, %v2052, %v2054
        %v2056 = vrot.slane %v750, 5
        %v2057 = vsel %vm2028, %v2054, %v2056
        %v2058 = vrot.slane %v751, 5
        %v2059 = vsel %vm2028, %v2056, %v2058
        %v2060 = vrot.slane %v752, 5
        %v2061 = vsel %vm2028, %v2058, %v2060
        %v2062 = vrot.slane %v753, 5
        %v2063 = vsel %vm2028, %v2060, %v2062
        %v2064 = vrot.slane %v754, 5
        %v2065 = vsel %vm2028, %v2062, %v2064
        %v2066 = vrot.slane %v755, 5
        %v2067 = vsel %vm2028, %v2064, %v2066
        %v2068 = vrot.slane %v756, 5
        %v2069 = vsel %vm2028, %v2066, %v2068
        %v2070 = vrot.slane %v757, 5
        %v2071 = vsel %vm2028, %v2068, %v2070
        %v2072 = vrot.slane %v758, 5
        %v2073 = vsel %vm2028, %v2070, %v2072
        %v2074 = vrot.slane %v759, 5
        %v2075 = vsel %vm2028, %v2072, %v2074
        %v2076 = vrot.slane %v760, 5
        %v2077 = vsel %vm2028, %v2074, %v2076
        %v2078 = vrot.slane %v761, 5
        %v2079 = vsel %vm2028, %v2076, %v2078
        %v2080 = vrot.slane %v762, 5
        %v2081 = vsel %vm2028, %v2078, %v2080
        %v2082 = vrot.slane %v763, 5
        %v2083 = vsel %vm2028, %v2080, %v2082
        %v2084 = vrot.slane %v764, 5
        %v2085 = vsel %vm2028, %v2082, %v2084
        %v2086 = vrot.slane %v765, 5
        %v2087 = vsel %vm2028, %v2084, %v2086
        %v2088 = vrot.slane %v766, 5
        %v2089 = vsel %vm2028, %v2086, %v2088
        %v2090 = vrot.slane %v767, 5
        %v2091 = vsel %vm2028, %v2088, %v2090
        %v2092 = vrot.slane %v768, 5
        %v2093 = vsel %vm2028, %v2090, %v2092
        %v2094 = vrot.slane %v769, 5
        %v2095 = vsel %vm2028, %v2092, %v2094
        %v2096 = vrot.slane %v770, 5
        %v2097 = vsel %vm2028, %v2094, %v2096
        %v2098 = vrot.slane %v771, 5
        %v2099 = vsel %vm2028, %v2096, %v2098
        %v2100 = vrot.slane %v772, 5
        %v2101 = vsel %vm2028, %v2098, %v2100
        %2102 = vrot.lane.b32.xlu0 %v2031, 7
        %v2103 = vpop.permute.xlu0 %2102
        %2104 = vrot.lane.b32.xlu0 %v2033, 7
        %v2105 = vpop.permute.xlu0 %2104
        %2106 = vrot.lane.b32.xlu0 %v2035, 7
        %v2107 = vpop.permute.xlu0 %2106
        %2108 = vrot.lane.b32.xlu0 %v2037, 7
        %v2109 = vpop.permute.xlu0 %2108
        %2110 = vrot.lane.b32.xlu0 %v2039, 7
        %v2111 = vpop.permute.xlu0 %2110
        %2112 = vrot.lane.b32.xlu0 %v2041, 7
        %v2113 = vpop.permute.xlu0 %2112
        %2114 = vrot.lane.b32.xlu0 %v2043, 7
        %v2115 = vpop.permute.xlu0 %2114
        %2116 = vrot.lane.b32.xlu0 %v2045, 7
        %v2117 = vpop.permute.xlu0 %2116
        %2118 = vrot.lane.b32.xlu0 %v2047, 7
        %v2119 = vpop.permute.xlu0 %2118
        %2120 = vrot.lane.b32.xlu0 %v2049, 7
        %v2121 = vpop.permute.xlu0 %2120
        %2122 = vrot.lane.b32.xlu0 %v2051, 7
        %v2123 = vpop.permute.xlu0 %2122
        %2124 = vrot.lane.b32.xlu0 %v2053, 7
        %v2125 = vpop.permute.xlu0 %2124
        %2126 = vrot.lane.b32.xlu0 %v2055, 7
        %v2127 = vpop.permute.xlu0 %2126
        %2128 = vrot.lane.b32.xlu0 %v2057, 7
        %v2129 = vpop.permute.xlu0 %2128
        %2130 = vrot.lane.b32.xlu0 %v2059, 7
        %v2131 = vpop.permute.xlu0 %2130
        %2132 = vrot.lane.b32.xlu0 %v2061, 7
        %v2133 = vpop.permute.xlu0 %2132
        %2134 = vrot.lane.b32.xlu0 %v2063, 7
        %v2135 = vpop.permute.xlu0 %2134
        %2136 = vrot.lane.b32.xlu0 %v2065, 7
        %v2137 = vpop.permute.xlu0 %2136
        %2138 = vrot.lane.b32.xlu0 %v2067, 7
        %v2139 = vpop.permute.xlu0 %2138
        %2140 = vrot.lane.b32.xlu0 %v2069, 7
        %v2141 = vpop.permute.xlu0 %2140
        %2142 = vrot.lane.b32.xlu0 %v2071, 7
        %v2143 = vpop.permute.xlu0 %2142
        %2144 = vrot.lane.b32.xlu0 %v2073, 7
        %v2145 = vpop.permute.xlu0 %2144
        %2146 = vrot.lane.b32.xlu0 %v2075, 7
        %v2147 = vpop.permute.xlu0 %2146
        %2148 = vrot.lane.b32.xlu0 %v2077, 7
        %v2149 = vpop.permute.xlu0 %2148
        %2150 = vrot.lane.b32.xlu0 %v2079, 7
        %v2151 = vpop.permute.xlu0 %2150
        %2152 = vrot.lane.b32.xlu0 %v2081, 7
        %v2153 = vpop.permute.xlu0 %2152
        %2154 = vrot.lane.b32.xlu0 %v2083, 7
        %v2155 = vpop.permute.xlu0 %2154
        %2156 = vrot.lane.b32.xlu0 %v2085, 7
        %v2157 = vpop.permute.xlu0 %2156
        %2158 = vrot.lane.b32.xlu0 %v2087, 7
        %v2159 = vpop.permute.xlu0 %2158
        %2160 = vrot.lane.b32.xlu0 %v2089, 7
        %v2161 = vpop.permute.xlu0 %2160
        %2162 = vrot.lane.b32.xlu0 %v2091, 7
        %v2163 = vpop.permute.xlu0 %2162
        %2164 = vrot.lane.b32.xlu0 %v2093, 7
        %v2165 = vpop.permute.xlu0 %2164
        %2166 = vrot.lane.b32.xlu0 %v2095, 7
        %v2167 = vpop.permute.xlu0 %2166
        %2168 = vrot.lane.b32.xlu0 %v2097, 7
        %v2169 = vpop.permute.xlu0 %2168
        %2170 = vrot.lane.b32.xlu0 %v2099, 7
        %v2171 = vpop.permute.xlu0 %2170
        %2172 = vrot.lane.b32.xlu0 %v2101, 7
        %v2173 = vpop.permute.xlu0 %2172
        %vm2210 = vcmask 64568
        %2211 = vst.msk [vmem:[#allocation2] sm:$0xff] %vm2210, %v2103
        %2212 = vst.msk [vmem:[#allocation2 + $0x18] sm:$0xff] %vm2210, %v2105
        %2213 = vst.msk [vmem:[#allocation2 + $0x30] sm:$0xff] %vm2210, %v2107
        %2214 = vst.msk [vmem:[#allocation2 + $0x48] sm:$0xff] %vm2210, %v2109
        %2215 = vst.msk [vmem:[#allocation2 + $0x60] sm:$0xff] %vm2210, %v2111
        %2216 = vst.msk [vmem:[#allocation2 + $0x78] sm:$0xff] %vm2210, %v2113
        %2217 = vst.msk [vmem:[#allocation2 + $0x90] sm:$0xff] %vm2210, %v2115
        %2218 = vst.msk [vmem:[#allocation2 + $0xa8] sm:$0xff] %vm2210, %v2117
        %2219 = vst.msk [vmem:[#allocation2 + $0xc0] sm:$0xff] %vm2210, %v2119
        %2220 = vst.msk [vmem:[#allocation2 + $0xd8] sm:$0xff] %vm2210, %v2121
        %2221 = vst.msk [vmem:[#allocation2 + $0xf0] sm:$0xff] %vm2210, %v2123
        %2222 = vst.msk [vmem:[#allocation2 + $0x108] sm:$0xff] %vm2210, %v2125
        %2223 = vst.msk [vmem:[#allocation2 + $0x120] sm:$0xff] %vm2210, %v2127
        %2224 = vst.msk [vmem:[#allocation2 + $0x138] sm:$0xff] %vm2210, %v2129
        %2225 = vst.msk [vmem:[#allocation2 + $0x150] sm:$0xff] %vm2210, %v2131
        %2226 = vst.msk [vmem:[#allocation2 + $0x168] sm:$0xff] %vm2210, %v2133
        %2227 = vst.msk [vmem:[#allocation2 + $0x180] sm:$0xff] %vm2210, %v2135
        %2228 = vst.msk [vmem:[#allocation2 + $0x198] sm:$0xff] %vm2210, %v2137
        %2229 = vst.msk [vmem:[#allocation2 + $0x1b0] sm:$0xff] %vm2210, %v2139
        %2230 = vst.msk [vmem:[#allocation2 + $0x1c8] sm:$0xff] %vm2210, %v2141
        %2231 = vst.msk [vmem:[#allocation2 + $0x1e0] sm:$0xff] %vm2210, %v2143
        %2232 = vst.msk [vmem:[#allocation2 + $0x1f8] sm:$0xff] %vm2210, %v2145
        %2233 = vst.msk [vmem:[#allocation2 + $0x210] sm:$0xff] %vm2210, %v2147
        %2234 = vst.msk [vmem:[#allocation2 + $0x228] sm:$0xff] %vm2210, %v2149
        %2235 = vst.msk [vmem:[#allocation2 + $0x240] sm:$0xff] %vm2210, %v2151
        %2236 = vst.msk [vmem:[#allocation2 + $0x258] sm:$0xff] %vm2210, %v2153
        %2237 = vst.msk [vmem:[#allocation2 + $0x270] sm:$0xff] %vm2210, %v2155
        %2238 = vst.msk [vmem:[#allocation2 + $0x288] sm:$0xff] %vm2210, %v2157
        %2239 = vst.msk [vmem:[#allocation2 + $0x2a0] sm:$0xff] %vm2210, %v2159
        %2240 = vst.msk [vmem:[#allocation2 + $0x2b8] sm:$0xff] %vm2210, %v2161
        %2241 = vst.msk [vmem:[#allocation2 + $0x2d0] sm:$0xff] %vm2210, %v2163
        %2242 = vst.msk [vmem:[#allocation2 + $0x2e8] sm:$0xff] %vm2210, %v2165
        %2243 = vst.msk [vmem:[#allocation2 + $0x300] sm:$0xff] %vm2210, %v2167
        %2244 = vst.msk [vmem:[#allocation2 + $0x318] sm:$0xff] %vm2210, %v2169
        %2245 = vst.msk [vmem:[#allocation2 + $0x330] sm:$0xff] %vm2210, %v2171
        %vm2246 = vcmask 62520
        %2247 = vst.msk [vmem:[#allocation2 + $0x348] sm:$0x3f] %vm2246, %v2173
        %vm2248 = vcmask 1041408
        %v2249 = vrot.slane %v736, 6
        %v2250 = vrot.slane %v737, 6
        %v2251 = vsel %vm2248, %v2249, %v2250
        %v2252 = vrot.slane %v738, 6
        %v2253 = vsel %vm2248, %v2250, %v2252
        %v2254 = vrot.slane %v739, 6
        %v2255 = vsel %vm2248, %v2252, %v2254
        %v2256 = vrot.slane %v740, 6
        %v2257 = vsel %vm2248, %v2254, %v2256
        %v2258 = vrot.slane %v741, 6
        %v2259 = vsel %vm2248, %v2256, %v2258
        %v2260 = vrot.slane %v742, 6
        %v2261 = vsel %vm2248, %v2258, %v2260
        %v2262 = vrot.slane %v743, 6
        %v2263 = vsel %vm2248, %v2260, %v2262
        %v2264 = vrot.slane %v744, 6
        %v2265 = vsel %vm2248, %v2262, %v2264
        %v2266 = vrot.slane %v745, 6
        %v2267 = vsel %vm2248, %v2264, %v2266
        %v2268 = vrot.slane %v746, 6
        %v2269 = vsel %vm2248, %v2266, %v2268
        %v2270 = vrot.slane %v747, 6
        %v2271 = vsel %vm2248, %v2268, %v2270
        %v2272 = vrot.slane %v748, 6
        %v2273 = vsel %vm2248, %v2270, %v2272
        %v2274 = vrot.slane %v749, 6
        %v2275 = vsel %vm2248, %v2272, %v2274
        %v2276 = vrot.slane %v750, 6
        %v2277 = vsel %vm2248, %v2274, %v2276
        %v2278 = vrot.slane %v751, 6
        %v2279 = vsel %vm2248, %v2276, %v2278
        %v2280 = vrot.slane %v752, 6
        %v2281 = vsel %vm2248, %v2278, %v2280
        %v2282 = vrot.slane %v753, 6
        %v2283 = vsel %vm2248, %v2280, %v2282
        %v2284 = vrot.slane %v754, 6
        %v2285 = vsel %vm2248, %v2282, %v2284
        %v2286 = vrot.slane %v755, 6
        %v2287 = vsel %vm2248, %v2284, %v2286
        %v2288 = vrot.slane %v756, 6
        %v2289 = vsel %vm2248, %v2286, %v2288
        %v2290 = vrot.slane %v757, 6
        %v2291 = vsel %vm2248, %v2288, %v2290
        %v2292 = vrot.slane %v758, 6
        %v2293 = vsel %vm2248, %v2290, %v2292
        %v2294 = vrot.slane %v759, 6
        %v2295 = vsel %vm2248, %v2292, %v2294
        %v2296 = vrot.slane %v760, 6
        %v2297 = vsel %vm2248, %v2294, %v2296
        %v2298 = vrot.slane %v761, 6
        %v2299 = vsel %vm2248, %v2296, %v2298
        %v2300 = vrot.slane %v762, 6
        %v2301 = vsel %vm2248, %v2298, %v2300
        %v2302 = vrot.slane %v763, 6
        %v2303 = vsel %vm2248, %v2300, %v2302
        %v2304 = vrot.slane %v764, 6
        %v2305 = vsel %vm2248, %v2302, %v2304
        %v2306 = vrot.slane %v765, 6
        %v2307 = vsel %vm2248, %v2304, %v2306
        %v2308 = vrot.slane %v766, 6
        %v2309 = vsel %vm2248, %v2306, %v2308
        %v2310 = vrot.slane %v767, 6
        %v2311 = vsel %vm2248, %v2308, %v2310
        %v2312 = vrot.slane %v768, 6
        %v2313 = vsel %vm2248, %v2310, %v2312
        %v2314 = vrot.slane %v769, 6
        %v2315 = vsel %vm2248, %v2312, %v2314
        %v2316 = vrot.slane %v770, 6
        %v2317 = vsel %vm2248, %v2314, %v2316
        %v2318 = vrot.slane %v771, 6
        %v2319 = vsel %vm2248, %v2316, %v2318
        %v2320 = vrot.slane %v772, 6
        %v2321 = vsel %vm2248, %v2318, %v2320
        %2322 = vrot.lane.b32.xlu0 %v2251, 8
        %v2323 = vpop.permute.xlu0 %2322
        %2324 = vrot.lane.b32.xlu0 %v2253, 8
        %v2325 = vpop.permute.xlu0 %2324
        %2326 = vrot.lane.b32.xlu0 %v2255, 8
        %v2327 = vpop.permute.xlu0 %2326
        %2328 = vrot.lane.b32.xlu0 %v2257, 8
        %v2329 = vpop.permute.xlu0 %2328
        %2330 = vrot.lane.b32.xlu0 %v2259, 8
        %v2331 = vpop.permute.xlu0 %2330
        %2332 = vrot.lane.b32.xlu0 %v2261, 8
        %v2333 = vpop.permute.xlu0 %2332
        %2334 = vrot.lane.b32.xlu0 %v2263, 8
        %v2335 = vpop.permute.xlu0 %2334
        %2336 = vrot.lane.b32.xlu0 %v2265, 8
        %v2337 = vpop.permute.xlu0 %2336
        %2338 = vrot.lane.b32.xlu0 %v2267, 8
        %v2339 = vpop.permute.xlu0 %2338
        %2340 = vrot.lane.b32.xlu0 %v2269, 8
        %v2341 = vpop.permute.xlu0 %2340
        %2342 = vrot.lane.b32.xlu0 %v2271, 8
        %v2343 = vpop.permute.xlu0 %2342
        %2344 = vrot.lane.b32.xlu0 %v2273, 8
        %v2345 = vpop.permute.xlu0 %2344
        %2346 = vrot.lane.b32.xlu0 %v2275, 8
        %v2347 = vpop.permute.xlu0 %2346
        %2348 = vrot.lane.b32.xlu0 %v2277, 8
        %v2349 = vpop.permute.xlu0 %2348
        %2350 = vrot.lane.b32.xlu0 %v2279, 8
        %v2351 = vpop.permute.xlu0 %2350
        %2352 = vrot.lane.b32.xlu0 %v2281, 8
        %v2353 = vpop.permute.xlu0 %2352
        %2354 = vrot.lane.b32.xlu0 %v2283, 8
        %v2355 = vpop.permute.xlu0 %2354
        %2356 = vrot.lane.b32.xlu0 %v2285, 8
        %v2357 = vpop.permute.xlu0 %2356
        %2358 = vrot.lane.b32.xlu0 %v2287, 8
        %v2359 = vpop.permute.xlu0 %2358
        %2360 = vrot.lane.b32.xlu0 %v2289, 8
        %v2361 = vpop.permute.xlu0 %2360
        %2362 = vrot.lane.b32.xlu0 %v2291, 8
        %v2363 = vpop.permute.xlu0 %2362
        %2364 = vrot.lane.b32.xlu0 %v2293, 8
        %v2365 = vpop.permute.xlu0 %2364
        %2366 = vrot.lane.b32.xlu0 %v2295, 8
        %v2367 = vpop.permute.xlu0 %2366
        %2368 = vrot.lane.b32.xlu0 %v2297, 8
        %v2369 = vpop.permute.xlu0 %2368
        %2370 = vrot.lane.b32.xlu0 %v2299, 8
        %v2371 = vpop.permute.xlu0 %2370
        %2372 = vrot.lane.b32.xlu0 %v2301, 8
        %v2373 = vpop.permute.xlu0 %2372
        %2374 = vrot.lane.b32.xlu0 %v2303, 8
        %v2375 = vpop.permute.xlu0 %2374
        %2376 = vrot.lane.b32.xlu0 %v2305, 8
        %v2377 = vpop.permute.xlu0 %2376
        %2378 = vrot.lane.b32.xlu0 %v2307, 8
        %v2379 = vpop.permute.xlu0 %2378
        %2380 = vrot.lane.b32.xlu0 %v2309, 8
        %v2381 = vpop.permute.xlu0 %2380
        %2382 = vrot.lane.b32.xlu0 %v2311, 8
        %v2383 = vpop.permute.xlu0 %2382
        %2384 = vrot.lane.b32.xlu0 %v2313, 8
        %v2385 = vpop.permute.xlu0 %2384
        %2386 = vrot.lane.b32.xlu0 %v2315, 8
        %v2387 = vpop.permute.xlu0 %2386
        %2388 = vrot.lane.b32.xlu0 %v2317, 8
        %v2389 = vpop.permute.xlu0 %2388
        %2390 = vrot.lane.b32.xlu0 %v2319, 8
        %v2391 = vpop.permute.xlu0 %2390
        %2392 = vrot.lane.b32.xlu0 %v2321, 8
        %v2393 = vpop.permute.xlu0 %2392
        %vm2430 = vcmask 72768
        %2431 = vst.msk [vmem:[#allocation2] sm:$0xff] %vm2430, %v2323
        %2432 = vst.msk [vmem:[#allocation2 + $0x18] sm:$0xff] %vm2430, %v2325
        %2433 = vst.msk [vmem:[#allocation2 + $0x30] sm:$0xff] %vm2430, %v2327
        %2434 = vst.msk [vmem:[#allocation2 + $0x48] sm:$0xff] %vm2430, %v2329
        %2435 = vst.msk [vmem:[#allocation2 + $0x60] sm:$0xff] %vm2430, %v2331
        %2436 = vst.msk [vmem:[#allocation2 + $0x78] sm:$0xff] %vm2430, %v2333
        %2437 = vst.msk [vmem:[#allocation2 + $0x90] sm:$0xff] %vm2430, %v2335
        %2438 = vst.msk [vmem:[#allocation2 + $0xa8] sm:$0xff] %vm2430, %v2337
        %2439 = vst.msk [vmem:[#allocation2 + $0xc0] sm:$0xff] %vm2430, %v2339
        %2440 = vst.msk [vmem:[#allocation2 + $0xd8] sm:$0xff] %vm2430, %v2341
        %2441 = vst.msk [vmem:[#allocation2 + $0xf0] sm:$0xff] %vm2430, %v2343
        %2442 = vst.msk [vmem:[#allocation2 + $0x108] sm:$0xff] %vm2430, %v2345
        %2443 = vst.msk [vmem:[#allocation2 + $0x120] sm:$0xff] %vm2430, %v2347
        %2444 = vst.msk [vmem:[#allocation2 + $0x138] sm:$0xff] %vm2430, %v2349
        %2445 = vst.msk [vmem:[#allocation2 + $0x150] sm:$0xff] %vm2430, %v2351
        %2446 = vst.msk [vmem:[#allocation2 + $0x168] sm:$0xff] %vm2430, %v2353
        %2447 = vst.msk [vmem:[#allocation2 + $0x180] sm:$0xff] %vm2430, %v2355
        %2448 = vst.msk [vmem:[#allocation2 + $0x198] sm:$0xff] %vm2430, %v2357
        %2449 = vst.msk [vmem:[#allocation2 + $0x1b0] sm:$0xff] %vm2430, %v2359
        %2450 = vst.msk [vmem:[#allocation2 + $0x1c8] sm:$0xff] %vm2430, %v2361
        %2451 = vst.msk [vmem:[#allocation2 + $0x1e0] sm:$0xff] %vm2430, %v2363
        %2452 = vst.msk [vmem:[#allocation2 + $0x1f8] sm:$0xff] %vm2430, %v2365
        %2453 = vst.msk [vmem:[#allocation2 + $0x210] sm:$0xff] %vm2430, %v2367
        %2454 = vst.msk [vmem:[#allocation2 + $0x228] sm:$0xff] %vm2430, %v2369
        %2455 = vst.msk [vmem:[#allocation2 + $0x240] sm:$0xff] %vm2430, %v2371
        %2456 = vst.msk [vmem:[#allocation2 + $0x258] sm:$0xff] %vm2430, %v2373
        %2457 = vst.msk [vmem:[#allocation2 + $0x270] sm:$0xff] %vm2430, %v2375
        %2458 = vst.msk [vmem:[#allocation2 + $0x288] sm:$0xff] %vm2430, %v2377
        %2459 = vst.msk [vmem:[#allocation2 + $0x2a0] sm:$0xff] %vm2430, %v2379
        %2460 = vst.msk [vmem:[#allocation2 + $0x2b8] sm:$0xff] %vm2430, %v2381
        %2461 = vst.msk [vmem:[#allocation2 + $0x2d0] sm:$0xff] %vm2430, %v2383
        %2462 = vst.msk [vmem:[#allocation2 + $0x2e8] sm:$0xff] %vm2430, %v2385
        %2463 = vst.msk [vmem:[#allocation2 + $0x300] sm:$0xff] %vm2430, %v2387
        %2464 = vst.msk [vmem:[#allocation2 + $0x318] sm:$0xff] %vm2430, %v2389
        %2465 = vst.msk [vmem:[#allocation2 + $0x330] sm:$0xff] %vm2430, %v2391
        %vm2466 = vcmask 70720
        %2467 = vst.msk [vmem:[#allocation2 + $0x348] sm:$0x3f] %vm2466, %v2393
        %v2468 = vld [vmem:[#allocation2] sm:$0xff]
        %v2469 = vld [vmem:[#allocation2 + $0x18] sm:$0xff]
        %v2470 = vld [vmem:[#allocation2 + $0x30] sm:$0xff]
        %v2471 = vld [vmem:[#allocation2 + $0x48] sm:$0xff]
        %v2472 = vld [vmem:[#allocation2 + $0x60] sm:$0xff]
        %v2473 = vld [vmem:[#allocation2 + $0x78] sm:$0xff]
        %v2474 = vld [vmem:[#allocation2 + $0x90] sm:$0xff]
        %v2475 = vld [vmem:[#allocation2 + $0xa8] sm:$0xff]
        %v2476 = vld [vmem:[#allocation2 + $0xc0] sm:$0xff]
        %v2477 = vld [vmem:[#allocation2 + $0xd8] sm:$0xff]
        %v2478 = vld [vmem:[#allocation2 + $0xf0] sm:$0xff]
        %v2479 = vld [vmem:[#allocation2 + $0x108] sm:$0xff]
        %v2480 = vld [vmem:[#allocation2 + $0x120] sm:$0xff]
        %v2481 = vld [vmem:[#allocation2 + $0x138] sm:$0xff]
        %v2482 = vld [vmem:[#allocation2 + $0x150] sm:$0xff]
        %v2483 = vld [vmem:[#allocation2 + $0x168] sm:$0xff]
        %v2484 = vld [vmem:[#allocation2 + $0x180] sm:$0xff]
        %v2485 = vld [vmem:[#allocation2 + $0x198] sm:$0xff]
        %v2486 = vld [vmem:[#allocation2 + $0x1b0] sm:$0xff]
        %v2487 = vld [vmem:[#allocation2 + $0x1c8] sm:$0xff]
        %v2488 = vld [vmem:[#allocation2 + $0x1e0] sm:$0xff]
        %v2489 = vld [vmem:[#allocation2 + $0x1f8] sm:$0xff]
        %v2490 = vld [vmem:[#allocation2 + $0x210] sm:$0xff]
        %v2491 = vld [vmem:[#allocation2 + $0x228] sm:$0xff]
        %v2492 = vld [vmem:[#allocation2 + $0x240] sm:$0xff]
        %v2493 = vld [vmem:[#allocation2 + $0x258] sm:$0xff]
        %v2494 = vld [vmem:[#allocation2 + $0x270] sm:$0xff]
        %v2495 = vld [vmem:[#allocation2 + $0x288] sm:$0xff]
        %v2496 = vld [vmem:[#allocation2 + $0x2a0] sm:$0xff]
        %v2497 = vld [vmem:[#allocation2 + $0x2b8] sm:$0xff]
        %v2498 = vld [vmem:[#allocation2 + $0x2d0] sm:$0xff]
        %v2499 = vld [vmem:[#allocation2 + $0x2e8] sm:$0xff]
        %v2500 = vld [vmem:[#allocation2 + $0x300] sm:$0xff]
        %v2501 = vld [vmem:[#allocation2 + $0x318] sm:$0xff]
        %v2502 = vld [vmem:[#allocation2 + $0x330] sm:$0xff]
        %v2503 = vld [vmem:[#allocation2 + $0x348] sm:$0x3f]
        %v2504 = vld [vmem:[#allocation4] sm:$0xff]
        %v2505 = vld [vmem:[#allocation4 + $0x8] sm:$0x1]
        %v2506 = vld [vmem:[#allocation11] sm:$0x1]
        %v2508 = vlaneseq
        %v2509 = vshrl.u32 %v2508, 7
        %v2510 = vsub.s32 0, %v2509
        %v2511 = vrot.slane %v2506, %v2510
        %vm2513 = vcmask 72704
        %v2515 = vsel %vm2513, %v2468, 0
        %v2518 = vsel %vm2513, %v2469, 0
        %v2521 = vsel %vm2513, %v2470, 0
        %v2524 = vsel %vm2513, %v2471, 0
        %v2527 = vsel %vm2513, %v2472, 0
        %v2530 = vsel %vm2513, %v2473, 0
        %v2533 = vsel %vm2513, %v2474, 0
        %v2536 = vsel %vm2513, %v2475, 0
        %v2539 = vsel %vm2513, %v2476, 0
        %v2542 = vsel %vm2513, %v2477, 0
        %v2545 = vsel %vm2513, %v2478, 0
        %v2548 = vsel %vm2513, %v2479, 0
        %v2551 = vsel %vm2513, %v2480, 0
        %v2554 = vsel %vm2513, %v2481, 0
        %v2557 = vsel %vm2513, %v2482, 0
        %v2560 = vsel %vm2513, %v2483, 0
        %v2563 = vsel %vm2513, %v2484, 0
        %v2566 = vsel %vm2513, %v2485, 0
        %v2569 = vsel %vm2513, %v2486, 0
        %v2572 = vsel %vm2513, %v2487, 0
        %v2575 = vsel %vm2513, %v2488, 0
        %v2578 = vsel %vm2513, %v2489, 0
        %v2581 = vsel %vm2513, %v2490, 0
        %v2584 = vsel %vm2513, %v2491, 0
        %v2587 = vsel %vm2513, %v2492, 0
        %v2590 = vsel %vm2513, %v2493, 0
        %v2593 = vsel %vm2513, %v2494, 0
        %v2596 = vsel %vm2513, %v2495, 0
        %v2599 = vsel %vm2513, %v2496, 0
        %v2602 = vsel %vm2513, %v2497, 0
        %v2605 = vsel %vm2513, %v2498, 0
        %v2608 = vsel %vm2513, %v2499, 0
        %v2611 = vsel %vm2513, %v2500, 0
        %v2614 = vsel %vm2513, %v2501, 0
        %v2617 = vsel %vm2513, %v2502, 0
        %v2620 = vsel %vm2513, %v2503, 0
        %vm2622 = vcmask 1040384
        %v2624 = vsel %vm2622, %v2505, 0
        %2626 = vmatprep.subr.mxu0 0.0
        %2627 = vmatpush1.msra.mxu0 0.0
        %2628 = vmatprep.subr.mxu0 0.0
        %2629 = vmatpush1.msra.mxu0 0.0
        %2630 = vmatprep.subr.mxu0 0.0
        %2631 = vmatpush1.msra.mxu0 0.0
        %2632 = vmatprep.subr.mxu0 0.0
        %2633 = vmatpush1.msra.mxu0 0.0
        %2634 = vmatprep.subr.mxu0 0.0
        %2635 = vmatpush1.msra.mxu0 0.0
        %2636 = vmatprep.subr.mxu0 0.0
        %2637 = vmatpush1.msra.mxu0 0.0
        %2638 = vmatprep.subr.mxu0 0.0
        %2639 = vmatpush1.msra.mxu0 0.0
        %2640 = vmatprep.subr.mxu0 0.0
        %2641 = vmatpush1.msra.mxu0 0.0
        %2642 = vmatprep.subr.mxu0 0.0
        %2643 = vmatpush1.msra.mxu0 0.0
        %2644 = vmatprep.subr.mxu0 0.0
        %2645 = vmatpush1.msra.mxu0 0.0
        %2646 = vmatprep.subr.mxu0 0.0
        %2647 = vmatpush1.msra.mxu0 0.0
        %2648 = vmatprep.subr.mxu0 0.0
        %2649 = vmatpush1.msra.mxu0 0.0
        %2650 = vmatprep.subr.mxu0 0.0
        %2651 = vmatpush1.msra.mxu0 0.0
        %2652 = vmatprep.subr.mxu0 0.0
        %2653 = vmatpush1.msra.mxu0 0.0
        %2654 = vmatprep.subr.mxu0 0.0
        %2655 = vmatpush1.msra.mxu0 %v2624
        %2656 = vmatprep.subr.mxu0 0.0
        %2657 = vmatpush1.msra.mxu0 %v2504
        %2658 = vmatprep.subr.mxu0 0.0
        %2659 = vmatpush2.msra.mxu0 0.0
        %2660 = vmatprep.subr.mxu0 0.0
        %2661 = vmatpush2.msra.mxu0 0.0
        %2662 = vmatprep.subr.mxu0 0.0
        %2663 = vmatpush2.msra.mxu0 0.0
        %2664 = vmatprep.subr.mxu0 0.0
        %2665 = vmatpush2.msra.mxu0 0.0
        %2666 = vmatprep.subr.mxu0 0.0
        %2667 = vmatpush2.msra.mxu0 0.0
        %2668 = vmatprep.subr.mxu0 0.0
        %2669 = vmatpush2.msra.mxu0 0.0
        %2670 = vmatprep.subr.mxu0 0.0
        %2671 = vmatpush2.msra.mxu0 0.0
        %2672 = vmatprep.subr.mxu0 0.0
        %2673 = vmatpush2.msra.mxu0 0.0
        %2674 = vmatprep.subr.mxu0 0.0
        %2675 = vmatpush2.msra.mxu0 0.0
        %2676 = vmatprep.subr.mxu0 0.0
        %2677 = vmatpush2.msra.mxu0 0.0
        %2678 = vmatprep.subr.mxu0 0.0
        %2679 = vmatpush2.msra.mxu0 0.0
        %2680 = vmatprep.subr.mxu0 0.0
        %2681 = vmatpush2.msra.mxu0 0.0
        %2682 = vmatprep.subr.mxu0 0.0
        %2683 = vmatpush2.msra.mxu0 0.0
        %2684 = vmatprep.subr.mxu0 0.0
        %2685 = vmatpush2.msra.mxu0 0.0
        %2686 = vmatprep.subr.mxu0 0.0
        %2687 = vmatpush2.msra.mxu0 0.0
        %2688 = vmatprep.subr.mxu0 0.0
        %2689 = vmatpush2.msra.mxu0 0.0
        %2690 = vmatprep.mubr.f32.mxu0 0.0
        %2691 = vmatmul.mubr.f32.gmra.mxu0 %v2515
        %v2692 = vpop.f32.mrf.mxu0
        %v2693 = vadd.f32 %v2511, %v2692
        %v2694 = vpop.f32.mrf.mxu0
        %2695 = vmatprep.mubr.f32.mxu0 0.0
        %2696 = vmatmul.mubr.f32.gmra.mxu0 %v2518
        %v2697 = vpop.f32.mrf.mxu0
        %v2698 = vadd.f32 %v2511, %v2697
        %v2699 = vpop.f32.mrf.mxu0
        %2700 = vmatprep.mubr.f32.mxu0 0.0
        %2701 = vmatmul.mubr.f32.gmra.mxu0 %v2521
        %v2702 = vpop.f32.mrf.mxu0
        %v2703 = vadd.f32 %v2511, %v2702
        %v2704 = vpop.f32.mrf.mxu0
        %2705 = vmatprep.mubr.f32.mxu0 0.0
        %2706 = vmatmul.mubr.f32.gmra.mxu0 %v2524
        %v2707 = vpop.f32.mrf.mxu0
        %v2708 = vadd.f32 %v2511, %v2707
        %v2709 = vpop.f32.mrf.mxu0
        %2710 = vmatprep.mubr.f32.mxu0 0.0
        %2711 = vmatmul.mubr.f32.gmra.mxu0 %v2527
        %v2712 = vpop.f32.mrf.mxu0
        %v2713 = vadd.f32 %v2511, %v2712
        %v2714 = vpop.f32.mrf.mxu0
        %2715 = vmatprep.mubr.f32.mxu0 0.0
        %2716 = vmatmul.mubr.f32.gmra.mxu0 %v2530
        %v2717 = vpop.f32.mrf.mxu0
        %v2718 = vadd.f32 %v2511, %v2717
        %v2719 = vpop.f32.mrf.mxu0
        %2720 = vmatprep.mubr.f32.mxu0 0.0
        %2721 = vmatmul.mubr.f32.gmra.mxu0 %v2533
        %v2722 = vpop.f32.mrf.mxu0
        %v2723 = vadd.f32 %v2511, %v2722
        %v2724 = vpop.f32.mrf.mxu0
        %2725 = vmatprep.mubr.f32.mxu0 0.0
        %2726 = vmatmul.mubr.f32.gmra.mxu0 %v2536
        %v2727 = vpop.f32.mrf.mxu0
        %v2728 = vadd.f32 %v2511, %v2727
        %v2729 = vpop.f32.mrf.mxu0
        %2730 = vmatprep.mubr.f32.mxu0 0.0
        %2731 = vmatmul.mubr.f32.gmra.mxu0 %v2539
        %v2732 = vpop.f32.mrf.mxu0
        %v2733 = vadd.f32 %v2511, %v2732
        %v2734 = vpop.f32.mrf.mxu0
        %2735 = vmatprep.mubr.f32.mxu0 0.0
        %2736 = vmatmul.mubr.f32.gmra.mxu0 %v2542
        %v2737 = vpop.f32.mrf.mxu0
        %v2738 = vadd.f32 %v2511, %v2737
        %v2739 = vpop.f32.mrf.mxu0
        %2740 = vmatprep.mubr.f32.mxu0 0.0
        %2741 = vmatmul.mubr.f32.gmra.mxu0 %v2545
        %v2742 = vpop.f32.mrf.mxu0
        %v2743 = vadd.f32 %v2511, %v2742
        %v2744 = vpop.f32.mrf.mxu0
        %2745 = vmatprep.mubr.f32.mxu0 0.0
        %2746 = vmatmul.mubr.f32.gmra.mxu0 %v2548
        %v2747 = vpop.f32.mrf.mxu0
        %v2748 = vadd.f32 %v2511, %v2747
        %v2749 = vpop.f32.mrf.mxu0
        %2750 = vmatprep.mubr.f32.mxu0 0.0
        %2751 = vmatmul.mubr.f32.gmra.mxu0 %v2551
        %v2752 = vpop.f32.mrf.mxu0
        %v2753 = vadd.f32 %v2511, %v2752
        %v2754 = vpop.f32.mrf.mxu0
        %2755 = vmatprep.mubr.f32.mxu0 0.0
        %2756 = vmatmul.mubr.f32.gmra.mxu0 %v2554
        %v2757 = vpop.f32.mrf.mxu0
        %v2758 = vadd.f32 %v2511, %v2757
        %v2759 = vpop.f32.mrf.mxu0
        %2760 = vmatprep.mubr.f32.mxu0 0.0
        %2761 = vmatmul.mubr.f32.gmra.mxu0 %v2557
        %v2762 = vpop.f32.mrf.mxu0
        %v2763 = vadd.f32 %v2511, %v2762
        %v2764 = vpop.f32.mrf.mxu0
        %2765 = vmatprep.mubr.f32.mxu0 0.0
        %2766 = vmatmul.mubr.f32.gmra.mxu0 %v2560
        %v2767 = vpop.f32.mrf.mxu0
        %v2768 = vadd.f32 %v2511, %v2767
        %v2769 = vpop.f32.mrf.mxu0
        %2770 = vmatprep.mubr.f32.mxu0 0.0
        %2771 = vmatmul.mubr.f32.gmra.mxu0 %v2563
        %v2772 = vpop.f32.mrf.mxu0
        %v2773 = vadd.f32 %v2511, %v2772
        %v2774 = vpop.f32.mrf.mxu0
        %2775 = vmatprep.mubr.f32.mxu0 0.0
        %2776 = vmatmul.mubr.f32.gmra.mxu0 %v2566
        %v2777 = vpop.f32.mrf.mxu0
        %v2778 = vadd.f32 %v2511, %v2777
        %v2779 = vpop.f32.mrf.mxu0
        %2780 = vmatprep.mubr.f32.mxu0 0.0
        %2781 = vmatmul.mubr.f32.gmra.mxu0 %v2569
        %v2782 = vpop.f32.mrf.mxu0
        %v2783 = vadd.f32 %v2511, %v2782
        %v2784 = vpop.f32.mrf.mxu0
        %2785 = vmatprep.mubr.f32.mxu0 0.0
        %2786 = vmatmul.mubr.f32.gmra.mxu0 %v2572
        %v2787 = vpop.f32.mrf.mxu0
        %v2788 = vadd.f32 %v2511, %v2787
        %v2789 = vpop.f32.mrf.mxu0
        %2790 = vmatprep.mubr.f32.mxu0 0.0
        %2791 = vmatmul.mubr.f32.gmra.mxu0 %v2575
        %v2792 = vpop.f32.mrf.mxu0
        %v2793 = vadd.f32 %v2511, %v2792
        %v2794 = vpop.f32.mrf.mxu0
        %2795 = vmatprep.mubr.f32.mxu0 0.0
        %2796 = vmatmul.mubr.f32.gmra.mxu0 %v2578
        %v2797 = vpop.f32.mrf.mxu0
        %v2798 = vadd.f32 %v2511, %v2797
        %v2799 = vpop.f32.mrf.mxu0
        %2800 = vmatprep.mubr.f32.mxu0 0.0
        %2801 = vmatmul.mubr.f32.gmra.mxu0 %v2581
        %v2802 = vpop.f32.mrf.mxu0
        %v2803 = vadd.f32 %v2511, %v2802
        %v2804 = vpop.f32.mrf.mxu0
        %2805 = vmatprep.mubr.f32.mxu0 0.0
        %2806 = vmatmul.mubr.f32.gmra.mxu0 %v2584
        %v2807 = vpop.f32.mrf.mxu0
        %v2808 = vadd.f32 %v2511, %v2807
        %v2809 = vpop.f32.mrf.mxu0
        %2810 = vmatprep.mubr.f32.mxu0 0.0
        %2811 = vmatmul.mubr.f32.gmra.mxu0 %v2587
        %v2812 = vpop.f32.mrf.mxu0
        %v2813 = vadd.f32 %v2511, %v2812
        %v2814 = vpop.f32.mrf.mxu0
        %2815 = vmatprep.mubr.f32.mxu0 0.0
        %2816 = vmatmul.mubr.f32.gmra.mxu0 %v2590
        %v2817 = vpop.f32.mrf.mxu0
        %v2818 = vadd.f32 %v2511, %v2817
        %v2819 = vpop.f32.mrf.mxu0
        %2820 = vmatprep.mubr.f32.mxu0 0.0
        %2821 = vmatmul.mubr.f32.gmra.mxu0 %v2593
        %v2822 = vpop.f32.mrf.mxu0
        %v2823 = vadd.f32 %v2511, %v2822
        %v2824 = vpop.f32.mrf.mxu0
        %2825 = vmatprep.mubr.f32.mxu0 0.0
        %2826 = vmatmul.mubr.f32.gmra.mxu0 %v2596
        %v2827 = vpop.f32.mrf.mxu0
        %v2828 = vadd.f32 %v2511, %v2827
        %v2829 = vpop.f32.mrf.mxu0
        %2830 = vmatprep.mubr.f32.mxu0 0.0
        %2831 = vmatmul.mubr.f32.gmra.mxu0 %v2599
        %v2832 = vpop.f32.mrf.mxu0
        %v2833 = vadd.f32 %v2511, %v2832
        %v2834 = vpop.f32.mrf.mxu0
        %2835 = vmatprep.mubr.f32.mxu0 0.0
        %2836 = vmatmul.mubr.f32.gmra.mxu0 %v2602
        %v2837 = vpop.f32.mrf.mxu0
        %v2838 = vadd.f32 %v2511, %v2837
        %v2839 = vpop.f32.mrf.mxu0
        %2840 = vmatprep.mubr.f32.mxu0 0.0
        %2841 = vmatmul.mubr.f32.gmra.mxu0 %v2605
        %v2842 = vpop.f32.mrf.mxu0
        %v2843 = vadd.f32 %v2511, %v2842
        %v2844 = vpop.f32.mrf.mxu0
        %2845 = vmatprep.mubr.f32.mxu0 0.0
        %2846 = vmatmul.mubr.f32.gmra.mxu0 %v2608
        %v2847 = vpop.f32.mrf.mxu0
        %v2848 = vadd.f32 %v2511, %v2847
        %v2849 = vpop.f32.mrf.mxu0
        %2850 = vmatprep.mubr.f32.mxu0 0.0
        %2851 = vmatmul.mubr.f32.gmra.mxu0 %v2611
        %v2852 = vpop.f32.mrf.mxu0
        %v2853 = vadd.f32 %v2511, %v2852
        %v2854 = vpop.f32.mrf.mxu0
        %2855 = vmatprep.mubr.f32.mxu0 0.0
        %2856 = vmatmul.mubr.f32.gmra.mxu0 %v2614
        %v2857 = vpop.f32.mrf.mxu0
        %v2858 = vadd.f32 %v2511, %v2857
        %v2859 = vpop.f32.mrf.mxu0
        %2860 = vmatprep.mubr.f32.mxu0 0.0
        %2861 = vmatmul.mubr.f32.gmra.mxu0 %v2617
        %v2862 = vpop.f32.mrf.mxu0
        %v2863 = vadd.f32 %v2511, %v2862
        %v2864 = vpop.f32.mrf.mxu0
        %2865 = vmatprep.mubr.f32.mxu0 0.0
        %2866 = vmatmul.mubr.f32.gmra.mxu0 %v2620
        %v2867 = vpop.f32.mrf.mxu0
        %v2868 = vadd.f32 %v2511, %v2867
        %v2869 = vpop.f32.mrf.mxu0
        %2870 = vdwg.mxu0
        %v2871 = vmax.f32 %v2693, 0.0
        %v2872 = vmax.f32 %v2698, 0.0
        %v2873 = vmax.f32 %v2703, 0.0
        %v2874 = vmax.f32 %v2708, 0.0
        %v2875 = vmax.f32 %v2713, 0.0
        %v2876 = vmax.f32 %v2718, 0.0
        %v2877 = vmax.f32 %v2723, 0.0
        %v2878 = vmax.f32 %v2728, 0.0
        %v2879 = vmax.f32 %v2733, 0.0
        %v2880 = vmax.f32 %v2738, 0.0
        %v2881 = vmax.f32 %v2743, 0.0
        %v2882 = vmax.f32 %v2748, 0.0
        %v2883 = vmax.f32 %v2753, 0.0
        %v2884 = vmax.f32 %v2758, 0.0
        %v2885 = vmax.f32 %v2763, 0.0
        %v2886 = vmax.f32 %v2768, 0.0
        %v2887 = vmax.f32 %v2773, 0.0
        %v2888 = vmax.f32 %v2778, 0.0
        %v2889 = vmax.f32 %v2783, 0.0
        %v2890 = vmax.f32 %v2788, 0.0
        %v2891 = vmax.f32 %v2793, 0.0
        %v2892 = vmax.f32 %v2798, 0.0
        %v2893 = vmax.f32 %v2803, 0.0
        %v2894 = vmax.f32 %v2808, 0.0
        %v2895 = vmax.f32 %v2813, 0.0
        %v2896 = vmax.f32 %v2818, 0.0
        %v2897 = vmax.f32 %v2823, 0.0
        %v2898 = vmax.f32 %v2828, 0.0
        %v2899 = vmax.f32 %v2833, 0.0
        %v2900 = vmax.f32 %v2838, 0.0
        %v2901 = vmax.f32 %v2843, 0.0
        %v2902 = vmax.f32 %v2848, 0.0
        %v2903 = vmax.f32 %v2853, 0.0
        %v2904 = vmax.f32 %v2858, 0.0
        %v2905 = vmax.f32 %v2863, 0.0
        %v2906 = vmax.f32 %v2868, 0.0
        %v2943 = vrot.slane %v2871, 1
        %v2944 = vrot.slane %v2872, 1
        %v2945 = vsel %vm847, %v2943, %v2944
        %v2946 = vrot.slane %v2873, 1
        %v2947 = vsel %vm847, %v2944, %v2946
        %v2948 = vrot.slane %v2874, 1
        %v2949 = vsel %vm847, %v2946, %v2948
        %v2950 = vrot.slane %v2875, 1
        %v2951 = vsel %vm847, %v2948, %v2950
        %v2952 = vrot.slane %v2876, 1
        %v2953 = vsel %vm847, %v2950, %v2952
        %v2954 = vrot.slane %v2877, 1
        %v2955 = vsel %vm847, %v2952, %v2954
        %v2956 = vrot.slane %v2878, 1
        %v2957 = vsel %vm847, %v2954, %v2956
        %v2958 = vrot.slane %v2879, 1
        %v2959 = vsel %vm847, %v2956, %v2958
        %v2960 = vrot.slane %v2880, 1
        %v2961 = vsel %vm847, %v2958, %v2960
        %v2962 = vrot.slane %v2881, 1
        %v2963 = vsel %vm847, %v2960, %v2962
        %v2964 = vrot.slane %v2882, 1
        %v2965 = vsel %vm847, %v2962, %v2964
        %v2966 = vrot.slane %v2883, 1
        %v2967 = vsel %vm847, %v2964, %v2966
        %v2968 = vrot.slane %v2884, 1
        %v2969 = vsel %vm847, %v2966, %v2968
        %v2970 = vrot.slane %v2885, 1
        %v2971 = vsel %vm847, %v2968, %v2970
        %v2972 = vrot.slane %v2886, 1
        %v2973 = vsel %vm847, %v2970, %v2972
        %v2974 = vrot.slane %v2887, 1
        %v2975 = vsel %vm847, %v2972, %v2974
        %v2976 = vrot.slane %v2888, 1
        %v2977 = vsel %vm847, %v2974, %v2976
        %v2978 = vrot.slane %v2889, 1
        %v2979 = vsel %vm847, %v2976, %v2978
        %v2980 = vrot.slane %v2890, 1
        %v2981 = vsel %vm847, %v2978, %v2980
        %v2982 = vrot.slane %v2891, 1
        %v2983 = vsel %vm847, %v2980, %v2982
        %v2984 = vrot.slane %v2892, 1
        %v2985 = vsel %vm847, %v2982, %v2984
        %v2986 = vrot.slane %v2893, 1
        %v2987 = vsel %vm847, %v2984, %v2986
        %v2988 = vrot.slane %v2894, 1
        %v2989 = vsel %vm847, %v2986, %v2988
        %v2990 = vrot.slane %v2895, 1
        %v2991 = vsel %vm847, %v2988, %v2990
        %v2992 = vrot.slane %v2896, 1
        %v2993 = vsel %vm847, %v2990, %v2992
        %v2994 = vrot.slane %v2897, 1
        %v2995 = vsel %vm847, %v2992, %v2994
        %v2996 = vrot.slane %v2898, 1
        %v2997 = vsel %vm847, %v2994, %v2996
        %v2998 = vrot.slane %v2899, 1
        %v2999 = vsel %vm847, %v2996, %v2998
        %v3000 = vrot.slane %v2900, 1
        %v3001 = vsel %vm847, %v2998, %v3000
        %v3002 = vrot.slane %v2901, 1
        %v3003 = vsel %vm847, %v3000, %v3002
        %v3004 = vrot.slane %v2902, 1
        %v3005 = vsel %vm847, %v3002, %v3004
        %v3006 = vrot.slane %v2903, 1
        %v3007 = vsel %vm847, %v3004, %v3006
        %v3008 = vrot.slane %v2904, 1
        %v3009 = vsel %vm847, %v3006, %v3008
        %v3010 = vrot.slane %v2905, 1
        %v3011 = vsel %vm847, %v3008, %v3010
        %v3012 = vrot.slane %v2906, 1
        %v3013 = vsel %vm847, %v3010, %v3012
        %v3050 = vmax.f32 %v2871, %v2945
        %v3051 = vmax.f32 %v2872, %v2947
        %v3052 = vmax.f32 %v2873, %v2949
        %v3053 = vmax.f32 %v2874, %v2951
        %v3054 = vmax.f32 %v2875, %v2953
        %v3055 = vmax.f32 %v2876, %v2955
        %v3056 = vmax.f32 %v2877, %v2957
        %v3057 = vmax.f32 %v2878, %v2959
        %v3058 = vmax.f32 %v2879, %v2961
        %v3059 = vmax.f32 %v2880, %v2963
        %v3060 = vmax.f32 %v2881, %v2965
        %v3061 = vmax.f32 %v2882, %v2967
        %v3062 = vmax.f32 %v2883, %v2969
        %v3063 = vmax.f32 %v2884, %v2971
        %v3064 = vmax.f32 %v2885, %v2973
        %v3065 = vmax.f32 %v2886, %v2975
        %v3066 = vmax.f32 %v2887, %v2977
        %v3067 = vmax.f32 %v2888, %v2979
        %v3068 = vmax.f32 %v2889, %v2981
        %v3069 = vmax.f32 %v2890, %v2983
        %v3070 = vmax.f32 %v2891, %v2985
        %v3071 = vmax.f32 %v2892, %v2987
        %v3072 = vmax.f32 %v2893, %v2989
        %v3073 = vmax.f32 %v2894, %v2991
        %v3074 = vmax.f32 %v2895, %v2993
        %v3075 = vmax.f32 %v2896, %v2995
        %v3076 = vmax.f32 %v2897, %v2997
        %v3077 = vmax.f32 %v2898, %v2999
        %v3078 = vmax.f32 %v2899, %v3001
        %v3079 = vmax.f32 %v2900, %v3003
        %v3080 = vmax.f32 %v2901, %v3005
        %v3081 = vmax.f32 %v2902, %v3007
        %v3082 = vmax.f32 %v2903, %v3009
        %v3083 = vmax.f32 %v2904, %v3011
        %v3084 = vmax.f32 %v2905, %v3013
        %v3085 = vmax.f32 %v2906, %v3012
        %v3120 = vrot.slane %v3052, 2
        %v3121 = vrot.slane %v3053, 2
        %v3122 = vsel %vm1065, %v3120, %v3121
        %v3123 = vrot.slane %v3054, 2
        %v3124 = vsel %vm1065, %v3121, %v3123
        %v3125 = vrot.slane %v3055, 2
        %v3126 = vsel %vm1065, %v3123, %v3125
        %v3127 = vrot.slane %v3056, 2
        %v3128 = vsel %vm1065, %v3125, %v3127
        %v3129 = vrot.slane %v3057, 2
        %v3130 = vsel %vm1065, %v3127, %v3129
        %v3131 = vrot.slane %v3058, 2
        %v3132 = vsel %vm1065, %v3129, %v3131
        %v3133 = vrot.slane %v3059, 2
        %v3134 = vsel %vm1065, %v3131, %v3133
        %v3135 = vrot.slane %v3060, 2
        %v3136 = vsel %vm1065, %v3133, %v3135
        %v3137 = vrot.slane %v3061, 2
        %v3138 = vsel %vm1065, %v3135, %v3137
        %v3139 = vrot.slane %v3062, 2
        %v3140 = vsel %vm1065, %v3137, %v3139
        %v3141 = vrot.slane %v3063, 2
        %v3142 = vsel %vm1065, %v3139, %v3141
        %v3143 = vrot.slane %v3064, 2
        %v3144 = vsel %vm1065, %v3141, %v3143
        %v3145 = vrot.slane %v3065, 2
        %v3146 = vsel %vm1065, %v3143, %v3145
        %v3147 = vrot.slane %v3066, 2
        %v3148 = vsel %vm1065, %v3145, %v3147
        %v3149 = vrot.slane %v3067, 2
        %v3150 = vsel %vm1065, %v3147, %v3149
        %v3151 = vrot.slane %v3068, 2
        %v3152 = vsel %vm1065, %v3149, %v3151
        %v3153 = vrot.slane %v3069, 2
        %v3154 = vsel %vm1065, %v3151, %v3153
        %v3155 = vrot.slane %v3070, 2
        %v3156 = vsel %vm1065, %v3153, %v3155
        %v3157 = vrot.slane %v3071, 2
        %v3158 = vsel %vm1065, %v3155, %v3157
        %v3159 = vrot.slane %v3072, 2
        %v3160 = vsel %vm1065, %v3157, %v3159
        %v3161 = vrot.slane %v3073, 2
        %v3162 = vsel %vm1065, %v3159, %v3161
        %v3163 = vrot.slane %v3074, 2
        %v3164 = vsel %vm1065, %v3161, %v3163
        %v3165 = vrot.slane %v3075, 2
        %v3166 = vsel %vm1065, %v3163, %v3165
        %v3167 = vrot.slane %v3076, 2
        %v3168 = vsel %vm1065, %v3165, %v3167
        %v3169 = vrot.slane %v3077, 2
        %v3170 = vsel %vm1065, %v3167, %v3169
        %v3171 = vrot.slane %v3078, 2
        %v3172 = vsel %vm1065, %v3169, %v3171
        %v3173 = vrot.slane %v3079, 2
        %v3174 = vsel %vm1065, %v3171, %v3173
        %v3175 = vrot.slane %v3080, 2
        %v3176 = vsel %vm1065, %v3173, %v3175
        %v3177 = vrot.slane %v3081, 2
        %v3178 = vsel %vm1065, %v3175, %v3177
        %v3179 = vrot.slane %v3082, 2
        %v3180 = vsel %vm1065, %v3177, %v3179
        %v3181 = vrot.slane %v3083, 2
        %v3182 = vsel %vm1065, %v3179, %v3181
        %v3183 = vrot.slane %v3084, 2
        %v3184 = vsel %vm1065, %v3181, %v3183
        %v3185 = vrot.slane %v3085, 2
        %v3186 = vsel %vm1065, %v3183, %v3185
        %v3221 = vmax.f32 %v3050, %v3122
        %v3222 = vmax.f32 %v3051, %v3124
        %v3223 = vmax.f32 %v3052, %v3126
        %v3224 = vmax.f32 %v3053, %v3128
        %v3225 = vmax.f32 %v3054, %v3130
        %v3226 = vmax.f32 %v3055, %v3132
        %v3227 = vmax.f32 %v3056, %v3134
        %v3228 = vmax.f32 %v3057, %v3136
        %v3229 = vmax.f32 %v3058, %v3138
        %v3230 = vmax.f32 %v3059, %v3140
        %v3231 = vmax.f32 %v3060, %v3142
        %v3232 = vmax.f32 %v3061, %v3144
        %v3233 = vmax.f32 %v3062, %v3146
        %v3234 = vmax.f32 %v3063, %v3148
        %v3235 = vmax.f32 %v3064, %v3150
        %v3236 = vmax.f32 %v3065, %v3152
        %v3237 = vmax.f32 %v3066, %v3154
        %v3238 = vmax.f32 %v3067, %v3156
        %v3239 = vmax.f32 %v3068, %v3158
        %v3240 = vmax.f32 %v3069, %v3160
        %v3241 = vmax.f32 %v3070, %v3162
        %v3242 = vmax.f32 %v3071, %v3164
        %v3243 = vmax.f32 %v3072, %v3166
        %v3244 = vmax.f32 %v3073, %v3168
        %v3245 = vmax.f32 %v3074, %v3170
        %v3246 = vmax.f32 %v3075, %v3172
        %v3247 = vmax.f32 %v3076, %v3174
        %v3248 = vmax.f32 %v3077, %v3176
        %v3249 = vmax.f32 %v3078, %v3178
        %v3250 = vmax.f32 %v3079, %v3180
        %v3251 = vmax.f32 %v3080, %v3182
        %v3252 = vmax.f32 %v3081, %v3184
        %v3253 = vmax.f32 %v3082, %v3186
        %v3254 = vmax.f32 %v3083, %v3185
        %v3255 = vld [vmem:[%s13] sm:$0xff]
        %v3256 = vld [vmem:[%s13 + $0x8] sm:$0xff]
        %v3257 = vld [vmem:[%s13 + $0x10] sm:$0xff]
        %v3258 = vld [vmem:[%s13 + $0x18] sm:$0xff]
        %v3259 = vld [vmem:[%s13 + $0x20] sm:$0xff]
        %v3260 = vld [vmem:[%s13 + $0x28] sm:$0xff]
        %v3261 = vld [vmem:[%s13 + $0x30] sm:$0xff]
        %v3262 = vld [vmem:[%s13 + $0x38] sm:$0xff]
        %v3263 = vld [vmem:[%s13 + $0x40] sm:$0xff]
        %v3264 = vld [vmem:[%s13 + $0x48] sm:$0xff]
        %v3265 = vld [vmem:[%s13 + $0x50] sm:$0xff]
        %v3266 = vld [vmem:[%s13 + $0x58] sm:$0xff]
        %v3267 = vld [vmem:[%s13 + $0x60] sm:$0xff]
        %v3268 = vld [vmem:[%s13 + $0x68] sm:$0xff]
        %v3269 = vld [vmem:[%s13 + $0x70] sm:$0xff]
        %v3270 = vld [vmem:[%s13 + $0x78] sm:$0xff]
        %v3271 = vld [vmem:[%s13 + $0x80] sm:$0xff]
        %v3272 = vld [vmem:[%s13 + $0x88] sm:$0xff]
        %v3273 = vld [vmem:[%s13 + $0x90] sm:$0xff]
        %v3274 = vld [vmem:[%s13 + $0x98] sm:$0xff]
        %v3275 = vld [vmem:[%s13 + $0xa0] sm:$0xff]
        %v3276 = vld [vmem:[%s13 + $0xa8] sm:$0xff]
        %v3277 = vld [vmem:[%s13 + $0xb0] sm:$0xff]
        %v3278 = vld [vmem:[%s13 + $0xb8] sm:$0xff]
        %v3279 = vld [vmem:[%s13 + $0xc0] sm:$0xff]
        %v3280 = vld [vmem:[%s13 + $0xc8] sm:$0xff]
        %v3281 = vld [vmem:[%s13 + $0xd0] sm:$0xff]
        %v3282 = vld [vmem:[%s13 + $0xd8] sm:$0xff]
        %v3283 = vld [vmem:[%s13 + $0xe0] sm:$0xff]
        %v3284 = vld [vmem:[%s13 + $0xe8] sm:$0xff]
        %v3285 = vld [vmem:[%s13 + $0xf0] sm:$0xff]
        %v3286 = vld [vmem:[%s13 + $0xf8] sm:$0xff]
        %v3287 = vld [vmem:[%s13 + $0x100] sm:$0xff]
        %v3288 = vld [vmem:[%s13 + $0x108] sm:$0xff]
        %v3289 = vld [vmem:[%s13 + $0x110] sm:$0xff]
        %v3290 = vld [vmem:[%s13 + $0x118] sm:$0xff]
        %v3291 = vld [vmem:[%s13 + $0x120] sm:$0xf]
        %v3292 = vld [vmem:[%s13 + $0x128] sm:$0xf]
        %v3293 = vld [vmem:[%s13 + $0x130] sm:$0xf]
        %vm3294 = vcmask 89088
        %v3296 = vsel %vm3294, %v3257, 0
        %v3299 = vsel %vm3294, %v3260, 0
        %v3302 = vsel %vm3294, %v3263, 0
        %v3305 = vsel %vm3294, %v3266, 0
        %v3308 = vsel %vm3294, %v3269, 0
        %v3311 = vsel %vm3294, %v3272, 0
        %v3314 = vsel %vm3294, %v3275, 0
        %v3317 = vsel %vm3294, %v3278, 0
        %v3320 = vsel %vm3294, %v3281, 0
        %v3323 = vsel %vm3294, %v3284, 0
        %v3326 = vsel %vm3294, %v3287, 0
        %v3329 = vsel %vm3294, %v3290, 0
        %v3332 = vsel %vm3294, %v3293, 0
        %v3335 = vsel %vm2028, %v3254, 0
        %3337 = vmatprep.subr.mxu0 0.0
        %3338 = vmatpush1.msra.mxu0 %v3236
        %3339 = vmatprep.subr.mxu0 0.0
        %3340 = vmatpush1.msra.mxu0 %v3235
        %3341 = vmatprep.subr.mxu0 0.0
        %3342 = vmatpush1.msra.mxu0 %v3234
        %3343 = vmatprep.subr.mxu0 0.0
        %3344 = vmatpush1.msra.mxu0 %v3233
        %3345 = vmatprep.subr.mxu0 0.0
        %3346 = vmatpush1.msra.mxu0 %v3232
        %3347 = vmatprep.subr.mxu0 0.0
        %3348 = vmatpush1.msra.mxu0 %v3231
        %3349 = vmatprep.subr.mxu0 0.0
        %3350 = vmatpush1.msra.mxu0 %v3230
        %3351 = vmatprep.subr.mxu0 0.0
        %3352 = vmatpush1.msra.mxu0 %v3229
        %3353 = vmatprep.subr.mxu0 0.0
        %3354 = vmatpush1.msra.mxu0 %v3228
        %3355 = vmatprep.subr.mxu0 0.0
        %3356 = vmatpush1.msra.mxu0 %v3227
        %3357 = vmatprep.subr.mxu0 0.0
        %3358 = vmatpush1.msra.mxu0 %v3226
        %3359 = vmatprep.subr.mxu0 0.0
        %3360 = vmatpush1.msra.mxu0 %v3225
        %3361 = vmatprep.subr.mxu0 0.0
        %3362 = vmatpush1.msra.mxu0 %v3224
        %3363 = vmatprep.subr.mxu0 0.0
        %3364 = vmatpush1.msra.mxu0 %v3223
        %3365 = vmatprep.subr.mxu0 0.0
        %3366 = vmatpush1.msra.mxu0 %v3222
        %3367 = vmatprep.subr.mxu0 0.0
        %3368 = vmatpush1.msra.mxu0 %v3221
        %3369 = vmatprep.subr.mxu0 0.0
        %3370 = vmatpush2.msra.mxu0 %v3252
        %3371 = vmatprep.subr.mxu0 0.0
        %3372 = vmatpush2.msra.mxu0 %v3251
        %3373 = vmatprep.subr.mxu0 0.0
        %3374 = vmatpush2.msra.mxu0 %v3250
        %3375 = vmatprep.subr.mxu0 0.0
        %3376 = vmatpush2.msra.mxu0 %v3249
        %3377 = vmatprep.subr.mxu0 0.0
        %3378 = vmatpush2.msra.mxu0 %v3248
        %3379 = vmatprep.subr.mxu0 0.0
        %3380 = vmatpush2.msra.mxu0 %v3247
        %3381 = vmatprep.subr.mxu0 0.0
        %3382 = vmatpush2.msra.mxu0 %v3246
        %3383 = vmatprep.subr.mxu0 0.0
        %3384 = vmatpush2.msra.mxu0 %v3245
        %3385 = vmatprep.subr.mxu0 0.0
        %3386 = vmatpush2.msra.mxu0 %v3244
        %3387 = vmatprep.subr.mxu0 0.0
        %3388 = vmatpush2.msra.mxu0 %v3243
        %3389 = vmatprep.subr.mxu0 0.0
        %3390 = vmatpush2.msra.mxu0 %v3242
        %3391 = vmatprep.subr.mxu0 0.0
        %3392 = vmatpush2.msra.mxu0 %v3241
        %3393 = vmatprep.subr.mxu0 0.0
        %3394 = vmatpush2.msra.mxu0 %v3240
        %3395 = vmatprep.subr.mxu0 0.0
        %3396 = vmatpush2.msra.mxu0 %v3239
        %3397 = vmatprep.subr.mxu0 0.0
        %3398 = vmatpush2.msra.mxu0 %v3238
        %3399 = vmatprep.subr.mxu0 0.0
        %3400 = vmatpush2.msra.mxu0 %v3237
        %3401 = vmatprep.mubr.f32.mxu0 %v3256
        %3402 = vmatmul.mubr.f32.gmra.mxu0 %v3255
        %v3403 = vpop.f32.mrf.mxu0
        %v3404 = vadd.f32 0.0, %v3403
        %v3405 = vpop.f32.mrf.mxu0
        %3406 = vmatprep.mubr.f32.mxu0 %v3259
        %3407 = vmatmul.mubr.f32.gmra.mxu0 %v3258
        %v3408 = vpop.f32.mrf.mxu0
        %v3409 = vadd.f32 0.0, %v3408
        %v3410 = vpop.f32.mrf.mxu0
        %3411 = vmatprep.mubr.f32.mxu0 %v3262
        %3412 = vmatmul.mubr.f32.gmra.mxu0 %v3261
        %v3413 = vpop.f32.mrf.mxu0
        %v3414 = vadd.f32 0.0, %v3413
        %v3415 = vpop.f32.mrf.mxu0
        %3416 = vmatprep.mubr.f32.mxu0 %v3265
        %3417 = vmatmul.mubr.f32.gmra.mxu0 %v3264
        %v3418 = vpop.f32.mrf.mxu0
        %v3419 = vadd.f32 0.0, %v3418
        %v3420 = vpop.f32.mrf.mxu0
        %3421 = vmatprep.mubr.f32.mxu0 %v3268
        %3422 = vmatmul.mubr.f32.gmra.mxu0 %v3267
        %v3423 = vpop.f32.mrf.mxu0
        %v3424 = vadd.f32 0.0, %v3423
        %v3425 = vpop.f32.mrf.mxu0
        %3426 = vmatprep.mubr.f32.mxu0 %v3271
        %3427 = vmatmul.mubr.f32.gmra.mxu0 %v3270
        %v3428 = vpop.f32.mrf.mxu0
        %v3429 = vadd.f32 0.0, %v3428
        %v3430 = vpop.f32.mrf.mxu0
        %3431 = vmatprep.mubr.f32.mxu0 %v3274
        %3432 = vmatmul.mubr.f32.gmra.mxu0 %v3273
        %v3433 = vpop.f32.mrf.mxu0
        %v3434 = vadd.f32 0.0, %v3433
        %v3435 = vpop.f32.mrf.mxu0
        %3436 = vmatprep.mubr.f32.mxu0 %v3277
        %3437 = vmatmul.mubr.f32.gmra.mxu0 %v3276
        %v3438 = vpop.f32.mrf.mxu0
        %v3439 = vadd.f32 0.0, %v3438
        %v3440 = vpop.f32.mrf.mxu0
        %3441 = vmatprep.mubr.f32.mxu0 %v3280
        %3442 = vmatmul.mubr.f32.gmra.mxu0 %v3279
        %v3443 = vpop.f32.mrf.mxu0
        %v3444 = vadd.f32 0.0, %v3443
        %v3445 = vpop.f32.mrf.mxu0
        %3446 = vmatprep.mubr.f32.mxu0 %v3283
        %3447 = vmatmul.mubr.f32.gmra.mxu0 %v3282
        %v3448 = vpop.f32.mrf.mxu0
        %v3449 = vadd.f32 0.0, %v3448
        %v3450 = vpop.f32.mrf.mxu0
        %3451 = vmatprep.mubr.f32.mxu0 %v3286
        %3452 = vmatmul.mubr.f32.gmra.mxu0 %v3285
        %v3453 = vpop.f32.mrf.mxu0
        %v3454 = vadd.f32 0.0, %v3453
        %v3455 = vpop.f32.mrf.mxu0
        %3456 = vmatprep.mubr.f32.mxu0 %v3289
        %3457 = vmatmul.mubr.f32.gmra.mxu0 %v3288
        %v3458 = vpop.f32.mrf.mxu0
        %v3459 = vadd.f32 0.0, %v3458
        %v3460 = vpop.f32.mrf.mxu0
        %3461 = vmatprep.mubr.f32.mxu0 %v3292
        %3462 = vmatmul.mubr.f32.gmra.mxu0 %v3291
        %v3463 = vpop.f32.mrf.mxu0
        %v3464 = vadd.f32 0.0, %v3463
        %v3465 = vpop.f32.mrf.mxu0
        %3466 = vdwg.mxu0
        %3467 = vmatprep.subr.mxu0 0.0
        %3468 = vmatpush1.msra.mxu0 0.0
        %3469 = vmatprep.subr.mxu0 0.0
        %3470 = vmatpush1.msra.mxu0 0.0
        %3471 = vmatprep.subr.mxu0 0.0
        %3472 = vmatpush1.msra.mxu0 0.0
        %3473 = vmatprep.subr.mxu0 0.0
        %3474 = vmatpush1.msra.mxu0 0.0
        %3475 = vmatprep.subr.mxu0 0.0
        %3476 = vmatpush1.msra.mxu0 0.0
        %3477 = vmatprep.subr.mxu0 0.0
        %3478 = vmatpush1.msra.mxu0 0.0
        %3479 = vmatprep.subr.mxu0 0.0
        %3480 = vmatpush1.msra.mxu0 0.0
        %3481 = vmatprep.subr.mxu0 0.0
        %3482 = vmatpush1.msra.mxu0 0.0
        %3483 = vmatprep.subr.mxu0 0.0
        %3484 = vmatpush1.msra.mxu0 0.0
        %3485 = vmatprep.subr.mxu0 0.0
        %3486 = vmatpush1.msra.mxu0 0.0
        %3487 = vmatprep.subr.mxu0 0.0
        %3488 = vmatpush1.msra.mxu0 0.0
        %3489 = vmatprep.subr.mxu0 0.0
        %3490 = vmatpush1.msra.mxu0 0.0
        %3491 = vmatprep.subr.mxu0 0.0
        %3492 = vmatpush1.msra.mxu0 0.0
        %3493 = vmatprep.subr.mxu0 0.0
        %3494 = vmatpush1.msra.mxu0 0.0
        %3495 = vmatprep.subr.mxu0 0.0
        %3496 = vmatpush1.msra.mxu0 %v3335
        %3497 = vmatprep.subr.mxu0 0.0
        %3498 = vmatpush1.msra.mxu0 %v3253
        %3499 = vmatprep.subr.mxu0 0.0
        %3500 = vmatpush2.msra.mxu0 0.0
        %3501 = vmatprep.subr.mxu0 0.0
        %3502 = vmatpush2.msra.mxu0 0.0
        %3503 = vmatprep.subr.mxu0 0.0
        %3504 = vmatpush2.msra.mxu0 0.0
        %3505 = vmatprep.subr.mxu0 0.0
        %3506 = vmatpush2.msra.mxu0 0.0
        %3507 = vmatprep.subr.mxu0 0.0
        %3508 = vmatpush2.msra.mxu0 0.0
        %3509 = vmatprep.subr.mxu0 0.0
        %3510 = vmatpush2.msra.mxu0 0.0
        %3511 = vmatprep.subr.mxu0 0.0
        %3512 = vmatpush2.msra.mxu0 0.0
        %3513 = vmatprep.subr.mxu0 0.0
        %3514 = vmatpush2.msra.mxu0 0.0
        %3515 = vmatprep.subr.mxu0 0.0
        %3516 = vmatpush2.msra.mxu0 0.0
        %3517 = vmatprep.subr.mxu0 0.0
        %3518 = vmatpush2.msra.mxu0 0.0
        %3519 = vmatprep.subr.mxu0 0.0
        %3520 = vmatpush2.msra.mxu0 0.0
        %3521 = vmatprep.subr.mxu0 0.0
        %3522 = vmatpush2.msra.mxu0 0.0
        %3523 = vmatprep.subr.mxu0 0.0
        %3524 = vmatpush2.msra.mxu0 0.0
        %3525 = vmatprep.subr.mxu0 0.0
        %3526 = vmatpush2.msra.mxu0 0.0
        %3527 = vmatprep.subr.mxu0 0.0
        %3528 = vmatpush2.msra.mxu0 0.0
        %3529 = vmatprep.subr.mxu0 0.0
        %3530 = vmatpush2.msra.mxu0 0.0
        %3531 = vmatprep.mubr.f32.mxu0 0.0
        %3532 = vmatmul.mubr.f32.gmra.mxu0 %v3296
        %v3533 = vpop.f32.mrf.mxu0
        %v3534 = vadd.f32 %v3404, %v3533
        %v3535 = vpop.f32.mrf.mxu0
        %3536 = vmatprep.mubr.f32.mxu0 0.0
        %3537 = vmatmul.mubr.f32.gmra.mxu0 %v3299
        %v3538 = vpop.f32.mrf.mxu0
        %v3539 = vadd.f32 %v3409, %v3538
        %v3540 = vpop.f32.mrf.mxu0
        %3541 = vmatprep.mubr.f32.mxu0 0.0
        %3542 = vmatmul.mubr.f32.gmra.mxu0 %v3302
        %v3543 = vpop.f32.mrf.mxu0
        %v3544 = vadd.f32 %v3414, %v3543
        %v3545 = vpop.f32.mrf.mxu0
        %3546 = vmatprep.mubr.f32.mxu0 0.0
        %3547 = vmatmul.mubr.f32.gmra.mxu0 %v3305
        %v3548 = vpop.f32.mrf.mxu0
        %v3549 = vadd.f32 %v3419, %v3548
        %v3550 = vpop.f32.mrf.mxu0
        %3551 = vmatprep.mubr.f32.mxu0 0.0
        %3552 = vmatmul.mubr.f32.gmra.mxu0 %v3308
        %v3553 = vpop.f32.mrf.mxu0
        %v3554 = vadd.f32 %v3424, %v3553
        %v3555 = vpop.f32.mrf.mxu0
        %3556 = vmatprep.mubr.f32.mxu0 0.0
        %3557 = vmatmul.mubr.f32.gmra.mxu0 %v3311
        %v3558 = vpop.f32.mrf.mxu0
        %v3559 = vadd.f32 %v3429, %v3558
        %v3560 = vpop.f32.mrf.mxu0
        %3561 = vmatprep.mubr.f32.mxu0 0.0
        %3562 = vmatmul.mubr.f32.gmra.mxu0 %v3314
        %v3563 = vpop.f32.mrf.mxu0
        %v3564 = vadd.f32 %v3434, %v3563
        %v3565 = vpop.f32.mrf.mxu0
        %3566 = vmatprep.mubr.f32.mxu0 0.0
        %3567 = vmatmul.mubr.f32.gmra.mxu0 %v3317
        %v3568 = vpop.f32.mrf.mxu0
        %v3569 = vadd.f32 %v3439, %v3568
        %v3570 = vpop.f32.mrf.mxu0
        %3571 = vmatprep.mubr.f32.mxu0 0.0
        %3572 = vmatmul.mubr.f32.gmra.mxu0 %v3320
        %v3573 = vpop.f32.mrf.mxu0
        %v3574 = vadd.f32 %v3444, %v3573
        %v3575 = vpop.f32.mrf.mxu0
        %3576 = vmatprep.mubr.f32.mxu0 0.0
        %3577 = vmatmul.mubr.f32.gmra.mxu0 %v3323
        %v3578 = vpop.f32.mrf.mxu0
        %v3579 = vadd.f32 %v3449, %v3578
        %v3580 = vpop.f32.mrf.mxu0
        %3581 = vmatprep.mubr.f32.mxu0 0.0
        %3582 = vmatmul.mubr.f32.gmra.mxu0 %v3326
        %v3583 = vpop.f32.mrf.mxu0
        %v3584 = vadd.f32 %v3454, %v3583
        %v3585 = vpop.f32.mrf.mxu0
        %3586 = vmatprep.mubr.f32.mxu0 0.0
        %3587 = vmatmul.mubr.f32.gmra.mxu0 %v3329
        %v3588 = vpop.f32.mrf.mxu0
        %v3589 = vadd.f32 %v3459, %v3588
        %v3590 = vpop.f32.mrf.mxu0
        %3591 = vmatprep.mubr.f32.mxu0 0.0
        %3592 = vmatmul.mubr.f32.gmra.mxu0 %v3332
        %v3593 = vpop.f32.mrf.mxu0
        %v3594 = vadd.f32 %v3464, %v3593
        %v3595 = vpop.f32.mrf.mxu0
        %3596 = vdwg.mxu0
        %vm3597 = vcmask 64512
        %3598 = vst.msk [vmem:[#allocation2] sm:$0xff] %vm3597, %v3534
        %3599 = vst.msk [vmem:[#allocation2 + $0x18] sm:$0xff] %vm3597, %v3539
        %3600 = vst.msk [vmem:[#allocation2 + $0x30] sm:$0xff] %vm3597, %v3544
        %3601 = vst.msk [vmem:[#allocation2 + $0x48] sm:$0xff] %vm3597, %v3549
        %3602 = vst.msk [vmem:[#allocation2 + $0x60] sm:$0xff] %vm3597, %v3554
        %3603 = vst.msk [vmem:[#allocation2 + $0x78] sm:$0xff] %vm3597, %v3559
        %3604 = vst.msk [vmem:[#allocation2 + $0x90] sm:$0xff] %vm3597, %v3564
        %3605 = vst.msk [vmem:[#allocation2 + $0xa8] sm:$0xff] %vm3597, %v3569
        %3606 = vst.msk [vmem:[#allocation2 + $0xc0] sm:$0xff] %vm3597, %v3574
        %vm3607 = vcmask 62464
        %3608 = vst.msk [vmem:[#allocation2 + $0xd8] sm:$0x3f] %vm3607, %v3579
        %v3619 = vrot.slane %v3534, 1
        %v3620 = vrot.slane %v3539, 1
        %v3621 = vsel %vm847, %v3619, %v3620
        %v3622 = vrot.slane %v3544, 1
        %v3623 = vsel %vm847, %v3620, %v3622
        %v3624 = vrot.slane %v3549, 1
        %v3625 = vsel %vm847, %v3622, %v3624
        %v3626 = vrot.slane %v3554, 1
        %v3627 = vsel %vm847, %v3624, %v3626
        %v3628 = vrot.slane %v3559, 1
        %v3629 = vsel %vm847, %v3626, %v3628
        %v3630 = vrot.slane %v3564, 1
        %v3631 = vsel %vm847, %v3628, %v3630
        %v3632 = vrot.slane %v3569, 1
        %v3633 = vsel %vm847, %v3630, %v3632
        %v3634 = vrot.slane %v3574, 1
        %v3635 = vsel %vm847, %v3632, %v3634
        %v3636 = vrot.slane %v3579, 1
        %v3637 = vsel %vm847, %v3634, %v3636
        %3638 = vrot.lane.b32.xlu0 %v3621, 8
        %v3639 = vpop.permute.xlu0 %3638
        %3640 = vrot.lane.b32.xlu0 %v3623, 8
        %v3641 = vpop.permute.xlu0 %3640
        %3642 = vrot.lane.b32.xlu0 %v3625, 8
        %v3643 = vpop.permute.xlu0 %3642
        %3644 = vrot.lane.b32.xlu0 %v3627, 8
        %v3645 = vpop.permute.xlu0 %3644
        %3646 = vrot.lane.b32.xlu0 %v3629, 8
        %v3647 = vpop.permute.xlu0 %3646
        %3648 = vrot.lane.b32.xlu0 %v3631, 8
        %v3649 = vpop.permute.xlu0 %3648
        %3650 = vrot.lane.b32.xlu0 %v3633, 8
        %v3651 = vpop.permute.xlu0 %3650
        %3652 = vrot.lane.b32.xlu0 %v3635, 8
        %v3653 = vpop.permute.xlu0 %3652
        %3654 = vrot.lane.b32.xlu0 %v3637, 8
        %v3655 = vpop.permute.xlu0 %3654
        %3656 = vrot.lane.b32.xlu0 %v3636, 8
        %v3657 = vpop.permute.xlu0 %3656
        %vm3668 = vcmask 130112
        %3669 = vst.msk [vmem:[#allocation2] sm:$0xff] %vm3668, %v3639
        %3670 = vst.msk [vmem:[#allocation2 + $0x18] sm:$0xff] %vm3668, %v3641
        %3671 = vst.msk [vmem:[#allocation2 + $0x30] sm:$0xff] %vm3668, %v3643
        %3672 = vst.msk [vmem:[#allocation2 + $0x48] sm:$0xff] %vm3668, %v3645
        %3673 = vst.msk [vmem:[#allocation2 + $0x60] sm:$0xff] %vm3668, %v3647
        %3674 = vst.msk [vmem:[#allocation2 + $0x78] sm:$0xff] %vm3668, %v3649
        %3675 = vst.msk [vmem:[#allocation2 + $0x90] sm:$0xff] %vm3668, %v3651
        %3676 = vst.msk [vmem:[#allocation2 + $0xa8] sm:$0xff] %vm3668, %v3653
        %3677 = vst.msk [vmem:[#allocation2 + $0xc0] sm:$0xff] %vm3668, %v3655
        %vm3678 = vcmask 128064
        %3679 = vst.msk [vmem:[#allocation2 + $0xd8] sm:$0x3f] %vm3678, %v3657
        %v3680 = vrot.slane %v3534, 2
        %v3681 = vrot.slane %v3539, 2
        %v3682 = vsel %vm1065, %v3680, %v3681
        %v3683 = vrot.slane %v3544, 2
        %v3684 = vsel %vm1065, %v3681, %v3683
        %v3685 = vrot.slane %v3549, 2
        %v3686 = vsel %vm1065, %v3683, %v3685
        %v3687 = vrot.slane %v3554, 2
        %v3688 = vsel %vm1065, %v3685, %v3687
        %v3689 = vrot.slane %v3559, 2
        %v3690 = vsel %vm1065, %v3687, %v3689
        %v3691 = vrot.slane %v3564, 2
        %v3692 = vsel %vm1065, %v3689, %v3691
        %v3693 = vrot.slane %v3569, 2
        %v3694 = vsel %vm1065, %v3691, %v3693
        %v3695 = vrot.slane %v3574, 2
        %v3696 = vsel %vm1065, %v3693, %v3695
        %v3697 = vrot.slane %v3579, 2
        %v3698 = vsel %vm1065, %v3695, %v3697
        %3699 = vrot.lane.b32.xlu0 %v3682, 16
        %v3700 = vpop.permute.xlu0 %3699
        %3701 = vrot.lane.b32.xlu0 %v3684, 16
        %v3702 = vpop.permute.xlu0 %3701
        %3703 = vrot.lane.b32.xlu0 %v3686, 16
        %v3704 = vpop.permute.xlu0 %3703
        %3705 = vrot.lane.b32.xlu0 %v3688, 16
        %v3706 = vpop.permute.xlu0 %3705
        %3707 = vrot.lane.b32.xlu0 %v3690, 16
        %v3708 = vpop.permute.xlu0 %3707
        %3709 = vrot.lane.b32.xlu0 %v3692, 16
        %v3710 = vpop.permute.xlu0 %3709
        %3711 = vrot.lane.b32.xlu0 %v3694, 16
        %v3712 = vpop.permute.xlu0 %3711
        %3713 = vrot.lane.b32.xlu0 %v3696, 16
        %v3714 = vpop.permute.xlu0 %3713
        %3715 = vrot.lane.b32.xlu0 %v3698, 16
        %v3716 = vpop.permute.xlu0 %3715
        %3717 = vrot.lane.b32.xlu0 %v3697, 16
        %v3718 = vpop.permute.xlu0 %3717
        %vm3729 = vcmask 195712
        %3730 = vst.msk [vmem:[#allocation2] sm:$0xff] %vm3729, %v3700
        %3731 = vst.msk [vmem:[#allocation2 + $0x18] sm:$0xff] %vm3729, %v3702
        %3732 = vst.msk [vmem:[#allocation2 + $0x30] sm:$0xff] %vm3729, %v3704
        %3733 = vst.msk [vmem:[#allocation2 + $0x48] sm:$0xff] %vm3729, %v3706
        %3734 = vst.msk [vmem:[#allocation2 + $0x60] sm:$0xff] %vm3729, %v3708
        %3735 = vst.msk [vmem:[#allocation2 + $0x78] sm:$0xff] %vm3729, %v3710
        %3736 = vst.msk [vmem:[#allocation2 + $0x90] sm:$0xff] %vm3729, %v3712
        %3737 = vst.msk [vmem:[#allocation2 + $0xa8] sm:$0xff] %vm3729, %v3714
        %3738 = vst.msk [vmem:[#allocation2 + $0xc0] sm:$0xff] %vm3729, %v3716
        %vm3739 = vcmask 193664
        %3740 = vst.msk [vmem:[#allocation2 + $0xd8] sm:$0x3f] %vm3739, %v3718
        %v3742 = vrot.slane %v3584, 2
        %v3743 = vsel %vm1065, %v3697, %v3742
        %3744 = vrot.lane.b32.xlu0 %v3684, 24
        %v3745 = vpop.permute.xlu0 %3744
        %3746 = vrot.lane.b32.xlu0 %v3686, 24
        %v3747 = vpop.permute.xlu0 %3746
        %3748 = vrot.lane.b32.xlu0 %v3688, 24
        %v3749 = vpop.permute.xlu0 %3748
        %3750 = vrot.lane.b32.xlu0 %v3690, 24
        %v3751 = vpop.permute.xlu0 %3750
        %3752 = vrot.lane.b32.xlu0 %v3692, 24
        %v3753 = vpop.permute.xlu0 %3752
        %3754 = vrot.lane.b32.xlu0 %v3694, 24
        %v3755 = vpop.permute.xlu0 %3754
        %3756 = vrot.lane.b32.xlu0 %v3696, 24
        %v3757 = vpop.permute.xlu0 %3756
        %3758 = vrot.lane.b32.xlu0 %v3698, 24
        %v3759 = vpop.permute.xlu0 %3758
        %3760 = vrot.lane.b32.xlu0 %v3743, 24
        %v3761 = vpop.permute.xlu0 %3760
        %3762 = vrot.lane.b32.xlu0 %v3742, 24
        %v3763 = vpop.permute.xlu0 %3762
        %vm3774 = vcmask 261312
        %3775 = vst.msk [vmem:[#allocation2] sm:$0xff] %vm3774, %v3745
        %3776 = vst.msk [vmem:[#allocation2 + $0x18] sm:$0xff] %vm3774, %v3747
        %3777 = vst.msk [vmem:[#allocation2 + $0x30] sm:$0xff] %vm3774, %v3749
        %3778 = vst.msk [vmem:[#allocation2 + $0x48] sm:$0xff] %vm3774, %v3751
        %3779 = vst.msk [vmem:[#allocation2 + $0x60] sm:$0xff] %vm3774, %v3753
        %3780 = vst.msk [vmem:[#allocation2 + $0x78] sm:$0xff] %vm3774, %v3755
        %3781 = vst.msk [vmem:[#allocation2 + $0x90] sm:$0xff] %vm3774, %v3757
        %3782 = vst.msk [vmem:[#allocation2 + $0xa8] sm:$0xff] %vm3774, %v3759
        %3783 = vst.msk [vmem:[#allocation2 + $0xc0] sm:$0xff] %vm3774, %v3761
        %vm3784 = vcmask 259264
        %3785 = vst.msk [vmem:[#allocation2 + $0xd8] sm:$0x3f] %vm3784, %v3763
        %v3787 = vrot.slane %v3539, 3
        %v3788 = vrot.slane %v3544, 3
        %v3789 = vsel %vm1436, %v3787, %v3788
        %v3790 = vrot.slane %v3549, 3
        %v3791 = vsel %vm1436, %v3788, %v3790
        %v3792 = vrot.slane %v3554, 3
        %v3793 = vsel %vm1436, %v3790, %v3792
        %v3794 = vrot.slane %v3559, 3
        %v3795 = vsel %vm1436, %v3792, %v3794
        %v3796 = vrot.slane %v3564, 3
        %v3797 = vsel %vm1436, %v3794, %v3796
        %v3798 = vrot.slane %v3569, 3
        %v3799 = vsel %vm1436, %v3796, %v3798
        %v3800 = vrot.slane %v3574, 3
        %v3801 = vsel %vm1436, %v3798, %v3800
        %v3802 = vrot.slane %v3579, 3
        %v3803 = vsel %vm1436, %v3800, %v3802
        %v3804 = vrot.slane %v3584, 3
        %v3805 = vsel %vm1436, %v3802, %v3804
        %v3806 = vrot.slane %v3589, 3
        %v3807 = vsel %vm1436, %v3804, %v3806
        %3808 = vrot.lane.b32.xlu0 %v3789, 32
        %v3809 = vpop.permute.xlu0 %3808
        %3810 = vrot.lane.b32.xlu0 %v3791, 32
        %v3811 = vpop.permute.xlu0 %3810
        %3812 = vrot.lane.b32.xlu0 %v3793, 32
        %v3813 = vpop.permute.xlu0 %3812
        %3814 = vrot.lane.b32.xlu0 %v3795, 32
        %v3815 = vpop.permute.xlu0 %3814
        %3816 = vrot.lane.b32.xlu0 %v3797, 32
        %v3817 = vpop.permute.xlu0 %3816
        %3818 = vrot.lane.b32.xlu0 %v3799, 32
        %v3819 = vpop.permute.xlu0 %3818
        %3820 = vrot.lane.b32.xlu0 %v3801, 32
        %v3821 = vpop.permute.xlu0 %3820
        %3822 = vrot.lane.b32.xlu0 %v3803, 32
        %v3823 = vpop.permute.xlu0 %3822
        %3824 = vrot.lane.b32.xlu0 %v3805, 32
        %v3825 = vpop.permute.xlu0 %3824
        %3826 = vrot.lane.b32.xlu0 %v3807, 32
        %v3827 = vpop.permute.xlu0 %3826
        %vm3838 = vcmask 326912
        %3839 = vst.msk [vmem:[#allocation2] sm:$0xff] %vm3838, %v3809
        %3840 = vst.msk [vmem:[#allocation2 + $0x18] sm:$0xff] %vm3838, %v3811
        %3841 = vst.msk [vmem:[#allocation2 + $0x30] sm:$0xff] %vm3838, %v3813
        %3842 = vst.msk [vmem:[#allocation2 + $0x48] sm:$0xff] %vm3838, %v3815
        %3843 = vst.msk [vmem:[#allocation2 + $0x60] sm:$0xff] %vm3838, %v3817
        %3844 = vst.msk [vmem:[#allocation2 + $0x78] sm:$0xff] %vm3838, %v3819
        %3845 = vst.msk [vmem:[#allocation2 + $0x90] sm:$0xff] %vm3838, %v3821
        %3846 = vst.msk [vmem:[#allocation2 + $0xa8] sm:$0xff] %vm3838, %v3823
        %3847 = vst.msk [vmem:[#allocation2 + $0xc0] sm:$0xff] %vm3838, %v3825
        %vm3848 = vcmask 324864
        %3849 = vst.msk [vmem:[#allocation2 + $0xd8] sm:$0x3f] %vm3848, %v3827
        %v3850 = vrot.slane %v3539, 4
        %v3851 = vrot.slane %v3544, 4
        %v3852 = vsel %vm1656, %v3850, %v3851
        %v3853 = vrot.slane %v3549, 4
        %v3854 = vsel %vm1656, %v3851, %v3853
        %v3855 = vrot.slane %v3554, 4
        %v3856 = vsel %vm1656, %v3853, %v3855
        %v3857 = vrot.slane %v3559, 4
        %v3858 = vsel %vm1656, %v3855, %v3857
        %v3859 = vrot.slane %v3564, 4
        %v3860 = vsel %vm1656, %v3857, %v3859
        %v3861 = vrot.slane %v3569, 4
        %v3862 = vsel %vm1656, %v3859, %v3861
        %v3863 = vrot.slane %v3574, 4
        %v3864 = vsel %vm1656, %v3861, %v3863
        %v3865 = vrot.slane %v3579, 4
        %v3866 = vsel %vm1656, %v3863, %v3865
        %v3867 = vrot.slane %v3584, 4
        %v3868 = vsel %vm1656, %v3865, %v3867
        %v3869 = vrot.slane %v3589, 4
        %v3870 = vsel %vm1656, %v3867, %v3869
        %3871 = vrot.lane.b32.xlu0 %v3852, 40
        %v3872 = vpop.permute.xlu0 %3871
        %3873 = vrot.lane.b32.xlu0 %v3854, 40
        %v3874 = vpop.permute.xlu0 %3873
        %3875 = vrot.lane.b32.xlu0 %v3856, 40
        %v3876 = vpop.permute.xlu0 %3875
        %3877 = vrot.lane.b32.xlu0 %v3858, 40
        %v3878 = vpop.permute.xlu0 %3877
        %3879 = vrot.lane.b32.xlu0 %v3860, 40
        %v3880 = vpop.permute.xlu0 %3879
        %3881 = vrot.lane.b32.xlu0 %v3862, 40
        %v3882 = vpop.permute.xlu0 %3881
        %3883 = vrot.lane.b32.xlu0 %v3864, 40
        %v3884 = vpop.permute.xlu0 %3883
        %3885 = vrot.lane.b32.xlu0 %v3866, 40
        %v3886 = vpop.permute.xlu0 %3885
        %3887 = vrot.lane.b32.xlu0 %v3868, 40
        %v3888 = vpop.permute.xlu0 %3887
        %3889 = vrot.lane.b32.xlu0 %v3870, 40
        %v3890 = vpop.permute.xlu0 %3889
        %vm3901 = vcmask 392512
        %3902 = vst.msk [vmem:[#allocation2] sm:$0xff] %vm3901, %v3872
        %3903 = vst.msk [vmem:[#allocation2 + $0x18] sm:$0xff] %vm3901, %v3874
        %3904 = vst.msk [vmem:[#allocation2 + $0x30] sm:$0xff] %vm3901, %v3876
        %3905 = vst.msk [vmem:[#allocation2 + $0x48] sm:$0xff] %vm3901, %v3878
        %3906 = vst.msk [vmem:[#allocation2 + $0x60] sm:$0xff] %vm3901, %v3880
        %3907 = vst.msk [vmem:[#allocation2 + $0x78] sm:$0xff] %vm3901, %v3882
        %3908 = vst.msk [vmem:[#allocation2 + $0x90] sm:$0xff] %vm3901, %v3884
        %3909 = vst.msk [vmem:[#allocation2 + $0xa8] sm:$0xff] %vm3901, %v3886
        %3910 = vst.msk [vmem:[#allocation2 + $0xc0] sm:$0xff] %vm3901, %v3888
        %vm3911 = vcmask 390464
        %3912 = vst.msk [vmem:[#allocation2 + $0xd8] sm:$0x3f] %vm3911, %v3890
        %v3914 = vrot.slane %v3594, 4
        %v3915 = vsel %vm1656, %v3869, %v3914
        %3916 = vrot.lane.b32.xlu0 %v3854, 48
        %v3917 = vpop.permute.xlu0 %3916
        %3918 = vrot.lane.b32.xlu0 %v3856, 48
        %v3919 = vpop.permute.xlu0 %3918
        %3920 = vrot.lane.b32.xlu0 %v3858, 48
        %v3921 = vpop.permute.xlu0 %3920
        %3922 = vrot.lane.b32.xlu0 %v3860, 48
        %v3923 = vpop.permute.xlu0 %3922
        %3924 = vrot.lane.b32.xlu0 %v3862, 48
        %v3925 = vpop.permute.xlu0 %3924
        %3926 = vrot.lane.b32.xlu0 %v3864, 48
        %v3927 = vpop.permute.xlu0 %3926
        %3928 = vrot.lane.b32.xlu0 %v3866, 48
        %v3929 = vpop.permute.xlu0 %3928
        %3930 = vrot.lane.b32.xlu0 %v3868, 48
        %v3931 = vpop.permute.xlu0 %3930
        %3932 = vrot.lane.b32.xlu0 %v3870, 48
        %v3933 = vpop.permute.xlu0 %3932
        %3934 = vrot.lane.b32.xlu0 %v3915, 48
        %v3935 = vpop.permute.xlu0 %3934
        %vm3946 = vcmask 458112
        %3947 = vst.msk [vmem:[#allocation2] sm:$0xff] %vm3946, %v3917
        %3948 = vst.msk [vmem:[#allocation2 + $0x18] sm:$0xff] %vm3946, %v3919
        %3949 = vst.msk [vmem:[#allocation2 + $0x30] sm:$0xff] %vm3946, %v3921
        %3950 = vst.msk [vmem:[#allocation2 + $0x48] sm:$0xff] %vm3946, %v3923
        %3951 = vst.msk [vmem:[#allocation2 + $0x60] sm:$0xff] %vm3946, %v3925
        %3952 = vst.msk [vmem:[#allocation2 + $0x78] sm:$0xff] %vm3946, %v3927
        %3953 = vst.msk [vmem:[#allocation2 + $0x90] sm:$0xff] %vm3946, %v3929
        %3954 = vst.msk [vmem:[#allocation2 + $0xa8] sm:$0xff] %vm3946, %v3931
        %3955 = vst.msk [vmem:[#allocation2 + $0xc0] sm:$0xff] %vm3946, %v3933
        %vm3956 = vcmask 456064
        %3957 = vst.msk [vmem:[#allocation2 + $0xd8] sm:$0x3f] %vm3956, %v3935
        %v3958 = vrot.slane %v3544, 5
        %v3959 = vrot.slane %v3549, 5
        %v3960 = vsel %vm2028, %v3958, %v3959
        %v3961 = vrot.slane %v3554, 5
        %v3962 = vsel %vm2028, %v3959, %v3961
        %v3963 = vrot.slane %v3559, 5
        %v3964 = vsel %vm2028, %v3961, %v3963
        %v3965 = vrot.slane %v3564, 5
        %v3966 = vsel %vm2028, %v3963, %v3965
        %v3967 = vrot.slane %v3569, 5
        %v3968 = vsel %vm2028, %v3965, %v3967
        %v3969 = vrot.slane %v3574, 5
        %v3970 = vsel %vm2028, %v3967, %v3969
        %v3971 = vrot.slane %v3579, 5
        %v3972 = vsel %vm2028, %v3969, %v3971
        %v3973 = vrot.slane %v3584, 5
        %v3974 = vsel %vm2028, %v3971, %v3973
        %v3975 = vrot.slane %v3589, 5
        %v3976 = vsel %vm2028, %v3973, %v3975
        %v3977 = vrot.slane %v3594, 5
        %v3978 = vsel %vm2028, %v3975, %v3977
        %3979 = vrot.lane.b32.xlu0 %v3960, 56
        %v3980 = vpop.permute.xlu0 %3979
        %3981 = vrot.lane.b32.xlu0 %v3962, 56
        %v3982 = vpop.permute.xlu0 %3981
        %3983 = vrot.lane.b32.xlu0 %v3964, 56
        %v3984 = vpop.permute.xlu0 %3983
        %3985 = vrot.lane.b32.xlu0 %v3966, 56
        %v3986 = vpop.permute.xlu0 %3985
        %3987 = vrot.lane.b32.xlu0 %v3968, 56
        %v3988 = vpop.permute.xlu0 %3987
        %3989 = vrot.lane.b32.xlu0 %v3970, 56
        %v3990 = vpop.permute.xlu0 %3989
        %3991 = vrot.lane.b32.xlu0 %v3972, 56
        %v3992 = vpop.permute.xlu0 %3991
        %3993 = vrot.lane.b32.xlu0 %v3974, 56
        %v3994 = vpop.permute.xlu0 %3993
        %3995 = vrot.lane.b32.xlu0 %v3976, 56
        %v3996 = vpop.permute.xlu0 %3995
        %3997 = vrot.lane.b32.xlu0 %v3978, 56
        %v3998 = vpop.permute.xlu0 %3997
        %vm4009 = vcmask 523712
        %4010 = vst.msk [vmem:[#allocation2] sm:$0xff] %vm4009, %v3980
        %4011 = vst.msk [vmem:[#allocation2 + $0x18] sm:$0xff] %vm4009, %v3982
        %4012 = vst.msk [vmem:[#allocation2 + $0x30] sm:$0xff] %vm4009, %v3984
        %4013 = vst.msk [vmem:[#allocation2 + $0x48] sm:$0xff] %vm4009, %v3986
        %4014 = vst.msk [vmem:[#allocation2 + $0x60] sm:$0xff] %vm4009, %v3988
        %4015 = vst.msk [vmem:[#allocation2 + $0x78] sm:$0xff] %vm4009, %v3990
        %4016 = vst.msk [vmem:[#allocation2 + $0x90] sm:$0xff] %vm4009, %v3992
        %4017 = vst.msk [vmem:[#allocation2 + $0xa8] sm:$0xff] %vm4009, %v3994
        %4018 = vst.msk [vmem:[#allocation2 + $0xc0] sm:$0xff] %vm4009, %v3996
        %vm4019 = vcmask 521664
        %4020 = vst.msk [vmem:[#allocation2 + $0xd8] sm:$0x3f] %vm4019, %v3998
        %v4021 = vrot.slane %v3544, 6
        %v4022 = vrot.slane %v3549, 6
        %v4023 = vsel %vm2248, %v4021, %v4022
        %v4024 = vrot.slane %v3554, 6
        %v4025 = vsel %vm2248, %v4022, %v4024
        %v4026 = vrot.slane %v3559, 6
        %v4027 = vsel %vm2248, %v4024, %v4026
        %v4028 = vrot.slane %v3564, 6
        %v4029 = vsel %vm2248, %v4026, %v4028
        %v4030 = vrot.slane %v3569, 6
        %v4031 = vsel %vm2248, %v4028, %v4030
        %v4032 = vrot.slane %v3574, 6
        %v4033 = vsel %vm2248, %v4030, %v4032
        %v4034 = vrot.slane %v3579, 6
        %v4035 = vsel %vm2248, %v4032, %v4034
        %v4036 = vrot.slane %v3584, 6
        %v4037 = vsel %vm2248, %v4034, %v4036
        %v4038 = vrot.slane %v3589, 6
        %v4039 = vsel %vm2248, %v4036, %v4038
        %v4040 = vrot.slane %v3594, 6
        %v4041 = vsel %vm2248, %v4038, %v4040
        %4042 = vrot.lane.b32.xlu0 %v4023, 64
        %v4043 = vpop.permute.xlu0 %4042
        %4044 = vrot.lane.b32.xlu0 %v4025, 64
        %v4045 = vpop.permute.xlu0 %4044
        %4046 = vrot.lane.b32.xlu0 %v4027, 64
        %v4047 = vpop.permute.xlu0 %4046
        %4048 = vrot.lane.b32.xlu0 %v4029, 64
        %v4049 = vpop.permute.xlu0 %4048
        %4050 = vrot.lane.b32.xlu0 %v4031, 64
        %v4051 = vpop.permute.xlu0 %4050
        %4052 = vrot.lane.b32.xlu0 %v4033, 64
        %v4053 = vpop.permute.xlu0 %4052
        %4054 = vrot.lane.b32.xlu0 %v4035, 64
        %v4055 = vpop.permute.xlu0 %4054
        %4056 = vrot.lane.b32.xlu0 %v4037, 64
        %v4057 = vpop.permute.xlu0 %4056
        %4058 = vrot.lane.b32.xlu0 %v4039, 64
        %v4059 = vpop.permute.xlu0 %4058
        %4060 = vrot.lane.b32.xlu0 %v4041, 64
        %v4061 = vpop.permute.xlu0 %4060
        %vm4072 = vcmask 589312
        %4073 = vst.msk [vmem:[#allocation2] sm:$0xff] %vm4072, %v4043
        %4074 = vst.msk [vmem:[#allocation2 + $0x18] sm:$0xff] %vm4072, %v4045
        %4075 = vst.msk [vmem:[#allocation2 + $0x30] sm:$0xff] %vm4072, %v4047
        %4076 = vst.msk [vmem:[#allocation2 + $0x48] sm:$0xff] %vm4072, %v4049
        %4077 = vst.msk [vmem:[#allocation2 + $0x60] sm:$0xff] %vm4072, %v4051
        %4078 = vst.msk [vmem:[#allocation2 + $0x78] sm:$0xff] %vm4072, %v4053
        %4079 = vst.msk [vmem:[#allocation2 + $0x90] sm:$0xff] %vm4072, %v4055
        %4080 = vst.msk [vmem:[#allocation2 + $0xa8] sm:$0xff] %vm4072, %v4057
        %4081 = vst.msk [vmem:[#allocation2 + $0xc0] sm:$0xff] %vm4072, %v4059
        %vm4082 = vcmask 587264
        %4083 = vst.msk [vmem:[#allocation2 + $0xd8] sm:$0x3f] %vm4082, %v4061
        %v4084 = vld [vmem:[#allocation2] sm:$0xff]
        %v4085 = vld [vmem:[#allocation2 + $0x18] sm:$0xff]
        %v4086 = vld [vmem:[#allocation2 + $0x30] sm:$0xff]
        %v4087 = vld [vmem:[#allocation2 + $0x48] sm:$0xff]
        %v4088 = vld [vmem:[#allocation2 + $0x60] sm:$0xff]
        %v4089 = vld [vmem:[#allocation2 + $0x78] sm:$0xff]
        %v4090 = vld [vmem:[#allocation2 + $0x90] sm:$0xff]
        %v4091 = vld [vmem:[#allocation2 + $0xa8] sm:$0xff]
        %v4092 = vld [vmem:[#allocation2 + $0xc0] sm:$0xff]
        %v4093 = vld [vmem:[#allocation2 + $0xd8] sm:$0x3f]
        %v4094 = vld [vmem:[#allocation6] sm:$0xff]
        %v4095 = vld [vmem:[#allocation6 + $0x8] sm:$0xff]
        %v4096 = vld [vmem:[#allocation6 + $0x10] sm:$0xff]
        %v4097 = vld [vmem:[#allocation6 + $0x18] sm:$0xff]
        %v4098 = vld [vmem:[#allocation6 + $0x20] sm:$0xff]
        %v4099 = vld [vmem:[#allocation6 + $0x28] sm:$0xff]
        %v4100 = vld [vmem:[#allocation6 + $0x30] sm:$0xff]
        %v4101 = vld [vmem:[#allocation6 + $0x38] sm:$0xff]
        %v4102 = vld [vmem:[#allocation6 + $0x40] sm:$0xff]
        %v4103 = vld [vmem:[#allocation12] sm:$0x1]
        %v4105 = vlaneseq
        %v4106 = vshrl.u32 %v4105, 7
        %v4107 = vsub.s32 0, %v4106
        %v4108 = vrot.slane %v4103, %v4107
        %vm4110 = vcmask 588800
        %v4112 = vsel %vm4110, %v4084, 0
        %v4115 = vsel %vm4110, %v4085, 0
        %v4118 = vsel %vm4110, %v4086, 0
        %v4121 = vsel %vm4110, %v4087, 0
        %v4124 = vsel %vm4110, %v4088, 0
        %v4127 = vsel %vm4110, %v4089, 0
        %v4130 = vsel %vm4110, %v4090, 0
        %v4133 = vsel %vm4110, %v4091, 0
        %v4136 = vsel %vm4110, %v4092, 0
        %v4139 = vsel %vm4110, %v4093, 0
        %4141 = vmatprep.subr.mxu0 0.0
        %4142 = vmatpush1.msra.mxu0 0.0
        %4143 = vmatprep.subr.mxu0 0.0
        %4144 = vmatpush1.msra.mxu0 0.0
        %4145 = vmatprep.subr.mxu0 0.0
        %4146 = vmatpush1.msra.mxu0 0.0
        %4147 = vmatprep.subr.mxu0 0.0
        %4148 = vmatpush1.msra.mxu0 0.0
        %4149 = vmatprep.subr.mxu0 0.0
        %4150 = vmatpush1.msra.mxu0 0.0
        %4151 = vmatprep.subr.mxu0 0.0
        %4152 = vmatpush1.msra.mxu0 0.0
        %4153 = vmatprep.subr.mxu0 0.0
        %4154 = vmatpush1.msra.mxu0 0.0
        %4155 = vmatprep.subr.mxu0 0.0
        %4156 = vmatpush1.msra.mxu0 %v4102
        %4157 = vmatprep.subr.mxu0 0.0
        %4158 = vmatpush1.msra.mxu0 %v4101
        %4159 = vmatprep.subr.mxu0 0.0
        %4160 = vmatpush1.msra.mxu0 %v4100
        %4161 = vmatprep.subr.mxu0 0.0
        %4162 = vmatpush1.msra.mxu0 %v4099
        %4163 = vmatprep.subr.mxu0 0.0
        %4164 = vmatpush1.msra.mxu0 %v4098
        %4165 = vmatprep.subr.mxu0 0.0
        %4166 = vmatpush1.msra.mxu0 %v4097
        %4167 = vmatprep.subr.mxu0 0.0
        %4168 = vmatpush1.msra.mxu0 %v4096
        %4169 = vmatprep.subr.mxu0 0.0
        %4170 = vmatpush1.msra.mxu0 %v4095
        %4171 = vmatprep.subr.mxu0 0.0
        %4172 = vmatpush1.msra.mxu0 %v4094
        %4173 = vmatprep.subr.mxu0 0.0
        %4174 = vmatpush2.msra.mxu0 0.0
        %4175 = vmatprep.subr.mxu0 0.0
        %4176 = vmatpush2.msra.mxu0 0.0
        %4177 = vmatprep.subr.mxu0 0.0
        %4178 = vmatpush2.msra.mxu0 0.0
        %4179 = vmatprep.subr.mxu0 0.0
        %4180 = vmatpush2.msra.mxu0 0.0
        %4181 = vmatprep.subr.mxu0 0.0
        %4182 = vmatpush2.msra.mxu0 0.0
        %4183 = vmatprep.subr.mxu0 0.0
        %4184 = vmatpush2.msra.mxu0 0.0
        %4185 = vmatprep.subr.mxu0 0.0
        %4186 = vmatpush2.msra.mxu0 0.0
        %4187 = vmatprep.subr.mxu0 0.0
        %4188 = vmatpush2.msra.mxu0 0.0
        %4189 = vmatprep.subr.mxu0 0.0
        %4190 = vmatpush2.msra.mxu0 0.0
        %4191 = vmatprep.subr.mxu0 0.0
        %4192 = vmatpush2.msra.mxu0 0.0
        %4193 = vmatprep.subr.mxu0 0.0
        %4194 = vmatpush2.msra.mxu0 0.0
        %4195 = vmatprep.subr.mxu0 0.0
        %4196 = vmatpush2.msra.mxu0 0.0
        %4197 = vmatprep.subr.mxu0 0.0
        %4198 = vmatpush2.msra.mxu0 0.0
        %4199 = vmatprep.subr.mxu0 0.0
        %4200 = vmatpush2.msra.mxu0 0.0
        %4201 = vmatprep.subr.mxu0 0.0
        %4202 = vmatpush2.msra.mxu0 0.0
        %4203 = vmatprep.subr.mxu0 0.0
        %4204 = vmatpush2.msra.mxu0 0.0
        %4205 = vmatprep.mubr.f32.mxu0 0.0
        %4206 = vmatmul.mubr.f32.gmra.mxu0 %v4112
        %v4207 = vpop.f32.mrf.mxu0
        %v4208 = vadd.f32 %v4108, %v4207
        %v4209 = vpop.f32.mrf.mxu0
        %4210 = vmatprep.mubr.f32.mxu0 0.0
        %4211 = vmatmul.mubr.f32.gmra.mxu0 %v4115
        %v4212 = vpop.f32.mrf.mxu0
        %v4213 = vadd.f32 %v4108, %v4212
        %v4214 = vpop.f32.mrf.mxu0
        %4215 = vmatprep.mubr.f32.mxu0 0.0
        %4216 = vmatmul.mubr.f32.gmra.mxu0 %v4118
        %v4217 = vpop.f32.mrf.mxu0
        %v4218 = vadd.f32 %v4108, %v4217
        %v4219 = vpop.f32.mrf.mxu0
        %4220 = vmatprep.mubr.f32.mxu0 0.0
        %4221 = vmatmul.mubr.f32.gmra.mxu0 %v4121
        %v4222 = vpop.f32.mrf.mxu0
        %v4223 = vadd.f32 %v4108, %v4222
        %v4224 = vpop.f32.mrf.mxu0
        %4225 = vmatprep.mubr.f32.mxu0 0.0
        %4226 = vmatmul.mubr.f32.gmra.mxu0 %v4124
        %v4227 = vpop.f32.mrf.mxu0
        %v4228 = vadd.f32 %v4108, %v4227
        %v4229 = vpop.f32.mrf.mxu0
        %4230 = vmatprep.mubr.f32.mxu0 0.0
        %4231 = vmatmul.mubr.f32.gmra.mxu0 %v4127
        %v4232 = vpop.f32.mrf.mxu0
        %v4233 = vadd.f32 %v4108, %v4232
        %v4234 = vpop.f32.mrf.mxu0
        %4235 = vmatprep.mubr.f32.mxu0 0.0
        %4236 = vmatmul.mubr.f32.gmra.mxu0 %v4130
        %v4237 = vpop.f32.mrf.mxu0
        %v4238 = vadd.f32 %v4108, %v4237
        %v4239 = vpop.f32.mrf.mxu0
        %4240 = vmatprep.mubr.f32.mxu0 0.0
        %4241 = vmatmul.mubr.f32.gmra.mxu0 %v4133
        %v4242 = vpop.f32.mrf.mxu0
        %v4243 = vadd.f32 %v4108, %v4242
        %v4244 = vpop.f32.mrf.mxu0
        %4245 = vmatprep.mubr.f32.mxu0 0.0
        %4246 = vmatmul.mubr.f32.gmra.mxu0 %v4136
        %v4247 = vpop.f32.mrf.mxu0
        %v4248 = vadd.f32 %v4108, %v4247
        %v4249 = vpop.f32.mrf.mxu0
        %4250 = vmatprep.mubr.f32.mxu0 0.0
        %4251 = vmatmul.mubr.f32.gmra.mxu0 %v4139
        %v4252 = vpop.f32.mrf.mxu0
        %v4253 = vadd.f32 %v4108, %v4252
        %v4254 = vpop.f32.mrf.mxu0
        %4255 = vdwg.mxu0
        %v4256 = vmax.f32 %v4208, 0.0
        %v4257 = vmax.f32 %v4213, 0.0
        %v4258 = vmax.f32 %v4218, 0.0
        %v4259 = vmax.f32 %v4223, 0.0
        %v4260 = vmax.f32 %v4228, 0.0
        %v4261 = vmax.f32 %v4233, 0.0
        %v4262 = vmax.f32 %v4238, 0.0
        %v4263 = vmax.f32 %v4243, 0.0
        %v4264 = vmax.f32 %v4248, 0.0
        %v4265 = vmax.f32 %v4253, 0.0
        %v4276 = vrot.slane %v4256, 1
        %v4277 = vrot.slane %v4257, 1
        %v4278 = vsel %vm847, %v4276, %v4277
        %v4279 = vrot.slane %v4258, 1
        %v4280 = vsel %vm847, %v4277, %v4279
        %v4281 = vrot.slane %v4259, 1
        %v4282 = vsel %vm847, %v4279, %v4281
        %v4283 = vrot.slane %v4260, 1
        %v4284 = vsel %vm847, %v4281, %v4283
        %v4285 = vrot.slane %v4261, 1
        %v4286 = vsel %vm847, %v4283, %v4285
        %v4287 = vrot.slane %v4262, 1
        %v4288 = vsel %vm847, %v4285, %v4287
        %v4289 = vrot.slane %v4263, 1
        %v4290 = vsel %vm847, %v4287, %v4289
        %v4291 = vrot.slane %v4264, 1
        %v4292 = vsel %vm847, %v4289, %v4291
        %v4293 = vrot.slane %v4265, 1
        %v4294 = vsel %vm847, %v4291, %v4293
        %v4305 = vmax.f32 %v4256, %v4278
        %v4306 = vmax.f32 %v4257, %v4280
        %v4307 = vmax.f32 %v4258, %v4282
        %v4308 = vmax.f32 %v4259, %v4284
        %v4309 = vmax.f32 %v4260, %v4286
        %v4310 = vmax.f32 %v4261, %v4288
        %v4311 = vmax.f32 %v4262, %v4290
        %v4312 = vmax.f32 %v4263, %v4292
        %v4313 = vmax.f32 %v4264, %v4294
        %v4314 = vmax.f32 %v4265, %v4293
        %v4324 = vrot.slane %v4306, 2
        %v4325 = vrot.slane %v4307, 2
        %v4326 = vsel %vm1065, %v4324, %v4325
        %v4327 = vrot.slane %v4308, 2
        %v4328 = vsel %vm1065, %v4325, %v4327
        %v4329 = vrot.slane %v4309, 2
        %v4330 = vsel %vm1065, %v4327, %v4329
        %v4331 = vrot.slane %v4310, 2
        %v4332 = vsel %vm1065, %v4329, %v4331
        %v4333 = vrot.slane %v4311, 2
        %v4334 = vsel %vm1065, %v4331, %v4333
        %v4335 = vrot.slane %v4312, 2
        %v4336 = vsel %vm1065, %v4333, %v4335
        %v4337 = vrot.slane %v4313, 2
        %v4338 = vsel %vm1065, %v4335, %v4337
        %v4339 = vrot.slane %v4314, 2
        %v4340 = vsel %vm1065, %v4337, %v4339
        %v4350 = vmax.f32 %v4305, %v4326
        %v4351 = vmax.f32 %v4306, %v4328
        %v4352 = vmax.f32 %v4307, %v4330
        %v4353 = vmax.f32 %v4308, %v4332
        %v4354 = vmax.f32 %v4309, %v4334
        %v4355 = vmax.f32 %v4310, %v4336
        %v4356 = vmax.f32 %v4311, %v4338
        %v4357 = vmax.f32 %v4312, %v4340
        %v4358 = vmax.f32 %v4313, %v4339
        %v4359 = vld [vmem:[#allocation14] sm:$0xff]
        %v4360 = vld [vmem:[#allocation14 + $0x8] sm:$0xff]
        %v4361 = vld [vmem:[#allocation14 + $0x10] sm:$0xff]
        %v4362 = vld [vmem:[#allocation14 + $0x18] sm:$0xff]
        %v4363 = vld [vmem:[#allocation14 + $0x20] sm:$0xf]
        %vm4364 = vcmask 547840
        %v4366 = vsel %vm4364, %v4359, 0
        %v4369 = vsel %vm4364, %v4360, 0
        %v4372 = vsel %vm4364, %v4361, 0
        %v4375 = vsel %vm4364, %v4362, 0
        %v4378 = vsel %vm4364, %v4363, 0
        %v4381 = vsel %vm2028, %v4358, 0
        %4383 = vmatprep.subr.mxu0 0.0
        %4384 = vmatpush1.msra.mxu0 0.0
        %4385 = vmatprep.subr.mxu0 0.0
        %4386 = vmatpush1.msra.mxu0 0.0
        %4387 = vmatprep.subr.mxu0 0.0
        %4388 = vmatpush1.msra.mxu0 0.0
        %4389 = vmatprep.subr.mxu0 0.0
        %4390 = vmatpush1.msra.mxu0 0.0
        %4391 = vmatprep.subr.mxu0 0.0
        %4392 = vmatpush1.msra.mxu0 0.0
        %4393 = vmatprep.subr.mxu0 0.0
        %4394 = vmatpush1.msra.mxu0 0.0
        %4395 = vmatprep.subr.mxu0 0.0
        %4396 = vmatpush1.msra.mxu0 0.0
        %4397 = vmatprep.subr.mxu0 0.0
        %4398 = vmatpush1.msra.mxu0 %v4381
        %4399 = vmatprep.subr.mxu0 0.0
        %4400 = vmatpush1.msra.mxu0 %v4357
        %4401 = vmatprep.subr.mxu0 0.0
        %4402 = vmatpush1.msra.mxu0 %v4356
        %4403 = vmatprep.subr.mxu0 0.0
        %4404 = vmatpush1.msra.mxu0 %v4355
        %4405 = vmatprep.subr.mxu0 0.0
        %4406 = vmatpush1.msra.mxu0 %v4354
        %4407 = vmatprep.subr.mxu0 0.0
        %4408 = vmatpush1.msra.mxu0 %v4353
        %4409 = vmatprep.subr.mxu0 0.0
        %4410 = vmatpush1.msra.mxu0 %v4352
        %4411 = vmatprep.subr.mxu0 0.0
        %4412 = vmatpush1.msra.mxu0 %v4351
        %4413 = vmatprep.subr.mxu0 0.0
        %4414 = vmatpush1.msra.mxu0 %v4350
        %4415 = vmatprep.subr.mxu0 0.0
        %4416 = vmatpush2.msra.mxu0 0.0
        %4417 = vmatprep.subr.mxu0 0.0
        %4418 = vmatpush2.msra.mxu0 0.0
        %4419 = vmatprep.subr.mxu0 0.0
        %4420 = vmatpush2.msra.mxu0 0.0
        %4421 = vmatprep.subr.mxu0 0.0
        %4422 = vmatpush2.msra.mxu0 0.0
        %4423 = vmatprep.subr.mxu0 0.0
        %4424 = vmatpush2.msra.mxu0 0.0
        %4425 = vmatprep.subr.mxu0 0.0
        %4426 = vmatpush2.msra.mxu0 0.0
        %4427 = vmatprep.subr.mxu0 0.0
        %4428 = vmatpush2.msra.mxu0 0.0
        %4429 = vmatprep.subr.mxu0 0.0
        %4430 = vmatpush2.msra.mxu0 0.0
        %4431 = vmatprep.subr.mxu0 0.0
        %4432 = vmatpush2.msra.mxu0 0.0
        %4433 = vmatprep.subr.mxu0 0.0
        %4434 = vmatpush2.msra.mxu0 0.0
        %4435 = vmatprep.subr.mxu0 0.0
        %4436 = vmatpush2.msra.mxu0 0.0
        %4437 = vmatprep.subr.mxu0 0.0
        %4438 = vmatpush2.msra.mxu0 0.0
        %4439 = vmatprep.subr.mxu0 0.0
        %4440 = vmatpush2.msra.mxu0 0.0
        %4441 = vmatprep.subr.mxu0 0.0
        %4442 = vmatpush2.msra.mxu0 0.0
        %4443 = vmatprep.subr.mxu0 0.0
        %4444 = vmatpush2.msra.mxu0 0.0
        %4445 = vmatprep.subr.mxu0 0.0
        %4446 = vmatpush2.msra.mxu0 0.0
        %4447 = vmatprep.mubr.f32.mxu0 0.0
        %4448 = vmatmul.mubr.f32.gmra.mxu0 %v4366
        %v4449 = vpop.f32.mrf.mxu0
        %v4450 = vadd.f32 0.0, %v4449
        %v4451 = vpop.f32.mrf.mxu0
        %4452 = vmatprep.mubr.f32.mxu0 0.0
        %4453 = vmatmul.mubr.f32.gmra.mxu0 %v4369
        %v4454 = vpop.f32.mrf.mxu0
        %v4455 = vadd.f32 0.0, %v4454
        %v4456 = vpop.f32.mrf.mxu0
        %4457 = vmatprep.mubr.f32.mxu0 0.0
        %4458 = vmatmul.mubr.f32.gmra.mxu0 %v4372
        %v4459 = vpop.f32.mrf.mxu0
        %v4460 = vadd.f32 0.0, %v4459
        %v4461 = vpop.f32.mrf.mxu0
        %4462 = vmatprep.mubr.f32.mxu0 0.0
        %4463 = vmatmul.mubr.f32.gmra.mxu0 %v4375
        %v4464 = vpop.f32.mrf.mxu0
        %v4465 = vadd.f32 0.0, %v4464
        %v4466 = vpop.f32.mrf.mxu0
        %4467 = vmatprep.mubr.f32.mxu0 0.0
        %4468 = vmatmul.mubr.f32.gmra.mxu0 %v4378
        %v4469 = vpop.f32.mrf.mxu0
        %v4470 = vadd.f32 0.0, %v4469
        %v4471 = vpop.f32.mrf.mxu0
        %4472 = vdwg.mxu0
        %vm4473 = vcmask 130048
        %4474 = vst.msk [vmem:[#allocation2] sm:$0xff] %vm4473, %v4450
        %4475 = vst.msk [vmem:[#allocation2 + $0x18] sm:$0xff] %vm4473, %v4455
        %vm4476 = vcmask 128000
        %4477 = vst.msk [vmem:[#allocation2 + $0x30] sm:$0x3f] %vm4476, %v4460
        %v4481 = vrot.slane %v4450, 1
        %v4482 = vrot.slane %v4455, 1
        %v4483 = vsel %vm847, %v4481, %v4482
        %v4484 = vrot.slane %v4460, 1
        %v4485 = vsel %vm847, %v4482, %v4484
        %4486 = vrot.lane.b32.xlu0 %v4483, 16
        %v4487 = vpop.permute.xlu0 %4486
        %4488 = vrot.lane.b32.xlu0 %v4485, 16
        %v4489 = vpop.permute.xlu0 %4488
        %4490 = vrot.lane.b32.xlu0 %v4484, 16
        %v4491 = vpop.permute.xlu0 %4490
        %vm4495 = vcmask 261248
        %4496 = vst.msk [vmem:[#allocation2] sm:$0xff] %vm4495, %v4487
        %4497 = vst.msk [vmem:[#allocation2 + $0x18] sm:$0xff] %vm4495, %v4489
        %vm4498 = vcmask 259200
        %4499 = vst.msk [vmem:[#allocation2 + $0x30] sm:$0x3f] %vm4498, %v4491
        %v4500 = vrot.slane %v4450, 2
        %v4501 = vrot.slane %v4455, 2
        %v4502 = vsel %vm1065, %v4500, %v4501
        %v4503 = vrot.slane %v4460, 2
        %v4504 = vsel %vm1065, %v4501, %v4503
        %4505 = vrot.lane.b32.xlu0 %v4502, 32
        %v4506 = vpop.permute.xlu0 %4505
        %4507 = vrot.lane.b32.xlu0 %v4504, 32
        %v4508 = vpop.permute.xlu0 %4507
        %4509 = vrot.lane.b32.xlu0 %v4503, 32
        %v4510 = vpop.permute.xlu0 %4509
        %vm4514 = vcmask 392448
        %4515 = vst.msk [vmem:[#allocation2] sm:$0xff] %vm4514, %v4506
        %4516 = vst.msk [vmem:[#allocation2 + $0x18] sm:$0xff] %vm4514, %v4508
        %vm4517 = vcmask 390400
        %4518 = vst.msk [vmem:[#allocation2 + $0x30] sm:$0x3f] %vm4517, %v4510
        %v4520 = vrot.slane %v4450, 6
        %v4521 = vrot.slane %v4455, 6
        %v4522 = vsel %vm2248, %v4520, %v4521
        %v4523 = vrot.slane %v4460, 6
        %v4524 = vsel %vm2248, %v4521, %v4523
        %v4525 = vrot.slane %v4465, 6
        %v4526 = vsel %vm2248, %v4523, %v4525
        %4527 = vrot.lane.b32.xlu0 %v4522, 48
        %v4528 = vpop.permute.xlu0 %4527
        %4529 = vrot.lane.b32.xlu0 %v4524, 48
        %v4530 = vpop.permute.xlu0 %4529
        %4531 = vrot.lane.b32.xlu0 %v4526, 48
        %v4532 = vpop.permute.xlu0 %4531
        %vm4536 = vcmask 523648
        %4537 = vst.msk [vmem:[#allocation2] sm:$0xff] %vm4536, %v4528
        %4538 = vst.msk [vmem:[#allocation2 + $0x18] sm:$0xff] %vm4536, %v4530
        %vm4539 = vcmask 521600
        %4540 = vst.msk [vmem:[#allocation2 + $0x30] sm:$0x3f] %vm4539, %v4532
        %v4541 = vrot.slane %v4450, 7
        %v4542 = vrot.slane %v4455, 7
        %v4543 = vsel %vm2622, %v4541, %v4542
        %v4544 = vrot.slane %v4460, 7
        %v4545 = vsel %vm2622, %v4542, %v4544
        %v4546 = vrot.slane %v4465, 7
        %v4547 = vsel %vm2622, %v4544, %v4546
        %4548 = vrot.lane.b32.xlu0 %v4543, 64
        %v4549 = vpop.permute.xlu0 %4548
        %4550 = vrot.lane.b32.xlu0 %v4545, 64
        %v4551 = vpop.permute.xlu0 %4550
        %4552 = vrot.lane.b32.xlu0 %v4547, 64
        %v4553 = vpop.permute.xlu0 %4552
        %vm4557 = vcmask 654848
        %4558 = vst.msk [vmem:[#allocation2] sm:$0xff] %vm4557, %v4549
        %4559 = vst.msk [vmem:[#allocation2 + $0x18] sm:$0xff] %vm4557, %v4551
        %vm4560 = vcmask 652800
        %4561 = vst.msk [vmem:[#allocation2 + $0x30] sm:$0x3f] %vm4560, %v4553
        %4562 = vrot.lane.b32.xlu0 %v4455, 80
        %v4563 = vpop.permute.xlu0 %4562
        %4564 = vrot.lane.b32.xlu0 %v4460, 80
        %v4565 = vpop.permute.xlu0 %4564
        %4566 = vrot.lane.b32.xlu0 %v4465, 80
        %v4567 = vpop.permute.xlu0 %4566
        %vm4571 = vcmask 786048
        %4572 = vst.msk [vmem:[#allocation2] sm:$0xff] %vm4571, %v4563
        %4573 = vst.msk [vmem:[#allocation2 + $0x18] sm:$0xff] %vm4571, %v4565
        %vm4574 = vcmask 784000
        %4575 = vst.msk [vmem:[#allocation2 + $0x30] sm:$0x3f] %vm4574, %v4567
        %v4577 = vrot.slane %v4455, 4
        %v4578 = vrot.slane %v4460, 4
        %v4579 = vsel %vm1656, %v4577, %v4578
        %v4580 = vrot.slane %v4465, 4
        %v4581 = vsel %vm1656, %v4578, %v4580
        %v4582 = vrot.slane %v4470, 4
        %v4583 = vsel %vm1656, %v4580, %v4582
        %4584 = vrot.lane.b32.xlu0 %v4579, 96
        %v4585 = vpop.permute.xlu0 %4584
        %4586 = vrot.lane.b32.xlu0 %v4581, 96
        %v4587 = vpop.permute.xlu0 %4586
        %4588 = vrot.lane.b32.xlu0 %v4583, 96
        %v4589 = vpop.permute.xlu0 %4588
        %vm4593 = vcmask 917248
        %4594 = vst.msk [vmem:[#allocation2] sm:$0xff] %vm4593, %v4585
        %4595 = vst.msk [vmem:[#allocation2 + $0x18] sm:$0xff] %vm4593, %v4587
        %vm4596 = vcmask 915200
        %4597 = vst.msk [vmem:[#allocation2 + $0x30] sm:$0x3f] %vm4596, %v4589
        %v4598 = vrot.slane %v4455, 5
        %v4599 = vrot.slane %v4460, 5
        %v4600 = vsel %vm2028, %v4598, %v4599
        %v4601 = vrot.slane %v4465, 5
        %v4602 = vsel %vm2028, %v4599, %v4601
        %v4603 = vrot.slane %v4470, 5
        %v4604 = vsel %vm2028, %v4601, %v4603
        %4605 = vrot.lane.b32.xlu0 %v4600, 112
        %v4606 = vpop.permute.xlu0 %4605
        %4607 = vrot.lane.b32.xlu0 %v4602, 112
        %v4608 = vpop.permute.xlu0 %4607
        %4609 = vrot.lane.b32.xlu0 %v4604, 112
        %v4610 = vpop.permute.xlu0 %4609
        %vm4614 = vcmask 1048448
        %4615 = vst.msk [vmem:[#allocation2] sm:$0xff] %vm4614, %v4606
        %4616 = vst.msk [vmem:[#allocation2 + $0x18] sm:$0xff] %vm4614, %v4608
        %vm4617 = vcmask 1046400
        %4618 = vst.msk [vmem:[#allocation2 + $0x30] sm:$0x3f] %vm4617, %v4610
        %v4619 = vrot.slane %v4470, 6
        %v4620 = vsel %vm2248, %v4525, %v4619
        %4624 = vst.msk [vmem:[#allocation2 + $0x8] sm:$0xff] %vm4473, %v4524
        %4625 = vst.msk [vmem:[#allocation2 + $0x20] sm:$0xff] %vm4473, %v4526
        %4626 = vst.msk [vmem:[#allocation2 + $0x38] sm:$0x3f] %vm4476, %v4620
        %v4627 = vld [vmem:[#allocation2] sm:$0xff]
        %v4628 = vld [vmem:[#allocation2 + $0x8] sm:$0xff]
        %v4629 = vld [vmem:[#allocation2 + $0x18] sm:$0xff]
        %v4630 = vld [vmem:[#allocation2 + $0x20] sm:$0xff]
        %v4631 = vld [vmem:[#allocation2 + $0x30] sm:$0x3f]
        %v4632 = vld [vmem:[#allocation2 + $0x38] sm:$0x3f]
        %v4633 = vld [vmem:[#allocation8] sm:$0xff]
        %v4634 = vld [vmem:[#allocation8 + $0x8] sm:$0xff]
        %v4635 = vld [vmem:[#allocation8 + $0x10] sm:$0xff]
        %v4636 = vld [vmem:[#allocation8 + $0x18] sm:$0xff]
        %v4637 = vld [vmem:[#allocation8 + $0x20] sm:$0xff]
        %v4638 = vld [vmem:[#allocation8 + $0x28] sm:$0xff]
        %v4639 = vld [vmem:[#allocation8 + $0x30] sm:$0xff]
        %v4640 = vld [vmem:[#allocation8 + $0x38] sm:$0xff]
        %v4641 = vld [vmem:[#allocation8 + $0x40] sm:$0xff]
        %v4642 = vld [vmem:[#allocation8 + $0x48] sm:$0xff]
        %v4643 = vld [vmem:[#allocation8 + $0x50] sm:$0xff]
        %v4644 = vld [vmem:[#allocation8 + $0x58] sm:$0xff]
        %v4645 = vld [vmem:[#allocation8 + $0x60] sm:$0xff]
        %v4646 = vld [vmem:[#allocation8 + $0x68] sm:$0xff]
        %v4647 = vld [vmem:[#allocation8 + $0x70] sm:$0xff]
        %v4648 = vld [vmem:[#allocation8 + $0x78] sm:$0xff]
        %v4649 = vld [vmem:[#allocation8 + $0x80] sm:$0xff]
        %v4650 = vld [vmem:[#allocation8 + $0x88] sm:$0xff]
        %v4651 = vld [vmem:[%s9] sm:$0x1]
        %v4653 = vlaneseq
        %v4654 = vshrl.u32 %v4653, 7
        %v4655 = vsub.s32 0, %v4654
        %v4656 = vrot.slane %v4651, %v4655
        %v4659 = vsel %vm4473, %v4628, 0
        %v4662 = vsel %vm4473, %v4630, 0
        %v4665 = vsel %vm4473, %v4632, 0
        %4667 = vmatprep.subr.mxu0 0.0
        %4668 = vmatpush1.msra.mxu0 %v4648
        %4669 = vmatprep.subr.mxu0 0.0
        %4670 = vmatpush1.msra.mxu0 %v4647
        %4671 = vmatprep.subr.mxu0 0.0
        %4672 = vmatpush1.msra.mxu0 %v4646
        %4673 = vmatprep.subr.mxu0 0.0
        %4674 = vmatpush1.msra.mxu0 %v4645
        %4675 = vmatprep.subr.mxu0 0.0
        %4676 = vmatpush1.msra.mxu0 %v4644
        %4677 = vmatprep.subr.mxu0 0.0
        %4678 = vmatpush1.msra.mxu0 %v4643
        %4679 = vmatprep.subr.mxu0 0.0
        %4680 = vmatpush1.msra.mxu0 %v4642
        %4681 = vmatprep.subr.mxu0 0.0
        %4682 = vmatpush1.msra.mxu0 %v4641
        %4683 = vmatprep.subr.mxu0 0.0
        %4684 = vmatpush1.msra.mxu0 %v4640
        %4685 = vmatprep.subr.mxu0 0.0
        %4686 = vmatpush1.msra.mxu0 %v4639
        %4687 = vmatprep.subr.mxu0 0.0
        %4688 = vmatpush1.msra.mxu0 %v4638
        %4689 = vmatprep.subr.mxu0 0.0
        %4690 = vmatpush1.msra.mxu0 %v4637
        %4691 = vmatprep.subr.mxu0 0.0
        %4692 = vmatpush1.msra.mxu0 %v4636
        %4693 = vmatprep.subr.mxu0 0.0
        %4694 = vmatpush1.msra.mxu0 %v4635
        %4695 = vmatprep.subr.mxu0 0.0
        %4696 = vmatpush1.msra.mxu0 %v4634
        %4697 = vmatprep.subr.mxu0 0.0
        %4698 = vmatpush1.msra.mxu0 %v4633
        %4699 = vmatprep.subr.mxu0 0.0
        %4700 = vmatpush2.msra.mxu0 0.0
        %4701 = vmatprep.subr.mxu0 0.0
        %4702 = vmatpush2.msra.mxu0 0.0
        %4703 = vmatprep.subr.mxu0 0.0
        %4704 = vmatpush2.msra.mxu0 0.0
        %4705 = vmatprep.subr.mxu0 0.0
        %4706 = vmatpush2.msra.mxu0 0.0
        %4707 = vmatprep.subr.mxu0 0.0
        %4708 = vmatpush2.msra.mxu0 0.0
        %4709 = vmatprep.subr.mxu0 0.0
        %4710 = vmatpush2.msra.mxu0 0.0
        %4711 = vmatprep.subr.mxu0 0.0
        %4712 = vmatpush2.msra.mxu0 0.0
        %4713 = vmatprep.subr.mxu0 0.0
        %4714 = vmatpush2.msra.mxu0 0.0
        %4715 = vmatprep.subr.mxu0 0.0
        %4716 = vmatpush2.msra.mxu0 0.0
        %4717 = vmatprep.subr.mxu0 0.0
        %4718 = vmatpush2.msra.mxu0 0.0
        %4719 = vmatprep.subr.mxu0 0.0
        %4720 = vmatpush2.msra.mxu0 0.0
        %4721 = vmatprep.subr.mxu0 0.0
        %4722 = vmatpush2.msra.mxu0 0.0
        %4723 = vmatprep.subr.mxu0 0.0
        %4724 = vmatpush2.msra.mxu0 0.0
        %4725 = vmatprep.subr.mxu0 0.0
        %4726 = vmatpush2.msra.mxu0 0.0
        %4727 = vmatprep.subr.mxu0 0.0
        %4728 = vmatpush2.msra.mxu0 %v4650
        %4729 = vmatprep.subr.mxu0 0.0
        %4730 = vmatpush2.msra.mxu0 %v4649
        %4731 = vmatprep.mubr.f32.mxu0 %v4659
        %4732 = vmatmul.mubr.f32.gmra.mxu0 %v4627
        %v4733 = vpop.f32.mrf.mxu0
        %v4734 = vadd.f32 %v4656, %v4733
        %v4735 = vpop.f32.mrf.mxu0
        %4736 = vmatprep.mubr.f32.mxu0 %v4662
        %4737 = vmatmul.mubr.f32.gmra.mxu0 %v4629
        %v4738 = vpop.f32.mrf.mxu0
        %v4739 = vadd.f32 %v4656, %v4738
        %v4740 = vpop.f32.mrf.mxu0
        %4741 = vmatprep.mubr.f32.mxu0 %v4665
        %4742 = vmatmul.mubr.f32.gmra.mxu0 %v4631
        %v4743 = vpop.f32.mrf.mxu0
        %v4744 = vadd.f32 %v4656, %v4743
        %v4745 = vpop.f32.mrf.mxu0
        %4746 = vdwg.mxu0
        %v4747 = vmax.f32 %v4734, 0.0
        %v4748 = vmax.f32 %v4739, 0.0
        %v4749 = vmax.f32 %v4744, 0.0
        %v4753 = vrot.slane %v4747, 1
        %v4754 = vrot.slane %v4748, 1
        %v4755 = vsel %vm847, %v4753, %v4754
        %v4756 = vrot.slane %v4749, 1
        %v4757 = vsel %vm847, %v4754, %v4756
        %v4761 = vmax.f32 %v4747, %v4755
        %v4762 = vmax.f32 %v4748, %v4757
        %v4763 = vmax.f32 %v4749, %v4756
        %v4767 = vrot.slane %v4761, 6
        %v4768 = vrot.slane %v4762, 6
        %v4769 = vsel %vm2248, %v4767, %v4768
        %v4770 = vrot.slane %v4763, 6
        %v4771 = vsel %vm2248, %v4768, %v4770
        %v4774 = vmax.f32 %v4761, %v4769
        %v4775 = vmax.f32 %v4762, %v4771
        %v4776 = vld [vmem:[%s15] sm:$0xff]
        %v4777 = vld [vmem:[%s15 + $0x8] sm:$0xff]
        %vm4778 = vcmask 121856
        %v4780 = vsel %vm4778, %v4776, 0
        %v4783 = vsel %vm4778, %v4777, 0
        %v4786 = vsel %vm847, %v4775, 0
        %4788 = vmatprep.subr.mxu0 0.0
        %4789 = vmatpush1.msra.mxu0 0.0
        %4790 = vmatprep.subr.mxu0 0.0
        %4791 = vmatpush1.msra.mxu0 0.0
        %4792 = vmatprep.subr.mxu0 0.0
        %4793 = vmatpush1.msra.mxu0 0.0
        %4794 = vmatprep.subr.mxu0 0.0
        %4795 = vmatpush1.msra.mxu0 0.0
        %4796 = vmatprep.subr.mxu0 0.0
        %4797 = vmatpush1.msra.mxu0 0.0
        %4798 = vmatprep.subr.mxu0 0.0
        %4799 = vmatpush1.msra.mxu0 0.0
        %4800 = vmatprep.subr.mxu0 0.0
        %4801 = vmatpush1.msra.mxu0 0.0
        %4802 = vmatprep.subr.mxu0 0.0
        %4803 = vmatpush1.msra.mxu0 0.0
        %4804 = vmatprep.subr.mxu0 0.0
        %4805 = vmatpush1.msra.mxu0 0.0
        %4806 = vmatprep.subr.mxu0 0.0
        %4807 = vmatpush1.msra.mxu0 0.0
        %4808 = vmatprep.subr.mxu0 0.0
        %4809 = vmatpush1.msra.mxu0 0.0
        %4810 = vmatprep.subr.mxu0 0.0
        %4811 = vmatpush1.msra.mxu0 0.0
        %4812 = vmatprep.subr.mxu0 0.0
        %4813 = vmatpush1.msra.mxu0 0.0
        %4814 = vmatprep.subr.mxu0 0.0
        %4815 = vmatpush1.msra.mxu0 0.0
        %4816 = vmatprep.subr.mxu0 0.0
        %4817 = vmatpush1.msra.mxu0 %v4786
        %4818 = vmatprep.subr.mxu0 0.0
        %4819 = vmatpush1.msra.mxu0 %v4774
        %4820 = vmatprep.subr.mxu0 0.0
        %4821 = vmatpush2.msra.mxu0 0.0
        %4822 = vmatprep.subr.mxu0 0.0
        %4823 = vmatpush2.msra.mxu0 0.0
        %4824 = vmatprep.subr.mxu0 0.0
        %4825 = vmatpush2.msra.mxu0 0.0
        %4826 = vmatprep.subr.mxu0 0.0
        %4827 = vmatpush2.msra.mxu0 0.0
        %4828 = vmatprep.subr.mxu0 0.0
        %4829 = vmatpush2.msra.mxu0 0.0
        %4830 = vmatprep.subr.mxu0 0.0
        %4831 = vmatpush2.msra.mxu0 0.0
        %4832 = vmatprep.subr.mxu0 0.0
        %4833 = vmatpush2.msra.mxu0 0.0
        %4834 = vmatprep.subr.mxu0 0.0
        %4835 = vmatpush2.msra.mxu0 0.0
        %4836 = vmatprep.subr.mxu0 0.0
        %4837 = vmatpush2.msra.mxu0 0.0
        %4838 = vmatprep.subr.mxu0 0.0
        %4839 = vmatpush2.msra.mxu0 0.0
        %4840 = vmatprep.subr.mxu0 0.0
        %4841 = vmatpush2.msra.mxu0 0.0
        %4842 = vmatprep.subr.mxu0 0.0
        %4843 = vmatpush2.msra.mxu0 0.0
        %4844 = vmatprep.subr.mxu0 0.0
        %4845 = vmatpush2.msra.mxu0 0.0
        %4846 = vmatprep.subr.mxu0 0.0
        %4847 = vmatpush2.msra.mxu0 0.0
        %4848 = vmatprep.subr.mxu0 0.0
        %4849 = vmatpush2.msra.mxu0 0.0
        %4850 = vmatprep.subr.mxu0 0.0
        %4851 = vmatpush2.msra.mxu0 0.0
        %4852 = vmatprep.mubr.f32.mxu0 0.0
        %4853 = vmatmul.mubr.f32.gmra.mxu0 %v4780
        %v4854 = vpop.f32.mrf.mxu0
        %v4855 = vadd.f32 0.0, %v4854
        %v4856 = vpop.f32.mrf.mxu0
        %4857 = vmatprep.mubr.f32.mxu0 0.0
        %4858 = vmatmul.mubr.f32.gmra.mxu0 %v4783
        %v4859 = vpop.f32.mrf.mxu0
        %v4860 = vadd.f32 0.0, %v4859
        %v4861 = vpop.f32.mrf.mxu0
        %4862 = vdwg.mxu0
        %vm4863 = vcmask 259072
        %4864 = vst.msk [vmem:[#allocation2] sm:$0x3f] %vm4863, %v4855
        %v4866 = vrot.slane %v4855, 1
        %4867 = vrot.lane.b32.xlu0 %v4866, 32
        %v4868 = vpop.permute.xlu0 %4867
        %vm4870 = vcmask 521472
        %4871 = vst.msk [vmem:[#allocation2] sm:$0x3f] %vm4870, %v4868
        %v4872 = vrot.slane %v4855, 2
        %4873 = vrot.lane.b32.xlu0 %v4872, 64
        %v4874 = vpop.permute.xlu0 %4873
        %vm4876 = vcmask 783872
        %4877 = vst.msk [vmem:[#allocation2] sm:$0x3f] %vm4876, %v4874
        %v4879 = vrot.slane %v4855, 4
        %v4880 = vrot.slane %v4860, 4
        %v4881 = vsel %vm1656, %v4879, %v4880
        %4882 = vrot.lane.b32.xlu0 %v4881, 96
        %v4883 = vpop.permute.xlu0 %4882
        %vm4885 = vcmask 1046272
        %4886 = vst.msk [vmem:[#allocation2] sm:$0x3f] %vm4885, %v4883
        %v4887 = vrot.slane %v4855, 5
        %v4888 = vrot.slane %v4860, 5
        %v4889 = vsel %vm2028, %v4887, %v4888
        %4891 = vst.msk [vmem:[#allocation2 + $0x8] sm:$0x3f] %vm4863, %v4889
        %v4892 = vrot.slane %v4855, 6
        %v4893 = vrot.slane %v4860, 6
        %v4894 = vsel %vm2248, %v4892, %v4893
        %4895 = vrot.lane.b32.xlu0 %v4894, 32
        %v4896 = vpop.permute.xlu0 %4895
        %4898 = vst.msk [vmem:[#allocation2 + $0x8] sm:$0x3f] %vm4870, %v4896
        %4899 = vrot.lane.b32.xlu0 %v4860, 64
        %v4900 = vpop.permute.xlu0 %4899
        %4902 = vst.msk [vmem:[#allocation2 + $0x8] sm:$0x3f] %vm4876, %v4900
        %v4903 = vrot.slane %v4860, 1
        %4904 = vrot.lane.b32.xlu0 %v4903, 96
        %v4905 = vpop.permute.xlu0 %4904
        %4907 = vst.msk [vmem:[#allocation2 + $0x8] sm:$0x3f] %vm4885, %v4905
        %v4908 = vrot.slane %v4860, 2
        %4910 = vst.msk [vmem:[#allocation2 + $0x10] sm:$0x3f] %vm4863, %v4908
        %v4911 = vld [vmem:[#allocation2] sm:$0x3f]
        %v4912 = vld [vmem:[#allocation2 + $0x8] sm:$0x3f]
        %v4913 = vld [vmem:[#allocation2 + $0x10] sm:$0x3f]
        %v4914 = vld [vmem:[%s4] sm:$0xff]
        %v4915 = vld [vmem:[%s4 + $0x8] sm:$0xff]
        %v4916 = vld [vmem:[%s4 + $0x10] sm:$0xff]
        %v4917 = vld [vmem:[%s4 + $0x18] sm:$0xff]
        %v4918 = vld [vmem:[%s4 + $0x20] sm:$0xff]
        %v4919 = vld [vmem:[%s4 + $0x28] sm:$0xff]
        %v4920 = vld [vmem:[%s4 + $0x30] sm:$0xff]
        %v4921 = vld [vmem:[%s4 + $0x38] sm:$0xff]
        %v4922 = vld [vmem:[%s4 + $0x40] sm:$0xff]
        %v4923 = vld [vmem:[%s4 + $0x48] sm:$0xff]
        %v4924 = vld [vmem:[%s4 + $0x50] sm:$0xff]
        %v4925 = vld [vmem:[%s4 + $0x58] sm:$0xff]
        %v4926 = vld [vmem:[%s4 + $0x60] sm:$0xff]
        %v4927 = vld [vmem:[%s4 + $0x68] sm:$0xff]
        %v4928 = vld [vmem:[%s4 + $0x70] sm:$0xff]
        %v4929 = vld [vmem:[%s4 + $0x78] sm:$0xff]
        %v4930 = vld [vmem:[%s4 + $0x80] sm:$0xff]
        %v4931 = vld [vmem:[%s4 + $0x88] sm:$0xff]
        %v4932 = vld [vmem:[%s4 + $0x90] sm:$0xff]
        %v4933 = vld [vmem:[%s4 + $0x98] sm:$0xff]
        %v4934 = vld [vmem:[%s4 + $0xa0] sm:$0xff]
        %v4935 = vld [vmem:[%s4 + $0xa8] sm:$0xff]
        %v4936 = vld [vmem:[%s4 + $0xb0] sm:$0xff]
        %v4937 = vld [vmem:[%s4 + $0xb8] sm:$0xff]
        %v4938 = vld [vmem:[%s4 + $0xc0] sm:$0xff]
        %v4939 = vld [vmem:[%s4 + $0xc8] sm:$0xff]
        %v4940 = vld [vmem:[%s4 + $0xd0] sm:$0xff]
        %v4941 = vld [vmem:[%s4 + $0xd8] sm:$0xff]
        %v4942 = vld [vmem:[%s4 + $0xe0] sm:$0xff]
        %v4943 = vld [vmem:[%s4 + $0xe8] sm:$0xff]
        %v4944 = vld [vmem:[%s4 + $0xf0] sm:$0xff]
        %v4945 = vld [vmem:[%s4 + $0xf8] sm:$0xff]
        %v4946 = vld [vmem:[%s4 + $0x100] sm:$0xff]
        %v4947 = vld [vmem:[%s4 + $0x108] sm:$0xff]
        %v4948 = vld [vmem:[%s4 + $0x110] sm:$0xff]
        %v4949 = vld [vmem:[%s4 + $0x118] sm:$0xff]
        %v4950 = vld [vmem:[%s10] sm:$0x1]
        %v4952 = vlaneseq
        %v4953 = vshrl.u32 %v4952, 7
        %v4954 = vsub.s32 0, %v4953
        %v4955 = vrot.slane %v4950, %v4954
        %vm4957 = vcmask 261120
        %v4959 = vsel %vm4957, %v4913, 0
        %4961 = vmatprep.subr.mxu0 0.0
        %4962 = vmatpush1.msra.mxu0 %v4929
        %4963 = vmatprep.subr.mxu0 0.0
        %4964 = vmatpush1.msra.mxu0 %v4928
        %4965 = vmatprep.subr.mxu0 0.0
        %4966 = vmatpush1.msra.mxu0 %v4927
        %4967 = vmatprep.subr.mxu0 0.0
        %4968 = vmatpush1.msra.mxu0 %v4926
        %4969 = vmatprep.subr.mxu0 0.0
        %4970 = vmatpush1.msra.mxu0 %v4925
        %4971 = vmatprep.subr.mxu0 0.0
        %4972 = vmatpush1.msra.mxu0 %v4924
        %4973 = vmatprep.subr.mxu0 0.0
        %4974 = vmatpush1.msra.mxu0 %v4923
        %4975 = vmatprep.subr.mxu0 0.0
        %4976 = vmatpush1.msra.mxu0 %v4922
        %4977 = vmatprep.subr.mxu0 0.0
        %4978 = vmatpush1.msra.mxu0 %v4921
        %4979 = vmatprep.subr.mxu0 0.0
        %4980 = vmatpush1.msra.mxu0 %v4920
        %4981 = vmatprep.subr.mxu0 0.0
        %4982 = vmatpush1.msra.mxu0 %v4919
        %4983 = vmatprep.subr.mxu0 0.0
        %4984 = vmatpush1.msra.mxu0 %v4918
        %4985 = vmatprep.subr.mxu0 0.0
        %4986 = vmatpush1.msra.mxu0 %v4917
        %4987 = vmatprep.subr.mxu0 0.0
        %4988 = vmatpush1.msra.mxu0 %v4916
        %4989 = vmatprep.subr.mxu0 0.0
        %4990 = vmatpush1.msra.mxu0 %v4915
        %4991 = vmatprep.subr.mxu0 0.0
        %4992 = vmatpush1.msra.mxu0 %v4914
        %4993 = vmatprep.subr.mxu0 0.0
        %4994 = vmatpush2.msra.mxu0 %v4945
        %4995 = vmatprep.subr.mxu0 0.0
        %4996 = vmatpush2.msra.mxu0 %v4944
        %4997 = vmatprep.subr.mxu0 0.0
        %4998 = vmatpush2.msra.mxu0 %v4943
        %4999 = vmatprep.subr.mxu0 0.0
        %5000 = vmatpush2.msra.mxu0 %v4942
        %5001 = vmatprep.subr.mxu0 0.0
        %5002 = vmatpush2.msra.mxu0 %v4941
        %5003 = vmatprep.subr.mxu0 0.0
        %5004 = vmatpush2.msra.mxu0 %v4940
        %5005 = vmatprep.subr.mxu0 0.0
        %5006 = vmatpush2.msra.mxu0 %v4939
        %5007 = vmatprep.subr.mxu0 0.0
        %5008 = vmatpush2.msra.mxu0 %v4938
        %5009 = vmatprep.subr.mxu0 0.0
        %5010 = vmatpush2.msra.mxu0 %v4937
        %5011 = vmatprep.subr.mxu0 0.0
        %5012 = vmatpush2.msra.mxu0 %v4936
        %5013 = vmatprep.subr.mxu0 0.0
        %5014 = vmatpush2.msra.mxu0 %v4935
        %5015 = vmatprep.subr.mxu0 0.0
        %5016 = vmatpush2.msra.mxu0 %v4934
        %5017 = vmatprep.subr.mxu0 0.0
        %5018 = vmatpush2.msra.mxu0 %v4933
        %5019 = vmatprep.subr.mxu0 0.0
        %5020 = vmatpush2.msra.mxu0 %v4932
        %5021 = vmatprep.subr.mxu0 0.0
        %5022 = vmatpush2.msra.mxu0 %v4931
        %5023 = vmatprep.subr.mxu0 0.0
        %5024 = vmatpush2.msra.mxu0 %v4930
        %5025 = vmatprep.mubr.f32.mxu0 %v4912
        %5026 = vmatmul.mubr.f32.gmra.mxu0 %v4911
        %v5027 = vpop.f32.mrf.mxu0
        %v5028 = vadd.f32 %v4955, %v5027
        %v5029 = vpop.f32.mrf.mxu0
        %5030 = vdwg.mxu0
        %5031 = vmatprep.subr.mxu0 0.0
        %5032 = vmatpush1.msra.mxu0 0.0
        %5033 = vmatprep.subr.mxu0 0.0
        %5034 = vmatpush1.msra.mxu0 0.0
        %5035 = vmatprep.subr.mxu0 0.0
        %5036 = vmatpush1.msra.mxu0 0.0
        %5037 = vmatprep.subr.mxu0 0.0
        %5038 = vmatpush1.msra.mxu0 0.0
        %5039 = vmatprep.subr.mxu0 0.0
        %5040 = vmatpush1.msra.mxu0 0.0
        %5041 = vmatprep.subr.mxu0 0.0
        %5042 = vmatpush1.msra.mxu0 0.0
        %5043 = vmatprep.subr.mxu0 0.0
        %5044 = vmatpush1.msra.mxu0 0.0
        %5045 = vmatprep.subr.mxu0 0.0
        %5046 = vmatpush1.msra.mxu0 0.0
        %5047 = vmatprep.subr.mxu0 0.0
        %5048 = vmatpush1.msra.mxu0 0.0
        %5049 = vmatprep.subr.mxu0 0.0
        %5050 = vmatpush1.msra.mxu0 0.0
        %5051 = vmatprep.subr.mxu0 0.0
        %5052 = vmatpush1.msra.mxu0 0.0
        %5053 = vmatprep.subr.mxu0 0.0
        %5054 = vmatpush1.msra.mxu0 0.0
        %5055 = vmatprep.subr.mxu0 0.0
        %5056 = vmatpush1.msra.mxu0 %v4949
        %5057 = vmatprep.subr.mxu0 0.0
        %5058 = vmatpush1.msra.mxu0 %v4948
        %5059 = vmatprep.subr.mxu0 0.0
        %5060 = vmatpush1.msra.mxu0 %v4947
        %5061 = vmatprep.subr.mxu0 0.0
        %5062 = vmatpush1.msra.mxu0 %v4946
        %5063 = vmatprep.subr.mxu0 0.0
        %5064 = vmatpush2.msra.mxu0 0.0
        %5065 = vmatprep.subr.mxu0 0.0
        %5066 = vmatpush2.msra.mxu0 0.0
        %5067 = vmatprep.subr.mxu0 0.0
        %5068 = vmatpush2.msra.mxu0 0.0
        %5069 = vmatprep.subr.mxu0 0.0
        %5070 = vmatpush2.msra.mxu0 0.0
        %5071 = vmatprep.subr.mxu0 0.0
        %5072 = vmatpush2.msra.mxu0 0.0
        %5073 = vmatprep.subr.mxu0 0.0
        %5074 = vmatpush2.msra.mxu0 0.0
        %5075 = vmatprep.subr.mxu0 0.0
        %5076 = vmatpush2.msra.mxu0 0.0
        %5077 = vmatprep.subr.mxu0 0.0
        %5078 = vmatpush2.msra.mxu0 0.0
        %5079 = vmatprep.subr.mxu0 0.0
        %5080 = vmatpush2.msra.mxu0 0.0
        %5081 = vmatprep.subr.mxu0 0.0
        %5082 = vmatpush2.msra.mxu0 0.0
        %5083 = vmatprep.subr.mxu0 0.0
        %5084 = vmatpush2.msra.mxu0 0.0
        %5085 = vmatprep.subr.mxu0 0.0
        %5086 = vmatpush2.msra.mxu0 0.0
        %5087 = vmatprep.subr.mxu0 0.0
        %5088 = vmatpush2.msra.mxu0 0.0
        %5089 = vmatprep.subr.mxu0 0.0
        %5090 = vmatpush2.msra.mxu0 0.0
        %5091 = vmatprep.subr.mxu0 0.0
        %5092 = vmatpush2.msra.mxu0 0.0
        %5093 = vmatprep.subr.mxu0 0.0
        %5094 = vmatpush2.msra.mxu0 0.0
        %5095 = vmatprep.mubr.f32.mxu0 0.0
        %5096 = vmatmul.mubr.f32.gmra.mxu0 %v4959
        %v5097 = vpop.f32.mrf.mxu0
        %v5098 = vadd.f32 %v5028, %v5097
        %v5099 = vpop.f32.mrf.mxu0
        %5100 = vdwg.mxu0
        %v5101 = vmax.f32 %v5098, 0.0
        %v5102 = vld [vmem:[%s16] sm:$0xff]
        %v5103 = vld [vmem:[%s16 + $0x8] sm:$0xff]
        %v5104 = vld [vmem:[%s16 + $0x10] sm:$0xff]
        %v5105 = vld [vmem:[%s16 + $0x18] sm:$0xff]
        %v5106 = vld [vmem:[%s16 + $0x20] sm:$0xf]
        %vm5107 = vcmask 48128
        %v5109 = vsel %vm5107, %v5102, 0
        %v5112 = vsel %vm5107, %v5103, 0
        %v5115 = vsel %vm5107, %v5104, 0
        %v5118 = vsel %vm5107, %v5105, 0
        %v5121 = vsel %vm5107, %v5106, 0
        %v5124 = vsel %vm1065, %v5101, 0
        %5126 = vmatprep.subr.mxu0 0.0
        %5127 = vmatpush1.msra.mxu0 0.0
        %5128 = vmatprep.subr.mxu0 0.0
        %5129 = vmatpush1.msra.mxu0 0.0
        %5130 = vmatprep.subr.mxu0 0.0
        %5131 = vmatpush1.msra.mxu0 0.0
        %5132 = vmatprep.subr.mxu0 0.0
        %5133 = vmatpush1.msra.mxu0 0.0
        %5134 = vmatprep.subr.mxu0 0.0
        %5135 = vmatpush1.msra.mxu0 0.0
        %5136 = vmatprep.subr.mxu0 0.0
        %5137 = vmatpush1.msra.mxu0 0.0
        %5138 = vmatprep.subr.mxu0 0.0
        %5139 = vmatpush1.msra.mxu0 0.0
        %5140 = vmatprep.subr.mxu0 0.0
        %5141 = vmatpush1.msra.mxu0 0.0
        %5142 = vmatprep.subr.mxu0 0.0
        %5143 = vmatpush1.msra.mxu0 0.0
        %5144 = vmatprep.subr.mxu0 0.0
        %5145 = vmatpush1.msra.mxu0 0.0
        %5146 = vmatprep.subr.mxu0 0.0
        %5147 = vmatpush1.msra.mxu0 0.0
        %5148 = vmatprep.subr.mxu0 0.0
        %5149 = vmatpush1.msra.mxu0 0.0
        %5150 = vmatprep.subr.mxu0 0.0
        %5151 = vmatpush1.msra.mxu0 0.0
        %5152 = vmatprep.subr.mxu0 0.0
        %5153 = vmatpush1.msra.mxu0 0.0
        %5154 = vmatprep.subr.mxu0 0.0
        %5155 = vmatpush1.msra.mxu0 0.0
        %5156 = vmatprep.subr.mxu0 0.0
        %5157 = vmatpush1.msra.mxu0 %v5124
        %5158 = vmatprep.subr.mxu0 0.0
        %5159 = vmatpush2.msra.mxu0 0.0
        %5160 = vmatprep.subr.mxu0 0.0
        %5161 = vmatpush2.msra.mxu0 0.0
        %5162 = vmatprep.subr.mxu0 0.0
        %5163 = vmatpush2.msra.mxu0 0.0
        %5164 = vmatprep.subr.mxu0 0.0
        %5165 = vmatpush2.msra.mxu0 0.0
        %5166 = vmatprep.subr.mxu0 0.0
        %5167 = vmatpush2.msra.mxu0 0.0
        %5168 = vmatprep.subr.mxu0 0.0
        %5169 = vmatpush2.msra.mxu0 0.0
        %5170 = vmatprep.subr.mxu0 0.0
        %5171 = vmatpush2.msra.mxu0 0.0
        %5172 = vmatprep.subr.mxu0 0.0
        %5173 = vmatpush2.msra.mxu0 0.0
        %5174 = vmatprep.subr.mxu0 0.0
        %5175 = vmatpush2.msra.mxu0 0.0
        %5176 = vmatprep.subr.mxu0 0.0
        %5177 = vmatpush2.msra.mxu0 0.0
        %5178 = vmatprep.subr.mxu0 0.0
        %5179 = vmatpush2.msra.mxu0 0.0
        %5180 = vmatprep.subr.mxu0 0.0
        %5181 = vmatpush2.msra.mxu0 0.0
        %5182 = vmatprep.subr.mxu0 0.0
        %5183 = vmatpush2.msra.mxu0 0.0
        %5184 = vmatprep.subr.mxu0 0.0
        %5185 = vmatpush2.msra.mxu0 0.0
        %5186 = vmatprep.subr.mxu0 0.0
        %5187 = vmatpush2.msra.mxu0 0.0
        %5188 = vmatprep.subr.mxu0 0.0
        %5189 = vmatpush2.msra.mxu0 0.0
        %5190 = vmatprep.mubr.f32.mxu0 0.0
        %5191 = vmatmul.mubr.f32.gmra.mxu0 %v5109
        %v5192 = vpop.f32.mrf.mxu0
        %v5193 = vadd.f32 0.0, %v5192
        %v5194 = vpop.f32.mrf.mxu0
        %5195 = vmatprep.mubr.f32.mxu0 0.0
        %5196 = vmatmul.mubr.f32.gmra.mxu0 %v5112
        %v5197 = vpop.f32.mrf.mxu0
        %v5198 = vadd.f32 0.0, %v5197
        %v5199 = vpop.f32.mrf.mxu0
        %5200 = vmatprep.mubr.f32.mxu0 0.0
        %5201 = vmatmul.mubr.f32.gmra.mxu0 %v5115
        %v5202 = vpop.f32.mrf.mxu0
        %v5203 = vadd.f32 0.0, %v5202
        %v5204 = vpop.f32.mrf.mxu0
        %5205 = vmatprep.mubr.f32.mxu0 0.0
        %5206 = vmatmul.mubr.f32.gmra.mxu0 %v5118
        %v5207 = vpop.f32.mrf.mxu0
        %v5208 = vadd.f32 0.0, %v5207
        %v5209 = vpop.f32.mrf.mxu0
        %5210 = vmatprep.mubr.f32.mxu0 0.0
        %5211 = vmatmul.mubr.f32.gmra.mxu0 %v5121
        %v5212 = vpop.f32.mrf.mxu0
        %v5213 = vadd.f32 0.0, %v5212
        %v5214 = vpop.f32.mrf.mxu0
        %5215 = vdwg.mxu0
        %5216 = vst.msk [vmem:[#allocation2] sm:$0xff] %vm4473, %v5193
        %5217 = vst.msk [vmem:[#allocation2 + $0x18] sm:$0xff] %vm4473, %v5198
        %5218 = vst.msk [vmem:[#allocation2 + $0x30] sm:$0x3f] %vm4476, %v5203
        %v5222 = vrot.slane %v5193, 1
        %v5223 = vrot.slane %v5198, 1
        %v5224 = vsel %vm847, %v5222, %v5223
        %v5225 = vrot.slane %v5203, 1
        %v5226 = vsel %vm847, %v5223, %v5225
        %5227 = vrot.lane.b32.xlu0 %v5224, 16
        %v5228 = vpop.permute.xlu0 %5227
        %5229 = vrot.lane.b32.xlu0 %v5226, 16
        %v5230 = vpop.permute.xlu0 %5229
        %5231 = vrot.lane.b32.xlu0 %v5225, 16
        %v5232 = vpop.permute.xlu0 %5231
        %5236 = vst.msk [vmem:[#allocation2] sm:$0xff] %vm4495, %v5228
        %5237 = vst.msk [vmem:[#allocation2 + $0x18] sm:$0xff] %vm4495, %v5230
        %5238 = vst.msk [vmem:[#allocation2 + $0x30] sm:$0x3f] %vm4498, %v5232
        %v5239 = vrot.slane %v5193, 2
        %v5240 = vrot.slane %v5198, 2
        %v5241 = vsel %vm1065, %v5239, %v5240
        %v5242 = vrot.slane %v5203, 2
        %v5243 = vsel %vm1065, %v5240, %v5242
        %5244 = vrot.lane.b32.xlu0 %v5241, 32
        %v5245 = vpop.permute.xlu0 %5244
        %5246 = vrot.lane.b32.xlu0 %v5243, 32
        %v5247 = vpop.permute.xlu0 %5246
        %5248 = vrot.lane.b32.xlu0 %v5242, 32
        %v5249 = vpop.permute.xlu0 %5248
        %5253 = vst.msk [vmem:[#allocation2] sm:$0xff] %vm4514, %v5245
        %5254 = vst.msk [vmem:[#allocation2 + $0x18] sm:$0xff] %vm4514, %v5247
        %5255 = vst.msk [vmem:[#allocation2 + $0x30] sm:$0x3f] %vm4517, %v5249
        %v5257 = vrot.slane %v5193, 6
        %v5258 = vrot.slane %v5198, 6
        %v5259 = vsel %vm2248, %v5257, %v5258
        %v5260 = vrot.slane %v5203, 6
        %v5261 = vsel %vm2248, %v5258, %v5260
        %v5262 = vrot.slane %v5208, 6
        %v5263 = vsel %vm2248, %v5260, %v5262
        %5264 = vrot.lane.b32.xlu0 %v5259, 48
        %v5265 = vpop.permute.xlu0 %5264
        %5266 = vrot.lane.b32.xlu0 %v5261, 48
        %v5267 = vpop.permute.xlu0 %5266
        %5268 = vrot.lane.b32.xlu0 %v5263, 48
        %v5269 = vpop.permute.xlu0 %5268
        %5273 = vst.msk [vmem:[#allocation2] sm:$0xff] %vm4536, %v5265
        %5274 = vst.msk [vmem:[#allocation2 + $0x18] sm:$0xff] %vm4536, %v5267
        %5275 = vst.msk [vmem:[#allocation2 + $0x30] sm:$0x3f] %vm4539, %v5269
        %v5276 = vrot.slane %v5193, 7
        %v5277 = vrot.slane %v5198, 7
        %v5278 = vsel %vm2622, %v5276, %v5277
        %v5279 = vrot.slane %v5203, 7
        %v5280 = vsel %vm2622, %v5277, %v5279
        %v5281 = vrot.slane %v5208, 7
        %v5282 = vsel %vm2622, %v5279, %v5281
        %5283 = vrot.lane.b32.xlu0 %v5278, 64
        %v5284 = vpop.permute.xlu0 %5283
        %5285 = vrot.lane.b32.xlu0 %v5280, 64
        %v5286 = vpop.permute.xlu0 %5285
        %5287 = vrot.lane.b32.xlu0 %v5282, 64
        %v5288 = vpop.permute.xlu0 %5287
        %5292 = vst.msk [vmem:[#allocation2] sm:$0xff] %vm4557, %v5284
        %5293 = vst.msk [vmem:[#allocation2 + $0x18] sm:$0xff] %vm4557, %v5286
        %5294 = vst.msk [vmem:[#allocation2 + $0x30] sm:$0x3f] %vm4560, %v5288
        %5295 = vrot.lane.b32.xlu0 %v5198, 80
        %v5296 = vpop.permute.xlu0 %5295
        %5297 = vrot.lane.b32.xlu0 %v5203, 80
        %v5298 = vpop.permute.xlu0 %5297
        %5299 = vrot.lane.b32.xlu0 %v5208, 80
        %v5300 = vpop.permute.xlu0 %5299
        %5304 = vst.msk [vmem:[#allocation2] sm:$0xff] %vm4571, %v5296
        %5305 = vst.msk [vmem:[#allocation2 + $0x18] sm:$0xff] %vm4571, %v5298
        %5306 = vst.msk [vmem:[#allocation2 + $0x30] sm:$0x3f] %vm4574, %v5300
        %v5308 = vrot.slane %v5198, 4
        %v5309 = vrot.slane %v5203, 4
        %v5310 = vsel %vm1656, %v5308, %v5309
        %v5311 = vrot.slane %v5208, 4
        %v5312 = vsel %vm1656, %v5309, %v5311
        %v5313 = vrot.slane %v5213, 4
        %v5314 = vsel %vm1656, %v5311, %v5313
        %5315 = vrot.lane.b32.xlu0 %v5310, 96
        %v5316 = vpop.permute.xlu0 %5315
        %5317 = vrot.lane.b32.xlu0 %v5312, 96
        %v5318 = vpop.permute.xlu0 %5317
        %5319 = vrot.lane.b32.xlu0 %v5314, 96
        %v5320 = vpop.permute.xlu0 %5319
        %5324 = vst.msk [vmem:[#allocation2] sm:$0xff] %vm4593, %v5316
        %5325 = vst.msk [vmem:[#allocation2 + $0x18] sm:$0xff] %vm4593, %v5318
        %5326 = vst.msk [vmem:[#allocation2 + $0x30] sm:$0x3f] %vm4596, %v5320
        %v5327 = vrot.slane %v5198, 5
        %v5328 = vrot.slane %v5203, 5
        %v5329 = vsel %vm2028, %v5327, %v5328
        %v5330 = vrot.slane %v5208, 5
        %v5331 = vsel %vm2028, %v5328, %v5330
        %v5332 = vrot.slane %v5213, 5
        %v5333 = vsel %vm2028, %v5330, %v5332
        %5334 = vrot.lane.b32.xlu0 %v5329, 112
        %v5335 = vpop.permute.xlu0 %5334
        %5336 = vrot.lane.b32.xlu0 %v5331, 112
        %v5337 = vpop.permute.xlu0 %5336
        %5338 = vrot.lane.b32.xlu0 %v5333, 112
        %v5339 = vpop.permute.xlu0 %5338
        %5343 = vst.msk [vmem:[#allocation2] sm:$0xff] %vm4614, %v5335
        %5344 = vst.msk [vmem:[#allocation2 + $0x18] sm:$0xff] %vm4614, %v5337
        %5345 = vst.msk [vmem:[#allocation2 + $0x30] sm:$0x3f] %vm4617, %v5339
        %v5346 = vrot.slane %v5213, 6
        %v5347 = vsel %vm2248, %v5262, %v5346
        %5351 = vst.msk [vmem:[#allocation2 + $0x8] sm:$0xff] %vm4473, %v5261
        %5352 = vst.msk [vmem:[#allocation2 + $0x20] sm:$0xff] %vm4473, %v5263
        %5353 = vst.msk [vmem:[#allocation2 + $0x38] sm:$0x3f] %vm4476, %v5347
        %v5354 = vld [vmem:[#allocation2] sm:$0xff]
        %v5355 = vld [vmem:[#allocation2 + $0x8] sm:$0xff]
        %v5356 = vld [vmem:[#allocation2 + $0x18] sm:$0xff]
        %v5357 = vld [vmem:[#allocation2 + $0x20] sm:$0xff]
        %v5358 = vld [vmem:[#allocation2 + $0x30] sm:$0x3f]
        %v5359 = vld [vmem:[#allocation2 + $0x38] sm:$0x3f]
        %v5360 = vld [vmem:[%s5] sm:$0xff]
        %v5361 = vld [vmem:[%s5 + $0x8] sm:$0xff]
        %v5362 = vld [vmem:[%s5 + $0x10] sm:$0xff]
        %v5363 = vld [vmem:[%s5 + $0x18] sm:$0xff]
        %v5364 = vld [vmem:[%s5 + $0x20] sm:$0xff]
        %v5365 = vld [vmem:[%s5 + $0x28] sm:$0xff]
        %v5366 = vld [vmem:[%s5 + $0x30] sm:$0xff]
        %v5367 = vld [vmem:[%s5 + $0x38] sm:$0xff]
        %v5368 = vld [vmem:[%s5 + $0x40] sm:$0xff]
        %v5369 = vld [vmem:[%s5 + $0x48] sm:$0xff]
        %v5370 = vld [vmem:[%s5 + $0x50] sm:$0xff]
        %v5371 = vld [vmem:[%s5 + $0x58] sm:$0xff]
        %v5372 = vld [vmem:[%s5 + $0x60] sm:$0xff]
        %v5373 = vld [vmem:[%s5 + $0x68] sm:$0xff]
        %v5374 = vld [vmem:[%s5 + $0x70] sm:$0xff]
        %v5375 = vld [vmem:[%s5 + $0x78] sm:$0xff]
        %v5376 = vld [vmem:[%s5 + $0x80] sm:$0xff]
        %v5377 = vld [vmem:[%s5 + $0x88] sm:$0xff]
        %v5378 = vld [vmem:[%s11] sm:$0x1]
        %v5380 = vlaneseq
        %v5381 = vshrl.u32 %v5380, 7
        %v5382 = vsub.s32 0, %v5381
        %v5383 = vrot.slane %v5378, %v5382
        %v5386 = vsel %vm4473, %v5355, 0
        %v5389 = vsel %vm4473, %v5357, 0
        %v5392 = vsel %vm4473, %v5359, 0
        %5394 = vmatprep.subr.mxu0 0.0
        %5395 = vmatpush1.msra.mxu0 %v5375
        %5396 = vmatprep.subr.mxu0 0.0
        %5397 = vmatpush1.msra.mxu0 %v5374
        %5398 = vmatprep.subr.mxu0 0.0
        %5399 = vmatpush1.msra.mxu0 %v5373
        %5400 = vmatprep.subr.mxu0 0.0
        %5401 = vmatpush1.msra.mxu0 %v5372
        %5402 = vmatprep.subr.mxu0 0.0
        %5403 = vmatpush1.msra.mxu0 %v5371
        %5404 = vmatprep.subr.mxu0 0.0
        %5405 = vmatpush1.msra.mxu0 %v5370
        %5406 = vmatprep.subr.mxu0 0.0
        %5407 = vmatpush1.msra.mxu0 %v5369
        %5408 = vmatprep.subr.mxu0 0.0
        %5409 = vmatpush1.msra.mxu0 %v5368
        %5410 = vmatprep.subr.mxu0 0.0
        %5411 = vmatpush1.msra.mxu0 %v5367
        %5412 = vmatprep.subr.mxu0 0.0
        %5413 = vmatpush1.msra.mxu0 %v5366
        %5414 = vmatprep.subr.mxu0 0.0
        %5415 = vmatpush1.msra.mxu0 %v5365
        %5416 = vmatprep.subr.mxu0 0.0
        %5417 = vmatpush1.msra.mxu0 %v5364
        %5418 = vmatprep.subr.mxu0 0.0
        %5419 = vmatpush1.msra.mxu0 %v5363
        %5420 = vmatprep.subr.mxu0 0.0
        %5421 = vmatpush1.msra.mxu0 %v5362
        %5422 = vmatprep.subr.mxu0 0.0
        %5423 = vmatpush1.msra.mxu0 %v5361
        %5424 = vmatprep.subr.mxu0 0.0
        %5425 = vmatpush1.msra.mxu0 %v5360
        %5426 = vmatprep.subr.mxu0 0.0
        %5427 = vmatpush2.msra.mxu0 0.0
        %5428 = vmatprep.subr.mxu0 0.0
        %5429 = vmatpush2.msra.mxu0 0.0
        %5430 = vmatprep.subr.mxu0 0.0
        %5431 = vmatpush2.msra.mxu0 0.0
        %5432 = vmatprep.subr.mxu0 0.0
        %5433 = vmatpush2.msra.mxu0 0.0
        %5434 = vmatprep.subr.mxu0 0.0
        %5435 = vmatpush2.msra.mxu0 0.0
        %5436 = vmatprep.subr.mxu0 0.0
        %5437 = vmatpush2.msra.mxu0 0.0
        %5438 = vmatprep.subr.mxu0 0.0
        %5439 = vmatpush2.msra.mxu0 0.0
        %5440 = vmatprep.subr.mxu0 0.0
        %5441 = vmatpush2.msra.mxu0 0.0
        %5442 = vmatprep.subr.mxu0 0.0
        %5443 = vmatpush2.msra.mxu0 0.0
        %5444 = vmatprep.subr.mxu0 0.0
        %5445 = vmatpush2.msra.mxu0 0.0
        %5446 = vmatprep.subr.mxu0 0.0
        %5447 = vmatpush2.msra.mxu0 0.0
        %5448 = vmatprep.subr.mxu0 0.0
        %5449 = vmatpush2.msra.mxu0 0.0
        %5450 = vmatprep.subr.mxu0 0.0
        %5451 = vmatpush2.msra.mxu0 0.0
        %5452 = vmatprep.subr.mxu0 0.0
        %5453 = vmatpush2.msra.mxu0 0.0
        %5454 = vmatprep.subr.mxu0 0.0
        %5455 = vmatpush2.msra.mxu0 %v5377
        %5456 = vmatprep.subr.mxu0 0.0
        %5457 = vmatpush2.msra.mxu0 %v5376
        %5458 = vmatprep.mubr.f32.mxu0 %v5386
        %5459 = vmatmul.mubr.f32.gmra.mxu0 %v5354
        %v5460 = vpop.f32.mrf.mxu0
        %v5461 = vadd.f32 %v5383, %v5460
        %v5462 = vpop.f32.mrf.mxu0
        %5463 = vmatprep.mubr.f32.mxu0 %v5389
        %5464 = vmatmul.mubr.f32.gmra.mxu0 %v5356
        %v5465 = vpop.f32.mrf.mxu0
        %v5466 = vadd.f32 %v5383, %v5465
        %v5467 = vpop.f32.mrf.mxu0
        %5468 = vmatprep.mubr.f32.mxu0 %v5392
        %5469 = vmatmul.mubr.f32.gmra.mxu0 %v5358
        %v5470 = vpop.f32.mrf.mxu0
        %v5471 = vadd.f32 %v5383, %v5470
        %v5472 = vpop.f32.mrf.mxu0
        %5473 = vdwg.mxu0
        %v5474 = vmax.f32 %v5461, 0.0
        %v5475 = vmax.f32 %v5466, 0.0
        %v5476 = vmax.f32 %v5471, 0.0
        %v5477 = vld [vmem:[#allocation15] sm:$0xff]
        %v5478 = vld [vmem:[#allocation15 + $0x8] sm:$0xff]
        %v5479 = vld [vmem:[#allocation15 + $0x10] sm:$0xff]
        %v5480 = vld [vmem:[#allocation15 + $0x18] sm:$0xff]
        %v5481 = vld [vmem:[#allocation15 + $0x20] sm:$0xff]
        %v5482 = vld [vmem:[#allocation15 + $0x28] sm:$0xff]
        %v5483 = vld [vmem:[#allocation15 + $0x30] sm:$0xff]
        %v5484 = vld [vmem:[#allocation15 + $0x38] sm:$0xff]
        %v5485 = vld [vmem:[#allocation15 + $0x40] sm:$0xff]
        %v5486 = vld [vmem:[#allocation15 + $0x48] sm:$0xff]
        %v5487 = vld [vmem:[#allocation15 + $0x50] sm:$0xff]
        %v5488 = vld [vmem:[#allocation15 + $0x58] sm:$0xff]
        %v5489 = vld [vmem:[#allocation15 + $0x60] sm:$0xf]
        %vm5490 = vcmask 179200
        %v5492 = vsel %vm5490, %v5477, 0
        %v5495 = vsel %vm5490, %v5478, 0
        %v5498 = vsel %vm5490, %v5479, 0
        %v5501 = vsel %vm5490, %v5480, 0
        %v5504 = vsel %vm5490, %v5481, 0
        %v5507 = vsel %vm5490, %v5482, 0
        %v5510 = vsel %vm5490, %v5483, 0
        %v5513 = vsel %vm5490, %v5484, 0
        %v5516 = vsel %vm5490, %v5485, 0
        %v5519 = vsel %vm5490, %v5486, 0
        %v5522 = vsel %vm5490, %v5487, 0
        %v5525 = vsel %vm5490, %v5488, 0
        %v5528 = vsel %vm5490, %v5489, 0
        %v5531 = vsel %vm1065, %v5476, 0
        %5533 = vmatprep.subr.mxu0 0.0
        %5534 = vmatpush1.msra.mxu0 0.0
        %5535 = vmatprep.subr.mxu0 0.0
        %5536 = vmatpush1.msra.mxu0 0.0
        %5537 = vmatprep.subr.mxu0 0.0
        %5538 = vmatpush1.msra.mxu0 0.0
        %5539 = vmatprep.subr.mxu0 0.0
        %5540 = vmatpush1.msra.mxu0 0.0
        %5541 = vmatprep.subr.mxu0 0.0
        %5542 = vmatpush1.msra.mxu0 0.0
        %5543 = vmatprep.subr.mxu0 0.0
        %5544 = vmatpush1.msra.mxu0 0.0
        %5545 = vmatprep.subr.mxu0 0.0
        %5546 = vmatpush1.msra.mxu0 0.0
        %5547 = vmatprep.subr.mxu0 0.0
        %5548 = vmatpush1.msra.mxu0 0.0
        %5549 = vmatprep.subr.mxu0 0.0
        %5550 = vmatpush1.msra.mxu0 0.0
        %5551 = vmatprep.subr.mxu0 0.0
        %5552 = vmatpush1.msra.mxu0 0.0
        %5553 = vmatprep.subr.mxu0 0.0
        %5554 = vmatpush1.msra.mxu0 0.0
        %5555 = vmatprep.subr.mxu0 0.0
        %5556 = vmatpush1.msra.mxu0 0.0
        %5557 = vmatprep.subr.mxu0 0.0
        %5558 = vmatpush1.msra.mxu0 0.0
        %5559 = vmatprep.subr.mxu0 0.0
        %5560 = vmatpush1.msra.mxu0 %v5531
        %5561 = vmatprep.subr.mxu0 0.0
        %5562 = vmatpush1.msra.mxu0 %v5475
        %5563 = vmatprep.subr.mxu0 0.0
        %5564 = vmatpush1.msra.mxu0 %v5474
        %5565 = vmatprep.subr.mxu0 0.0
        %5566 = vmatpush2.msra.mxu0 0.0
        %5567 = vmatprep.subr.mxu0 0.0
        %5568 = vmatpush2.msra.mxu0 0.0
        %5569 = vmatprep.subr.mxu0 0.0
        %5570 = vmatpush2.msra.mxu0 0.0
        %5571 = vmatprep.subr.mxu0 0.0
        %5572 = vmatpush2.msra.mxu0 0.0
        %5573 = vmatprep.subr.mxu0 0.0
        %5574 = vmatpush2.msra.mxu0 0.0
        %5575 = vmatprep.subr.mxu0 0.0
        %5576 = vmatpush2.msra.mxu0 0.0
        %5577 = vmatprep.subr.mxu0 0.0
        %5578 = vmatpush2.msra.mxu0 0.0
        %5579 = vmatprep.subr.mxu0 0.0
        %5580 = vmatpush2.msra.mxu0 0.0
        %5581 = vmatprep.subr.mxu0 0.0
        %5582 = vmatpush2.msra.mxu0 0.0
        %5583 = vmatprep.subr.mxu0 0.0
        %5584 = vmatpush2.msra.mxu0 0.0
        %5585 = vmatprep.subr.mxu0 0.0
        %5586 = vmatpush2.msra.mxu0 0.0
        %5587 = vmatprep.subr.mxu0 0.0
        %5588 = vmatpush2.msra.mxu0 0.0
        %5589 = vmatprep.subr.mxu0 0.0
        %5590 = vmatpush2.msra.mxu0 0.0
        %5591 = vmatprep.subr.mxu0 0.0
        %5592 = vmatpush2.msra.mxu0 0.0
        %5593 = vmatprep.subr.mxu0 0.0
        %5594 = vmatpush2.msra.mxu0 0.0
        %5595 = vmatprep.subr.mxu0 0.0
        %5596 = vmatpush2.msra.mxu0 0.0
        %5597 = vmatprep.mubr.f32.mxu0 0.0
        %5598 = vmatmul.mubr.f32.gmra.mxu0 %v5492
        %v5599 = vpop.f32.mrf.mxu0
        %v5600 = vadd.f32 0.0, %v5599
        %v5601 = vpop.f32.mrf.mxu0
        %5602 = vmatprep.mubr.f32.mxu0 0.0
        %5603 = vmatmul.mubr.f32.gmra.mxu0 %v5495
        %v5604 = vpop.f32.mrf.mxu0
        %v5605 = vadd.f32 0.0, %v5604
        %v5606 = vpop.f32.mrf.mxu0
        %5607 = vmatprep.mubr.f32.mxu0 0.0
        %5608 = vmatmul.mubr.f32.gmra.mxu0 %v5498
        %v5609 = vpop.f32.mrf.mxu0
        %v5610 = vadd.f32 0.0, %v5609
        %v5611 = vpop.f32.mrf.mxu0
        %5612 = vmatprep.mubr.f32.mxu0 0.0
        %5613 = vmatmul.mubr.f32.gmra.mxu0 %v5501
        %v5614 = vpop.f32.mrf.mxu0
        %v5615 = vadd.f32 0.0, %v5614
        %v5616 = vpop.f32.mrf.mxu0
        %5617 = vmatprep.mubr.f32.mxu0 0.0
        %5618 = vmatmul.mubr.f32.gmra.mxu0 %v5504
        %v5619 = vpop.f32.mrf.mxu0
        %v5620 = vadd.f32 0.0, %v5619
        %v5621 = vpop.f32.mrf.mxu0
        %5622 = vmatprep.mubr.f32.mxu0 0.0
        %5623 = vmatmul.mubr.f32.gmra.mxu0 %v5507
        %v5624 = vpop.f32.mrf.mxu0
        %v5625 = vadd.f32 0.0, %v5624
        %v5626 = vpop.f32.mrf.mxu0
        %5627 = vmatprep.mubr.f32.mxu0 0.0
        %5628 = vmatmul.mubr.f32.gmra.mxu0 %v5510
        %v5629 = vpop.f32.mrf.mxu0
        %v5630 = vadd.f32 0.0, %v5629
        %v5631 = vpop.f32.mrf.mxu0
        %5632 = vmatprep.mubr.f32.mxu0 0.0
        %5633 = vmatmul.mubr.f32.gmra.mxu0 %v5513
        %v5634 = vpop.f32.mrf.mxu0
        %v5635 = vadd.f32 0.0, %v5634
        %v5636 = vpop.f32.mrf.mxu0
        %5637 = vmatprep.mubr.f32.mxu0 0.0
        %5638 = vmatmul.mubr.f32.gmra.mxu0 %v5516
        %v5639 = vpop.f32.mrf.mxu0
        %v5640 = vadd.f32 0.0, %v5639
        %v5641 = vpop.f32.mrf.mxu0
        %5642 = vmatprep.mubr.f32.mxu0 0.0
        %5643 = vmatmul.mubr.f32.gmra.mxu0 %v5519
        %v5644 = vpop.f32.mrf.mxu0
        %v5645 = vadd.f32 0.0, %v5644
        %v5646 = vpop.f32.mrf.mxu0
        %5647 = vmatprep.mubr.f32.mxu0 0.0
        %5648 = vmatmul.mubr.f32.gmra.mxu0 %v5522
        %v5649 = vpop.f32.mrf.mxu0
        %v5650 = vadd.f32 0.0, %v5649
        %v5651 = vpop.f32.mrf.mxu0
        %5652 = vmatprep.mubr.f32.mxu0 0.0
        %5653 = vmatmul.mubr.f32.gmra.mxu0 %v5525
        %v5654 = vpop.f32.mrf.mxu0
        %v5655 = vadd.f32 0.0, %v5654
        %v5656 = vpop.f32.mrf.mxu0
        %5657 = vmatprep.mubr.f32.mxu0 0.0
        %5658 = vmatmul.mubr.f32.gmra.mxu0 %v5528
        %v5659 = vpop.f32.mrf.mxu0
        %v5660 = vadd.f32 0.0, %v5659
        %v5661 = vpop.f32.mrf.mxu0
        %5662 = vdwg.mxu0
        %5663 = vst.msk [vmem:[#allocation2] sm:$0xff] %vm3597, %v5600
        %5664 = vst.msk [vmem:[#allocation2 + $0x18] sm:$0xff] %vm3597, %v5605
        %5665 = vst.msk [vmem:[#allocation2 + $0x30] sm:$0xff] %vm3597, %v5610
        %5666 = vst.msk [vmem:[#allocation2 + $0x48] sm:$0xff] %vm3597, %v5615
        %5667 = vst.msk [vmem:[#allocation2 + $0x60] sm:$0xff] %vm3597, %v5620
        %5668 = vst.msk [vmem:[#allocation2 + $0x78] sm:$0xff] %vm3597, %v5625
        %5669 = vst.msk [vmem:[#allocation2 + $0x90] sm:$0xff] %vm3597, %v5630
        %5670 = vst.msk [vmem:[#allocation2 + $0xa8] sm:$0xff] %vm3597, %v5635
        %5671 = vst.msk [vmem:[#allocation2 + $0xc0] sm:$0xff] %vm3597, %v5640
        %5672 = vst.msk [vmem:[#allocation2 + $0xd8] sm:$0x3f] %vm3607, %v5645
        %v5683 = vrot.slane %v5600, 1
        %v5684 = vrot.slane %v5605, 1
        %v5685 = vsel %vm847, %v5683, %v5684
        %v5686 = vrot.slane %v5610, 1
        %v5687 = vsel %vm847, %v5684, %v5686
        %v5688 = vrot.slane %v5615, 1
        %v5689 = vsel %vm847, %v5686, %v5688
        %v5690 = vrot.slane %v5620, 1
        %v5691 = vsel %vm847, %v5688, %v5690
        %v5692 = vrot.slane %v5625, 1
        %v5693 = vsel %vm847, %v5690, %v5692
        %v5694 = vrot.slane %v5630, 1
        %v5695 = vsel %vm847, %v5692, %v5694
        %v5696 = vrot.slane %v5635, 1
        %v5697 = vsel %vm847, %v5694, %v5696
        %v5698 = vrot.slane %v5640, 1
        %v5699 = vsel %vm847, %v5696, %v5698
        %v5700 = vrot.slane %v5645, 1
        %v5701 = vsel %vm847, %v5698, %v5700
        %5702 = vrot.lane.b32.xlu0 %v5685, 8
        %v5703 = vpop.permute.xlu0 %5702
        %5704 = vrot.lane.b32.xlu0 %v5687, 8
        %v5705 = vpop.permute.xlu0 %5704
        %5706 = vrot.lane.b32.xlu0 %v5689, 8
        %v5707 = vpop.permute.xlu0 %5706
        %5708 = vrot.lane.b32.xlu0 %v5691, 8
        %v5709 = vpop.permute.xlu0 %5708
        %5710 = vrot.lane.b32.xlu0 %v5693, 8
        %v5711 = vpop.permute.xlu0 %5710
        %5712 = vrot.lane.b32.xlu0 %v5695, 8
        %v5713 = vpop.permute.xlu0 %5712
        %5714 = vrot.lane.b32.xlu0 %v5697, 8
        %v5715 = vpop.permute.xlu0 %5714
        %5716 = vrot.lane.b32.xlu0 %v5699, 8
        %v5717 = vpop.permute.xlu0 %5716
        %5718 = vrot.lane.b32.xlu0 %v5701, 8
        %v5719 = vpop.permute.xlu0 %5718
        %5720 = vrot.lane.b32.xlu0 %v5700, 8
        %v5721 = vpop.permute.xlu0 %5720
        %5732 = vst.msk [vmem:[#allocation2] sm:$0xff] %vm3668, %v5703
        %5733 = vst.msk [vmem:[#allocation2 + $0x18] sm:$0xff] %vm3668, %v5705
        %5734 = vst.msk [vmem:[#allocation2 + $0x30] sm:$0xff] %vm3668, %v5707
        %5735 = vst.msk [vmem:[#allocation2 + $0x48] sm:$0xff] %vm3668, %v5709
        %5736 = vst.msk [vmem:[#allocation2 + $0x60] sm:$0xff] %vm3668, %v5711
        %5737 = vst.msk [vmem:[#allocation2 + $0x78] sm:$0xff] %vm3668, %v5713
        %5738 = vst.msk [vmem:[#allocation2 + $0x90] sm:$0xff] %vm3668, %v5715
        %5739 = vst.msk [vmem:[#allocation2 + $0xa8] sm:$0xff] %vm3668, %v5717
        %5740 = vst.msk [vmem:[#allocation2 + $0xc0] sm:$0xff] %vm3668, %v5719
        %5741 = vst.msk [vmem:[#allocation2 + $0xd8] sm:$0x3f] %vm3678, %v5721
        %v5742 = vrot.slane %v5600, 2
        %v5743 = vrot.slane %v5605, 2
        %v5744 = vsel %vm1065, %v5742, %v5743
        %v5745 = vrot.slane %v5610, 2
        %v5746 = vsel %vm1065, %v5743, %v5745
        %v5747 = vrot.slane %v5615, 2
        %v5748 = vsel %vm1065, %v5745, %v5747
        %v5749 = vrot.slane %v5620, 2
        %v5750 = vsel %vm1065, %v5747, %v5749
        %v5751 = vrot.slane %v5625, 2
        %v5752 = vsel %vm1065, %v5749, %v5751
        %v5753 = vrot.slane %v5630, 2
        %v5754 = vsel %vm1065, %v5751, %v5753
        %v5755 = vrot.slane %v5635, 2
        %v5756 = vsel %vm1065, %v5753, %v5755
        %v5757 = vrot.slane %v5640, 2
        %v5758 = vsel %vm1065, %v5755, %v5757
        %v5759 = vrot.slane %v5645, 2
        %v5760 = vsel %vm1065, %v5757, %v5759
        %5761 = vrot.lane.b32.xlu0 %v5744, 16
        %v5762 = vpop.permute.xlu0 %5761
        %5763 = vrot.lane.b32.xlu0 %v5746, 16
        %v5764 = vpop.permute.xlu0 %5763
        %5765 = vrot.lane.b32.xlu0 %v5748, 16
        %v5766 = vpop.permute.xlu0 %5765
        %5767 = vrot.lane.b32.xlu0 %v5750, 16
        %v5768 = vpop.permute.xlu0 %5767
        %5769 = vrot.lane.b32.xlu0 %v5752, 16
        %v5770 = vpop.permute.xlu0 %5769
        %5771 = vrot.lane.b32.xlu0 %v5754, 16
        %v5772 = vpop.permute.xlu0 %5771
        %5773 = vrot.lane.b32.xlu0 %v5756, 16
        %v5774 = vpop.permute.xlu0 %5773
        %5775 = vrot.lane.b32.xlu0 %v5758, 16
        %v5776 = vpop.permute.xlu0 %5775
        %5777 = vrot.lane.b32.xlu0 %v5760, 16
        %v5778 = vpop.permute.xlu0 %5777
        %5779 = vrot.lane.b32.xlu0 %v5759, 16
        %v5780 = vpop.permute.xlu0 %5779
        %5791 = vst.msk [vmem:[#allocation2] sm:$0xff] %vm3729, %v5762
        %5792 = vst.msk [vmem:[#allocation2 + $0x18] sm:$0xff] %vm3729, %v5764
        %5793 = vst.msk [vmem:[#allocation2 + $0x30] sm:$0xff] %vm3729, %v5766
        %5794 = vst.msk [vmem:[#allocation2 + $0x48] sm:$0xff] %vm3729, %v5768
        %5795 = vst.msk [vmem:[#allocation2 + $0x60] sm:$0xff] %vm3729, %v5770
        %5796 = vst.msk [vmem:[#allocation2 + $0x78] sm:$0xff] %vm3729, %v5772
        %5797 = vst.msk [vmem:[#allocation2 + $0x90] sm:$0xff] %vm3729, %v5774
        %5798 = vst.msk [vmem:[#allocation2 + $0xa8] sm:$0xff] %vm3729, %v5776
        %5799 = vst.msk [vmem:[#allocation2 + $0xc0] sm:$0xff] %vm3729, %v5778
        %5800 = vst.msk [vmem:[#allocation2 + $0xd8] sm:$0x3f] %vm3739, %v5780
        %v5802 = vrot.slane %v5650, 2
        %v5803 = vsel %vm1065, %v5759, %v5802
        %5804 = vrot.lane.b32.xlu0 %v5746, 24
        %v5805 = vpop.permute.xlu0 %5804
        %5806 = vrot.lane.b32.xlu0 %v5748, 24
        %v5807 = vpop.permute.xlu0 %5806
        %5808 = vrot.lane.b32.xlu0 %v5750, 24
        %v5809 = vpop.permute.xlu0 %5808
        %5810 = vrot.lane.b32.xlu0 %v5752, 24
        %v5811 = vpop.permute.xlu0 %5810
        %5812 = vrot.lane.b32.xlu0 %v5754, 24
        %v5813 = vpop.permute.xlu0 %5812
        %5814 = vrot.lane.b32.xlu0 %v5756, 24
        %v5815 = vpop.permute.xlu0 %5814
        %5816 = vrot.lane.b32.xlu0 %v5758, 24
        %v5817 = vpop.permute.xlu0 %5816
        %5818 = vrot.lane.b32.xlu0 %v5760, 24
        %v5819 = vpop.permute.xlu0 %5818
        %5820 = vrot.lane.b32.xlu0 %v5803, 24
        %v5821 = vpop.permute.xlu0 %5820
        %5822 = vrot.lane.b32.xlu0 %v5802, 24
        %v5823 = vpop.permute.xlu0 %5822
        %5834 = vst.msk [vmem:[#allocation2] sm:$0xff] %vm3774, %v5805
        %5835 = vst.msk [vmem:[#allocation2 + $0x18] sm:$0xff] %vm3774, %v5807
        %5836 = vst.msk [vmem:[#allocation2 + $0x30] sm:$0xff] %vm3774, %v5809
        %5837 = vst.msk [vmem:[#allocation2 + $0x48] sm:$0xff] %vm3774, %v5811
        %5838 = vst.msk [vmem:[#allocation2 + $0x60] sm:$0xff] %vm3774, %v5813
        %5839 = vst.msk [vmem:[#allocation2 + $0x78] sm:$0xff] %vm3774, %v5815
        %5840 = vst.msk [vmem:[#allocation2 + $0x90] sm:$0xff] %vm3774, %v5817
        %5841 = vst.msk [vmem:[#allocation2 + $0xa8] sm:$0xff] %vm3774, %v5819
        %5842 = vst.msk [vmem:[#allocation2 + $0xc0] sm:$0xff] %vm3774, %v5821
        %5843 = vst.msk [vmem:[#allocation2 + $0xd8] sm:$0x3f] %vm3784, %v5823
        %v5845 = vrot.slane %v5605, 3
        %v5846 = vrot.slane %v5610, 3
        %v5847 = vsel %vm1436, %v5845, %v5846
        %v5848 = vrot.slane %v5615, 3
        %v5849 = vsel %vm1436, %v5846, %v5848
        %v5850 = vrot.slane %v5620, 3
        %v5851 = vsel %vm1436, %v5848, %v5850
        %v5852 = vrot.slane %v5625, 3
        %v5853 = vsel %vm1436, %v5850, %v5852
        %v5854 = vrot.slane %v5630, 3
        %v5855 = vsel %vm1436, %v5852, %v5854
        %v5856 = vrot.slane %v5635, 3
        %v5857 = vsel %vm1436, %v5854, %v5856
        %v5858 = vrot.slane %v5640, 3
        %v5859 = vsel %vm1436, %v5856, %v5858
        %v5860 = vrot.slane %v5645, 3
        %v5861 = vsel %vm1436, %v5858, %v5860
        %v5862 = vrot.slane %v5650, 3
        %v5863 = vsel %vm1436, %v5860, %v5862
        %v5864 = vrot.slane %v5655, 3
        %v5865 = vsel %vm1436, %v5862, %v5864
        %5866 = vrot.lane.b32.xlu0 %v5847, 32
        %v5867 = vpop.permute.xlu0 %5866
        %5868 = vrot.lane.b32.xlu0 %v5849, 32
        %v5869 = vpop.permute.xlu0 %5868
        %5870 = vrot.lane.b32.xlu0 %v5851, 32
        %v5871 = vpop.permute.xlu0 %5870
        %5872 = vrot.lane.b32.xlu0 %v5853, 32
        %v5873 = vpop.permute.xlu0 %5872
        %5874 = vrot.lane.b32.xlu0 %v5855, 32
        %v5875 = vpop.permute.xlu0 %5874
        %5876 = vrot.lane.b32.xlu0 %v5857, 32
        %v5877 = vpop.permute.xlu0 %5876
        %5878 = vrot.lane.b32.xlu0 %v5859, 32
        %v5879 = vpop.permute.xlu0 %5878
        %5880 = vrot.lane.b32.xlu0 %v5861, 32
        %v5881 = vpop.permute.xlu0 %5880
        %5882 = vrot.lane.b32.xlu0 %v5863, 32
        %v5883 = vpop.permute.xlu0 %5882
        %5884 = vrot.lane.b32.xlu0 %v5865, 32
        %v5885 = vpop.permute.xlu0 %5884
        %5896 = vst.msk [vmem:[#allocation2] sm:$0xff] %vm3838, %v5867
        %5897 = vst.msk [vmem:[#allocation2 + $0x18] sm:$0xff] %vm3838, %v5869
        %5898 = vst.msk [vmem:[#allocation2 + $0x30] sm:$0xff] %vm3838, %v5871
        %5899 = vst.msk [vmem:[#allocation2 + $0x48] sm:$0xff] %vm3838, %v5873
        %5900 = vst.msk [vmem:[#allocation2 + $0x60] sm:$0xff] %vm3838, %v5875
        %5901 = vst.msk [vmem:[#allocation2 + $0x78] sm:$0xff] %vm3838, %v5877
        %5902 = vst.msk [vmem:[#allocation2 + $0x90] sm:$0xff] %vm3838, %v5879
        %5903 = vst.msk [vmem:[#allocation2 + $0xa8] sm:$0xff] %vm3838, %v5881
        %5904 = vst.msk [vmem:[#allocation2 + $0xc0] sm:$0xff] %vm3838, %v5883
        %5905 = vst.msk [vmem:[#allocation2 + $0xd8] sm:$0x3f] %vm3848, %v5885
        %v5906 = vrot.slane %v5605, 4
        %v5907 = vrot.slane %v5610, 4
        %v5908 = vsel %vm1656, %v5906, %v5907
        %v5909 = vrot.slane %v5615, 4
        %v5910 = vsel %vm1656, %v5907, %v5909
        %v5911 = vrot.slane %v5620, 4
        %v5912 = vsel %vm1656, %v5909, %v5911
        %v5913 = vrot.slane %v5625, 4
        %v5914 = vsel %vm1656, %v5911, %v5913
        %v5915 = vrot.slane %v5630, 4
        %v5916 = vsel %vm1656, %v5913, %v5915
        %v5917 = vrot.slane %v5635, 4
        %v5918 = vsel %vm1656, %v5915, %v5917
        %v5919 = vrot.slane %v5640, 4
        %v5920 = vsel %vm1656, %v5917, %v5919
        %v5921 = vrot.slane %v5645, 4
        %v5922 = vsel %vm1656, %v5919, %v5921
        %v5923 = vrot.slane %v5650, 4
        %v5924 = vsel %vm1656, %v5921, %v5923
        %v5925 = vrot.slane %v5655, 4
        %v5926 = vsel %vm1656, %v5923, %v5925
        %5927 = vrot.lane.b32.xlu0 %v5908, 40
        %v5928 = vpop.permute.xlu0 %5927
        %5929 = vrot.lane.b32.xlu0 %v5910, 40
        %v5930 = vpop.permute.xlu0 %5929
        %5931 = vrot.lane.b32.xlu0 %v5912, 40
        %v5932 = vpop.permute.xlu0 %5931
        %5933 = vrot.lane.b32.xlu0 %v5914, 40
        %v5934 = vpop.permute.xlu0 %5933
        %5935 = vrot.lane.b32.xlu0 %v5916, 40
        %v5936 = vpop.permute.xlu0 %5935
        %5937 = vrot.lane.b32.xlu0 %v5918, 40
        %v5938 = vpop.permute.xlu0 %5937
        %5939 = vrot.lane.b32.xlu0 %v5920, 40
        %v5940 = vpop.permute.xlu0 %5939
        %5941 = vrot.lane.b32.xlu0 %v5922, 40
        %v5942 = vpop.permute.xlu0 %5941
        %5943 = vrot.lane.b32.xlu0 %v5924, 40
        %v5944 = vpop.permute.xlu0 %5943
        %5945 = vrot.lane.b32.xlu0 %v5926, 40
        %v5946 = vpop.permute.xlu0 %5945
        %5957 = vst.msk [vmem:[#allocation2] sm:$0xff] %vm3901, %v5928
        %5958 = vst.msk [vmem:[#allocation2 + $0x18] sm:$0xff] %vm3901, %v5930
        %5959 = vst.msk [vmem:[#allocation2 + $0x30] sm:$0xff] %vm3901, %v5932
        %5960 = vst.msk [vmem:[#allocation2 + $0x48] sm:$0xff] %vm3901, %v5934
        %5961 = vst.msk [vmem:[#allocation2 + $0x60] sm:$0xff] %vm3901, %v5936
        %5962 = vst.msk [vmem:[#allocation2 + $0x78] sm:$0xff] %vm3901, %v5938
        %5963 = vst.msk [vmem:[#allocation2 + $0x90] sm:$0xff] %vm3901, %v5940
        %5964 = vst.msk [vmem:[#allocation2 + $0xa8] sm:$0xff] %vm3901, %v5942
        %5965 = vst.msk [vmem:[#allocation2 + $0xc0] sm:$0xff] %vm3901, %v5944
        %5966 = vst.msk [vmem:[#allocation2 + $0xd8] sm:$0x3f] %vm3911, %v5946
        %v5968 = vrot.slane %v5660, 4
        %v5969 = vsel %vm1656, %v5925, %v5968
        %5970 = vrot.lane.b32.xlu0 %v5910, 48
        %v5971 = vpop.permute.xlu0 %5970
        %5972 = vrot.lane.b32.xlu0 %v5912, 48
        %v5973 = vpop.permute.xlu0 %5972
        %5974 = vrot.lane.b32.xlu0 %v5914, 48
        %v5975 = vpop.permute.xlu0 %5974
        %5976 = vrot.lane.b32.xlu0 %v5916, 48
        %v5977 = vpop.permute.xlu0 %5976
        %5978 = vrot.lane.b32.xlu0 %v5918, 48
        %v5979 = vpop.permute.xlu0 %5978
        %5980 = vrot.lane.b32.xlu0 %v5920, 48
        %v5981 = vpop.permute.xlu0 %5980
        %5982 = vrot.lane.b32.xlu0 %v5922, 48
        %v5983 = vpop.permute.xlu0 %5982
        %5984 = vrot.lane.b32.xlu0 %v5924, 48
        %v5985 = vpop.permute.xlu0 %5984
        %5986 = vrot.lane.b32.xlu0 %v5926, 48
        %v5987 = vpop.permute.xlu0 %5986
        %5988 = vrot.lane.b32.xlu0 %v5969, 48
        %v5989 = vpop.permute.xlu0 %5988
        %6000 = vst.msk [vmem:[#allocation2] sm:$0xff] %vm3946, %v5971
        %6001 = vst.msk [vmem:[#allocation2 + $0x18] sm:$0xff] %vm3946, %v5973
        %6002 = vst.msk [vmem:[#allocation2 + $0x30] sm:$0xff] %vm3946, %v5975
        %6003 = vst.msk [vmem:[#allocation2 + $0x48] sm:$0xff] %vm3946, %v5977
        %6004 = vst.msk [vmem:[#allocation2 + $0x60] sm:$0xff] %vm3946, %v5979
        %6005 = vst.msk [vmem:[#allocation2 + $0x78] sm:$0xff] %vm3946, %v5981
        %6006 = vst.msk [vmem:[#allocation2 + $0x90] sm:$0xff] %vm3946, %v5983
        %6007 = vst.msk [vmem:[#allocation2 + $0xa8] sm:$0xff] %vm3946, %v5985
        %6008 = vst.msk [vmem:[#allocation2 + $0xc0] sm:$0xff] %vm3946, %v5987
        %6009 = vst.msk [vmem:[#allocation2 + $0xd8] sm:$0x3f] %vm3956, %v5989
        %v6010 = vrot.slane %v5610, 5
        %v6011 = vrot.slane %v5615, 5
        %v6012 = vsel %vm2028, %v6010, %v6011
        %v6013 = vrot.slane %v5620, 5
        %v6014 = vsel %vm2028, %v6011, %v6013
        %v6015 = vrot.slane %v5625, 5
        %v6016 = vsel %vm2028, %v6013, %v6015
        %v6017 = vrot.slane %v5630, 5
        %v6018 = vsel %vm2028, %v6015, %v6017
        %v6019 = vrot.slane %v5635, 5
        %v6020 = vsel %vm2028, %v6017, %v6019
        %v6021 = vrot.slane %v5640, 5
        %v6022 = vsel %vm2028, %v6019, %v6021
        %v6023 = vrot.slane %v5645, 5
        %v6024 = vsel %vm2028, %v6021, %v6023
        %v6025 = vrot.slane %v5650, 5
        %v6026 = vsel %vm2028, %v6023, %v6025
        %v6027 = vrot.slane %v5655, 5
        %v6028 = vsel %vm2028, %v6025, %v6027
        %v6029 = vrot.slane %v5660, 5
        %v6030 = vsel %vm2028, %v6027, %v6029
        %6031 = vrot.lane.b32.xlu0 %v6012, 56
        %v6032 = vpop.permute.xlu0 %6031
        %6033 = vrot.lane.b32.xlu0 %v6014, 56
        %v6034 = vpop.permute.xlu0 %6033
        %6035 = vrot.lane.b32.xlu0 %v6016, 56
        %v6036 = vpop.permute.xlu0 %6035
        %6037 = vrot.lane.b32.xlu0 %v6018, 56
        %v6038 = vpop.permute.xlu0 %6037
        %6039 = vrot.lane.b32.xlu0 %v6020, 56
        %v6040 = vpop.permute.xlu0 %6039
        %6041 = vrot.lane.b32.xlu0 %v6022, 56
        %v6042 = vpop.permute.xlu0 %6041
        %6043 = vrot.lane.b32.xlu0 %v6024, 56
        %v6044 = vpop.permute.xlu0 %6043
        %6045 = vrot.lane.b32.xlu0 %v6026, 56
        %v6046 = vpop.permute.xlu0 %6045
        %6047 = vrot.lane.b32.xlu0 %v6028, 56
        %v6048 = vpop.permute.xlu0 %6047
        %6049 = vrot.lane.b32.xlu0 %v6030, 56
        %v6050 = vpop.permute.xlu0 %6049
        %6061 = vst.msk [vmem:[#allocation2] sm:$0xff] %vm4009, %v6032
        %6062 = vst.msk [vmem:[#allocation2 + $0x18] sm:$0xff] %vm4009, %v6034
        %6063 = vst.msk [vmem:[#allocation2 + $0x30] sm:$0xff] %vm4009, %v6036
        %6064 = vst.msk [vmem:[#allocation2 + $0x48] sm:$0xff] %vm4009, %v6038
        %6065 = vst.msk [vmem:[#allocation2 + $0x60] sm:$0xff] %vm4009, %v6040
        %6066 = vst.msk [vmem:[#allocation2 + $0x78] sm:$0xff] %vm4009, %v6042
        %6067 = vst.msk [vmem:[#allocation2 + $0x90] sm:$0xff] %vm4009, %v6044
        %6068 = vst.msk [vmem:[#allocation2 + $0xa8] sm:$0xff] %vm4009, %v6046
        %6069 = vst.msk [vmem:[#allocation2 + $0xc0] sm:$0xff] %vm4009, %v6048
        %6070 = vst.msk [vmem:[#allocation2 + $0xd8] sm:$0x3f] %vm4019, %v6050
        %v6071 = vrot.slane %v5610, 6
        %v6072 = vrot.slane %v5615, 6
        %v6073 = vsel %vm2248, %v6071, %v6072
        %v6074 = vrot.slane %v5620, 6
        %v6075 = vsel %vm2248, %v6072, %v6074
        %v6076 = vrot.slane %v5625, 6
        %v6077 = vsel %vm2248, %v6074, %v6076
        %v6078 = vrot.slane %v5630, 6
        %v6079 = vsel %vm2248, %v6076, %v6078
        %v6080 = vrot.slane %v5635, 6
        %v6081 = vsel %vm2248, %v6078, %v6080
        %v6082 = vrot.slane %v5640, 6
        %v6083 = vsel %vm2248, %v6080, %v6082
        %v6084 = vrot.slane %v5645, 6
        %v6085 = vsel %vm2248, %v6082, %v6084
        %v6086 = vrot.slane %v5650, 6
        %v6087 = vsel %vm2248, %v6084, %v6086
        %v6088 = vrot.slane %v5655, 6
        %v6089 = vsel %vm2248, %v6086, %v6088
        %v6090 = vrot.slane %v5660, 6
        %v6091 = vsel %vm2248, %v6088, %v6090
        %6092 = vrot.lane.b32.xlu0 %v6073, 64
        %v6093 = vpop.permute.xlu0 %6092
        %6094 = vrot.lane.b32.xlu0 %v6075, 64
        %v6095 = vpop.permute.xlu0 %6094
        %6096 = vrot.lane.b32.xlu0 %v6077, 64
        %v6097 = vpop.permute.xlu0 %6096
        %6098 = vrot.lane.b32.xlu0 %v6079, 64
        %v6099 = vpop.permute.xlu0 %6098
        %6100 = vrot.lane.b32.xlu0 %v6081, 64
        %v6101 = vpop.permute.xlu0 %6100
        %6102 = vrot.lane.b32.xlu0 %v6083, 64
        %v6103 = vpop.permute.xlu0 %6102
        %6104 = vrot.lane.b32.xlu0 %v6085, 64
        %v6105 = vpop.permute.xlu0 %6104
        %6106 = vrot.lane.b32.xlu0 %v6087, 64
        %v6107 = vpop.permute.xlu0 %6106
        %6108 = vrot.lane.b32.xlu0 %v6089, 64
        %v6109 = vpop.permute.xlu0 %6108
        %6110 = vrot.lane.b32.xlu0 %v6091, 64
        %v6111 = vpop.permute.xlu0 %6110
        %6122 = vst.msk [vmem:[#allocation2] sm:$0xff] %vm4072, %v6093
        %6123 = vst.msk [vmem:[#allocation2 + $0x18] sm:$0xff] %vm4072, %v6095
        %6124 = vst.msk [vmem:[#allocation2 + $0x30] sm:$0xff] %vm4072, %v6097
        %6125 = vst.msk [vmem:[#allocation2 + $0x48] sm:$0xff] %vm4072, %v6099
        %6126 = vst.msk [vmem:[#allocation2 + $0x60] sm:$0xff] %vm4072, %v6101
        %6127 = vst.msk [vmem:[#allocation2 + $0x78] sm:$0xff] %vm4072, %v6103
        %6128 = vst.msk [vmem:[#allocation2 + $0x90] sm:$0xff] %vm4072, %v6105
        %6129 = vst.msk [vmem:[#allocation2 + $0xa8] sm:$0xff] %vm4072, %v6107
        %6130 = vst.msk [vmem:[#allocation2 + $0xc0] sm:$0xff] %vm4072, %v6109
        %6131 = vst.msk [vmem:[#allocation2 + $0xd8] sm:$0x3f] %vm4082, %v6111
        %v6132 = vld [vmem:[#allocation2] sm:$0xff]
        %v6133 = vld [vmem:[#allocation2 + $0x18] sm:$0xff]
        %v6134 = vld [vmem:[#allocation2 + $0x30] sm:$0xff]
        %v6135 = vld [vmem:[#allocation2 + $0x48] sm:$0xff]
        %v6136 = vld [vmem:[#allocation2 + $0x60] sm:$0xff]
        %v6137 = vld [vmem:[#allocation2 + $0x78] sm:$0xff]
        %v6138 = vld [vmem:[#allocation2 + $0x90] sm:$0xff]
        %v6139 = vld [vmem:[#allocation2 + $0xa8] sm:$0xff]
        %v6140 = vld [vmem:[#allocation2 + $0xc0] sm:$0xff]
        %v6141 = vld [vmem:[#allocation2 + $0xd8] sm:$0x3f]
        %v6142 = vld [vmem:[#allocation9] sm:$0xff]
        %v6143 = vld [vmem:[#allocation9 + $0x8] sm:$0xff]
        %v6144 = vld [vmem:[#allocation9 + $0x10] sm:$0xff]
        %v6145 = vld [vmem:[#allocation9 + $0x18] sm:$0xff]
        %v6146 = vld [vmem:[#allocation9 + $0x20] sm:$0xff]
        %v6147 = vld [vmem:[#allocation9 + $0x28] sm:$0xff]
        %v6148 = vld [vmem:[#allocation9 + $0x30] sm:$0xff]
        %v6149 = vld [vmem:[#allocation9 + $0x38] sm:$0xff]
        %v6150 = vld [vmem:[#allocation9 + $0x40] sm:$0xff]
        %v6151 = vld [vmem:[#allocation3] sm:$0x1]
        %v6153 = vlaneseq
        %v6154 = vshrl.u32 %v6153, 7
        %v6155 = vsub.s32 0, %v6154
        %v6156 = vrot.slane %v6151, %v6155
        %v6159 = vsel %vm4110, %v6132, 0
        %v6162 = vsel %vm4110, %v6133, 0
        %v6165 = vsel %vm4110, %v6134, 0
        %v6168 = vsel %vm4110, %v6135, 0
        %v6171 = vsel %vm4110, %v6136, 0
        %v6174 = vsel %vm4110, %v6137, 0
        %v6177 = vsel %vm4110, %v6138, 0
        %v6180 = vsel %vm4110, %v6139, 0
        %v6183 = vsel %vm4110, %v6140, 0
        %v6186 = vsel %vm4110, %v6141, 0
        %6188 = vmatprep.subr.mxu0 0.0
        %6189 = vmatpush1.msra.mxu0 0.0
        %6190 = vmatprep.subr.mxu0 0.0
        %6191 = vmatpush1.msra.mxu0 0.0
        %6192 = vmatprep.subr.mxu0 0.0
        %6193 = vmatpush1.msra.mxu0 0.0
        %6194 = vmatprep.subr.mxu0 0.0
        %6195 = vmatpush1.msra.mxu0 0.0
        %6196 = vmatprep.subr.mxu0 0.0
        %6197 = vmatpush1.msra.mxu0 0.0
        %6198 = vmatprep.subr.mxu0 0.0
        %6199 = vmatpush1.msra.mxu0 0.0
        %6200 = vmatprep.subr.mxu0 0.0
        %6201 = vmatpush1.msra.mxu0 0.0
        %6202 = vmatprep.subr.mxu0 0.0
        %6203 = vmatpush1.msra.mxu0 %v6150
        %6204 = vmatprep.subr.mxu0 0.0
        %6205 = vmatpush1.msra.mxu0 %v6149
        %6206 = vmatprep.subr.mxu0 0.0
        %6207 = vmatpush1.msra.mxu0 %v6148
        %6208 = vmatprep.subr.mxu0 0.0
        %6209 = vmatpush1.msra.mxu0 %v6147
        %6210 = vmatprep.subr.mxu0 0.0
        %6211 = vmatpush1.msra.mxu0 %v6146
        %6212 = vmatprep.subr.mxu0 0.0
        %6213 = vmatpush1.msra.mxu0 %v6145
        %6214 = vmatprep.subr.mxu0 0.0
        %6215 = vmatpush1.msra.mxu0 %v6144
        %6216 = vmatprep.subr.mxu0 0.0
        %6217 = vmatpush1.msra.mxu0 %v6143
        %6218 = vmatprep.subr.mxu0 0.0
        %6219 = vmatpush1.msra.mxu0 %v6142
        %6220 = vmatprep.subr.mxu0 0.0
        %6221 = vmatpush2.msra.mxu0 0.0
        %6222 = vmatprep.subr.mxu0 0.0
        %6223 = vmatpush2.msra.mxu0 0.0
        %6224 = vmatprep.subr.mxu0 0.0
        %6225 = vmatpush2.msra.mxu0 0.0
        %6226 = vmatprep.subr.mxu0 0.0
        %6227 = vmatpush2.msra.mxu0 0.0
        %6228 = vmatprep.subr.mxu0 0.0
        %6229 = vmatpush2.msra.mxu0 0.0
        %6230 = vmatprep.subr.mxu0 0.0
        %6231 = vmatpush2.msra.mxu0 0.0
        %6232 = vmatprep.subr.mxu0 0.0
        %6233 = vmatpush2.msra.mxu0 0.0
        %6234 = vmatprep.subr.mxu0 0.0
        %6235 = vmatpush2.msra.mxu0 0.0
        %6236 = vmatprep.subr.mxu0 0.0
        %6237 = vmatpush2.msra.mxu0 0.0
        %6238 = vmatprep.subr.mxu0 0.0
        %6239 = vmatpush2.msra.mxu0 0.0
        %6240 = vmatprep.subr.mxu0 0.0
        %6241 = vmatpush2.msra.mxu0 0.0
        %6242 = vmatprep.subr.mxu0 0.0
        %6243 = vmatpush2.msra.mxu0 0.0
        %6244 = vmatprep.subr.mxu0 0.0
        %6245 = vmatpush2.msra.mxu0 0.0
        %6246 = vmatprep.subr.mxu0 0.0
        %6247 = vmatpush2.msra.mxu0 0.0
        %6248 = vmatprep.subr.mxu0 0.0
        %6249 = vmatpush2.msra.mxu0 0.0
        %6250 = vmatprep.subr.mxu0 0.0
        %6251 = vmatpush2.msra.mxu0 0.0
        %6252 = vmatprep.mubr.f32.mxu0 0.0
        %6253 = vmatmul.mubr.f32.gmra.mxu0 %v6159
        %v6254 = vpop.f32.mrf.mxu0
        %v6255 = vadd.f32 %v6156, %v6254
        %v6256 = vpop.f32.mrf.mxu0
        %6257 = vmatprep.mubr.f32.mxu0 0.0
        %6258 = vmatmul.mubr.f32.gmra.mxu0 %v6162
        %v6259 = vpop.f32.mrf.mxu0
        %v6260 = vadd.f32 %v6156, %v6259
        %v6261 = vpop.f32.mrf.mxu0
        %6262 = vmatprep.mubr.f32.mxu0 0.0
        %6263 = vmatmul.mubr.f32.gmra.mxu0 %v6165
        %v6264 = vpop.f32.mrf.mxu0
        %v6265 = vadd.f32 %v6156, %v6264
        %v6266 = vpop.f32.mrf.mxu0
        %6267 = vmatprep.mubr.f32.mxu0 0.0
        %6268 = vmatmul.mubr.f32.gmra.mxu0 %v6168
        %v6269 = vpop.f32.mrf.mxu0
        %v6270 = vadd.f32 %v6156, %v6269
        %v6271 = vpop.f32.mrf.mxu0
        %6272 = vmatprep.mubr.f32.mxu0 0.0
        %6273 = vmatmul.mubr.f32.gmra.mxu0 %v6171
        %v6274 = vpop.f32.mrf.mxu0
        %v6275 = vadd.f32 %v6156, %v6274
        %v6276 = vpop.f32.mrf.mxu0
        %6277 = vmatprep.mubr.f32.mxu0 0.0
        %6278 = vmatmul.mubr.f32.gmra.mxu0 %v6174
        %v6279 = vpop.f32.mrf.mxu0
        %v6280 = vadd.f32 %v6156, %v6279
        %v6281 = vpop.f32.mrf.mxu0
        %6282 = vmatprep.mubr.f32.mxu0 0.0
        %6283 = vmatmul.mubr.f32.gmra.mxu0 %v6177
        %v6284 = vpop.f32.mrf.mxu0
        %v6285 = vadd.f32 %v6156, %v6284
        %v6286 = vpop.f32.mrf.mxu0
        %6287 = vmatprep.mubr.f32.mxu0 0.0
        %6288 = vmatmul.mubr.f32.gmra.mxu0 %v6180
        %v6289 = vpop.f32.mrf.mxu0
        %v6290 = vadd.f32 %v6156, %v6289
        %v6291 = vpop.f32.mrf.mxu0
        %6292 = vmatprep.mubr.f32.mxu0 0.0
        %6293 = vmatmul.mubr.f32.gmra.mxu0 %v6183
        %v6294 = vpop.f32.mrf.mxu0
        %v6295 = vadd.f32 %v6156, %v6294
        %v6296 = vpop.f32.mrf.mxu0
        %6297 = vmatprep.mubr.f32.mxu0 0.0
        %6298 = vmatmul.mubr.f32.gmra.mxu0 %v6186
        %v6299 = vpop.f32.mrf.mxu0
        %v6300 = vadd.f32 %v6156, %v6299
        %v6301 = vpop.f32.mrf.mxu0
        %6302 = vdwg.mxu0
        %v6303 = vsub.f32 0.0, %v6255
        %v6304 = vsub.f32 0.0, %v6260
        %v6305 = vsub.f32 0.0, %v6265
        %v6306 = vsub.f32 0.0, %v6270
        %v6307 = vsub.f32 0.0, %v6275
        %v6308 = vsub.f32 0.0, %v6280
        %v6309 = vsub.f32 0.0, %v6285
        %v6310 = vsub.f32 0.0, %v6290
        %v6311 = vsub.f32 0.0, %v6295
        %v6312 = vsub.f32 0.0, %v6300
        %v6313 = vmul.f32 %v6303, 1.442695
        %v6314 = vpow.pop %v6313
        %v6315 = vmul.f32 %v6304, 1.442695
        %v6316 = vpow.pop %v6315
        %v6317 = vmul.f32 %v6305, 1.442695
        %v6318 = vpow.pop %v6317
        %v6319 = vmul.f32 %v6306, 1.442695
        %v6320 = vpow.pop %v6319
        %v6321 = vmul.f32 %v6307, 1.442695
        %v6322 = vpow.pop %v6321
        %v6323 = vmul.f32 %v6308, 1.442695
        %v6324 = vpow.pop %v6323
        %v6325 = vmul.f32 %v6309, 1.442695
        %v6326 = vpow.pop %v6325
        %v6327 = vmul.f32 %v6310, 1.442695
        %v6328 = vpow.pop %v6327
        %v6329 = vmul.f32 %v6311, 1.442695
        %v6330 = vpow.pop %v6329
        %v6331 = vmul.f32 %v6312, 1.442695
        %v6332 = vpow.pop %v6331
        %v6333 = vadd.f32 %v6314, 1.0
        %v6334 = vadd.f32 %v6316, 1.0
        %v6335 = vadd.f32 %v6318, 1.0
        %v6336 = vadd.f32 %v6320, 1.0
        %v6337 = vadd.f32 %v6322, 1.0
        %v6338 = vadd.f32 %v6324, 1.0
        %v6339 = vadd.f32 %v6326, 1.0
        %v6340 = vadd.f32 %v6328, 1.0
        %v6341 = vadd.f32 %v6330, 1.0
        %v6342 = vadd.f32 %v6332, 1.0
        %v6343 = vrcp.pop %v6333
        %v6344 = vmul.f32 1.0, %v6343
        %v6345 = vrcp.pop %v6334
        %v6346 = vmul.f32 1.0, %v6345
        %v6347 = vrcp.pop %v6335
        %v6348 = vmul.f32 1.0, %v6347
        %v6349 = vrcp.pop %v6336
        %v6350 = vmul.f32 1.0, %v6349
        %v6351 = vrcp.pop %v6337
        %v6352 = vmul.f32 1.0, %v6351
        %v6353 = vrcp.pop %v6338
        %v6354 = vmul.f32 1.0, %v6353
        %v6355 = vrcp.pop %v6339
        %v6356 = vmul.f32 1.0, %v6355
        %v6357 = vrcp.pop %v6340
        %v6358 = vmul.f32 1.0, %v6357
        %v6359 = vrcp.pop %v6341
        %v6360 = vmul.f32 1.0, %v6359
        %v6361 = vrcp.pop %v6342
        %v6362 = vmul.f32 1.0, %v6361
        %v6363 = vld [vmem:[#allocation17] sm:$0xff]
        %v6364 = vld [vmem:[#allocation17 + $0x8] sm:$0xff]
        %v6365 = vld [vmem:[#allocation17 + $0x10] sm:$0xff]
        %v6366 = vld [vmem:[#allocation17 + $0x18] sm:$0xff]
        %v6367 = vld [vmem:[#allocation17 + $0x20] sm:$0xff]
        %v6368 = vld [vmem:[#allocation17 + $0x28] sm:$0xff]
        %v6369 = vld [vmem:[#allocation17 + $0x30] sm:$0xff]
        %v6370 = vld [vmem:[#allocation17 + $0x38] sm:$0xff]
        %v6371 = vld [vmem:[#allocation17 + $0x40] sm:$0xff]
        %v6372 = vld [vmem:[#allocation17 + $0x48] sm:$0xff]
        %v6373 = vld [vmem:[#allocation17 + $0x50] sm:$0xff]
        %v6374 = vld [vmem:[#allocation17 + $0x58] sm:$0xff]
        %v6375 = vld [vmem:[#allocation17 + $0x60] sm:$0xff]
        %v6376 = vld [vmem:[#allocation17 + $0x68] sm:$0xff]
        %v6377 = vld [vmem:[#allocation17 + $0x70] sm:$0xff]
        %v6378 = vld [vmem:[#allocation17 + $0x78] sm:$0xff]
        %v6379 = vld [vmem:[#allocation17 + $0x80] sm:$0xff]
        %v6380 = vld [vmem:[#allocation17 + $0x88] sm:$0xff]
        %v6381 = vld [vmem:[#allocation17 + $0x90] sm:$0xff]
        %v6382 = vld [vmem:[#allocation17 + $0x98] sm:$0xff]
        %v6383 = vld [vmem:[#allocation17 + $0xa0] sm:$0xff]
        %v6384 = vld [vmem:[#allocation17 + $0xa8] sm:$0xff]
        %v6385 = vld [vmem:[#allocation17 + $0xb0] sm:$0xff]
        %v6386 = vld [vmem:[#allocation17 + $0xb8] sm:$0xff]
        %v6387 = vld [vmem:[#allocation17 + $0xc0] sm:$0xff]
        %v6388 = vld [vmem:[#allocation17 + $0xc8] sm:$0xff]
        %v6389 = vld [vmem:[#allocation17 + $0xd0] sm:$0xff]
        %v6390 = vld [vmem:[#allocation17 + $0xd8] sm:$0xff]
        %v6391 = vld [vmem:[#allocation17 + $0xe0] sm:$0xff]
        %v6392 = vld [vmem:[#allocation17 + $0xe8] sm:$0xff]
        %v6393 = vld [vmem:[#allocation17 + $0xf0] sm:$0xff]
        %v6394 = vld [vmem:[#allocation17 + $0xf8] sm:$0xff]
        %vm6395 = vcmask 637952
        %v6397 = vsel %vm6395, %v6363, 0
        %v6400 = vsel %vm6395, %v6364, 0
        %v6403 = vsel %vm6395, %v6365, 0
        %v6406 = vsel %vm6395, %v6366, 0
        %v6409 = vsel %vm6395, %v6367, 0
        %v6412 = vsel %vm6395, %v6368, 0
        %v6415 = vsel %vm6395, %v6369, 0
        %v6418 = vsel %vm6395, %v6370, 0
        %v6421 = vsel %vm6395, %v6371, 0
        %v6424 = vsel %vm6395, %v6372, 0
        %v6427 = vsel %vm6395, %v6373, 0
        %v6430 = vsel %vm6395, %v6374, 0
        %v6433 = vsel %vm6395, %v6375, 0
        %v6436 = vsel %vm6395, %v6376, 0
        %v6439 = vsel %vm6395, %v6377, 0
        %v6442 = vsel %vm6395, %v6378, 0
        %v6445 = vsel %vm6395, %v6379, 0
        %v6448 = vsel %vm6395, %v6380, 0
        %v6451 = vsel %vm6395, %v6381, 0
        %v6454 = vsel %vm6395, %v6382, 0
        %v6457 = vsel %vm6395, %v6383, 0
        %v6460 = vsel %vm6395, %v6384, 0
        %v6463 = vsel %vm6395, %v6385, 0
        %v6466 = vsel %vm6395, %v6386, 0
        %v6469 = vsel %vm6395, %v6387, 0
        %v6472 = vsel %vm6395, %v6388, 0
        %v6475 = vsel %vm6395, %v6389, 0
        %v6478 = vsel %vm6395, %v6390, 0
        %v6481 = vsel %vm6395, %v6391, 0
        %v6484 = vsel %vm6395, %v6392, 0
        %v6487 = vsel %vm6395, %v6393, 0
        %v6490 = vsel %vm6395, %v6394, 0
        %v6493 = vsel %vm1065, %v6362, 0
        %6495 = vmatprep.subr.mxu0 0.0
        %6496 = vmatpush1.msra.mxu0 0.0
        %6497 = vmatprep.subr.mxu0 0.0
        %6498 = vmatpush1.msra.mxu0 0.0
        %6499 = vmatprep.subr.mxu0 0.0
        %6500 = vmatpush1.msra.mxu0 0.0
        %6501 = vmatprep.subr.mxu0 0.0
        %6502 = vmatpush1.msra.mxu0 0.0
        %6503 = vmatprep.subr.mxu0 0.0
        %6504 = vmatpush1.msra.mxu0 0.0
        %6505 = vmatprep.subr.mxu0 0.0
        %6506 = vmatpush1.msra.mxu0 0.0
        %6507 = vmatprep.subr.mxu0 0.0
        %6508 = vmatpush1.msra.mxu0 %v6493
        %6509 = vmatprep.subr.mxu0 0.0
        %6510 = vmatpush1.msra.mxu0 %v6360
        %6511 = vmatprep.subr.mxu0 0.0
        %6512 = vmatpush1.msra.mxu0 %v6358
        %6513 = vmatprep.subr.mxu0 0.0
        %6514 = vmatpush1.msra.mxu0 %v6356
        %6515 = vmatprep.subr.mxu0 0.0
        %6516 = vmatpush1.msra.mxu0 %v6354
        %6517 = vmatprep.subr.mxu0 0.0
        %6518 = vmatpush1.msra.mxu0 %v6352
        %6519 = vmatprep.subr.mxu0 0.0
        %6520 = vmatpush1.msra.mxu0 %v6350
        %6521 = vmatprep.subr.mxu0 0.0
        %6522 = vmatpush1.msra.mxu0 %v6348
        %6523 = vmatprep.subr.mxu0 0.0
        %6524 = vmatpush1.msra.mxu0 %v6346
        %6525 = vmatprep.subr.mxu0 0.0
        %6526 = vmatpush1.msra.mxu0 %v6344
        %6527 = vmatprep.subr.mxu0 0.0
        %6528 = vmatpush2.msra.mxu0 0.0
        %6529 = vmatprep.subr.mxu0 0.0
        %6530 = vmatpush2.msra.mxu0 0.0
        %6531 = vmatprep.subr.mxu0 0.0
        %6532 = vmatpush2.msra.mxu0 0.0
        %6533 = vmatprep.subr.mxu0 0.0
        %6534 = vmatpush2.msra.mxu0 0.0
        %6535 = vmatprep.subr.mxu0 0.0
        %6536 = vmatpush2.msra.mxu0 0.0
        %6537 = vmatprep.subr.mxu0 0.0
        %6538 = vmatpush2.msra.mxu0 0.0
        %6539 = vmatprep.subr.mxu0 0.0
        %6540 = vmatpush2.msra.mxu0 0.0
        %6541 = vmatprep.subr.mxu0 0.0
        %6542 = vmatpush2.msra.mxu0 0.0
        %6543 = vmatprep.subr.mxu0 0.0
        %6544 = vmatpush2.msra.mxu0 0.0
        %6545 = vmatprep.subr.mxu0 0.0
        %6546 = vmatpush2.msra.mxu0 0.0
        %6547 = vmatprep.subr.mxu0 0.0
        %6548 = vmatpush2.msra.mxu0 0.0
        %6549 = vmatprep.subr.mxu0 0.0
        %6550 = vmatpush2.msra.mxu0 0.0
        %6551 = vmatprep.subr.mxu0 0.0
        %6552 = vmatpush2.msra.mxu0 0.0
        %6553 = vmatprep.subr.mxu0 0.0
        %6554 = vmatpush2.msra.mxu0 0.0
        %6555 = vmatprep.subr.mxu0 0.0
        %6556 = vmatpush2.msra.mxu0 0.0
        %6557 = vmatprep.subr.mxu0 0.0
        %6558 = vmatpush2.msra.mxu0 0.0
        %6559 = vmatprep.mubr.f32.mxu0 0.0
        %6560 = vmatmul.mubr.f32.gmra.mxu0 %v6397
        %v6561 = vpop.f32.mrf.mxu0
        %v6562 = vadd.f32 0.0, %v6561
        %v6563 = vpop.f32.mrf.mxu0
        %6564 = vmatprep.mubr.f32.mxu0 0.0
        %6565 = vmatmul.mubr.f32.gmra.mxu0 %v6400
        %v6566 = vpop.f32.mrf.mxu0
        %v6567 = vadd.f32 0.0, %v6566
        %v6568 = vpop.f32.mrf.mxu0
        %6569 = vmatprep.mubr.f32.mxu0 0.0
        %6570 = vmatmul.mubr.f32.gmra.mxu0 %v6403
        %v6571 = vpop.f32.mrf.mxu0
        %v6572 = vadd.f32 0.0, %v6571
        %v6573 = vpop.f32.mrf.mxu0
        %6574 = vmatprep.mubr.f32.mxu0 0.0
        %6575 = vmatmul.mubr.f32.gmra.mxu0 %v6406
        %v6576 = vpop.f32.mrf.mxu0
        %v6577 = vadd.f32 0.0, %v6576
        %v6578 = vpop.f32.mrf.mxu0
        %6579 = vmatprep.mubr.f32.mxu0 0.0
        %6580 = vmatmul.mubr.f32.gmra.mxu0 %v6409
        %v6581 = vpop.f32.mrf.mxu0
        %v6582 = vadd.f32 0.0, %v6581
        %v6583 = vpop.f32.mrf.mxu0
        %6584 = vmatprep.mubr.f32.mxu0 0.0
        %6585 = vmatmul.mubr.f32.gmra.mxu0 %v6412
        %v6586 = vpop.f32.mrf.mxu0
        %v6587 = vadd.f32 0.0, %v6586
        %v6588 = vpop.f32.mrf.mxu0
        %6589 = vmatprep.mubr.f32.mxu0 0.0
        %6590 = vmatmul.mubr.f32.gmra.mxu0 %v6415
        %v6591 = vpop.f32.mrf.mxu0
        %v6592 = vadd.f32 0.0, %v6591
        %v6593 = vpop.f32.mrf.mxu0
        %6594 = vmatprep.mubr.f32.mxu0 0.0
        %6595 = vmatmul.mubr.f32.gmra.mxu0 %v6418
        %v6596 = vpop.f32.mrf.mxu0
        %v6597 = vadd.f32 0.0, %v6596
        %v6598 = vpop.f32.mrf.mxu0
        %6599 = vmatprep.mubr.f32.mxu0 0.0
        %6600 = vmatmul.mubr.f32.gmra.mxu0 %v6421
        %v6601 = vpop.f32.mrf.mxu0
        %v6602 = vadd.f32 0.0, %v6601
        %v6603 = vpop.f32.mrf.mxu0
        %6604 = vmatprep.mubr.f32.mxu0 0.0
        %6605 = vmatmul.mubr.f32.gmra.mxu0 %v6424
        %v6606 = vpop.f32.mrf.mxu0
        %v6607 = vadd.f32 0.0, %v6606
        %v6608 = vpop.f32.mrf.mxu0
        %6609 = vmatprep.mubr.f32.mxu0 0.0
        %6610 = vmatmul.mubr.f32.gmra.mxu0 %v6427
        %v6611 = vpop.f32.mrf.mxu0
        %v6612 = vadd.f32 0.0, %v6611
        %v6613 = vpop.f32.mrf.mxu0
        %6614 = vmatprep.mubr.f32.mxu0 0.0
        %6615 = vmatmul.mubr.f32.gmra.mxu0 %v6430
        %v6616 = vpop.f32.mrf.mxu0
        %v6617 = vadd.f32 0.0, %v6616
        %v6618 = vpop.f32.mrf.mxu0
        %6619 = vmatprep.mubr.f32.mxu0 0.0
        %6620 = vmatmul.mubr.f32.gmra.mxu0 %v6433
        %v6621 = vpop.f32.mrf.mxu0
        %v6622 = vadd.f32 0.0, %v6621
        %v6623 = vpop.f32.mrf.mxu0
        %6624 = vmatprep.mubr.f32.mxu0 0.0
        %6625 = vmatmul.mubr.f32.gmra.mxu0 %v6436
        %v6626 = vpop.f32.mrf.mxu0
        %v6627 = vadd.f32 0.0, %v6626
        %v6628 = vpop.f32.mrf.mxu0
        %6629 = vmatprep.mubr.f32.mxu0 0.0
        %6630 = vmatmul.mubr.f32.gmra.mxu0 %v6439
        %v6631 = vpop.f32.mrf.mxu0
        %v6632 = vadd.f32 0.0, %v6631
        %v6633 = vpop.f32.mrf.mxu0
        %6634 = vmatprep.mubr.f32.mxu0 0.0
        %6635 = vmatmul.mubr.f32.gmra.mxu0 %v6442
        %v6636 = vpop.f32.mrf.mxu0
        %v6637 = vadd.f32 0.0, %v6636
        %v6638 = vpop.f32.mrf.mxu0
        %6639 = vmatprep.mubr.f32.mxu0 0.0
        %6640 = vmatmul.mubr.f32.gmra.mxu0 %v6445
        %v6641 = vpop.f32.mrf.mxu0
        %v6642 = vadd.f32 0.0, %v6641
        %v6643 = vpop.f32.mrf.mxu0
        %6644 = vmatprep.mubr.f32.mxu0 0.0
        %6645 = vmatmul.mubr.f32.gmra.mxu0 %v6448
        %v6646 = vpop.f32.mrf.mxu0
        %v6647 = vadd.f32 0.0, %v6646
        %v6648 = vpop.f32.mrf.mxu0
        %6649 = vmatprep.mubr.f32.mxu0 0.0
        %6650 = vmatmul.mubr.f32.gmra.mxu0 %v6451
        %v6651 = vpop.f32.mrf.mxu0
        %v6652 = vadd.f32 0.0, %v6651
        %v6653 = vpop.f32.mrf.mxu0
        %6654 = vmatprep.mubr.f32.mxu0 0.0
        %6655 = vmatmul.mubr.f32.gmra.mxu0 %v6454
        %v6656 = vpop.f32.mrf.mxu0
        %v6657 = vadd.f32 0.0, %v6656
        %v6658 = vpop.f32.mrf.mxu0
        %6659 = vmatprep.mubr.f32.mxu0 0.0
        %6660 = vmatmul.mubr.f32.gmra.mxu0 %v6457
        %v6661 = vpop.f32.mrf.mxu0
        %v6662 = vadd.f32 0.0, %v6661
        %v6663 = vpop.f32.mrf.mxu0
        %6664 = vmatprep.mubr.f32.mxu0 0.0
        %6665 = vmatmul.mubr.f32.gmra.mxu0 %v6460
        %v6666 = vpop.f32.mrf.mxu0
        %v6667 = vadd.f32 0.0, %v6666
        %v6668 = vpop.f32.mrf.mxu0
        %6669 = vmatprep.mubr.f32.mxu0 0.0
        %6670 = vmatmul.mubr.f32.gmra.mxu0 %v6463
        %v6671 = vpop.f32.mrf.mxu0
        %v6672 = vadd.f32 0.0, %v6671
        %v6673 = vpop.f32.mrf.mxu0
        %6674 = vmatprep.mubr.f32.mxu0 0.0
        %6675 = vmatmul.mubr.f32.gmra.mxu0 %v6466
        %v6676 = vpop.f32.mrf.mxu0
        %v6677 = vadd.f32 0.0, %v6676
        %v6678 = vpop.f32.mrf.mxu0
        %6679 = vmatprep.mubr.f32.mxu0 0.0
        %6680 = vmatmul.mubr.f32.gmra.mxu0 %v6469
        %v6681 = vpop.f32.mrf.mxu0
        %v6682 = vadd.f32 0.0, %v6681
        %v6683 = vpop.f32.mrf.mxu0
        %6684 = vmatprep.mubr.f32.mxu0 0.0
        %6685 = vmatmul.mubr.f32.gmra.mxu0 %v6472
        %v6686 = vpop.f32.mrf.mxu0
        %v6687 = vadd.f32 0.0, %v6686
        %v6688 = vpop.f32.mrf.mxu0
        %6689 = vmatprep.mubr.f32.mxu0 0.0
        %6690 = vmatmul.mubr.f32.gmra.mxu0 %v6475
        %v6691 = vpop.f32.mrf.mxu0
        %v6692 = vadd.f32 0.0, %v6691
        %v6693 = vpop.f32.mrf.mxu0
        %6694 = vmatprep.mubr.f32.mxu0 0.0
        %6695 = vmatmul.mubr.f32.gmra.mxu0 %v6478
        %v6696 = vpop.f32.mrf.mxu0
        %v6697 = vadd.f32 0.0, %v6696
        %v6698 = vpop.f32.mrf.mxu0
        %6699 = vmatprep.mubr.f32.mxu0 0.0
        %6700 = vmatmul.mubr.f32.gmra.mxu0 %v6481
        %v6701 = vpop.f32.mrf.mxu0
        %v6702 = vadd.f32 0.0, %v6701
        %v6703 = vpop.f32.mrf.mxu0
        %6704 = vmatprep.mubr.f32.mxu0 0.0
        %6705 = vmatmul.mubr.f32.gmra.mxu0 %v6484
        %v6706 = vpop.f32.mrf.mxu0
        %v6707 = vadd.f32 0.0, %v6706
        %v6708 = vpop.f32.mrf.mxu0
        %6709 = vmatprep.mubr.f32.mxu0 0.0
        %6710 = vmatmul.mubr.f32.gmra.mxu0 %v6487
        %v6711 = vpop.f32.mrf.mxu0
        %v6712 = vadd.f32 0.0, %v6711
        %v6713 = vpop.f32.mrf.mxu0
        %6714 = vmatprep.mubr.f32.mxu0 0.0
        %6715 = vmatmul.mubr.f32.gmra.mxu0 %v6490
        %v6716 = vpop.f32.mrf.mxu0
        %v6717 = vadd.f32 0.0, %v6716
        %v6718 = vpop.f32.mrf.mxu0
        %6719 = vdwg.mxu0
        %6720 = vst.msk [vmem:[%s731] sm:$0xff] %vm773, %v6562
        %6721 = vst.msk [vmem:[%s731 + $0x8] sm:$0xff] %vm773, %v6567
        %6722 = vst.msk [vmem:[%s731 + $0x10] sm:$0xff] %vm773, %v6572
        %6723 = vst.msk [vmem:[%s731 + $0x18] sm:$0xff] %vm773, %v6577
        %6724 = vst.msk [vmem:[%s731 + $0x20] sm:$0xff] %vm773, %v6582
        %6725 = vst.msk [vmem:[%s731 + $0x28] sm:$0xff] %vm773, %v6587
        %6726 = vst.msk [vmem:[%s731 + $0x30] sm:$0xff] %vm773, %v6592
        %6727 = vst.msk [vmem:[%s731 + $0x38] sm:$0xff] %vm773, %v6597
        %6728 = vst.msk [vmem:[%s731 + $0x40] sm:$0xff] %vm773, %v6602
        %6729 = vst.msk [vmem:[%s731 + $0x48] sm:$0xff] %vm773, %v6607
        %6730 = vst.msk [vmem:[%s731 + $0x50] sm:$0xff] %vm773, %v6612
        %6731 = vst.msk [vmem:[%s731 + $0x58] sm:$0xff] %vm773, %v6617
        %6732 = vst.msk [vmem:[%s731 + $0x60] sm:$0xff] %vm773, %v6622
        %6733 = vst.msk [vmem:[%s731 + $0x68] sm:$0xff] %vm773, %v6627
        %6734 = vst.msk [vmem:[%s731 + $0x70] sm:$0xff] %vm773, %v6632
        %6735 = vst.msk [vmem:[%s731 + $0x78] sm:$0xff] %vm773, %v6637
        %6736 = vst.msk [vmem:[%s731 + $0x80] sm:$0xff] %vm773, %v6642
        %6737 = vst.msk [vmem:[%s731 + $0x88] sm:$0xff] %vm773, %v6647
        %6738 = vst.msk [vmem:[%s731 + $0x90] sm:$0xff] %vm773, %v6652
        %6739 = vst.msk [vmem:[%s731 + $0x98] sm:$0xff] %vm773, %v6657
        %6740 = vst.msk [vmem:[%s731 + $0xa0] sm:$0xff] %vm773, %v6662
        %6741 = vst.msk [vmem:[%s731 + $0xa8] sm:$0xff] %vm773, %v6667
        %6742 = vst.msk [vmem:[%s731 + $0xb0] sm:$0xff] %vm773, %v6672
        %6743 = vst.msk [vmem:[%s731 + $0xb8] sm:$0xff] %vm773, %v6677
        %6744 = vst.msk [vmem:[%s731 + $0xc0] sm:$0xff] %vm773, %v6682
        %6745 = vst.msk [vmem:[%s731 + $0xc8] sm:$0xff] %vm773, %v6687
        %6746 = vst.msk [vmem:[%s731 + $0xd0] sm:$0xff] %vm773, %v6692
        %6747 = vst.msk [vmem:[%s731 + $0xd8] sm:$0xff] %vm773, %v6697
        %6748 = vst.msk [vmem:[%s731 + $0xe0] sm:$0xff] %vm773, %v6702
        %6749 = vst.msk [vmem:[%s731 + $0xe8] sm:$0xff] %vm773, %v6707
        %6750 = vst.msk [vmem:[%s731 + $0xf0] sm:$0xff] %vm773, %v6712
        %6751 = vst.msk [vmem:[%s731 + $0xf8] sm:$0xff] %vm773, %v6717
        %p6752 = scmp.lt.s32.totalorder %s37, 1
        %s6753 = scalar_select %p6752, %s37, 1
        %s6754 = smul.addr %s6753, 32
        %s6755 = smul.addr %s6754, 8
        %s6756 = scalar_lea.vmem %s19, %s6755
        // Predicated region
        $region133: #{autoencoder_forward.1} parent=95 // pred_check
          %p6757 = pneg %p459
        $region134: #{autoencoder_forward.1} parent=95 // pred_check_branch
          %6759 = sbr.rel (%p6757) target = $region136
        $region135: #{autoencoder_forward.1} parent=95 // pred_region
          _
        $region136: #{autoencoder_forward.1} parent=95 // pred_fallthru
          _
      $region96: #{autoencoder_forward.1} parent=5 // pred_fallthru
        _
      %p6760 = scmp.le.s32.totalorder 2, %s32
      // Predicated region
      $region137: #{autoencoder_forward.1} parent=5 // pred_check
        %p6761 = pneg %p6760
      $region138: #{autoencoder_forward.1} parent=5 // pred_check_branch
        %6763 = sbr.rel (%p6761) target = $region140
      $region139: #{autoencoder_forward.1} parent=5 // pred_region
        %s6764 = ssub.s32 %s32, 2
        // Predicated region
        $region141: #{autoencoder_forward.1} parent=139 // pred_check
          %p6765 = pneg %p465
        $region142: #{autoencoder_forward.1} parent=139 // pred_check_branch
          %6767 = sbr.rel (%p6765) target = $region144
        $region143: #{autoencoder_forward.1} parent=139 // pred_region
          %p6768 = scmp.lt.s32.totalorder %s38, 1
          %s6769 = scalar_select %p6768, %s38, 1
          %s6770 = smul.addr %s6769, 32
          %s6771 = smul.addr %s6770, 8
          %s6772 = scalar_lea.vmem %s19, %s6771
        $region144: #{autoencoder_forward.1} parent=139 // pred_fallthru
          _
      $region140: #{autoencoder_forward.1} parent=5 // pred_fallthru
        _
    $region6: #{autoencoder_forward.1} parent=1 // loop_footer
      %s36 = sadd.s32 1, %s32
    $region7: #{autoencoder_forward.1} parent=1 // loop_footer_branch
      %31 = sbr.rel target = $region3
    $region8: #{autoencoder_forward.1} parent=1 // loop_exit
      _
    %6773 = vsyncpa [#allocation5], 1
    %s6774 = scalar_lea.sflag [#allocation5], 1
    %6775 = vsyncpa %s6774, 1
    %6776 = vsyncpa [#allocation7], 1
    %6777 = vsyncpa [#allocation10], 1
    %6778 = vsyncpa [#allocation13], 1
    %6779 = vsyncpa [#allocation16], 1

</llo_original>
